<compile_context>
chip_gen: v7x
topology: tpu7x:2x2x1
jax: 0.10.0
libtpu: 0.0.40
codegen_flags: <defaults>
</compile_context>

<pallas_src>
import functools

import jax
import jax.numpy as jnp
from jax.experimental import pallas as pl
from jax.experimental.pallas import tpu as pltpu

C_PAD = 128      # lane-dense channel width used inside the fused kernel
MAX_K = 8        # largest conv kernel size (kss[0])
NEG_INF = -1e30  # bias for padded (non-existent) output classes


def _vmem_spec():
    return pl.BlockSpec(memory_space=pltpu.MemorySpace.VMEM)


# ------------------------------ fused kernel ---------------------------------


def _conv_bn(x, w_ref, scale_ref, bias_ref, pad_ref, ks, relu):
    """Conv1d('same', ks) + folded-BN affine + optional ReLU (NLC layout).

    x:         (N, L, C)  f32 value
    w_ref:     (ks, C, C) bf16 weights (channel-padded)
    scale_ref: (1, C)     f32 folded BN scale
    bias_ref:  (1, C)     f32 folded BN bias (includes conv bias)
    pad_ref:   (N, L + MAX_K - 1, C) bf16 VMEM scratch for 'same' padding
    """
    N, L, C = x.shape
    Cout = w_ref.shape[2]
    xb = x.astype(jnp.bfloat16)

    if ks == 1:
        # 1x1 conv: single (N*L, C) x (C, Cout) MXU matmul, no padding needed.
        acc = jnp.dot(xb.reshape(N * L, C), w_ref[0],
                      preferred_element_type=jnp.float32)
    else:
        pad_left = (ks - 1) // 2  # PyTorch 'same': left = (K-1)//2, right = K-1-left
        pad_ref[...] = jnp.zeros(pad_ref.shape, pad_ref.dtype)
        pad_ref[:, pad_left:pad_left + L, :] = xb
        acc = jnp.zeros((N * L, Cout), jnp.float32)
        for k in range(ks):  # conv = sum of ks shifted batched MXU matmuls
            xk = pad_ref[:, k:k + L, :].reshape(N * L, C)
            acc = acc + jnp.dot(xk, w_ref[k],
                                preferred_element_type=jnp.float32)

    y = acc.reshape(N, L, Cout) * scale_ref[...] + bias_ref[...]
    if relu:
        y = jnp.maximum(y, 0.0)
    return y


def resnet_kernel(*refs, kss, shortcut_is_conv, c_out):
    """Entire ResNet forward in one kernel.

    Ref order: x, [per ResBlock: 3x(w, scale, bias), shortcut refs],
               fc_w, fc_b, out_ref, pad_scratch.
    """
    refs = list(refs)
    pad_ref = refs.pop()      # VMEM scratch (last positional arg)
    out_ref = refs.pop()      # output ref
    it = iter(refs)

    x = next(it)[...].astype(jnp.float32)          # (N, L, C_PAD)

    for is_conv_sc in shortcut_is_conv:
        res = x
        # three ConvBlocks (first two with ReLU, third without)
        for li, ks in enumerate(kss):
            w, s, b = next(it), next(it), next(it)
            x = _conv_bn(x, w, s, b, pad_ref, ks, relu=(li < len(kss) - 1))
        # shortcut: conv1x1+BN (channel change) or plain BN affine
        if is_conv_sc:
            w, s, b = next(it), next(it), next(it)
            sc = _conv_bn(res, w, s, b, pad_ref, 1, relu=False)
        else:
            s, b = next(it), next(it)
            sc = res * s[...] + b[...]
        # fused residual add + ReLU
        x = jnp.maximum(x + sc, 0.0)

    # GAP -> Linear -> softmax epilogue (padded classes have bias NEG_INF)
    fcw, fcb = next(it), next(it)
    pooled = jnp.mean(x, axis=1)                                   # (N, C_PAD)
    logits = jnp.dot(pooled, fcw[...],
                     preferred_element_type=jnp.float32) + fcb[...]
    m = jnp.max(logits, axis=-1, keepdims=True)
    e = jnp.exp(logits - m)
    probs = e / jnp.sum(e, axis=-1, keepdims=True)
    out_ref[...] = probs[:, :c_out].astype(out_ref.dtype)


# ------------------------------ host wrapper ----------------------------------


def resnet_forward(x_ncl, params):
    """x_ncl: (N, c_in, L) PyTorch layout -> (N, c_out) softmax probabilities."""
    N, c_in, L = x_ncl.shape
    c_out = params["c_out"]
    kss = params["kss"]
    assert max(kss) <= MAX_K

    # NCL -> NLC, pad channels to lane-dense 128, cast to bf16 (one tiny pad).
    x = jnp.transpose(x_ncl, (0, 2, 1))
    x = jnp.pad(x, ((0, 0), (0, 0), (0, C_PAD - c_in))).astype(jnp.bfloat16)

    inputs = [x]
    shortcut_is_conv = []
    for blk in params["resblocks"]:
        for cb in blk["convs"]:
            inputs += [cb["w"], cb["scale"], cb["bias"]]
        sc = blk["shortcut"]
        if sc["type"] == "conv":
            shortcut_is_conv.append(True)
            inputs += [sc["w"], sc["scale"], sc["bias"]]
        else:
            shortcut_is_conv.append(False)
            inputs += [sc["scale"], sc["bias"]]
    inputs += [params["fc_w"], params["fc_b"]]

    kernel = functools.partial(
        resnet_kernel, kss=kss, shortcut_is_conv=tuple(shortcut_is_conv),
        c_out=c_out)

    return pl.pallas_call(
        kernel,
        out_shape=jax.ShapeDtypeStruct((N, c_out), jnp.float32),
        in_specs=[_vmem_spec()] * len(inputs),
        out_specs=_vmem_spec(),
        scratch_shapes=[pltpu.VMEM((N, L + MAX_K - 1, C_PAD), jnp.bfloat16)],
    )(*inputs)


# ----------------------------- parameter init ---------------------------------


def _fold_bn(conv_bias, gamma, beta, mean, var, eps=1e-5):
    scale = gamma / jnp.sqrt(var + eps)
    bias = beta + (conv_bias - mean) * scale
    return scale, bias


def _pad_channels(a, axis, target):
    pad = [(0, 0)] * a.ndim
    pad[axis] = (0, target - a.shape[axis])
    return jnp.pad(a, pad)


def init_conv_block(key, ni, nf, ks):
    k1, k2, k3, k4, k5, k6 = jax.random.split(key, 6)
    bound = 1.0 / jnp.sqrt(float(ni * ks))
    w = jax.random.uniform(k1, (ks, ni, nf), jnp.float32, -bound, bound)
    conv_b = jax.random.uniform(k2, (nf,), jnp.float32, -bound, bound)
    gamma = jax.random.uniform(k3, (nf,), jnp.float32, 0.5, 1.5)
    beta = jax.random.uniform(k4, (nf,), jnp.float32, -0.5, 0.5)
    mean = 0.1 * jax.random.normal(k5, (nf,), jnp.float32)
    var = jax.random.uniform(k6, (nf,), jnp.float32, 0.5, 1.5)
    scale, bias = _fold_bn(conv_b, gamma, beta, mean, var)
    # channel-pad to 128 lanes; padded in/out channels carry exact zeros
    w = _pad_channels(_pad_channels(w, 1, C_PAD), 2, C_PAD).astype(jnp.bfloat16)
    scale = _pad_channels(scale.reshape(1, nf), 1, C_PAD)
    bias = _pad_channels(bias.reshape(1, nf), 1, C_PAD)
    return {"w": w, "scale": scale, "bias": bias}


def init_bn_shortcut(key, nf):
    k1, k2, k3, k4 = jax.random.split(key, 4)
    gamma = jax.random.uniform(k1, (nf,), jnp.float32, 0.5, 1.5)
    beta = jax.random.uniform(k2, (nf,), jnp.float32, -0.5, 0.5)
    mean = 0.1 * jax.random.normal(k3, (nf,), jnp.float32)
    var = jax.random.uniform(k4, (nf,), jnp.float32, 0.5, 1.5)
    scale, bias = _fold_bn(jnp.zeros((nf,), jnp.float32), gamma, beta, mean, var)
    return {"type": "bn",
            "scale": _pad_channels(scale.reshape(1, nf), 1, C_PAD),
            "bias": _pad_channels(bias.reshape(1, nf), 1, C_PAD)}


def init_res_block(key, ni, nf, kss=(8, 5, 3)):
    k1, k2, k3, k4 = jax.random.split(key, 4)
    convs = [init_conv_block(k1, ni, nf, kss[0]),
             init_conv_block(k2, nf, nf, kss[1]),
             init_conv_block(k3, nf, nf, kss[2])]
    if ni == nf:
        shortcut = init_bn_shortcut(k4, ni)
    else:
        cb = init_conv_block(k4, ni, nf, 1)
        shortcut = {"type": "conv", **cb}
    return {"convs": convs, "shortcut": shortcut}


def init_resnet(key, c_in, c_out, layers=(64, 128, 128), kss=(8, 5, 3)):
    assert max(layers) <= C_PAD and c_out <= C_PAD and c_in <= C_PAD
    k1, k2, k3, k4, k5 = jax.random.split(key, 5)
    resblocks = [init_res_block(k1, c_in, layers[0], kss),
                 init_res_block(k2, layers[0], layers[1], kss),
                 init_res_block(k3, layers[1], layers[2], kss)]
    bound = 1.0 / jnp.sqrt(float(layers[-1]))
    fc_w = jax.random.uniform(k4, (layers[-1], c_out), jnp.float32, -bound, bound)
    fc_b = jax.random.uniform(k5, (c_out,), jnp.float32, -bound, bound)
    fc_w = _pad_channels(_pad_channels(fc_w, 0, C_PAD), 1, C_PAD)
    fc_b = jnp.full((1, C_PAD), NEG_INF, jnp.float32).at[0, :c_out].set(fc_b)
    return {"resblocks": resblocks, "fc_w": fc_w, "fc_b": fc_b,
            "kss": kss, "c_out": c_out}


# ---------------------------------- main ---------------------------------------


if __name__ == "__main__":
    key = jax.random.PRNGKey(0)
    kp, kx = jax.random.split(key)

    N, c_in, L, c_out = 2, 4, 16, 6
    params = init_resnet(kp, c_in, c_out, layers=(64, 128, 128))

    x = jax.random.normal(kx, (N, c_in, L), jnp.float32)  # PyTorch NCL layout

    out = resnet_forward(x, params)
    out = jax.block_until_ready(out)

    assert out.shape == (N, c_out), out.shape
    # softmax rows sum to 1
    assert jnp.allclose(jnp.sum(out, axis=-1), 1.0, atol=1e-5)
    assert bool(jnp.all(out >= 0.0))

    print("KERNEL_OK")
</pallas_src>

<mosaic_0001>
module attributes {stable_mosaic.version = 11 : i64} {
  func.func @resnet_kernel(%arg0: memref<2x16x128xbf16, #tpu.memory_space<vmem>>, %arg1: memref<8x128x128xbf16, #tpu.memory_space<vmem>>, %arg2: memref<1x128xf32, #tpu.memory_space<vmem>>, %arg3: memref<1x128xf32, #tpu.memory_space<vmem>>, %arg4: memref<5x128x128xbf16, #tpu.memory_space<vmem>>, %arg5: memref<1x128xf32, #tpu.memory_space<vmem>>, %arg6: memref<1x128xf32, #tpu.memory_space<vmem>>, %arg7: memref<3x128x128xbf16, #tpu.memory_space<vmem>>, %arg8: memref<1x128xf32, #tpu.memory_space<vmem>>, %arg9: memref<1x128xf32, #tpu.memory_space<vmem>>, %arg10: memref<1x128x128xbf16, #tpu.memory_space<vmem>>, %arg11: memref<1x128xf32, #tpu.memory_space<vmem>>, %arg12: memref<1x128xf32, #tpu.memory_space<vmem>>, %arg13: memref<8x128x128xbf16, #tpu.memory_space<vmem>>, %arg14: memref<1x128xf32, #tpu.memory_space<vmem>>, %arg15: memref<1x128xf32, #tpu.memory_space<vmem>>, %arg16: memref<5x128x128xbf16, #tpu.memory_space<vmem>>, %arg17: memref<1x128xf32, #tpu.memory_space<vmem>>, %arg18: memref<1x128xf32, #tpu.memory_space<vmem>>, %arg19: memref<3x128x128xbf16, #tpu.memory_space<vmem>>, %arg20: memref<1x128xf32, #tpu.memory_space<vmem>>, %arg21: memref<1x128xf32, #tpu.memory_space<vmem>>, %arg22: memref<1x128x128xbf16, #tpu.memory_space<vmem>>, %arg23: memref<1x128xf32, #tpu.memory_space<vmem>>, %arg24: memref<1x128xf32, #tpu.memory_space<vmem>>, %arg25: memref<8x128x128xbf16, #tpu.memory_space<vmem>>, %arg26: memref<1x128xf32, #tpu.memory_space<vmem>>, %arg27: memref<1x128xf32, #tpu.memory_space<vmem>>, %arg28: memref<5x128x128xbf16, #tpu.memory_space<vmem>>, %arg29: memref<1x128xf32, #tpu.memory_space<vmem>>, %arg30: memref<1x128xf32, #tpu.memory_space<vmem>>, %arg31: memref<3x128x128xbf16, #tpu.memory_space<vmem>>, %arg32: memref<1x128xf32, #tpu.memory_space<vmem>>, %arg33: memref<1x128xf32, #tpu.memory_space<vmem>>, %arg34: memref<1x128xf32, #tpu.memory_space<vmem>>, %arg35: memref<1x128xf32, #tpu.memory_space<vmem>>, %arg36: memref<128x128xf32, #tpu.memory_space<vmem>>, %arg37: memref<1x128xf32, #tpu.memory_space<vmem>>, %arg38: memref<2x6xf32, #tpu.memory_space<vmem>>, %arg39: memref<2x23x128xbf16, #tpu.memory_space<vmem>>) attributes {dimension_semantics = [], scalar_prefetch = 0 : i64, scratch_operands = 1 : i64, tpu.core_type = #tpu.core_type<tc>} {
    %c0 = arith.constant 0 : index
    %c0_0 = arith.constant 0 : index
    %c0_1 = arith.constant 0 : index
    %0 = vector.load %arg0[%c0, %c0_0, %c0_1] : memref<2x16x128xbf16, #tpu.memory_space<vmem>>, vector<2x16x128xbf16>
    %1 = arith.extf %0 : vector<2x16x128xbf16> to vector<2x16x128xf32>
    %2 = arith.truncf %1 : vector<2x16x128xf32> to vector<2x16x128xbf16>
    %cst = arith.constant 0.000000e+00 : bf16
    %3 = vector.broadcast %cst : bf16 to vector<2x23x128xbf16>
    %c0_2 = arith.constant 0 : index
    %c0_3 = arith.constant 0 : index
    %c0_4 = arith.constant 0 : index
    %4 = vector.load %arg39[%c0_2, %c0_3, %c0_4] : memref<2x23x128xbf16, #tpu.memory_space<vmem>>, vector<2x23x128xbf16>
    tpu.vector_store %arg39[%c0_2, %c0_3, %c0_4], %3 {strides = array<i32>} : memref<2x23x128xbf16, #tpu.memory_space<vmem>>, vector<2x23x128xbf16>,
    %c0_5 = arith.constant 0 : index
    %c3 = arith.constant 3 : index
    %c0_6 = arith.constant 0 : index
    %5 = vector.load %arg39[%c0_5, %c3, %c0_6] : memref<2x23x128xbf16, #tpu.memory_space<vmem>>, vector<2x16x128xbf16>
    tpu.vector_store %arg39[%c0_5, %c3, %c0_6], %2 {strides = array<i32>} : memref<2x23x128xbf16, #tpu.memory_space<vmem>>, vector<2x16x128xbf16>,
    %cst_7 = arith.constant 0.000000e+00 : f32
    %6 = vector.broadcast %cst_7 : f32 to vector<32x128xf32>
    %c0_8 = arith.constant 0 : index
    %c0_9 = arith.constant 0 : index
    %c0_10 = arith.constant 0 : index
    %7 = vector.load %arg39[%c0_8, %c0_9, %c0_10] : memref<2x23x128xbf16, #tpu.memory_space<vmem>>, vector<2x16x128xbf16>
    %8 = vector.shape_cast %7 : vector<2x16x128xbf16> to vector<32x128xbf16>
    %c0_11 = arith.constant 0 : index
    %c0_12 = arith.constant 0 : index
    %c0_13 = arith.constant 0 : index
    %9 = vector.load %arg1[%c0_11, %c0_12, %c0_13] : memref<8x128x128xbf16, #tpu.memory_space<vmem>>, vector<1x128x128xbf16>
    %10 = vector.shape_cast %9 : vector<1x128x128xbf16> to vector<128x128xbf16>
    %cst_14 = arith.constant dense<0.000000e+00> : vector<32x128xf32>
    %11 = tpu.matmul %8, %10, %cst_14 {dimension_numbers = #tpu.dot_dimension_numbers<[1], [0], [0], [1], [0, 0, 1, 1], [], []>} : vector<32x128xbf16>, vector<128x128xbf16>, vector<32x128xf32> -> vector<32x128xf32>
    %12 = arith.addf %6, %11 : vector<32x128xf32>
    %c0_15 = arith.constant 0 : index
    %c1 = arith.constant 1 : index
    %c0_16 = arith.constant 0 : index
    %13 = vector.load %arg39[%c0_15, %c1, %c0_16] : memref<2x23x128xbf16, #tpu.memory_space<vmem>>, vector<2x16x128xbf16>
    %14 = vector.shape_cast %13 : vector<2x16x128xbf16> to vector<32x128xbf16>
    %c1_17 = arith.constant 1 : index
    %c0_18 = arith.constant 0 : index
    %c0_19 = arith.constant 0 : index
    %15 = vector.load %arg1[%c1_17, %c0_18, %c0_19] : memref<8x128x128xbf16, #tpu.memory_space<vmem>>, vector<1x128x128xbf16>
    %16 = vector.shape_cast %15 : vector<1x128x128xbf16> to vector<128x128xbf16>
    %cst_20 = arith.constant dense<0.000000e+00> : vector<32x128xf32>
    %17 = tpu.matmul %14, %16, %cst_20 {dimension_numbers = #tpu.dot_dimension_numbers<[1], [0], [0], [1], [0, 0, 1, 1], [], []>} : vector<32x128xbf16>, vector<128x128xbf16>, vector<32x128xf32> -> vector<32x128xf32>
    %18 = arith.addf %12, %17 : vector<32x128xf32>
    %c0_21 = arith.constant 0 : index
    %c2 = arith.constant 2 : index
    %c0_22 = arith.constant 0 : index
    %19 = vector.load %arg39[%c0_21, %c2, %c0_22] : memref<2x23x128xbf16, #tpu.memory_space<vmem>>, vector<2x16x128xbf16>
    %20 = vector.shape_cast %19 : vector<2x16x128xbf16> to vector<32x128xbf16>
    %c2_23 = arith.constant 2 : index
    %c0_24 = arith.constant 0 : index
    %c0_25 = arith.constant 0 : index
    %21 = vector.load %arg1[%c2_23, %c0_24, %c0_25] : memref<8x128x128xbf16, #tpu.memory_space<vmem>>, vector<1x128x128xbf16>
    %22 = vector.shape_cast %21 : vector<1x128x128xbf16> to vector<128x128xbf16>
    %cst_26 = arith.constant dense<0.000000e+00> : vector<32x128xf32>
    %23 = tpu.matmul %20, %22, %cst_26 {dimension_numbers = #tpu.dot_dimension_numbers<[1], [0], [0], [1], [0, 0, 1, 1], [], []>} : vector<32x128xbf16>, vector<128x128xbf16>, vector<32x128xf32> -> vector<32x128xf32>
    %24 = arith.addf %18, %23 : vector<32x128xf32>
    %c0_27 = arith.constant 0 : index
    %c3_28 = arith.constant 3 : index
    %c0_29 = arith.constant 0 : index
    %25 = vector.load %arg39[%c0_27, %c3_28, %c0_29] : memref<2x23x128xbf16, #tpu.memory_space<vmem>>, vector<2x16x128xbf16>
    %26 = vector.shape_cast %25 : vector<2x16x128xbf16> to vector<32x128xbf16>
    %c3_30 = arith.constant 3 : index
    %c0_31 = arith.constant 0 : index
    %c0_32 = arith.constant 0 : index
    %27 = vector.load %arg1[%c3_30, %c0_31, %c0_32] : memref<8x128x128xbf16, #tpu.memory_space<vmem>>, vector<1x128x128xbf16>
    %28 = vector.shape_cast %27 : vector<1x128x128xbf16> to vector<128x128xbf16>
    %cst_33 = arith.constant dense<0.000000e+00> : vector<32x128xf32>
    %29 = tpu.matmul %26, %28, %cst_33 {dimension_numbers = #tpu.dot_dimension_numbers<[1], [0], [0], [1], [0, 0, 1, 1], [], []>} : vector<32x128xbf16>, vector<128x128xbf16>, vector<32x128xf32> -> vector<32x128xf32>
    %30 = arith.addf %24, %29 : vector<32x128xf32>
    %c0_34 = arith.constant 0 : index
    %c4 = arith.constant 4 : index
    %c0_35 = arith.constant 0 : index
    %31 = vector.load %arg39[%c0_34, %c4, %c0_35] : memref<2x23x128xbf16, #tpu.memory_space<vmem>>, vector<2x16x128xbf16>
    %32 = vector.shape_cast %31 : vector<2x16x128xbf16> to vector<32x128xbf16>
    %c4_36 = arith.constant 4 : index
    %c0_37 = arith.constant 0 : index
    %c0_38 = arith.constant 0 : index
    %33 = vector.load %arg1[%c4_36, %c0_37, %c0_38] : memref<8x128x128xbf16, #tpu.memory_space<vmem>>, vector<1x128x128xbf16>
    %34 = vector.shape_cast %33 : vector<1x128x128xbf16> to vector<128x128xbf16>
    %cst_39 = arith.constant dense<0.000000e+00> : vector<32x128xf32>
    %35 = tpu.matmul %32, %34, %cst_39 {dimension_numbers = #tpu.dot_dimension_numbers<[1], [0], [0], [1], [0, 0, 1, 1], [], []>} : vector<32x128xbf16>, vector<128x128xbf16>, vector<32x128xf32> -> vector<32x128xf32>
    %36 = arith.addf %30, %35 : vector<32x128xf32>
    %c0_40 = arith.constant 0 : index
    %c5 = arith.constant 5 : index
    %c0_41 = arith.constant 0 : index
    %37 = vector.load %arg39[%c0_40, %c5, %c0_41] : memref<2x23x128xbf16, #tpu.memory_space<vmem>>, vector<2x16x128xbf16>
    %38 = vector.shape_cast %37 : vector<2x16x128xbf16> to vector<32x128xbf16>
    %c5_42 = arith.constant 5 : index
    %c0_43 = arith.constant 0 : index
    %c0_44 = arith.constant 0 : index
    %39 = vector.load %arg1[%c5_42, %c0_43, %c0_44] : memref<8x128x128xbf16, #tpu.memory_space<vmem>>, vector<1x128x128xbf16>
    %40 = vector.shape_cast %39 : vector<1x128x128xbf16> to vector<128x128xbf16>
    %cst_45 = arith.constant dense<0.000000e+00> : vector<32x128xf32>
    %41 = tpu.matmul %38, %40, %cst_45 {dimension_numbers = #tpu.dot_dimension_numbers<[1], [0], [0], [1], [0, 0, 1, 1], [], []>} : vector<32x128xbf16>, vector<128x128xbf16>, vector<32x128xf32> -> vector<32x128xf32>
    %42 = arith.addf %36, %41 : vector<32x128xf32>
    %c0_46 = arith.constant 0 : index
    %c6 = arith.constant 6 : index
    %c0_47 = arith.constant 0 : index
    %43 = vector.load %arg39[%c0_46, %c6, %c0_47] : memref<2x23x128xbf16, #tpu.memory_space<vmem>>, vector<2x16x128xbf16>
    %44 = vector.shape_cast %43 : vector<2x16x128xbf16> to vector<32x128xbf16>
    %c6_48 = arith.constant 6 : index
    %c0_49 = arith.constant 0 : index
    %c0_50 = arith.constant 0 : index
    %45 = vector.load %arg1[%c6_48, %c0_49, %c0_50] : memref<8x128x128xbf16, #tpu.memory_space<vmem>>, vector<1x128x128xbf16>
    %46 = vector.shape_cast %45 : vector<1x128x128xbf16> to vector<128x128xbf16>
    %cst_51 = arith.constant dense<0.000000e+00> : vector<32x128xf32>
    %47 = tpu.matmul %44, %46, %cst_51 {dimension_numbers = #tpu.dot_dimension_numbers<[1], [0], [0], [1], [0, 0, 1, 1], [], []>} : vector<32x128xbf16>, vector<128x128xbf16>, vector<32x128xf32> -> vector<32x128xf32>
    %48 = arith.addf %42, %47 : vector<32x128xf32>
    %c0_52 = arith.constant 0 : index
    %c7 = arith.constant 7 : index
    %c0_53 = arith.constant 0 : index
    %49 = vector.load %arg39[%c0_52, %c7, %c0_53] : memref<2x23x128xbf16, #tpu.memory_space<vmem>>, vector<2x16x128xbf16>
    %50 = vector.shape_cast %49 : vector<2x16x128xbf16> to vector<32x128xbf16>
    %c7_54 = arith.constant 7 : index
    %c0_55 = arith.constant 0 : index
    %c0_56 = arith.constant 0 : index
    %51 = vector.load %arg1[%c7_54, %c0_55, %c0_56] : memref<8x128x128xbf16, #tpu.memory_space<vmem>>, vector<1x128x128xbf16>
    %52 = vector.shape_cast %51 : vector<1x128x128xbf16> to vector<128x128xbf16>
    %cst_57 = arith.constant dense<0.000000e+00> : vector<32x128xf32>
    %53 = tpu.matmul %50, %52, %cst_57 {dimension_numbers = #tpu.dot_dimension_numbers<[1], [0], [0], [1], [0, 0, 1, 1], [], []>} : vector<32x128xbf16>, vector<128x128xbf16>, vector<32x128xf32> -> vector<32x128xf32>
    %54 = arith.addf %48, %53 : vector<32x128xf32>
    %55 = vector.shape_cast %54 : vector<32x128xf32> to vector<2x16x128xf32>
    %c0_58 = arith.constant 0 : index
    %c0_59 = arith.constant 0 : index
    %56 = vector.load %arg2[%c0_58, %c0_59] : memref<1x128xf32, #tpu.memory_space<vmem>>, vector<1x128xf32>
    %57 = vector.shape_cast %56 : vector<1x128xf32> to vector<1x1x128xf32>
    %58 = vector.broadcast %57 : vector<1x1x128xf32> to vector<2x16x128xf32>
    %59 = arith.mulf %55, %58 : vector<2x16x128xf32>
    %c0_60 = arith.constant 0 : index
    %c0_61 = arith.constant 0 : index
    %60 = vector.load %arg3[%c0_60, %c0_61] : memref<1x128xf32, #tpu.memory_space<vmem>>, vector<1x128xf32>
    %61 = vector.shape_cast %60 : vector<1x128xf32> to vector<1x1x128xf32>
    %62 = vector.broadcast %61 : vector<1x1x128xf32> to vector<2x16x128xf32>
    %63 = arith.addf %59, %62 : vector<2x16x128xf32>
    %cst_62 = arith.constant 0.000000e+00 : f32
    %64 = vector.broadcast %cst_62 : f32 to vector<2x16x128xf32>
    %65 = arith.maximumf %63, %64 : vector<2x16x128xf32>
    %66 = arith.truncf %65 : vector<2x16x128xf32> to vector<2x16x128xbf16>
    %cst_63 = arith.constant 0.000000e+00 : bf16
    %67 = vector.broadcast %cst_63 : bf16 to vector<2x23x128xbf16>
    %c0_64 = arith.constant 0 : index
    %c0_65 = arith.constant 0 : index
    %c0_66 = arith.constant 0 : index
    %68 = vector.load %arg39[%c0_64, %c0_65, %c0_66] : memref<2x23x128xbf16, #tpu.memory_space<vmem>>, vector<2x23x128xbf16>
    tpu.vector_store %arg39[%c0_64, %c0_65, %c0_66], %67 {strides = array<i32>} : memref<2x23x128xbf16, #tpu.memory_space<vmem>>, vector<2x23x128xbf16>,
    %c0_67 = arith.constant 0 : index
    %c2_68 = arith.constant 2 : index
    %c0_69 = arith.constant 0 : index
    %69 = vector.load %arg39[%c0_67, %c2_68, %c0_69] : memref<2x23x128xbf16, #tpu.memory_space<vmem>>, vector<2x16x128xbf16>
    tpu.vector_store %arg39[%c0_67, %c2_68, %c0_69], %66 {strides = array<i32>} : memref<2x23x128xbf16, #tpu.memory_space<vmem>>, vector<2x16x128xbf16>,
    %cst_70 = arith.constant 0.000000e+00 : f32
    %70 = vector.broadcast %cst_70 : f32 to vector<32x128xf32>
    %c0_71 = arith.constant 0 : index
    %c0_72 = arith.constant 0 : index
    %c0_73 = arith.constant 0 : index
    %71 = vector.load %arg39[%c0_71, %c0_72, %c0_73] : memref<2x23x128xbf16, #tpu.memory_space<vmem>>, vector<2x16x128xbf16>
    %72 = vector.shape_cast %71 : vector<2x16x128xbf16> to vector<32x128xbf16>
    %c0_74 = arith.constant 0 : index
    %c0_75 = arith.constant 0 : index
    %c0_76 = arith.constant 0 : index
    %73 = vector.load %arg4[%c0_74, %c0_75, %c0_76] : memref<5x128x128xbf16, #tpu.memory_space<vmem>>, vector<1x128x128xbf16>
    %74 = vector.shape_cast %73 : vector<1x128x128xbf16> to vector<128x128xbf16>
    %cst_77 = arith.constant dense<0.000000e+00> : vector<32x128xf32>
    %75 = tpu.matmul %72, %74, %cst_77 {dimension_numbers = #tpu.dot_dimension_numbers<[1], [0], [0], [1], [0, 0, 1, 1], [], []>} : vector<32x128xbf16>, vector<128x128xbf16>, vector<32x128xf32> -> vector<32x128xf32>
    %76 = arith.addf %70, %75 : vector<32x128xf32>
    %c0_78 = arith.constant 0 : index
    %c1_79 = arith.constant 1 : index
    %c0_80 = arith.constant 0 : index
    %77 = vector.load %arg39[%c0_78, %c1_79, %c0_80] : memref<2x23x128xbf16, #tpu.memory_space<vmem>>, vector<2x16x128xbf16>
    %78 = vector.shape_cast %77 : vector<2x16x128xbf16> to vector<32x128xbf16>
    %c1_81 = arith.constant 1 : index
    %c0_82 = arith.constant 0 : index
    %c0_83 = arith.constant 0 : index
    %79 = vector.load %arg4[%c1_81, %c0_82, %c0_83] : memref<5x128x128xbf16, #tpu.memory_space<vmem>>, vector<1x128x128xbf16>
    %80 = vector.shape_cast %79 : vector<1x128x128xbf16> to vector<128x128xbf16>
    %cst_84 = arith.constant dense<0.000000e+00> : vector<32x128xf32>
    %81 = tpu.matmul %78, %80, %cst_84 {dimension_numbers = #tpu.dot_dimension_numbers<[1], [0], [0], [1], [0, 0, 1, 1], [], []>} : vector<32x128xbf16>, vector<128x128xbf16>, vector<32x128xf32> -> vector<32x128xf32>
    %82 = arith.addf %76, %81 : vector<32x128xf32>
    %c0_85 = arith.constant 0 : index
    %c2_86 = arith.constant 2 : index
    %c0_87 = arith.constant 0 : index
    %83 = vector.load %arg39[%c0_85, %c2_86, %c0_87] : memref<2x23x128xbf16, #tpu.memory_space<vmem>>, vector<2x16x128xbf16>
    %84 = vector.shape_cast %83 : vector<2x16x128xbf16> to vector<32x128xbf16>
    %c2_88 = arith.constant 2 : index
    %c0_89 = arith.constant 0 : index
    %c0_90 = arith.constant 0 : index
    %85 = vector.load %arg4[%c2_88, %c0_89, %c0_90] : memref<5x128x128xbf16, #tpu.memory_space<vmem>>, vector<1x128x128xbf16>
    %86 = vector.shape_cast %85 : vector<1x128x128xbf16> to vector<128x128xbf16>
    %cst_91 = arith.constant dense<0.000000e+00> : vector<32x128xf32>
    %87 = tpu.matmul %84, %86, %cst_91 {dimension_numbers = #tpu.dot_dimension_numbers<[1], [0], [0], [1], [0, 0, 1, 1], [], []>} : vector<32x128xbf16>, vector<128x128xbf16>, vector<32x128xf32> -> vector<32x128xf32>
    %88 = arith.addf %82, %87 : vector<32x128xf32>
    %c0_92 = arith.constant 0 : index
    %c3_93 = arith.constant 3 : index
    %c0_94 = arith.constant 0 : index
    %89 = vector.load %arg39[%c0_92, %c3_93, %c0_94] : memref<2x23x128xbf16, #tpu.memory_space<vmem>>, vector<2x16x128xbf16>
    %90 = vector.shape_cast %89 : vector<2x16x128xbf16> to vector<32x128xbf16>
    %c3_95 = arith.constant 3 : index
    %c0_96 = arith.constant 0 : index
    %c0_97 = arith.constant 0 : index
    %91 = vector.load %arg4[%c3_95, %c0_96, %c0_97] : memref<5x128x128xbf16, #tpu.memory_space<vmem>>, vector<1x128x128xbf16>
    %92 = vector.shape_cast %91 : vector<1x128x128xbf16> to vector<128x128xbf16>
    %cst_98 = arith.constant dense<0.000000e+00> : vector<32x128xf32>
    %93 = tpu.matmul %90, %92, %cst_98 {dimension_numbers = #tpu.dot_dimension_numbers<[1], [0], [0], [1], [0, 0, 1, 1], [], []>} : vector<32x128xbf16>, vector<128x128xbf16>, vector<32x128xf32> -> vector<32x128xf32>
    %94 = arith.addf %88, %93 : vector<32x128xf32>
    %c0_99 = arith.constant 0 : index
    %c4_100 = arith.constant 4 : index
    %c0_101 = arith.constant 0 : index
    %95 = vector.load %arg39[%c0_99, %c4_100, %c0_101] : memref<2x23x128xbf16, #tpu.memory_space<vmem>>, vector<2x16x128xbf16>
    %96 = vector.shape_cast %95 : vector<2x16x128xbf16> to vector<32x128xbf16>
    %c4_102 = arith.constant 4 : index
    %c0_103 = arith.constant 0 : index
    %c0_104 = arith.constant 0 : index
    %97 = vector.load %arg4[%c4_102, %c0_103, %c0_104] : memref<5x128x128xbf16, #tpu.memory_space<vmem>>, vector<1x128x128xbf16>
    %98 = vector.shape_cast %97 : vector<1x128x128xbf16> to vector<128x128xbf16>
    %cst_105 = arith.constant dense<0.000000e+00> : vector<32x128xf32>
    %99 = tpu.matmul %96, %98, %cst_105 {dimension_numbers = #tpu.dot_dimension_numbers<[1], [0], [0], [1], [0, 0, 1, 1], [], []>} : vector<32x128xbf16>, vector<128x128xbf16>, vector<32x128xf32> -> vector<32x128xf32>
    %100 = arith.addf %94, %99 : vector<32x128xf32>
    %101 = vector.shape_cast %100 : vector<32x128xf32> to vector<2x16x128xf32>
    %c0_106 = arith.constant 0 : index
    %c0_107 = arith.constant 0 : index
    %102 = vector.load %arg5[%c0_106, %c0_107] : memref<1x128xf32, #tpu.memory_space<vmem>>, vector<1x128xf32>
    %103 = vector.shape_cast %102 : vector<1x128xf32> to vector<1x1x128xf32>
    %104 = vector.broadcast %103 : vector<1x1x128xf32> to vector<2x16x128xf32>
    %105 = arith.mulf %101, %104 : vector<2x16x128xf32>
    %c0_108 = arith.constant 0 : index
    %c0_109 = arith.constant 0 : index
    %106 = vector.load %arg6[%c0_108, %c0_109] : memref<1x128xf32, #tpu.memory_space<vmem>>, vector<1x128xf32>
    %107 = vector.shape_cast %106 : vector<1x128xf32> to vector<1x1x128xf32>
    %108 = vector.broadcast %107 : vector<1x1x128xf32> to vector<2x16x128xf32>
    %109 = arith.addf %105, %108 : vector<2x16x128xf32>
    %cst_110 = arith.constant 0.000000e+00 : f32
    %110 = vector.broadcast %cst_110 : f32 to vector<2x16x128xf32>
    %111 = arith.maximumf %109, %110 : vector<2x16x128xf32>
    %112 = arith.truncf %111 : vector<2x16x128xf32> to vector<2x16x128xbf16>
    %cst_111 = arith.constant 0.000000e+00 : bf16
    %113 = vector.broadcast %cst_111 : bf16 to vector<2x23x128xbf16>
    %c0_112 = arith.constant 0 : index
    %c0_113 = arith.constant 0 : index
    %c0_114 = arith.constant 0 : index
    %114 = vector.load %arg39[%c0_112, %c0_113, %c0_114] : memref<2x23x128xbf16, #tpu.memory_space<vmem>>, vector<2x23x128xbf16>
    tpu.vector_store %arg39[%c0_112, %c0_113, %c0_114], %113 {strides = array<i32>} : memref<2x23x128xbf16, #tpu.memory_space<vmem>>, vector<2x23x128xbf16>,
    %c0_115 = arith.constant 0 : index
    %c1_116 = arith.constant 1 : index
    %c0_117 = arith.constant 0 : index
    %115 = vector.load %arg39[%c0_115, %c1_116, %c0_117] : memref<2x23x128xbf16, #tpu.memory_space<vmem>>, vector<2x16x128xbf16>
    tpu.vector_store %arg39[%c0_115, %c1_116, %c0_117], %112 {strides = array<i32>} : memref<2x23x128xbf16, #tpu.memory_space<vmem>>, vector<2x16x128xbf16>,
    %cst_118 = arith.constant 0.000000e+00 : f32
    %116 = vector.broadcast %cst_118 : f32 to vector<32x128xf32>
    %c0_119 = arith.constant 0 : index
    %c0_120 = arith.constant 0 : index
    %c0_121 = arith.constant 0 : index
    %117 = vector.load %arg39[%c0_119, %c0_120, %c0_121] : memref<2x23x128xbf16, #tpu.memory_space<vmem>>, vector<2x16x128xbf16>
    %118 = vector.shape_cast %117 : vector<2x16x128xbf16> to vector<32x128xbf16>
    %c0_122 = arith.constant 0 : index
    %c0_123 = arith.constant 0 : index
    %c0_124 = arith.constant 0 : index
    %119 = vector.load %arg7[%c0_122, %c0_123, %c0_124] : memref<3x128x128xbf16, #tpu.memory_space<vmem>>, vector<1x128x128xbf16>
    %120 = vector.shape_cast %119 : vector<1x128x128xbf16> to vector<128x128xbf16>
    %cst_125 = arith.constant dense<0.000000e+00> : vector<32x128xf32>
    %121 = tpu.matmul %118, %120, %cst_125 {dimension_numbers = #tpu.dot_dimension_numbers<[1], [0], [0], [1], [0, 0, 1, 1], [], []>} : vector<32x128xbf16>, vector<128x128xbf16>, vector<32x128xf32> -> vector<32x128xf32>
    %122 = arith.addf %116, %121 : vector<32x128xf32>
    %c0_126 = arith.constant 0 : index
    %c1_127 = arith.constant 1 : index
    %c0_128 = arith.constant 0 : index
    %123 = vector.load %arg39[%c0_126, %c1_127, %c0_128] : memref<2x23x128xbf16, #tpu.memory_space<vmem>>, vector<2x16x128xbf16>
    %124 = vector.shape_cast %123 : vector<2x16x128xbf16> to vector<32x128xbf16>
    %c1_129 = arith.constant 1 : index
    %c0_130 = arith.constant 0 : index
    %c0_131 = arith.constant 0 : index
    %125 = vector.load %arg7[%c1_129, %c0_130, %c0_131] : memref<3x128x128xbf16, #tpu.memory_space<vmem>>, vector<1x128x128xbf16>
    %126 = vector.shape_cast %125 : vector<1x128x128xbf16> to vector<128x128xbf16>
    %cst_132 = arith.constant dense<0.000000e+00> : vector<32x128xf32>
    %127 = tpu.matmul %124, %126, %cst_132 {dimension_numbers = #tpu.dot_dimension_numbers<[1], [0], [0], [1], [0, 0, 1, 1], [], []>} : vector<32x128xbf16>, vector<128x128xbf16>, vector<32x128xf32> -> vector<32x128xf32>
    %128 = arith.addf %122, %127 : vector<32x128xf32>
    %c0_133 = arith.constant 0 : index
    %c2_134 = arith.constant 2 : index
    %c0_135 = arith.constant 0 : index
    %129 = vector.load %arg39[%c0_133, %c2_134, %c0_135] : memref<2x23x128xbf16, #tpu.memory_space<vmem>>, vector<2x16x128xbf16>
    %130 = vector.shape_cast %129 : vector<2x16x128xbf16> to vector<32x128xbf16>
    %c2_136 = arith.constant 2 : index
    %c0_137 = arith.constant 0 : index
    %c0_138 = arith.constant 0 : index
    %131 = vector.load %arg7[%c2_136, %c0_137, %c0_138] : memref<3x128x128xbf16, #tpu.memory_space<vmem>>, vector<1x128x128xbf16>
    %132 = vector.shape_cast %131 : vector<1x128x128xbf16> to vector<128x128xbf16>
    %cst_139 = arith.constant dense<0.000000e+00> : vector<32x128xf32>
    %133 = tpu.matmul %130, %132, %cst_139 {dimension_numbers = #tpu.dot_dimension_numbers<[1], [0], [0], [1], [0, 0, 1, 1], [], []>} : vector<32x128xbf16>, vector<128x128xbf16>, vector<32x128xf32> -> vector<32x128xf32>
    %134 = arith.addf %128, %133 : vector<32x128xf32>
    %135 = vector.shape_cast %134 : vector<32x128xf32> to vector<2x16x128xf32>
    %c0_140 = arith.constant 0 : index
    %c0_141 = arith.constant 0 : index
    %136 = vector.load %arg8[%c0_140, %c0_141] : memref<1x128xf32, #tpu.memory_space<vmem>>, vector<1x128xf32>
    %137 = vector.shape_cast %136 : vector<1x128xf32> to vector<1x1x128xf32>
    %138 = vector.broadcast %137 : vector<1x1x128xf32> to vector<2x16x128xf32>
    %139 = arith.mulf %135, %138 : vector<2x16x128xf32>
    %c0_142 = arith.constant 0 : index
    %c0_143 = arith.constant 0 : index
    %140 = vector.load %arg9[%c0_142, %c0_143] : memref<1x128xf32, #tpu.memory_space<vmem>>, vector<1x128xf32>
    %141 = vector.shape_cast %140 : vector<1x128xf32> to vector<1x1x128xf32>
    %142 = vector.broadcast %141 : vector<1x1x128xf32> to vector<2x16x128xf32>
    %143 = arith.addf %139, %142 : vector<2x16x128xf32>
    %144 = arith.truncf %1 : vector<2x16x128xf32> to vector<2x16x128xbf16>
    %145 = vector.shape_cast %144 : vector<2x16x128xbf16> to vector<32x128xbf16>
    %c0_144 = arith.constant 0 : index
    %c0_145 = arith.constant 0 : index
    %c0_146 = arith.constant 0 : index
    %146 = vector.load %arg10[%c0_144, %c0_145, %c0_146] : memref<1x128x128xbf16, #tpu.memory_space<vmem>>, vector<1x128x128xbf16>
    %147 = vector.shape_cast %146 : vector<1x128x128xbf16> to vector<128x128xbf16>
    %cst_147 = arith.constant dense<0.000000e+00> : vector<32x128xf32>
    %148 = tpu.matmul %145, %147, %cst_147 {dimension_numbers = #tpu.dot_dimension_numbers<[1], [0], [0], [1], [0, 0, 1, 1], [], []>} : vector<32x128xbf16>, vector<128x128xbf16>, vector<32x128xf32> -> vector<32x128xf32>
    %149 = vector.shape_cast %148 : vector<32x128xf32> to vector<2x16x128xf32>
    %c0_148 = arith.constant 0 : index
    %c0_149 = arith.constant 0 : index
    %150 = vector.load %arg11[%c0_148, %c0_149] : memref<1x128xf32, #tpu.memory_space<vmem>>, vector<1x128xf32>
    %151 = vector.shape_cast %150 : vector<1x128xf32> to vector<1x1x128xf32>
    %152 = vector.broadcast %151 : vector<1x1x128xf32> to vector<2x16x128xf32>
    %153 = arith.mulf %149, %152 : vector<2x16x128xf32>
    %c0_150 = arith.constant 0 : index
    %c0_151 = arith.constant 0 : index
    %154 = vector.load %arg12[%c0_150, %c0_151] : memref<1x128xf32, #tpu.memory_space<vmem>>, vector<1x128xf32>
    %155 = vector.shape_cast %154 : vector<1x128xf32> to vector<1x1x128xf32>
    %156 = vector.broadcast %155 : vector<1x1x128xf32> to vector<2x16x128xf32>
    %157 = arith.addf %153, %156 : vector<2x16x128xf32>
    %158 = arith.addf %143, %157 : vector<2x16x128xf32>
    %cst_152 = arith.constant 0.000000e+00 : f32
    %159 = vector.broadcast %cst_152 : f32 to vector<2x16x128xf32>
    %160 = arith.maximumf %158, %159 : vector<2x16x128xf32>
    %161 = arith.truncf %160 : vector<2x16x128xf32> to vector<2x16x128xbf16>
    %cst_153 = arith.constant 0.000000e+00 : bf16
    %162 = vector.broadcast %cst_153 : bf16 to vector<2x23x128xbf16>
    %c0_154 = arith.constant 0 : index
    %c0_155 = arith.constant 0 : index
    %c0_156 = arith.constant 0 : index
    %163 = vector.load %arg39[%c0_154, %c0_155, %c0_156] : memref<2x23x128xbf16, #tpu.memory_space<vmem>>, vector<2x23x128xbf16>
    tpu.vector_store %arg39[%c0_154, %c0_155, %c0_156], %162 {strides = array<i32>} : memref<2x23x128xbf16, #tpu.memory_space<vmem>>, vector<2x23x128xbf16>,
    %c0_157 = arith.constant 0 : index
    %c3_158 = arith.constant 3 : index
    %c0_159 = arith.constant 0 : index
    %164 = vector.load %arg39[%c0_157, %c3_158, %c0_159] : memref<2x23x128xbf16, #tpu.memory_space<vmem>>, vector<2x16x128xbf16>
    tpu.vector_store %arg39[%c0_157, %c3_158, %c0_159], %161 {strides = array<i32>} : memref<2x23x128xbf16, #tpu.memory_space<vmem>>, vector<2x16x128xbf16>,
    %cst_160 = arith.constant 0.000000e+00 : f32
    %165 = vector.broadcast %cst_160 : f32 to vector<32x128xf32>
    %c0_161 = arith.constant 0 : index
    %c0_162 = arith.constant 0 : index
    %c0_163 = arith.constant 0 : index
    %166 = vector.load %arg39[%c0_161, %c0_162, %c0_163] : memref<2x23x128xbf16, #tpu.memory_space<vmem>>, vector<2x16x128xbf16>
    %167 = vector.shape_cast %166 : vector<2x16x128xbf16> to vector<32x128xbf16>
    %c0_164 = arith.constant 0 : index
    %c0_165 = arith.constant 0 : index
    %c0_166 = arith.constant 0 : index
    %168 = vector.load %arg13[%c0_164, %c0_165, %c0_166] : memref<8x128x128xbf16, #tpu.memory_space<vmem>>, vector<1x128x128xbf16>
    %169 = vector.shape_cast %168 : vector<1x128x128xbf16> to vector<128x128xbf16>
    %cst_167 = arith.constant dense<0.000000e+00> : vector<32x128xf32>
    %170 = tpu.matmul %167, %169, %cst_167 {dimension_numbers = #tpu.dot_dimension_numbers<[1], [0], [0], [1], [0, 0, 1, 1], [], []>} : vector<32x128xbf16>, vector<128x128xbf16>, vector<32x128xf32> -> vector<32x128xf32>
    %171 = arith.addf %165, %170 : vector<32x128xf32>
    %c0_168 = arith.constant 0 : index
    %c1_169 = arith.constant 1 : index
    %c0_170 = arith.constant 0 : index
    %172 = vector.load %arg39[%c0_168, %c1_169, %c0_170] : memref<2x23x128xbf16, #tpu.memory_space<vmem>>, vector<2x16x128xbf16>
    %173 = vector.shape_cast %172 : vector<2x16x128xbf16> to vector<32x128xbf16>
    %c1_171 = arith.constant 1 : index
    %c0_172 = arith.constant 0 : index
    %c0_173 = arith.constant 0 : index
    %174 = vector.load %arg13[%c1_171, %c0_172, %c0_173] : memref<8x128x128xbf16, #tpu.memory_space<vmem>>, vector<1x128x128xbf16>
    %175 = vector.shape_cast %174 : vector<1x128x128xbf16> to vector<128x128xbf16>
    %cst_174 = arith.constant dense<0.000000e+00> : vector<32x128xf32>
    %176 = tpu.matmul %173, %175, %cst_174 {dimension_numbers = #tpu.dot_dimension_numbers<[1], [0], [0], [1], [0, 0, 1, 1], [], []>} : vector<32x128xbf16>, vector<128x128xbf16>, vector<32x128xf32> -> vector<32x128xf32>
    %177 = arith.addf %171, %176 : vector<32x128xf32>
    %c0_175 = arith.constant 0 : index
    %c2_176 = arith.constant 2 : index
    %c0_177 = arith.constant 0 : index
    %178 = vector.load %arg39[%c0_175, %c2_176, %c0_177] : memref<2x23x128xbf16, #tpu.memory_space<vmem>>, vector<2x16x128xbf16>
    %179 = vector.shape_cast %178 : vector<2x16x128xbf16> to vector<32x128xbf16>
    %c2_178 = arith.constant 2 : index
    %c0_179 = arith.constant 0 : index
    %c0_180 = arith.constant 0 : index
    %180 = vector.load %arg13[%c2_178, %c0_179, %c0_180] : memref<8x128x128xbf16, #tpu.memory_space<vmem>>, vector<1x128x128xbf16>
    %181 = vector.shape_cast %180 : vector<1x128x128xbf16> to vector<128x128xbf16>
    %cst_181 = arith.constant dense<0.000000e+00> : vector<32x128xf32>
    %182 = tpu.matmul %179, %181, %cst_181 {dimension_numbers = #tpu.dot_dimension_numbers<[1], [0], [0], [1], [0, 0, 1, 1], [], []>} : vector<32x128xbf16>, vector<128x128xbf16>, vector<32x128xf32> -> vector<32x128xf32>
    %183 = arith.addf %177, %182 : vector<32x128xf32>
    %c0_182 = arith.constant 0 : index
    %c3_183 = arith.constant 3 : index
    %c0_184 = arith.constant 0 : index
    %184 = vector.load %arg39[%c0_182, %c3_183, %c0_184] : memref<2x23x128xbf16, #tpu.memory_space<vmem>>, vector<2x16x128xbf16>
    %185 = vector.shape_cast %184 : vector<2x16x128xbf16> to vector<32x128xbf16>
    %c3_185 = arith.constant 3 : index
    %c0_186 = arith.constant 0 : index
    %c0_187 = arith.constant 0 : index
    %186 = vector.load %arg13[%c3_185, %c0_186, %c0_187] : memref<8x128x128xbf16, #tpu.memory_space<vmem>>, vector<1x128x128xbf16>
    %187 = vector.shape_cast %186 : vector<1x128x128xbf16> to vector<128x128xbf16>
    %cst_188 = arith.constant dense<0.000000e+00> : vector<32x128xf32>
    %188 = tpu.matmul %185, %187, %cst_188 {dimension_numbers = #tpu.dot_dimension_numbers<[1], [0], [0], [1], [0, 0, 1, 1], [], []>} : vector<32x128xbf16>, vector<128x128xbf16>, vector<32x128xf32> -> vector<32x128xf32>
    %189 = arith.addf %183, %188 : vector<32x128xf32>
    %c0_189 = arith.constant 0 : index
    %c4_190 = arith.constant 4 : index
    %c0_191 = arith.constant 0 : index
    %190 = vector.load %arg39[%c0_189, %c4_190, %c0_191] : memref<2x23x128xbf16, #tpu.memory_space<vmem>>, vector<2x16x128xbf16>
    %191 = vector.shape_cast %190 : vector<2x16x128xbf16> to vector<32x128xbf16>
    %c4_192 = arith.constant 4 : index
    %c0_193 = arith.constant 0 : index
    %c0_194 = arith.constant 0 : index
    %192 = vector.load %arg13[%c4_192, %c0_193, %c0_194] : memref<8x128x128xbf16, #tpu.memory_space<vmem>>, vector<1x128x128xbf16>
    %193 = vector.shape_cast %192 : vector<1x128x128xbf16> to vector<128x128xbf16>
    %cst_195 = arith.constant dense<0.000000e+00> : vector<32x128xf32>
    %194 = tpu.matmul %191, %193, %cst_195 {dimension_numbers = #tpu.dot_dimension_numbers<[1], [0], [0], [1], [0, 0, 1, 1], [], []>} : vector<32x128xbf16>, vector<128x128xbf16>, vector<32x128xf32> -> vector<32x128xf32>
    %195 = arith.addf %189, %194 : vector<32x128xf32>
    %c0_196 = arith.constant 0 : index
    %c5_197 = arith.constant 5 : index
    %c0_198 = arith.constant 0 : index
    %196 = vector.load %arg39[%c0_196, %c5_197, %c0_198] : memref<2x23x128xbf16, #tpu.memory_space<vmem>>, vector<2x16x128xbf16>
    %197 = vector.shape_cast %196 : vector<2x16x128xbf16> to vector<32x128xbf16>
    %c5_199 = arith.constant 5 : index
    %c0_200 = arith.constant 0 : index
    %c0_201 = arith.constant 0 : index
    %198 = vector.load %arg13[%c5_199, %c0_200, %c0_201] : memref<8x128x128xbf16, #tpu.memory_space<vmem>>, vector<1x128x128xbf16>
    %199 = vector.shape_cast %198 : vector<1x128x128xbf16> to vector<128x128xbf16>
    %cst_202 = arith.constant dense<0.000000e+00> : vector<32x128xf32>
    %200 = tpu.matmul %197, %199, %cst_202 {dimension_numbers = #tpu.dot_dimension_numbers<[1], [0], [0], [1], [0, 0, 1, 1], [], []>} : vector<32x128xbf16>, vector<128x128xbf16>, vector<32x128xf32> -> vector<32x128xf32>
    %201 = arith.addf %195, %200 : vector<32x128xf32>
    %c0_203 = arith.constant 0 : index
    %c6_204 = arith.constant 6 : index
    %c0_205 = arith.constant 0 : index
    %202 = vector.load %arg39[%c0_203, %c6_204, %c0_205] : memref<2x23x128xbf16, #tpu.memory_space<vmem>>, vector<2x16x128xbf16>
    %203 = vector.shape_cast %202 : vector<2x16x128xbf16> to vector<32x128xbf16>
    %c6_206 = arith.constant 6 : index
    %c0_207 = arith.constant 0 : index
    %c0_208 = arith.constant 0 : index
    %204 = vector.load %arg13[%c6_206, %c0_207, %c0_208] : memref<8x128x128xbf16, #tpu.memory_space<vmem>>, vector<1x128x128xbf16>
    %205 = vector.shape_cast %204 : vector<1x128x128xbf16> to vector<128x128xbf16>
    %cst_209 = arith.constant dense<0.000000e+00> : vector<32x128xf32>
    %206 = tpu.matmul %203, %205, %cst_209 {dimension_numbers = #tpu.dot_dimension_numbers<[1], [0], [0], [1], [0, 0, 1, 1], [], []>} : vector<32x128xbf16>, vector<128x128xbf16>, vector<32x128xf32> -> vector<32x128xf32>
    %207 = arith.addf %201, %206 : vector<32x128xf32>
    %c0_210 = arith.constant 0 : index
    %c7_211 = arith.constant 7 : index
    %c0_212 = arith.constant 0 : index
    %208 = vector.load %arg39[%c0_210, %c7_211, %c0_212] : memref<2x23x128xbf16, #tpu.memory_space<vmem>>, vector<2x16x128xbf16>
    %209 = vector.shape_cast %208 : vector<2x16x128xbf16> to vector<32x128xbf16>
    %c7_213 = arith.constant 7 : index
    %c0_214 = arith.constant 0 : index
    %c0_215 = arith.constant 0 : index
    %210 = vector.load %arg13[%c7_213, %c0_214, %c0_215] : memref<8x128x128xbf16, #tpu.memory_space<vmem>>, vector<1x128x128xbf16>
    %211 = vector.shape_cast %210 : vector<1x128x128xbf16> to vector<128x128xbf16>
    %cst_216 = arith.constant dense<0.000000e+00> : vector<32x128xf32>
    %212 = tpu.matmul %209, %211, %cst_216 {dimension_numbers = #tpu.dot_dimension_numbers<[1], [0], [0], [1], [0, 0, 1, 1], [], []>} : vector<32x128xbf16>, vector<128x128xbf16>, vector<32x128xf32> -> vector<32x128xf32>
    %213 = arith.addf %207, %212 : vector<32x128xf32>
    %214 = vector.shape_cast %213 : vector<32x128xf32> to vector<2x16x128xf32>
    %c0_217 = arith.constant 0 : index
    %c0_218 = arith.constant 0 : index
    %215 = vector.load %arg14[%c0_217, %c0_218] : memref<1x128xf32, #tpu.memory_space<vmem>>, vector<1x128xf32>
    %216 = vector.shape_cast %215 : vector<1x128xf32> to vector<1x1x128xf32>
    %217 = vector.broadcast %216 : vector<1x1x128xf32> to vector<2x16x128xf32>
    %218 = arith.mulf %214, %217 : vector<2x16x128xf32>
    %c0_219 = arith.constant 0 : index
    %c0_220 = arith.constant 0 : index
    %219 = vector.load %arg15[%c0_219, %c0_220] : memref<1x128xf32, #tpu.memory_space<vmem>>, vector<1x128xf32>
    %220 = vector.shape_cast %219 : vector<1x128xf32> to vector<1x1x128xf32>
    %221 = vector.broadcast %220 : vector<1x1x128xf32> to vector<2x16x128xf32>
    %222 = arith.addf %218, %221 : vector<2x16x128xf32>
    %cst_221 = arith.constant 0.000000e+00 : f32
    %223 = vector.broadcast %cst_221 : f32 to vector<2x16x128xf32>
    %224 = arith.maximumf %222, %223 : vector<2x16x128xf32>
    %225 = arith.truncf %224 : vector<2x16x128xf32> to vector<2x16x128xbf16>
    %cst_222 = arith.constant 0.000000e+00 : bf16
    %226 = vector.broadcast %cst_222 : bf16 to vector<2x23x128xbf16>
    %c0_223 = arith.constant 0 : index
    %c0_224 = arith.constant 0 : index
    %c0_225 = arith.constant 0 : index
    %227 = vector.load %arg39[%c0_223, %c0_224, %c0_225] : memref<2x23x128xbf16, #tpu.memory_space<vmem>>, vector<2x23x128xbf16>
    tpu.vector_store %arg39[%c0_223, %c0_224, %c0_225], %226 {strides = array<i32>} : memref<2x23x128xbf16, #tpu.memory_space<vmem>>, vector<2x23x128xbf16>,
    %c0_226 = arith.constant 0 : index
    %c2_227 = arith.constant 2 : index
    %c0_228 = arith.constant 0 : index
    %228 = vector.load %arg39[%c0_226, %c2_227, %c0_228] : memref<2x23x128xbf16, #tpu.memory_space<vmem>>, vector<2x16x128xbf16>
    tpu.vector_store %arg39[%c0_226, %c2_227, %c0_228], %225 {strides = array<i32>} : memref<2x23x128xbf16, #tpu.memory_space<vmem>>, vector<2x16x128xbf16>,
    %cst_229 = arith.constant 0.000000e+00 : f32
    %229 = vector.broadcast %cst_229 : f32 to vector<32x128xf32>
    %c0_230 = arith.constant 0 : index
    %c0_231 = arith.constant 0 : index
    %c0_232 = arith.constant 0 : index
    %230 = vector.load %arg39[%c0_230, %c0_231, %c0_232] : memref<2x23x128xbf16, #tpu.memory_space<vmem>>, vector<2x16x128xbf16>
    %231 = vector.shape_cast %230 : vector<2x16x128xbf16> to vector<32x128xbf16>
    %c0_233 = arith.constant 0 : index
    %c0_234 = arith.constant 0 : index
    %c0_235 = arith.constant 0 : index
    %232 = vector.load %arg16[%c0_233, %c0_234, %c0_235] : memref<5x128x128xbf16, #tpu.memory_space<vmem>>, vector<1x128x128xbf16>
    %233 = vector.shape_cast %232 : vector<1x128x128xbf16> to vector<128x128xbf16>
    %cst_236 = arith.constant dense<0.000000e+00> : vector<32x128xf32>
    %234 = tpu.matmul %231, %233, %cst_236 {dimension_numbers = #tpu.dot_dimension_numbers<[1], [0], [0], [1], [0, 0, 1, 1], [], []>} : vector<32x128xbf16>, vector<128x128xbf16>, vector<32x128xf32> -> vector<32x128xf32>
    %235 = arith.addf %229, %234 : vector<32x128xf32>
    %c0_237 = arith.constant 0 : index
    %c1_238 = arith.constant 1 : index
    %c0_239 = arith.constant 0 : index
    %236 = vector.load %arg39[%c0_237, %c1_238, %c0_239] : memref<2x23x128xbf16, #tpu.memory_space<vmem>>, vector<2x16x128xbf16>
    %237 = vector.shape_cast %236 : vector<2x16x128xbf16> to vector<32x128xbf16>
    %c1_240 = arith.constant 1 : index
    %c0_241 = arith.constant 0 : index
    %c0_242 = arith.constant 0 : index
    %238 = vector.load %arg16[%c1_240, %c0_241, %c0_242] : memref<5x128x128xbf16, #tpu.memory_space<vmem>>, vector<1x128x128xbf16>
    %239 = vector.shape_cast %238 : vector<1x128x128xbf16> to vector<128x128xbf16>
    %cst_243 = arith.constant dense<0.000000e+00> : vector<32x128xf32>
    %240 = tpu.matmul %237, %239, %cst_243 {dimension_numbers = #tpu.dot_dimension_numbers<[1], [0], [0], [1], [0, 0, 1, 1], [], []>} : vector<32x128xbf16>, vector<128x128xbf16>, vector<32x128xf32> -> vector<32x128xf32>
    %241 = arith.addf %235, %240 : vector<32x128xf32>
    %c0_244 = arith.constant 0 : index
    %c2_245 = arith.constant 2 : index
    %c0_246 = arith.constant 0 : index
    %242 = vector.load %arg39[%c0_244, %c2_245, %c0_246] : memref<2x23x128xbf16, #tpu.memory_space<vmem>>, vector<2x16x128xbf16>
    %243 = vector.shape_cast %242 : vector<2x16x128xbf16> to vector<32x128xbf16>
    %c2_247 = arith.constant 2 : index
    %c0_248 = arith.constant 0 : index
    %c0_249 = arith.constant 0 : index
    %244 = vector.load %arg16[%c2_247, %c0_248, %c0_249] : memref<5x128x128xbf16, #tpu.memory_space<vmem>>, vector<1x128x128xbf16>
    %245 = vector.shape_cast %244 : vector<1x128x128xbf16> to vector<128x128xbf16>
    %cst_250 = arith.constant dense<0.000000e+00> : vector<32x128xf32>
    %246 = tpu.matmul %243, %245, %cst_250 {dimension_numbers = #tpu.dot_dimension_numbers<[1], [0], [0], [1], [0, 0, 1, 1], [], []>} : vector<32x128xbf16>, vector<128x128xbf16>, vector<32x128xf32> -> vector<32x128xf32>
    %247 = arith.addf %241, %246 : vector<32x128xf32>
    %c0_251 = arith.constant 0 : index
    %c3_252 = arith.constant 3 : index
    %c0_253 = arith.constant 0 : index
    %248 = vector.load %arg39[%c0_251, %c3_252, %c0_253] : memref<2x23x128xbf16, #tpu.memory_space<vmem>>, vector<2x16x128xbf16>
    %249 = vector.shape_cast %248 : vector<2x16x128xbf16> to vector<32x128xbf16>
    %c3_254 = arith.constant 3 : index
    %c0_255 = arith.constant 0 : index
    %c0_256 = arith.constant 0 : index
    %250 = vector.load %arg16[%c3_254, %c0_255, %c0_256] : memref<5x128x128xbf16, #tpu.memory_space<vmem>>, vector<1x128x128xbf16>
    %251 = vector.shape_cast %250 : vector<1x128x128xbf16> to vector<128x128xbf16>
    %cst_257 = arith.constant dense<0.000000e+00> : vector<32x128xf32>
    %252 = tpu.matmul %249, %251, %cst_257 {dimension_numbers = #tpu.dot_dimension_numbers<[1], [0], [0], [1], [0, 0, 1, 1], [], []>} : vector<32x128xbf16>, vector<128x128xbf16>, vector<32x128xf32> -> vector<32x128xf32>
    %253 = arith.addf %247, %252 : vector<32x128xf32>
    %c0_258 = arith.constant 0 : index
    %c4_259 = arith.constant 4 : index
    %c0_260 = arith.constant 0 : index
    %254 = vector.load %arg39[%c0_258, %c4_259, %c0_260] : memref<2x23x128xbf16, #tpu.memory_space<vmem>>, vector<2x16x128xbf16>
    %255 = vector.shape_cast %254 : vector<2x16x128xbf16> to vector<32x128xbf16>
    %c4_261 = arith.constant 4 : index
    %c0_262 = arith.constant 0 : index
    %c0_263 = arith.constant 0 : index
    %256 = vector.load %arg16[%c4_261, %c0_262, %c0_263] : memref<5x128x128xbf16, #tpu.memory_space<vmem>>, vector<1x128x128xbf16>
    %257 = vector.shape_cast %256 : vector<1x128x128xbf16> to vector<128x128xbf16>
    %cst_264 = arith.constant dense<0.000000e+00> : vector<32x128xf32>
    %258 = tpu.matmul %255, %257, %cst_264 {dimension_numbers = #tpu.dot_dimension_numbers<[1], [0], [0], [1], [0, 0, 1, 1], [], []>} : vector<32x128xbf16>, vector<128x128xbf16>, vector<32x128xf32> -> vector<32x128xf32>
    %259 = arith.addf %253, %258 : vector<32x128xf32>
    %260 = vector.shape_cast %259 : vector<32x128xf32> to vector<2x16x128xf32>
    %c0_265 = arith.constant 0 : index
    %c0_266 = arith.constant 0 : index
    %261 = vector.load %arg17[%c0_265, %c0_266] : memref<1x128xf32, #tpu.memory_space<vmem>>, vector<1x128xf32>
    %262 = vector.shape_cast %261 : vector<1x128xf32> to vector<1x1x128xf32>
    %263 = vector.broadcast %262 : vector<1x1x128xf32> to vector<2x16x128xf32>
    %264 = arith.mulf %260, %263 : vector<2x16x128xf32>
    %c0_267 = arith.constant 0 : index
    %c0_268 = arith.constant 0 : index
    %265 = vector.load %arg18[%c0_267, %c0_268] : memref<1x128xf32, #tpu.memory_space<vmem>>, vector<1x128xf32>
    %266 = vector.shape_cast %265 : vector<1x128xf32> to vector<1x1x128xf32>
    %267 = vector.broadcast %266 : vector<1x1x128xf32> to vector<2x16x128xf32>
    %268 = arith.addf %264, %267 : vector<2x16x128xf32>
    %cst_269 = arith.constant 0.000000e+00 : f32
    %269 = vector.broadcast %cst_269 : f32 to vector<2x16x128xf32>
    %270 = arith.maximumf %268, %269 : vector<2x16x128xf32>
    %271 = arith.truncf %270 : vector<2x16x128xf32> to vector<2x16x128xbf16>
    %cst_270 = arith.constant 0.000000e+00 : bf16
    %272 = vector.broadcast %cst_270 : bf16 to vector<2x23x128xbf16>
    %c0_271 = arith.constant 0 : index
    %c0_272 = arith.constant 0 : index
    %c0_273 = arith.constant 0 : index
    %273 = vector.load %arg39[%c0_271, %c0_272, %c0_273] : memref<2x23x128xbf16, #tpu.memory_space<vmem>>, vector<2x23x128xbf16>
    tpu.vector_store %arg39[%c0_271, %c0_272, %c0_273], %272 {strides = array<i32>} : memref<2x23x128xbf16, #tpu.memory_space<vmem>>, vector<2x23x128xbf16>,
    %c0_274 = arith.constant 0 : index
    %c1_275 = arith.constant 1 : index
    %c0_276 = arith.constant 0 : index
    %274 = vector.load %arg39[%c0_274, %c1_275, %c0_276] : memref<2x23x128xbf16, #tpu.memory_space<vmem>>, vector<2x16x128xbf16>
    tpu.vector_store %arg39[%c0_274, %c1_275, %c0_276], %271 {strides = array<i32>} : memref<2x23x128xbf16, #tpu.memory_space<vmem>>, vector<2x16x128xbf16>,
    %cst_277 = arith.constant 0.000000e+00 : f32
    %275 = vector.broadcast %cst_277 : f32 to vector<32x128xf32>
    %c0_278 = arith.constant 0 : index
    %c0_279 = arith.constant 0 : index
    %c0_280 = arith.constant 0 : index
    %276 = vector.load %arg39[%c0_278, %c0_279, %c0_280] : memref<2x23x128xbf16, #tpu.memory_space<vmem>>, vector<2x16x128xbf16>
    %277 = vector.shape_cast %276 : vector<2x16x128xbf16> to vector<32x128xbf16>
    %c0_281 = arith.constant 0 : index
    %c0_282 = arith.constant 0 : index
    %c0_283 = arith.constant 0 : index
    %278 = vector.load %arg19[%c0_281, %c0_282, %c0_283] : memref<3x128x128xbf16, #tpu.memory_space<vmem>>, vector<1x128x128xbf16>
    %279 = vector.shape_cast %278 : vector<1x128x128xbf16> to vector<128x128xbf16>
    %cst_284 = arith.constant dense<0.000000e+00> : vector<32x128xf32>
    %280 = tpu.matmul %277, %279, %cst_284 {dimension_numbers = #tpu.dot_dimension_numbers<[1], [0], [0], [1], [0, 0, 1, 1], [], []>} : vector<32x128xbf16>, vector<128x128xbf16>, vector<32x128xf32> -> vector<32x128xf32>
    %281 = arith.addf %275, %280 : vector<32x128xf32>
    %c0_285 = arith.constant 0 : index
    %c1_286 = arith.constant 1 : index
    %c0_287 = arith.constant 0 : index
    %282 = vector.load %arg39[%c0_285, %c1_286, %c0_287] : memref<2x23x128xbf16, #tpu.memory_space<vmem>>, vector<2x16x128xbf16>
    %283 = vector.shape_cast %282 : vector<2x16x128xbf16> to vector<32x128xbf16>
    %c1_288 = arith.constant 1 : index
    %c0_289 = arith.constant 0 : index
    %c0_290 = arith.constant 0 : index
    %284 = vector.load %arg19[%c1_288, %c0_289, %c0_290] : memref<3x128x128xbf16, #tpu.memory_space<vmem>>, vector<1x128x128xbf16>
    %285 = vector.shape_cast %284 : vector<1x128x128xbf16> to vector<128x128xbf16>
    %cst_291 = arith.constant dense<0.000000e+00> : vector<32x128xf32>
    %286 = tpu.matmul %283, %285, %cst_291 {dimension_numbers = #tpu.dot_dimension_numbers<[1], [0], [0], [1], [0, 0, 1, 1], [], []>} : vector<32x128xbf16>, vector<128x128xbf16>, vector<32x128xf32> -> vector<32x128xf32>
    %287 = arith.addf %281, %286 : vector<32x128xf32>
    %c0_292 = arith.constant 0 : index
    %c2_293 = arith.constant 2 : index
    %c0_294 = arith.constant 0 : index
    %288 = vector.load %arg39[%c0_292, %c2_293, %c0_294] : memref<2x23x128xbf16, #tpu.memory_space<vmem>>, vector<2x16x128xbf16>
    %289 = vector.shape_cast %288 : vector<2x16x128xbf16> to vector<32x128xbf16>
    %c2_295 = arith.constant 2 : index
    %c0_296 = arith.constant 0 : index
    %c0_297 = arith.constant 0 : index
    %290 = vector.load %arg19[%c2_295, %c0_296, %c0_297] : memref<3x128x128xbf16, #tpu.memory_space<vmem>>, vector<1x128x128xbf16>
    %291 = vector.shape_cast %290 : vector<1x128x128xbf16> to vector<128x128xbf16>
    %cst_298 = arith.constant dense<0.000000e+00> : vector<32x128xf32>
    %292 = tpu.matmul %289, %291, %cst_298 {dimension_numbers = #tpu.dot_dimension_numbers<[1], [0], [0], [1], [0, 0, 1, 1], [], []>} : vector<32x128xbf16>, vector<128x128xbf16>, vector<32x128xf32> -> vector<32x128xf32>
    %293 = arith.addf %287, %292 : vector<32x128xf32>
    %294 = vector.shape_cast %293 : vector<32x128xf32> to vector<2x16x128xf32>
    %c0_299 = arith.constant 0 : index
    %c0_300 = arith.constant 0 : index
    %295 = vector.load %arg20[%c0_299, %c0_300] : memref<1x128xf32, #tpu.memory_space<vmem>>, vector<1x128xf32>
    %296 = vector.shape_cast %295 : vector<1x128xf32> to vector<1x1x128xf32>
    %297 = vector.broadcast %296 : vector<1x1x128xf32> to vector<2x16x128xf32>
    %298 = arith.mulf %294, %297 : vector<2x16x128xf32>
    %c0_301 = arith.constant 0 : index
    %c0_302 = arith.constant 0 : index
    %299 = vector.load %arg21[%c0_301, %c0_302] : memref<1x128xf32, #tpu.memory_space<vmem>>, vector<1x128xf32>
    %300 = vector.shape_cast %299 : vector<1x128xf32> to vector<1x1x128xf32>
    %301 = vector.broadcast %300 : vector<1x1x128xf32> to vector<2x16x128xf32>
    %302 = arith.addf %298, %301 : vector<2x16x128xf32>
    %303 = arith.truncf %160 : vector<2x16x128xf32> to vector<2x16x128xbf16>
    %304 = vector.shape_cast %303 : vector<2x16x128xbf16> to vector<32x128xbf16>
    %c0_303 = arith.constant 0 : index
    %c0_304 = arith.constant 0 : index
    %c0_305 = arith.constant 0 : index
    %305 = vector.load %arg22[%c0_303, %c0_304, %c0_305] : memref<1x128x128xbf16, #tpu.memory_space<vmem>>, vector<1x128x128xbf16>
    %306 = vector.shape_cast %305 : vector<1x128x128xbf16> to vector<128x128xbf16>
    %cst_306 = arith.constant dense<0.000000e+00> : vector<32x128xf32>
    %307 = tpu.matmul %304, %306, %cst_306 {dimension_numbers = #tpu.dot_dimension_numbers<[1], [0], [0], [1], [0, 0, 1, 1], [], []>} : vector<32x128xbf16>, vector<128x128xbf16>, vector<32x128xf32> -> vector<32x128xf32>
    %308 = vector.shape_cast %307 : vector<32x128xf32> to vector<2x16x128xf32>
    %c0_307 = arith.constant 0 : index
    %c0_308 = arith.constant 0 : index
    %309 = vector.load %arg23[%c0_307, %c0_308] : memref<1x128xf32, #tpu.memory_space<vmem>>, vector<1x128xf32>
    %310 = vector.shape_cast %309 : vector<1x128xf32> to vector<1x1x128xf32>
    %311 = vector.broadcast %310 : vector<1x1x128xf32> to vector<2x16x128xf32>
    %312 = arith.mulf %308, %311 : vector<2x16x128xf32>
    %c0_309 = arith.constant 0 : index
    %c0_310 = arith.constant 0 : index
    %313 = vector.load %arg24[%c0_309, %c0_310] : memref<1x128xf32, #tpu.memory_space<vmem>>, vector<1x128xf32>
    %314 = vector.shape_cast %313 : vector<1x128xf32> to vector<1x1x128xf32>
    %315 = vector.broadcast %314 : vector<1x1x128xf32> to vector<2x16x128xf32>
    %316 = arith.addf %312, %315 : vector<2x16x128xf32>
    %317 = arith.addf %302, %316 : vector<2x16x128xf32>
    %cst_311 = arith.constant 0.000000e+00 : f32
    %318 = vector.broadcast %cst_311 : f32 to vector<2x16x128xf32>
    %319 = arith.maximumf %317, %318 : vector<2x16x128xf32>
    %320 = arith.truncf %319 : vector<2x16x128xf32> to vector<2x16x128xbf16>
    %cst_312 = arith.constant 0.000000e+00 : bf16
    %321 = vector.broadcast %cst_312 : bf16 to vector<2x23x128xbf16>
    %c0_313 = arith.constant 0 : index
    %c0_314 = arith.constant 0 : index
    %c0_315 = arith.constant 0 : index
    %322 = vector.load %arg39[%c0_313, %c0_314, %c0_315] : memref<2x23x128xbf16, #tpu.memory_space<vmem>>, vector<2x23x128xbf16>
    tpu.vector_store %arg39[%c0_313, %c0_314, %c0_315], %321 {strides = array<i32>} : memref<2x23x128xbf16, #tpu.memory_space<vmem>>, vector<2x23x128xbf16>,
    %c0_316 = arith.constant 0 : index
    %c3_317 = arith.constant 3 : index
    %c0_318 = arith.constant 0 : index
    %323 = vector.load %arg39[%c0_316, %c3_317, %c0_318] : memref<2x23x128xbf16, #tpu.memory_space<vmem>>, vector<2x16x128xbf16>
    tpu.vector_store %arg39[%c0_316, %c3_317, %c0_318], %320 {strides = array<i32>} : memref<2x23x128xbf16, #tpu.memory_space<vmem>>, vector<2x16x128xbf16>,
    %cst_319 = arith.constant 0.000000e+00 : f32
    %324 = vector.broadcast %cst_319 : f32 to vector<32x128xf32>
    %c0_320 = arith.constant 0 : index
    %c0_321 = arith.constant 0 : index
    %c0_322 = arith.constant 0 : index
    %325 = vector.load %arg39[%c0_320, %c0_321, %c0_322] : memref<2x23x128xbf16, #tpu.memory_space<vmem>>, vector<2x16x128xbf16>
    %326 = vector.shape_cast %325 : vector<2x16x128xbf16> to vector<32x128xbf16>
    %c0_323 = arith.constant 0 : index
    %c0_324 = arith.constant 0 : index
    %c0_325 = arith.constant 0 : index
    %327 = vector.load %arg25[%c0_323, %c0_324, %c0_325] : memref<8x128x128xbf16, #tpu.memory_space<vmem>>, vector<1x128x128xbf16>
    %328 = vector.shape_cast %327 : vector<1x128x128xbf16> to vector<128x128xbf16>
    %cst_326 = arith.constant dense<0.000000e+00> : vector<32x128xf32>
    %329 = tpu.matmul %326, %328, %cst_326 {dimension_numbers = #tpu.dot_dimension_numbers<[1], [0], [0], [1], [0, 0, 1, 1], [], []>} : vector<32x128xbf16>, vector<128x128xbf16>, vector<32x128xf32> -> vector<32x128xf32>
    %330 = arith.addf %324, %329 : vector<32x128xf32>
    %c0_327 = arith.constant 0 : index
    %c1_328 = arith.constant 1 : index
    %c0_329 = arith.constant 0 : index
    %331 = vector.load %arg39[%c0_327, %c1_328, %c0_329] : memref<2x23x128xbf16, #tpu.memory_space<vmem>>, vector<2x16x128xbf16>
    %332 = vector.shape_cast %331 : vector<2x16x128xbf16> to vector<32x128xbf16>
    %c1_330 = arith.constant 1 : index
    %c0_331 = arith.constant 0 : index
    %c0_332 = arith.constant 0 : index
    %333 = vector.load %arg25[%c1_330, %c0_331, %c0_332] : memref<8x128x128xbf16, #tpu.memory_space<vmem>>, vector<1x128x128xbf16>
    %334 = vector.shape_cast %333 : vector<1x128x128xbf16> to vector<128x128xbf16>
    %cst_333 = arith.constant dense<0.000000e+00> : vector<32x128xf32>
    %335 = tpu.matmul %332, %334, %cst_333 {dimension_numbers = #tpu.dot_dimension_numbers<[1], [0], [0], [1], [0, 0, 1, 1], [], []>} : vector<32x128xbf16>, vector<128x128xbf16>, vector<32x128xf32> -> vector<32x128xf32>
    %336 = arith.addf %330, %335 : vector<32x128xf32>
    %c0_334 = arith.constant 0 : index
    %c2_335 = arith.constant 2 : index
    %c0_336 = arith.constant 0 : index
    %337 = vector.load %arg39[%c0_334, %c2_335, %c0_336] : memref<2x23x128xbf16, #tpu.memory_space<vmem>>, vector<2x16x128xbf16>
    %338 = vector.shape_cast %337 : vector<2x16x128xbf16> to vector<32x128xbf16>
    %c2_337 = arith.constant 2 : index
    %c0_338 = arith.constant 0 : index
    %c0_339 = arith.constant 0 : index
    %339 = vector.load %arg25[%c2_337, %c0_338, %c0_339] : memref<8x128x128xbf16, #tpu.memory_space<vmem>>, vector<1x128x128xbf16>
    %340 = vector.shape_cast %339 : vector<1x128x128xbf16> to vector<128x128xbf16>
    %cst_340 = arith.constant dense<0.000000e+00> : vector<32x128xf32>
    %341 = tpu.matmul %338, %340, %cst_340 {dimension_numbers = #tpu.dot_dimension_numbers<[1], [0], [0], [1], [0, 0, 1, 1], [], []>} : vector<32x128xbf16>, vector<128x128xbf16>, vector<32x128xf32> -> vector<32x128xf32>
    %342 = arith.addf %336, %341 : vector<32x128xf32>
    %c0_341 = arith.constant 0 : index
    %c3_342 = arith.constant 3 : index
    %c0_343 = arith.constant 0 : index
    %343 = vector.load %arg39[%c0_341, %c3_342, %c0_343] : memref<2x23x128xbf16, #tpu.memory_space<vmem>>, vector<2x16x128xbf16>
    %344 = vector.shape_cast %343 : vector<2x16x128xbf16> to vector<32x128xbf16>
    %c3_344 = arith.constant 3 : index
    %c0_345 = arith.constant 0 : index
    %c0_346 = arith.constant 0 : index
    %345 = vector.load %arg25[%c3_344, %c0_345, %c0_346] : memref<8x128x128xbf16, #tpu.memory_space<vmem>>, vector<1x128x128xbf16>
    %346 = vector.shape_cast %345 : vector<1x128x128xbf16> to vector<128x128xbf16>
    %cst_347 = arith.constant dense<0.000000e+00> : vector<32x128xf32>
    %347 = tpu.matmul %344, %346, %cst_347 {dimension_numbers = #tpu.dot_dimension_numbers<[1], [0], [0], [1], [0, 0, 1, 1], [], []>} : vector<32x128xbf16>, vector<128x128xbf16>, vector<32x128xf32> -> vector<32x128xf32>
    %348 = arith.addf %342, %347 : vector<32x128xf32>
    %c0_348 = arith.constant 0 : index
    %c4_349 = arith.constant 4 : index
    %c0_350 = arith.constant 0 : index
    %349 = vector.load %arg39[%c0_348, %c4_349, %c0_350] : memref<2x23x128xbf16, #tpu.memory_space<vmem>>, vector<2x16x128xbf16>
    %350 = vector.shape_cast %349 : vector<2x16x128xbf16> to vector<32x128xbf16>
    %c4_351 = arith.constant 4 : index
    %c0_352 = arith.constant 0 : index
    %c0_353 = arith.constant 0 : index
    %351 = vector.load %arg25[%c4_351, %c0_352, %c0_353] : memref<8x128x128xbf16, #tpu.memory_space<vmem>>, vector<1x128x128xbf16>
    %352 = vector.shape_cast %351 : vector<1x128x128xbf16> to vector<128x128xbf16>
    %cst_354 = arith.constant dense<0.000000e+00> : vector<32x128xf32>
    %353 = tpu.matmul %350, %352, %cst_354 {dimension_numbers = #tpu.dot_dimension_numbers<[1], [0], [0], [1], [0, 0, 1, 1], [], []>} : vector<32x128xbf16>, vector<128x128xbf16>, vector<32x128xf32> -> vector<32x128xf32>
    %354 = arith.addf %348, %353 : vector<32x128xf32>
    %c0_355 = arith.constant 0 : index
    %c5_356 = arith.constant 5 : index
    %c0_357 = arith.constant 0 : index
    %355 = vector.load %arg39[%c0_355, %c5_356, %c0_357] : memref<2x23x128xbf16, #tpu.memory_space<vmem>>, vector<2x16x128xbf16>
    %356 = vector.shape_cast %355 : vector<2x16x128xbf16> to vector<32x128xbf16>
    %c5_358 = arith.constant 5 : index
    %c0_359 = arith.constant 0 : index
    %c0_360 = arith.constant 0 : index
    %357 = vector.load %arg25[%c5_358, %c0_359, %c0_360] : memref<8x128x128xbf16, #tpu.memory_space<vmem>>, vector<1x128x128xbf16>
    %358 = vector.shape_cast %357 : vector<1x128x128xbf16> to vector<128x128xbf16>
    %cst_361 = arith.constant dense<0.000000e+00> : vector<32x128xf32>
    %359 = tpu.matmul %356, %358, %cst_361 {dimension_numbers = #tpu.dot_dimension_numbers<[1], [0], [0], [1], [0, 0, 1, 1], [], []>} : vector<32x128xbf16>, vector<128x128xbf16>, vector<32x128xf32> -> vector<32x128xf32>
    %360 = arith.addf %354, %359 : vector<32x128xf32>
    %c0_362 = arith.constant 0 : index
    %c6_363 = arith.constant 6 : index
    %c0_364 = arith.constant 0 : index
    %361 = vector.load %arg39[%c0_362, %c6_363, %c0_364] : memref<2x23x128xbf16, #tpu.memory_space<vmem>>, vector<2x16x128xbf16>
    %362 = vector.shape_cast %361 : vector<2x16x128xbf16> to vector<32x128xbf16>
    %c6_365 = arith.constant 6 : index
    %c0_366 = arith.constant 0 : index
    %c0_367 = arith.constant 0 : index
    %363 = vector.load %arg25[%c6_365, %c0_366, %c0_367] : memref<8x128x128xbf16, #tpu.memory_space<vmem>>, vector<1x128x128xbf16>
    %364 = vector.shape_cast %363 : vector<1x128x128xbf16> to vector<128x128xbf16>
    %cst_368 = arith.constant dense<0.000000e+00> : vector<32x128xf32>
    %365 = tpu.matmul %362, %364, %cst_368 {dimension_numbers = #tpu.dot_dimension_numbers<[1], [0], [0], [1], [0, 0, 1, 1], [], []>} : vector<32x128xbf16>, vector<128x128xbf16>, vector<32x128xf32> -> vector<32x128xf32>
    %366 = arith.addf %360, %365 : vector<32x128xf32>
    %c0_369 = arith.constant 0 : index
    %c7_370 = arith.constant 7 : index
    %c0_371 = arith.constant 0 : index
    %367 = vector.load %arg39[%c0_369, %c7_370, %c0_371] : memref<2x23x128xbf16, #tpu.memory_space<vmem>>, vector<2x16x128xbf16>
    %368 = vector.shape_cast %367 : vector<2x16x128xbf16> to vector<32x128xbf16>
    %c7_372 = arith.constant 7 : index
    %c0_373 = arith.constant 0 : index
    %c0_374 = arith.constant 0 : index
    %369 = vector.load %arg25[%c7_372, %c0_373, %c0_374] : memref<8x128x128xbf16, #tpu.memory_space<vmem>>, vector<1x128x128xbf16>
    %370 = vector.shape_cast %369 : vector<1x128x128xbf16> to vector<128x128xbf16>
    %cst_375 = arith.constant dense<0.000000e+00> : vector<32x128xf32>
    %371 = tpu.matmul %368, %370, %cst_375 {dimension_numbers = #tpu.dot_dimension_numbers<[1], [0], [0], [1], [0, 0, 1, 1], [], []>} : vector<32x128xbf16>, vector<128x128xbf16>, vector<32x128xf32> -> vector<32x128xf32>
    %372 = arith.addf %366, %371 : vector<32x128xf32>
    %373 = vector.shape_cast %372 : vector<32x128xf32> to vector<2x16x128xf32>
    %c0_376 = arith.constant 0 : index
    %c0_377 = arith.constant 0 : index
    %374 = vector.load %arg26[%c0_376, %c0_377] : memref<1x128xf32, #tpu.memory_space<vmem>>, vector<1x128xf32>
    %375 = vector.shape_cast %374 : vector<1x128xf32> to vector<1x1x128xf32>
    %376 = vector.broadcast %375 : vector<1x1x128xf32> to vector<2x16x128xf32>
    %377 = arith.mulf %373, %376 : vector<2x16x128xf32>
    %c0_378 = arith.constant 0 : index
    %c0_379 = arith.constant 0 : index
    %378 = vector.load %arg27[%c0_378, %c0_379] : memref<1x128xf32, #tpu.memory_space<vmem>>, vector<1x128xf32>
    %379 = vector.shape_cast %378 : vector<1x128xf32> to vector<1x1x128xf32>
    %380 = vector.broadcast %379 : vector<1x1x128xf32> to vector<2x16x128xf32>
    %381 = arith.addf %377, %380 : vector<2x16x128xf32>
    %cst_380 = arith.constant 0.000000e+00 : f32
    %382 = vector.broadcast %cst_380 : f32 to vector<2x16x128xf32>
    %383 = arith.maximumf %381, %382 : vector<2x16x128xf32>
    %384 = arith.truncf %383 : vector<2x16x128xf32> to vector<2x16x128xbf16>
    %cst_381 = arith.constant 0.000000e+00 : bf16
    %385 = vector.broadcast %cst_381 : bf16 to vector<2x23x128xbf16>
    %c0_382 = arith.constant 0 : index
    %c0_383 = arith.constant 0 : index
    %c0_384 = arith.constant 0 : index
    %386 = vector.load %arg39[%c0_382, %c0_383, %c0_384] : memref<2x23x128xbf16, #tpu.memory_space<vmem>>, vector<2x23x128xbf16>
    tpu.vector_store %arg39[%c0_382, %c0_383, %c0_384], %385 {strides = array<i32>} : memref<2x23x128xbf16, #tpu.memory_space<vmem>>, vector<2x23x128xbf16>,
    %c0_385 = arith.constant 0 : index
    %c2_386 = arith.constant 2 : index
    %c0_387 = arith.constant 0 : index
    %387 = vector.load %arg39[%c0_385, %c2_386, %c0_387] : memref<2x23x128xbf16, #tpu.memory_space<vmem>>, vector<2x16x128xbf16>
    tpu.vector_store %arg39[%c0_385, %c2_386, %c0_387], %384 {strides = array<i32>} : memref<2x23x128xbf16, #tpu.memory_space<vmem>>, vector<2x16x128xbf16>,
    %cst_388 = arith.constant 0.000000e+00 : f32
    %388 = vector.broadcast %cst_388 : f32 to vector<32x128xf32>
    %c0_389 = arith.constant 0 : index
    %c0_390 = arith.constant 0 : index
    %c0_391 = arith.constant 0 : index
    %389 = vector.load %arg39[%c0_389, %c0_390, %c0_391] : memref<2x23x128xbf16, #tpu.memory_space<vmem>>, vector<2x16x128xbf16>
    %390 = vector.shape_cast %389 : vector<2x16x128xbf16> to vector<32x128xbf16>
    %c0_392 = arith.constant 0 : index
    %c0_393 = arith.constant 0 : index
    %c0_394 = arith.constant 0 : index
    %391 = vector.load %arg28[%c0_392, %c0_393, %c0_394] : memref<5x128x128xbf16, #tpu.memory_space<vmem>>, vector<1x128x128xbf16>
    %392 = vector.shape_cast %391 : vector<1x128x128xbf16> to vector<128x128xbf16>
    %cst_395 = arith.constant dense<0.000000e+00> : vector<32x128xf32>
    %393 = tpu.matmul %390, %392, %cst_395 {dimension_numbers = #tpu.dot_dimension_numbers<[1], [0], [0], [1], [0, 0, 1, 1], [], []>} : vector<32x128xbf16>, vector<128x128xbf16>, vector<32x128xf32> -> vector<32x128xf32>
    %394 = arith.addf %388, %393 : vector<32x128xf32>
    %c0_396 = arith.constant 0 : index
    %c1_397 = arith.constant 1 : index
    %c0_398 = arith.constant 0 : index
    %395 = vector.load %arg39[%c0_396, %c1_397, %c0_398] : memref<2x23x128xbf16, #tpu.memory_space<vmem>>, vector<2x16x128xbf16>
    %396 = vector.shape_cast %395 : vector<2x16x128xbf16> to vector<32x128xbf16>
    %c1_399 = arith.constant 1 : index
    %c0_400 = arith.constant 0 : index
    %c0_401 = arith.constant 0 : index
    %397 = vector.load %arg28[%c1_399, %c0_400, %c0_401] : memref<5x128x128xbf16, #tpu.memory_space<vmem>>, vector<1x128x128xbf16>
    %398 = vector.shape_cast %397 : vector<1x128x128xbf16> to vector<128x128xbf16>
    %cst_402 = arith.constant dense<0.000000e+00> : vector<32x128xf32>
    %399 = tpu.matmul %396, %398, %cst_402 {dimension_numbers = #tpu.dot_dimension_numbers<[1], [0], [0], [1], [0, 0, 1, 1], [], []>} : vector<32x128xbf16>, vector<128x128xbf16>, vector<32x128xf32> -> vector<32x128xf32>
    %400 = arith.addf %394, %399 : vector<32x128xf32>
    %c0_403 = arith.constant 0 : index
    %c2_404 = arith.constant 2 : index
    %c0_405 = arith.constant 0 : index
    %401 = vector.load %arg39[%c0_403, %c2_404, %c0_405] : memref<2x23x128xbf16, #tpu.memory_space<vmem>>, vector<2x16x128xbf16>
    %402 = vector.shape_cast %401 : vector<2x16x128xbf16> to vector<32x128xbf16>
    %c2_406 = arith.constant 2 : index
    %c0_407 = arith.constant 0 : index
    %c0_408 = arith.constant 0 : index
    %403 = vector.load %arg28[%c2_406, %c0_407, %c0_408] : memref<5x128x128xbf16, #tpu.memory_space<vmem>>, vector<1x128x128xbf16>
    %404 = vector.shape_cast %403 : vector<1x128x128xbf16> to vector<128x128xbf16>
    %cst_409 = arith.constant dense<0.000000e+00> : vector<32x128xf32>
    %405 = tpu.matmul %402, %404, %cst_409 {dimension_numbers = #tpu.dot_dimension_numbers<[1], [0], [0], [1], [0, 0, 1, 1], [], []>} : vector<32x128xbf16>, vector<128x128xbf16>, vector<32x128xf32> -> vector<32x128xf32>
    %406 = arith.addf %400, %405 : vector<32x128xf32>
    %c0_410 = arith.constant 0 : index
    %c3_411 = arith.constant 3 : index
    %c0_412 = arith.constant 0 : index
    %407 = vector.load %arg39[%c0_410, %c3_411, %c0_412] : memref<2x23x128xbf16, #tpu.memory_space<vmem>>, vector<2x16x128xbf16>
    %408 = vector.shape_cast %407 : vector<2x16x128xbf16> to vector<32x128xbf16>
    %c3_413 = arith.constant 3 : index
    %c0_414 = arith.constant 0 : index
    %c0_415 = arith.constant 0 : index
    %409 = vector.load %arg28[%c3_413, %c0_414, %c0_415] : memref<5x128x128xbf16, #tpu.memory_space<vmem>>, vector<1x128x128xbf16>
    %410 = vector.shape_cast %409 : vector<1x128x128xbf16> to vector<128x128xbf16>
    %cst_416 = arith.constant dense<0.000000e+00> : vector<32x128xf32>
    %411 = tpu.matmul %408, %410, %cst_416 {dimension_numbers = #tpu.dot_dimension_numbers<[1], [0], [0], [1], [0, 0, 1, 1], [], []>} : vector<32x128xbf16>, vector<128x128xbf16>, vector<32x128xf32> -> vector<32x128xf32>
    %412 = arith.addf %406, %411 : vector<32x128xf32>
    %c0_417 = arith.constant 0 : index
    %c4_418 = arith.constant 4 : index
    %c0_419 = arith.constant 0 : index
    %413 = vector.load %arg39[%c0_417, %c4_418, %c0_419] : memref<2x23x128xbf16, #tpu.memory_space<vmem>>, vector<2x16x128xbf16>
    %414 = vector.shape_cast %413 : vector<2x16x128xbf16> to vector<32x128xbf16>
    %c4_420 = arith.constant 4 : index
    %c0_421 = arith.constant 0 : index
    %c0_422 = arith.constant 0 : index
    %415 = vector.load %arg28[%c4_420, %c0_421, %c0_422] : memref<5x128x128xbf16, #tpu.memory_space<vmem>>, vector<1x128x128xbf16>
    %416 = vector.shape_cast %415 : vector<1x128x128xbf16> to vector<128x128xbf16>
    %cst_423 = arith.constant dense<0.000000e+00> : vector<32x128xf32>
    %417 = tpu.matmul %414, %416, %cst_423 {dimension_numbers = #tpu.dot_dimension_numbers<[1], [0], [0], [1], [0, 0, 1, 1], [], []>} : vector<32x128xbf16>, vector<128x128xbf16>, vector<32x128xf32> -> vector<32x128xf32>
    %418 = arith.addf %412, %417 : vector<32x128xf32>
    %419 = vector.shape_cast %418 : vector<32x128xf32> to vector<2x16x128xf32>
    %c0_424 = arith.constant 0 : index
    %c0_425 = arith.constant 0 : index
    %420 = vector.load %arg29[%c0_424, %c0_425] : memref<1x128xf32, #tpu.memory_space<vmem>>, vector<1x128xf32>
    %421 = vector.shape_cast %420 : vector<1x128xf32> to vector<1x1x128xf32>
    %422 = vector.broadcast %421 : vector<1x1x128xf32> to vector<2x16x128xf32>
    %423 = arith.mulf %419, %422 : vector<2x16x128xf32>
    %c0_426 = arith.constant 0 : index
    %c0_427 = arith.constant 0 : index
    %424 = vector.load %arg30[%c0_426, %c0_427] : memref<1x128xf32, #tpu.memory_space<vmem>>, vector<1x128xf32>
    %425 = vector.shape_cast %424 : vector<1x128xf32> to vector<1x1x128xf32>
    %426 = vector.broadcast %425 : vector<1x1x128xf32> to vector<2x16x128xf32>
    %427 = arith.addf %423, %426 : vector<2x16x128xf32>
    %cst_428 = arith.constant 0.000000e+00 : f32
    %428 = vector.broadcast %cst_428 : f32 to vector<2x16x128xf32>
    %429 = arith.maximumf %427, %428 : vector<2x16x128xf32>
    %430 = arith.truncf %429 : vector<2x16x128xf32> to vector<2x16x128xbf16>
    %cst_429 = arith.constant 0.000000e+00 : bf16
    %431 = vector.broadcast %cst_429 : bf16 to vector<2x23x128xbf16>
    %c0_430 = arith.constant 0 : index
    %c0_431 = arith.constant 0 : index
    %c0_432 = arith.constant 0 : index
    %432 = vector.load %arg39[%c0_430, %c0_431, %c0_432] : memref<2x23x128xbf16, #tpu.memory_space<vmem>>, vector<2x23x128xbf16>
    tpu.vector_store %arg39[%c0_430, %c0_431, %c0_432], %431 {strides = array<i32>} : memref<2x23x128xbf16, #tpu.memory_space<vmem>>, vector<2x23x128xbf16>,
    %c0_433 = arith.constant 0 : index
    %c1_434 = arith.constant 1 : index
    %c0_435 = arith.constant 0 : index
    %433 = vector.load %arg39[%c0_433, %c1_434, %c0_435] : memref<2x23x128xbf16, #tpu.memory_space<vmem>>, vector<2x16x128xbf16>
    tpu.vector_store %arg39[%c0_433, %c1_434, %c0_435], %430 {strides = array<i32>} : memref<2x23x128xbf16, #tpu.memory_space<vmem>>, vector<2x16x128xbf16>,
    %cst_436 = arith.constant 0.000000e+00 : f32
    %434 = vector.broadcast %cst_436 : f32 to vector<32x128xf32>
    %c0_437 = arith.constant 0 : index
    %c0_438 = arith.constant 0 : index
    %c0_439 = arith.constant 0 : index
    %435 = vector.load %arg39[%c0_437, %c0_438, %c0_439] : memref<2x23x128xbf16, #tpu.memory_space<vmem>>, vector<2x16x128xbf16>
    %436 = vector.shape_cast %435 : vector<2x16x128xbf16> to vector<32x128xbf16>
    %c0_440 = arith.constant 0 : index
    %c0_441 = arith.constant 0 : index
    %c0_442 = arith.constant 0 : index
    %437 = vector.load %arg31[%c0_440, %c0_441, %c0_442] : memref<3x128x128xbf16, #tpu.memory_space<vmem>>, vector<1x128x128xbf16>
    %438 = vector.shape_cast %437 : vector<1x128x128xbf16> to vector<128x128xbf16>
    %cst_443 = arith.constant dense<0.000000e+00> : vector<32x128xf32>
    %439 = tpu.matmul %436, %438, %cst_443 {dimension_numbers = #tpu.dot_dimension_numbers<[1], [0], [0], [1], [0, 0, 1, 1], [], []>} : vector<32x128xbf16>, vector<128x128xbf16>, vector<32x128xf32> -> vector<32x128xf32>
    %440 = arith.addf %434, %439 : vector<32x128xf32>
    %c0_444 = arith.constant 0 : index
    %c1_445 = arith.constant 1 : index
    %c0_446 = arith.constant 0 : index
    %441 = vector.load %arg39[%c0_444, %c1_445, %c0_446] : memref<2x23x128xbf16, #tpu.memory_space<vmem>>, vector<2x16x128xbf16>
    %442 = vector.shape_cast %441 : vector<2x16x128xbf16> to vector<32x128xbf16>
    %c1_447 = arith.constant 1 : index
    %c0_448 = arith.constant 0 : index
    %c0_449 = arith.constant 0 : index
    %443 = vector.load %arg31[%c1_447, %c0_448, %c0_449] : memref<3x128x128xbf16, #tpu.memory_space<vmem>>, vector<1x128x128xbf16>
    %444 = vector.shape_cast %443 : vector<1x128x128xbf16> to vector<128x128xbf16>
    %cst_450 = arith.constant dense<0.000000e+00> : vector<32x128xf32>
    %445 = tpu.matmul %442, %444, %cst_450 {dimension_numbers = #tpu.dot_dimension_numbers<[1], [0], [0], [1], [0, 0, 1, 1], [], []>} : vector<32x128xbf16>, vector<128x128xbf16>, vector<32x128xf32> -> vector<32x128xf32>
    %446 = arith.addf %440, %445 : vector<32x128xf32>
    %c0_451 = arith.constant 0 : index
    %c2_452 = arith.constant 2 : index
    %c0_453 = arith.constant 0 : index
    %447 = vector.load %arg39[%c0_451, %c2_452, %c0_453] : memref<2x23x128xbf16, #tpu.memory_space<vmem>>, vector<2x16x128xbf16>
    %448 = vector.shape_cast %447 : vector<2x16x128xbf16> to vector<32x128xbf16>
    %c2_454 = arith.constant 2 : index
    %c0_455 = arith.constant 0 : index
    %c0_456 = arith.constant 0 : index
    %449 = vector.load %arg31[%c2_454, %c0_455, %c0_456] : memref<3x128x128xbf16, #tpu.memory_space<vmem>>, vector<1x128x128xbf16>
    %450 = vector.shape_cast %449 : vector<1x128x128xbf16> to vector<128x128xbf16>
    %cst_457 = arith.constant dense<0.000000e+00> : vector<32x128xf32>
    %451 = tpu.matmul %448, %450, %cst_457 {dimension_numbers = #tpu.dot_dimension_numbers<[1], [0], [0], [1], [0, 0, 1, 1], [], []>} : vector<32x128xbf16>, vector<128x128xbf16>, vector<32x128xf32> -> vector<32x128xf32>
    %452 = arith.addf %446, %451 : vector<32x128xf32>
    %453 = vector.shape_cast %452 : vector<32x128xf32> to vector<2x16x128xf32>
    %c0_458 = arith.constant 0 : index
    %c0_459 = arith.constant 0 : index
    %454 = vector.load %arg32[%c0_458, %c0_459] : memref<1x128xf32, #tpu.memory_space<vmem>>, vector<1x128xf32>
    %455 = vector.shape_cast %454 : vector<1x128xf32> to vector<1x1x128xf32>
    %456 = vector.broadcast %455 : vector<1x1x128xf32> to vector<2x16x128xf32>
    %457 = arith.mulf %453, %456 : vector<2x16x128xf32>
    %c0_460 = arith.constant 0 : index
    %c0_461 = arith.constant 0 : index
    %458 = vector.load %arg33[%c0_460, %c0_461] : memref<1x128xf32, #tpu.memory_space<vmem>>, vector<1x128xf32>
    %459 = vector.shape_cast %458 : vector<1x128xf32> to vector<1x1x128xf32>
    %460 = vector.broadcast %459 : vector<1x1x128xf32> to vector<2x16x128xf32>
    %461 = arith.addf %457, %460 : vector<2x16x128xf32>
    %c0_462 = arith.constant 0 : index
    %c0_463 = arith.constant 0 : index
    %462 = vector.load %arg34[%c0_462, %c0_463] : memref<1x128xf32, #tpu.memory_space<vmem>>, vector<1x128xf32>
    %463 = vector.shape_cast %462 : vector<1x128xf32> to vector<1x1x128xf32>
    %464 = vector.broadcast %463 : vector<1x1x128xf32> to vector<2x16x128xf32>
    %465 = arith.mulf %319, %464 : vector<2x16x128xf32>
    %c0_464 = arith.constant 0 : index
    %c0_465 = arith.constant 0 : index
    %466 = vector.load %arg35[%c0_464, %c0_465] : memref<1x128xf32, #tpu.memory_space<vmem>>, vector<1x128xf32>
    %467 = vector.shape_cast %466 : vector<1x128xf32> to vector<1x1x128xf32>
    %468 = vector.broadcast %467 : vector<1x1x128xf32> to vector<2x16x128xf32>
    %469 = arith.addf %465, %468 : vector<2x16x128xf32>
    %470 = arith.addf %461, %469 : vector<2x16x128xf32>
    %cst_466 = arith.constant 0.000000e+00 : f32
    %471 = vector.broadcast %cst_466 : f32 to vector<2x16x128xf32>
    %472 = arith.maximumf %470, %471 : vector<2x16x128xf32>
    %cst_467 = arith.constant dense<0.000000e+00> : vector<2x128xf32>
    %473 = vector.multi_reduction <add>, %472, %cst_467 [1] : vector<2x16x128xf32> to vector<2x128xf32>
    %cst_468 = arith.constant 1.600000e+01 : f32
    %474 = vector.broadcast %cst_468 : f32 to vector<2x128xf32>
    %475 = arith.divf %473, %474 : vector<2x128xf32>
    %c0_469 = arith.constant 0 : index
    %c0_470 = arith.constant 0 : index
    %476 = vector.load %arg36[%c0_469, %c0_470] : memref<128x128xf32, #tpu.memory_space<vmem>>, vector<128x128xf32>
    %cst_471 = arith.constant dense<0.000000e+00> : vector<2x128xf32>
    %477 = tpu.matmul %475, %476, %cst_471 {dimension_numbers = #tpu.dot_dimension_numbers<[1], [0], [0], [1], [0, 0, 1, 1], [], []>} : vector<2x128xf32>, vector<128x128xf32>, vector<2x128xf32> -> vector<2x128xf32>
    %c0_472 = arith.constant 0 : index
    %c0_473 = arith.constant 0 : index
    %478 = vector.load %arg37[%c0_472, %c0_473] : memref<1x128xf32, #tpu.memory_space<vmem>>, vector<1x128xf32>
    %479 = vector.broadcast %478 : vector<1x128xf32> to vector<2x128xf32>
    %480 = arith.addf %477, %479 : vector<2x128xf32>
    %cst_474 = arith.constant dense<0xFF800000> : vector<2xf32>
    %481 = vector.multi_reduction <maximumf>, %480, %cst_474 [1] : vector<2x128xf32> to vector<2xf32>
    %482 = vector.shape_cast %481 : vector<2xf32> to vector<2x1xf32>
    %483 = vector.broadcast %482 : vector<2x1xf32> to vector<2x128xf32>
    %484 = arith.subf %480, %483 : vector<2x128xf32>
    %485 = math.exp %484 : vector<2x128xf32>
    %cst_475 = arith.constant dense<0.000000e+00> : vector<2xf32>
    %486 = vector.multi_reduction <add>, %485, %cst_475 [1] : vector<2x128xf32> to vector<2xf32>
    %487 = vector.shape_cast %486 : vector<2xf32> to vector<2x1xf32>
    %488 = vector.broadcast %487 : vector<2x1xf32> to vector<2x128xf32>
    %489 = arith.divf %485, %488 : vector<2x128xf32>
    %490 = vector.extract_strided_slice %489 {offsets = [0, 0], sizes = [2, 6], strides = [1, 1]} : vector<2x128xf32> to vector<2x6xf32>
    %c0_476 = arith.constant 0 : index
    %c0_477 = arith.constant 0 : index
    %491 = vector.load %arg38[%c0_476, %c0_477] : memref<2x6xf32, #tpu.memory_space<vmem>>, vector<2x6xf32>
    tpu.vector_store %arg38[%c0_476, %c0_477], %490 {strides = array<i32>} : memref<2x6xf32, #tpu.memory_space<vmem>>, vector<2x6xf32>,
    return
  }
}

</mosaic_0001>

<llo_original>
// kernel: tpu_custom_call.1
$region0: #{tpu_custom_call.1}
  #allocation0 [shape = 'u32[]', space=smem, size = 0x4, offset = 0x4, fixed_abs, tag = 'smem constant byte address 0x4 - core index']
  #allocation1 [shape = 'u32[144,128]{1,0:T(1,128)}', space=vmem, size = 0x12000, scoped, tag = 'internal scratch']
  #allocation2 [shape = 'bf16[2,23,128]{2,1,0:T(8,128)(2,1)}', space=vmem, size = 0x3000, scoped, tag = 'scratch operand']
  %s0 = inlined_call_operand.smem [shape: u32[39], index: -1, kind: input, shape index: {}]
  %s1 = sld [smem:[%s0]]
  %s2 = scalar_lea.smem %s0, 1
  %s3 = sld [smem:[%s2]]
  %s4 = scalar_lea.smem %s0, 2
  %s5 = sld [smem:[%s4]]
  %s6 = scalar_lea.smem %s0, 3
  %s7 = sld [smem:[%s6]]
  %s8 = scalar_lea.smem %s0, 4
  %s9 = sld [smem:[%s8]]
  %s10 = scalar_lea.smem %s0, 5
  %s11 = sld [smem:[%s10]]
  %s12 = scalar_lea.smem %s0, 6
  %s13 = sld [smem:[%s12]]
  %s14 = scalar_lea.smem %s0, 7
  %s15 = sld [smem:[%s14]]
  %s16 = scalar_lea.smem %s0, 8
  %s17 = sld [smem:[%s16]]
  %s18 = scalar_lea.smem %s0, 9
  %s19 = sld [smem:[%s18]]
  %s20 = scalar_lea.smem %s0, 10
  %s21 = sld [smem:[%s20]]
  %s22 = scalar_lea.smem %s0, 11
  %s23 = sld [smem:[%s22]]
  %s24 = scalar_lea.smem %s0, 12
  %s25 = sld [smem:[%s24]]
  %s26 = scalar_lea.smem %s0, 13
  %s27 = sld [smem:[%s26]]
  %s28 = scalar_lea.smem %s0, 14
  %s29 = sld [smem:[%s28]]
  %s30 = scalar_lea.smem %s0, 15
  %s31 = sld [smem:[%s30]]
  %s32 = scalar_lea.smem %s0, 16
  %s33 = sld [smem:[%s32]]
  %s34 = scalar_lea.smem %s0, 17
  %s35 = sld [smem:[%s34]]
  %s36 = scalar_lea.smem %s0, 18
  %s37 = sld [smem:[%s36]]
  %s38 = scalar_lea.smem %s0, 19
  %s39 = sld [smem:[%s38]]
  %s40 = scalar_lea.smem %s0, 20
  %s41 = sld [smem:[%s40]]
  %s42 = scalar_lea.smem %s0, 21
  %s43 = sld [smem:[%s42]]
  %s44 = scalar_lea.smem %s0, 22
  %s45 = sld [smem:[%s44]]
  %s46 = scalar_lea.smem %s0, 23
  %s47 = sld [smem:[%s46]]
  %s48 = scalar_lea.smem %s0, 24
  %s49 = sld [smem:[%s48]]
  %s50 = scalar_lea.smem %s0, 25
  %s51 = sld [smem:[%s50]]
  %s52 = scalar_lea.smem %s0, 26
  %s53 = sld [smem:[%s52]]
  %s54 = scalar_lea.smem %s0, 27
  %s55 = sld [smem:[%s54]]
  %s56 = scalar_lea.smem %s0, 28
  %s57 = sld [smem:[%s56]]
  %s58 = scalar_lea.smem %s0, 29
  %s59 = sld [smem:[%s58]]
  %s60 = scalar_lea.smem %s0, 30
  %s61 = sld [smem:[%s60]]
  %s62 = scalar_lea.smem %s0, 31
  %s63 = sld [smem:[%s62]]
  %s64 = scalar_lea.smem %s0, 32
  %s65 = sld [smem:[%s64]]
  %s66 = scalar_lea.smem %s0, 33
  %s67 = sld [smem:[%s66]]
  %s68 = scalar_lea.smem %s0, 34
  %s69 = sld [smem:[%s68]]
  %s70 = scalar_lea.smem %s0, 35
  %s71 = sld [smem:[%s70]]
  %s72 = scalar_lea.smem %s0, 36
  %s73 = sld [smem:[%s72]]
  %s74 = scalar_lea.smem %s0, 37
  %s75 = sld [smem:[%s74]]
  %s76 = scalar_lea.smem %s0, 38
  %s77 = sld [smem:[%s76]]
  %s78 = sld [smem:[#allocation0]]
  $region274: #{tpu_custom_call.1} parent=0
    _
  %s80 = ssub.s32 1, %s78
  %s81 = scalar_select 0, %s80, %s78
  $region1: #{tpu_custom_call.1} parent=0
    #allocation3 [shape = 'u8[8192]{0}', space=vmem, size = 0x2000, scoped, tag = 'input window, operand 0, single buffered']
    #allocation4 [shape = 's32[1]{0}', space=sflag, size = 0x4, scoped, tag = 'scoped memory for tpu_custom_call.1']
    #allocation5 [shape = 's32[1]{0}', space=sflag, size = 0x4, scoped, tag = 'scoped memory for tpu_custom_call.1']
    #allocation6 [shape = 'u8[262144]{0}', space=vmem, size = 0x40000, scoped, tag = 'input window, operand 1, single buffered']
    #allocation7 [shape = 's32[1]{0}', space=sflag, size = 0x4, scoped, tag = 'scoped memory for tpu_custom_call.1']
    #allocation8 [shape = 'u8[163840]{0}', space=vmem, size = 0x28000, scoped, tag = 'input window, operand 4, single buffered']
    #allocation9 [shape = 'u8[98304]{0}', space=vmem, size = 0x18000, scoped, tag = 'input window, operand 7, single buffered']
    #allocation10 [shape = 's32[1]{0}', space=sflag, size = 0x4, scoped, tag = 'scoped memory for tpu_custom_call.1']
    #allocation11 [shape = 'u8[32768]{0}', space=vmem, size = 0x8000, scoped, tag = 'input window, operand 10, single buffered']
    #allocation12 [shape = 'u8[262144]{0}', space=vmem, size = 0x40000, scoped, tag = 'input window, operand 13, single buffered']
    #allocation13 [shape = 's32[1]{0}', space=sflag, size = 0x4, scoped, tag = 'scoped memory for tpu_custom_call.1']
    #allocation14 [shape = 'u8[512]{0}', space=vmem, size = 0x400, scoped, tag = 'input window, operand 14, single buffered']
    #allocation15 [shape = 'u8[512]{0}', space=vmem, size = 0x400, scoped, tag = 'input window, operand 15, single buffered']
    #allocation16 [shape = 's32[1]{0}', space=sflag, size = 0x4, scoped, tag = 'scoped memory for tpu_custom_call.1']
    #allocation17 [shape = 'u8[163840]{0}', space=vmem, size = 0x28000, scoped, tag = 'input window, operand 16, single buffered']
    #allocation18 [shape = 'u8[512]{0}', space=vmem, size = 0x400, scoped, tag = 'input window, operand 17, single buffered']
    #allocation19 [shape = 's32[1]{0}', space=sflag, size = 0x4, scoped, tag = 'scoped memory for tpu_custom_call.1']
    #allocation20 [shape = 'u8[512]{0}', space=vmem, size = 0x400, scoped, tag = 'input window, operand 18, single buffered']
    #allocation21 [shape = 'u8[98304]{0}', space=vmem, size = 0x18000, scoped, tag = 'input window, operand 19, single buffered']
    #allocation22 [shape = 's32[1]{0}', space=sflag, size = 0x4, scoped, tag = 'scoped memory for tpu_custom_call.1']
    #allocation23 [shape = 'u8[512]{0}', space=vmem, size = 0x400, scoped, tag = 'input window, operand 20, single buffered']
    #allocation24 [shape = 'u8[512]{0}', space=vmem, size = 0x400, scoped, tag = 'input window, operand 21, single buffered']
    #allocation25 [shape = 's32[1]{0}', space=sflag, size = 0x4, scoped, tag = 'scoped memory for tpu_custom_call.1']
    #allocation26 [shape = 'u8[32768]{0}', space=vmem, size = 0x8000, scoped, tag = 'input window, operand 22, single buffered']
    #allocation27 [shape = 'u8[512]{0}', space=vmem, size = 0x400, scoped, tag = 'input window, operand 23, single buffered']
    #allocation28 [shape = 's32[1]{0}', space=sflag, size = 0x4, scoped, tag = 'scoped memory for tpu_custom_call.1']
    #allocation29 [shape = 'u8[512]{0}', space=vmem, size = 0x400, scoped, tag = 'input window, operand 24, single buffered']
    #allocation30 [shape = 'u8[262144]{0}', space=vmem, size = 0x40000, scoped, tag = 'input window, operand 25, single buffered']
    #allocation31 [shape = 's32[1]{0}', space=sflag, size = 0x4, scoped, tag = 'scoped memory for tpu_custom_call.1']
    #allocation32 [shape = 'u8[512]{0}', space=vmem, size = 0x400, scoped, tag = 'input window, operand 26, single buffered']
    #allocation33 [shape = 'u8[512]{0}', space=vmem, size = 0x400, scoped, tag = 'input window, operand 27, single buffered']
    #allocation34 [shape = 's32[1]{0}', space=sflag, size = 0x4, scoped, tag = 'scoped memory for tpu_custom_call.1']
    #allocation35 [shape = 'u8[163840]{0}', space=vmem, size = 0x28000, scoped, tag = 'input window, operand 28, single buffered']
    #allocation36 [shape = 'u8[512]{0}', space=vmem, size = 0x400, scoped, tag = 'input window, operand 29, single buffered']
    #allocation37 [shape = 's32[1]{0}', space=sflag, size = 0x4, scoped, tag = 'scoped memory for tpu_custom_call.1']
    #allocation38 [shape = 'u8[512]{0}', space=vmem, size = 0x400, scoped, tag = 'input window, operand 30, single buffered']
    #allocation39 [shape = 'u8[98304]{0}', space=vmem, size = 0x18000, scoped, tag = 'input window, operand 31, single buffered']
    #allocation40 [shape = 's32[1]{0}', space=sflag, size = 0x4, scoped, tag = 'scoped memory for tpu_custom_call.1']
    #allocation41 [shape = 'u8[512]{0}', space=vmem, size = 0x400, scoped, tag = 'input window, operand 32, single buffered']
    #allocation42 [shape = 'u8[512]{0}', space=vmem, size = 0x400, scoped, tag = 'input window, operand 33, single buffered']
    #allocation43 [shape = 's32[1]{0}', space=sflag, size = 0x4, scoped, tag = 'scoped memory for tpu_custom_call.1']
    #allocation44 [shape = 'u8[512]{0}', space=vmem, size = 0x400, scoped, tag = 'input window, operand 34, single buffered']
    #allocation45 [shape = 'u8[512]{0}', space=vmem, size = 0x400, scoped, tag = 'input window, operand 35, single buffered']
    #allocation46 [shape = 's32[1]{0}', space=sflag, size = 0x4, scoped, tag = 'scoped memory for tpu_custom_call.1']
    #allocation47 [shape = 'u8[1024]{0}', space=vmem, size = 0x400, scoped, tag = 'output window, operand 0, single buffered']
    %82 = vsyncpa [#allocation4], 0
    %83 = vsyncpa [#allocation7], 0
    %84 = vsyncpa [#allocation10], 0
    %85 = vsyncpa [#allocation13], 0
    %86 = vsyncpa [#allocation16], 0
    %87 = vsyncpa [#allocation19], 0
    %88 = vsyncpa [#allocation22], 0
    %89 = vsyncpa [#allocation25], 0
    %90 = vsyncpa [#allocation28], 0
    %91 = vsyncpa [#allocation31], 0
    %92 = vsyncpa [#allocation34], 0
    %93 = vsyncpa [#allocation37], 0
    %94 = vsyncpa [#allocation40], 0
    %95 = vsyncpa [#allocation43], 0
    %96 = vsyncpa [#allocation46], 0
    %97 = vsyncpa [#allocation5], 0
    // Predicated region
    $region2: #{tpu_custom_call.1} parent=1 // pred_check
      _
    $region3: #{tpu_custom_call.1} parent=1 // pred_check_branch
      %99 = sbr.rel (0) target = $region5
    $region4: #{tpu_custom_call.1} parent=1 // pred_region
      %s101 = ssub.s32 256, 256
      %102 = vsyncadd [#allocation4], %s101
      %s103 = sshll.u32 [#allocation3], 4
      %s104 = int_to_ptr.vmem [resolvable:$true] %s103
      %109 = dma.hbm_to_vmem [thread:$0]  %s1, 256, %s104, [#allocation4], 64, 64, 4
    $region5: #{tpu_custom_call.1} parent=1 // pred_fallthru
      _
    // Predicated region
    $region6: #{tpu_custom_call.1} parent=1 // pred_check
      _
    $region7: #{tpu_custom_call.1} parent=1 // pred_check_branch
      %111 = sbr.rel (0) target = $region9
    $region8: #{tpu_custom_call.1} parent=1 // pred_region
      %s113 = ssub.s32 8192, 8192
      %114 = vsyncadd [#allocation7], %s113
      %s115 = sshll.u32 [#allocation6], 4
      %s116 = int_to_ptr.vmem [resolvable:$true] %s115
      %121 = dma.hbm_to_vmem [thread:$0]  %s3, 8192, %s116, [#allocation7], 64, 64, 4
    $region9: #{tpu_custom_call.1} parent=1 // pred_fallthru
      _
    // Predicated region
    $region10: #{tpu_custom_call.1} parent=1 // pred_check
      _
    $region11: #{tpu_custom_call.1} parent=1 // pred_check_branch
      %123 = sbr.rel (0) target = $region13
    $region12: #{tpu_custom_call.1} parent=1 // pred_region
      _
    $region13: #{tpu_custom_call.1} parent=1 // pred_fallthru
      _
    // Predicated region
    $region14: #{tpu_custom_call.1} parent=1 // pred_check
      _
    $region15: #{tpu_custom_call.1} parent=1 // pred_check_branch
      %125 = sbr.rel (0) target = $region17
    $region16: #{tpu_custom_call.1} parent=1 // pred_region
      _
    $region17: #{tpu_custom_call.1} parent=1 // pred_fallthru
      _
    // Predicated region
    $region18: #{tpu_custom_call.1} parent=1 // pred_check
      _
    $region19: #{tpu_custom_call.1} parent=1 // pred_check_branch
      %127 = sbr.rel (0) target = $region21
    $region20: #{tpu_custom_call.1} parent=1 // pred_region
      %s129 = ssub.s32 5120, 5120
      %130 = vsyncadd [#allocation7], %s129
      %s131 = sshll.u32 [#allocation8], 4
      %s132 = int_to_ptr.vmem [resolvable:$true] %s131
      %137 = dma.hbm_to_vmem [thread:$0]  %s9, 5120, %s132, [#allocation7], 64, 64, 4
    $region21: #{tpu_custom_call.1} parent=1 // pred_fallthru
      _
    // Predicated region
    $region22: #{tpu_custom_call.1} parent=1 // pred_check
      _
    $region23: #{tpu_custom_call.1} parent=1 // pred_check_branch
      %139 = sbr.rel (0) target = $region25
    $region24: #{tpu_custom_call.1} parent=1 // pred_region
      _
    $region25: #{tpu_custom_call.1} parent=1 // pred_fallthru
      _
    // Predicated region
    $region26: #{tpu_custom_call.1} parent=1 // pred_check
      _
    $region27: #{tpu_custom_call.1} parent=1 // pred_check_branch
      %141 = sbr.rel (0) target = $region29
    $region28: #{tpu_custom_call.1} parent=1 // pred_region
      _
    $region29: #{tpu_custom_call.1} parent=1 // pred_fallthru
      _
    // Predicated region
    $region30: #{tpu_custom_call.1} parent=1 // pred_check
      _
    $region31: #{tpu_custom_call.1} parent=1 // pred_check_branch
      %143 = sbr.rel (0) target = $region33
    $region32: #{tpu_custom_call.1} parent=1 // pred_region
      %s145 = ssub.s32 3072, 3072
      %146 = vsyncadd [#allocation10], %s145
      %s147 = sshll.u32 [#allocation9], 4
      %s148 = int_to_ptr.vmem [resolvable:$true] %s147
      %153 = dma.hbm_to_vmem [thread:$0]  %s15, 3072, %s148, [#allocation10], 64, 64, 4
    $region33: #{tpu_custom_call.1} parent=1 // pred_fallthru
      _
    // Predicated region
    $region34: #{tpu_custom_call.1} parent=1 // pred_check
      _
    $region35: #{tpu_custom_call.1} parent=1 // pred_check_branch
      %155 = sbr.rel (0) target = $region37
    $region36: #{tpu_custom_call.1} parent=1 // pred_region
      _
    $region37: #{tpu_custom_call.1} parent=1 // pred_fallthru
      _
    // Predicated region
    $region38: #{tpu_custom_call.1} parent=1 // pred_check
      _
    $region39: #{tpu_custom_call.1} parent=1 // pred_check_branch
      %157 = sbr.rel (0) target = $region41
    $region40: #{tpu_custom_call.1} parent=1 // pred_region
      _
    $region41: #{tpu_custom_call.1} parent=1 // pred_fallthru
      _
    // Predicated region
    $region42: #{tpu_custom_call.1} parent=1 // pred_check
      _
    $region43: #{tpu_custom_call.1} parent=1 // pred_check_branch
      %159 = sbr.rel (0) target = $region45
    $region44: #{tpu_custom_call.1} parent=1 // pred_region
      %s161 = ssub.s32 1024, 1024
      %162 = vsyncadd [#allocation10], %s161
      %s163 = sshll.u32 [#allocation11], 4
      %s164 = int_to_ptr.vmem [resolvable:$true] %s163
      %169 = dma.hbm_to_vmem [thread:$0]  %s21, 1024, %s164, [#allocation10], 64, 64, 4
    $region45: #{tpu_custom_call.1} parent=1 // pred_fallthru
      _
    // Predicated region
    $region46: #{tpu_custom_call.1} parent=1 // pred_check
      _
    $region47: #{tpu_custom_call.1} parent=1 // pred_check_branch
      %171 = sbr.rel (0) target = $region49
    $region48: #{tpu_custom_call.1} parent=1 // pred_region
      _
    $region49: #{tpu_custom_call.1} parent=1 // pred_fallthru
      _
    // Predicated region
    $region50: #{tpu_custom_call.1} parent=1 // pred_check
      _
    $region51: #{tpu_custom_call.1} parent=1 // pred_check_branch
      %173 = sbr.rel (0) target = $region53
    $region52: #{tpu_custom_call.1} parent=1 // pred_region
      _
    $region53: #{tpu_custom_call.1} parent=1 // pred_fallthru
      _
    // Predicated region
    $region54: #{tpu_custom_call.1} parent=1 // pred_check
      _
    $region55: #{tpu_custom_call.1} parent=1 // pred_check_branch
      %175 = sbr.rel (0) target = $region57
    $region56: #{tpu_custom_call.1} parent=1 // pred_region
      %s177 = ssub.s32 8192, 8192
      %178 = vsyncadd [#allocation13], %s177
      %s179 = sshll.u32 [#allocation12], 4
      %s180 = int_to_ptr.vmem [resolvable:$true] %s179
      %185 = dma.hbm_to_vmem [thread:$0]  %s27, 8192, %s180, [#allocation13], 64, 64, 4
    $region57: #{tpu_custom_call.1} parent=1 // pred_fallthru
      _
    // Predicated region
    $region58: #{tpu_custom_call.1} parent=1 // pred_check
      _
    $region59: #{tpu_custom_call.1} parent=1 // pred_check_branch
      %187 = sbr.rel (0) target = $region61
    $region60: #{tpu_custom_call.1} parent=1 // pred_region
      %s189 = ssub.s32 16, 16
      %190 = vsyncadd [#allocation13], %s189
      %s192 = sshll.u32 [#allocation14], 4
      %s193 = int_to_ptr.vmem [resolvable:$true] %s192
      %195 = dma.hbm_to_vmem [thread:$0]  %s29, 16, %s193, [#allocation13]
    $region61: #{tpu_custom_call.1} parent=1 // pred_fallthru
      _
    // Predicated region
    $region62: #{tpu_custom_call.1} parent=1 // pred_check
      _
    $region63: #{tpu_custom_call.1} parent=1 // pred_check_branch
      %197 = sbr.rel (0) target = $region65
    $region64: #{tpu_custom_call.1} parent=1 // pred_region
      %s199 = ssub.s32 16, 16
      %200 = vsyncadd [#allocation16], %s199
      %s202 = sshll.u32 [#allocation15], 4
      %s203 = int_to_ptr.vmem [resolvable:$true] %s202
      %205 = dma.hbm_to_vmem [thread:$0]  %s31, 16, %s203, [#allocation16]
    $region65: #{tpu_custom_call.1} parent=1 // pred_fallthru
      _
    // Predicated region
    $region66: #{tpu_custom_call.1} parent=1 // pred_check
      _
    $region67: #{tpu_custom_call.1} parent=1 // pred_check_branch
      %207 = sbr.rel (0) target = $region69
    $region68: #{tpu_custom_call.1} parent=1 // pred_region
      %s209 = ssub.s32 5120, 5120
      %210 = vsyncadd [#allocation16], %s209
      %s211 = sshll.u32 [#allocation17], 4
      %s212 = int_to_ptr.vmem [resolvable:$true] %s211
      %217 = dma.hbm_to_vmem [thread:$0]  %s33, 5120, %s212, [#allocation16], 64, 64, 4
    $region69: #{tpu_custom_call.1} parent=1 // pred_fallthru
      _
    // Predicated region
    $region70: #{tpu_custom_call.1} parent=1 // pred_check
      _
    $region71: #{tpu_custom_call.1} parent=1 // pred_check_branch
      %219 = sbr.rel (0) target = $region73
    $region72: #{tpu_custom_call.1} parent=1 // pred_region
      %s221 = ssub.s32 16, 16
      %222 = vsyncadd [#allocation19], %s221
      %s224 = sshll.u32 [#allocation18], 4
      %s225 = int_to_ptr.vmem [resolvable:$true] %s224
      %227 = dma.hbm_to_vmem [thread:$0]  %s35, 16, %s225, [#allocation19]
    $region73: #{tpu_custom_call.1} parent=1 // pred_fallthru
      _
    // Predicated region
    $region74: #{tpu_custom_call.1} parent=1 // pred_check
      _
    $region75: #{tpu_custom_call.1} parent=1 // pred_check_branch
      %229 = sbr.rel (0) target = $region77
    $region76: #{tpu_custom_call.1} parent=1 // pred_region
      %s231 = ssub.s32 16, 16
      %232 = vsyncadd [#allocation19], %s231
      %s234 = sshll.u32 [#allocation20], 4
      %s235 = int_to_ptr.vmem [resolvable:$true] %s234
      %237 = dma.hbm_to_vmem [thread:$0]  %s37, 16, %s235, [#allocation19]
    $region77: #{tpu_custom_call.1} parent=1 // pred_fallthru
      _
    // Predicated region
    $region78: #{tpu_custom_call.1} parent=1 // pred_check
      _
    $region79: #{tpu_custom_call.1} parent=1 // pred_check_branch
      %239 = sbr.rel (0) target = $region81
    $region80: #{tpu_custom_call.1} parent=1 // pred_region
      %s241 = ssub.s32 3072, 3072
      %242 = vsyncadd [#allocation22], %s241
      %s243 = sshll.u32 [#allocation21], 4
      %s244 = int_to_ptr.vmem [resolvable:$true] %s243
      %249 = dma.hbm_to_vmem [thread:$0]  %s39, 3072, %s244, [#allocation22], 64, 64, 4
    $region81: #{tpu_custom_call.1} parent=1 // pred_fallthru
      _
    // Predicated region
    $region82: #{tpu_custom_call.1} parent=1 // pred_check
      _
    $region83: #{tpu_custom_call.1} parent=1 // pred_check_branch
      %251 = sbr.rel (0) target = $region85
    $region84: #{tpu_custom_call.1} parent=1 // pred_region
      %s253 = ssub.s32 16, 16
      %254 = vsyncadd [#allocation22], %s253
      %s256 = sshll.u32 [#allocation23], 4
      %s257 = int_to_ptr.vmem [resolvable:$true] %s256
      %259 = dma.hbm_to_vmem [thread:$0]  %s41, 16, %s257, [#allocation22]
    $region85: #{tpu_custom_call.1} parent=1 // pred_fallthru
      _
    // Predicated region
    $region86: #{tpu_custom_call.1} parent=1 // pred_check
      _
    $region87: #{tpu_custom_call.1} parent=1 // pred_check_branch
      %261 = sbr.rel (0) target = $region89
    $region88: #{tpu_custom_call.1} parent=1 // pred_region
      %s263 = ssub.s32 16, 16
      %264 = vsyncadd [#allocation25], %s263
      %s266 = sshll.u32 [#allocation24], 4
      %s267 = int_to_ptr.vmem [resolvable:$true] %s266
      %269 = dma.hbm_to_vmem [thread:$0]  %s43, 16, %s267, [#allocation25]
    $region89: #{tpu_custom_call.1} parent=1 // pred_fallthru
      _
    // Predicated region
    $region90: #{tpu_custom_call.1} parent=1 // pred_check
      _
    $region91: #{tpu_custom_call.1} parent=1 // pred_check_branch
      %271 = sbr.rel (0) target = $region93
    $region92: #{tpu_custom_call.1} parent=1 // pred_region
      %s273 = ssub.s32 1024, 1024
      %274 = vsyncadd [#allocation25], %s273
      %s275 = sshll.u32 [#allocation26], 4
      %s276 = int_to_ptr.vmem [resolvable:$true] %s275
      %281 = dma.hbm_to_vmem [thread:$0]  %s45, 1024, %s276, [#allocation25], 64, 64, 4
    $region93: #{tpu_custom_call.1} parent=1 // pred_fallthru
      _
    // Predicated region
    $region94: #{tpu_custom_call.1} parent=1 // pred_check
      _
    $region95: #{tpu_custom_call.1} parent=1 // pred_check_branch
      %283 = sbr.rel (0) target = $region97
    $region96: #{tpu_custom_call.1} parent=1 // pred_region
      %s285 = ssub.s32 16, 16
      %286 = vsyncadd [#allocation28], %s285
      %s288 = sshll.u32 [#allocation27], 4
      %s289 = int_to_ptr.vmem [resolvable:$true] %s288
      %291 = dma.hbm_to_vmem [thread:$0]  %s47, 16, %s289, [#allocation28]
    $region97: #{tpu_custom_call.1} parent=1 // pred_fallthru
      _
    // Predicated region
    $region98: #{tpu_custom_call.1} parent=1 // pred_check
      _
    $region99: #{tpu_custom_call.1} parent=1 // pred_check_branch
      %293 = sbr.rel (0) target = $region101
    $region100: #{tpu_custom_call.1} parent=1 // pred_region
      %s295 = ssub.s32 16, 16
      %296 = vsyncadd [#allocation28], %s295
      %s298 = sshll.u32 [#allocation29], 4
      %s299 = int_to_ptr.vmem [resolvable:$true] %s298
      %301 = dma.hbm_to_vmem [thread:$0]  %s49, 16, %s299, [#allocation28]
    $region101: #{tpu_custom_call.1} parent=1 // pred_fallthru
      _
    // Predicated region
    $region102: #{tpu_custom_call.1} parent=1 // pred_check
      _
    $region103: #{tpu_custom_call.1} parent=1 // pred_check_branch
      %303 = sbr.rel (0) target = $region105
    $region104: #{tpu_custom_call.1} parent=1 // pred_region
      %s305 = ssub.s32 8192, 8192
      %306 = vsyncadd [#allocation31], %s305
      %s307 = sshll.u32 [#allocation30], 4
      %s308 = int_to_ptr.vmem [resolvable:$true] %s307
      %313 = dma.hbm_to_vmem [thread:$0]  %s51, 8192, %s308, [#allocation31], 64, 64, 4
    $region105: #{tpu_custom_call.1} parent=1 // pred_fallthru
      _
    // Predicated region
    $region106: #{tpu_custom_call.1} parent=1 // pred_check
      _
    $region107: #{tpu_custom_call.1} parent=1 // pred_check_branch
      %315 = sbr.rel (0) target = $region109
    $region108: #{tpu_custom_call.1} parent=1 // pred_region
      %s317 = ssub.s32 16, 16
      %318 = vsyncadd [#allocation31], %s317
      %s320 = sshll.u32 [#allocation32], 4
      %s321 = int_to_ptr.vmem [resolvable:$true] %s320
      %323 = dma.hbm_to_vmem [thread:$0]  %s53, 16, %s321, [#allocation31]
    $region109: #{tpu_custom_call.1} parent=1 // pred_fallthru
      _
    // Predicated region
    $region110: #{tpu_custom_call.1} parent=1 // pred_check
      _
    $region111: #{tpu_custom_call.1} parent=1 // pred_check_branch
      %325 = sbr.rel (0) target = $region113
    $region112: #{tpu_custom_call.1} parent=1 // pred_region
      %s327 = ssub.s32 16, 16
      %328 = vsyncadd [#allocation34], %s327
      %s330 = sshll.u32 [#allocation33], 4
      %s331 = int_to_ptr.vmem [resolvable:$true] %s330
      %333 = dma.hbm_to_vmem [thread:$0]  %s55, 16, %s331, [#allocation34]
    $region113: #{tpu_custom_call.1} parent=1 // pred_fallthru
      _
    // Predicated region
    $region114: #{tpu_custom_call.1} parent=1 // pred_check
      _
    $region115: #{tpu_custom_call.1} parent=1 // pred_check_branch
      %335 = sbr.rel (0) target = $region117
    $region116: #{tpu_custom_call.1} parent=1 // pred_region
      %s337 = ssub.s32 5120, 5120
      %338 = vsyncadd [#allocation34], %s337
      %s339 = sshll.u32 [#allocation35], 4
      %s340 = int_to_ptr.vmem [resolvable:$true] %s339
      %345 = dma.hbm_to_vmem [thread:$0]  %s57, 5120, %s340, [#allocation34], 64, 64, 4
    $region117: #{tpu_custom_call.1} parent=1 // pred_fallthru
      _
    // Predicated region
    $region118: #{tpu_custom_call.1} parent=1 // pred_check
      _
    $region119: #{tpu_custom_call.1} parent=1 // pred_check_branch
      %347 = sbr.rel (0) target = $region121
    $region120: #{tpu_custom_call.1} parent=1 // pred_region
      %s349 = ssub.s32 16, 16
      %350 = vsyncadd [#allocation37], %s349
      %s352 = sshll.u32 [#allocation36], 4
      %s353 = int_to_ptr.vmem [resolvable:$true] %s352
      %355 = dma.hbm_to_vmem [thread:$0]  %s59, 16, %s353, [#allocation37]
    $region121: #{tpu_custom_call.1} parent=1 // pred_fallthru
      _
    // Predicated region
    $region122: #{tpu_custom_call.1} parent=1 // pred_check
      _
    $region123: #{tpu_custom_call.1} parent=1 // pred_check_branch
      %357 = sbr.rel (0) target = $region125
    $region124: #{tpu_custom_call.1} parent=1 // pred_region
      %s359 = ssub.s32 16, 16
      %360 = vsyncadd [#allocation37], %s359
      %s362 = sshll.u32 [#allocation38], 4
      %s363 = int_to_ptr.vmem [resolvable:$true] %s362
      %365 = dma.hbm_to_vmem [thread:$0]  %s61, 16, %s363, [#allocation37]
    $region125: #{tpu_custom_call.1} parent=1 // pred_fallthru
      _
    // Predicated region
    $region126: #{tpu_custom_call.1} parent=1 // pred_check
      _
    $region127: #{tpu_custom_call.1} parent=1 // pred_check_branch
      %367 = sbr.rel (0) target = $region129
    $region128: #{tpu_custom_call.1} parent=1 // pred_region
      %s369 = ssub.s32 3072, 3072
      %370 = vsyncadd [#allocation40], %s369
      %s371 = sshll.u32 [#allocation39], 4
      %s372 = int_to_ptr.vmem [resolvable:$true] %s371
      %377 = dma.hbm_to_vmem [thread:$0]  %s63, 3072, %s372, [#allocation40], 64, 64, 4
    $region129: #{tpu_custom_call.1} parent=1 // pred_fallthru
      _
    // Predicated region
    $region130: #{tpu_custom_call.1} parent=1 // pred_check
      _
    $region131: #{tpu_custom_call.1} parent=1 // pred_check_branch
      %379 = sbr.rel (0) target = $region133
    $region132: #{tpu_custom_call.1} parent=1 // pred_region
      %s381 = ssub.s32 16, 16
      %382 = vsyncadd [#allocation40], %s381
      %s384 = sshll.u32 [#allocation41], 4
      %s385 = int_to_ptr.vmem [resolvable:$true] %s384
      %387 = dma.hbm_to_vmem [thread:$0]  %s65, 16, %s385, [#allocation40]
    $region133: #{tpu_custom_call.1} parent=1 // pred_fallthru
      _
    // Predicated region
    $region134: #{tpu_custom_call.1} parent=1 // pred_check
      _
    $region135: #{tpu_custom_call.1} parent=1 // pred_check_branch
      %389 = sbr.rel (0) target = $region137
    $region136: #{tpu_custom_call.1} parent=1 // pred_region
      %s391 = ssub.s32 16, 16
      %392 = vsyncadd [#allocation43], %s391
      %s394 = sshll.u32 [#allocation42], 4
      %s395 = int_to_ptr.vmem [resolvable:$true] %s394
      %397 = dma.hbm_to_vmem [thread:$0]  %s67, 16, %s395, [#allocation43]
    $region137: #{tpu_custom_call.1} parent=1 // pred_fallthru
      _
    // Predicated region
    $region138: #{tpu_custom_call.1} parent=1 // pred_check
      _
    $region139: #{tpu_custom_call.1} parent=1 // pred_check_branch
      %399 = sbr.rel (0) target = $region141
    $region140: #{tpu_custom_call.1} parent=1 // pred_region
      %s401 = ssub.s32 16, 16
      %402 = vsyncadd [#allocation43], %s401
      %s404 = sshll.u32 [#allocation44], 4
      %s405 = int_to_ptr.vmem [resolvable:$true] %s404
      %407 = dma.hbm_to_vmem [thread:$0]  %s69, 16, %s405, [#allocation43]
    $region141: #{tpu_custom_call.1} parent=1 // pred_fallthru
      _
    // Predicated region
    $region142: #{tpu_custom_call.1} parent=1 // pred_check
      _
    $region143: #{tpu_custom_call.1} parent=1 // pred_check_branch
      %409 = sbr.rel (0) target = $region145
    $region144: #{tpu_custom_call.1} parent=1 // pred_region
      %s411 = ssub.s32 16, 16
      %412 = vsyncadd [#allocation46], %s411
      %s414 = sshll.u32 [#allocation45], 4
      %s415 = int_to_ptr.vmem [resolvable:$true] %s414
      %417 = dma.hbm_to_vmem [thread:$0]  %s71, 16, %s415, [#allocation46]
    $region145: #{tpu_custom_call.1} parent=1 // pred_fallthru
      _
    // Predicated region
    $region146: #{tpu_custom_call.1} parent=1 // pred_check
      _
    $region147: #{tpu_custom_call.1} parent=1 // pred_check_branch
      %419 = sbr.rel (0) target = $region149
    $region148: #{tpu_custom_call.1} parent=1 // pred_region
      _
    $region149: #{tpu_custom_call.1} parent=1 // pred_fallthru
      _
    // Predicated region
    $region150: #{tpu_custom_call.1} parent=1 // pred_check
      _
    $region151: #{tpu_custom_call.1} parent=1 // pred_check_branch
      %421 = sbr.rel (0) target = $region153
    $region152: #{tpu_custom_call.1} parent=1 // pred_region
      _
    $region153: #{tpu_custom_call.1} parent=1 // pred_fallthru
      _
    // Predicated region
    $region154: #{tpu_custom_call.1} parent=1 // pred_check
      _
    $region155: #{tpu_custom_call.1} parent=1 // pred_check_branch
      %423 = sbr.rel (0) target = $region157
    $region156: #{tpu_custom_call.1} parent=1 // pred_region
      %424 = dma.done [#allocation4], 256
    $region157: #{tpu_custom_call.1} parent=1 // pred_fallthru
      _
    // Predicated region
    $region158: #{tpu_custom_call.1} parent=1 // pred_check
      _
    $region159: #{tpu_custom_call.1} parent=1 // pred_check_branch
      %426 = sbr.rel (0) target = $region161
    $region160: #{tpu_custom_call.1} parent=1 // pred_region
      %427 = dma.done [#allocation7], 8192
    $region161: #{tpu_custom_call.1} parent=1 // pred_fallthru
      _
    // Predicated region
    $region162: #{tpu_custom_call.1} parent=1 // pred_check
      _
    $region163: #{tpu_custom_call.1} parent=1 // pred_check_branch
      %429 = sbr.rel (0) target = $region165
    $region164: #{tpu_custom_call.1} parent=1 // pred_region
      %430 = dma.done [#allocation7], 5120
    $region165: #{tpu_custom_call.1} parent=1 // pred_fallthru
      _
    // Predicated region
    $region166: #{tpu_custom_call.1} parent=1 // pred_check
      _
    $region167: #{tpu_custom_call.1} parent=1 // pred_check_branch
      %432 = sbr.rel (0) target = $region169
    $region168: #{tpu_custom_call.1} parent=1 // pred_region
      %433 = dma.done [#allocation10], 3072
    $region169: #{tpu_custom_call.1} parent=1 // pred_fallthru
      _
    // Predicated region
    $region170: #{tpu_custom_call.1} parent=1 // pred_check
      _
    $region171: #{tpu_custom_call.1} parent=1 // pred_check_branch
      %435 = sbr.rel (0) target = $region173
    $region172: #{tpu_custom_call.1} parent=1 // pred_region
      %436 = dma.done [#allocation10], 1024
    $region173: #{tpu_custom_call.1} parent=1 // pred_fallthru
      _
    // Predicated region
    $region174: #{tpu_custom_call.1} parent=1 // pred_check
      _
    $region175: #{tpu_custom_call.1} parent=1 // pred_check_branch
      %438 = sbr.rel (0) target = $region177
    $region176: #{tpu_custom_call.1} parent=1 // pred_region
      %439 = dma.done [#allocation13], 8192
    $region177: #{tpu_custom_call.1} parent=1 // pred_fallthru
      _
    // Predicated region
    $region178: #{tpu_custom_call.1} parent=1 // pred_check
      _
    $region179: #{tpu_custom_call.1} parent=1 // pred_check_branch
      %441 = sbr.rel (0) target = $region181
    $region180: #{tpu_custom_call.1} parent=1 // pred_region
      %442 = dma.done [#allocation13], 16
    $region181: #{tpu_custom_call.1} parent=1 // pred_fallthru
      _
    // Predicated region
    $region182: #{tpu_custom_call.1} parent=1 // pred_check
      _
    $region183: #{tpu_custom_call.1} parent=1 // pred_check_branch
      %444 = sbr.rel (0) target = $region185
    $region184: #{tpu_custom_call.1} parent=1 // pred_region
      %445 = dma.done [#allocation16], 16
    $region185: #{tpu_custom_call.1} parent=1 // pred_fallthru
      _
    // Predicated region
    $region186: #{tpu_custom_call.1} parent=1 // pred_check
      _
    $region187: #{tpu_custom_call.1} parent=1 // pred_check_branch
      %447 = sbr.rel (0) target = $region189
    $region188: #{tpu_custom_call.1} parent=1 // pred_region
      %448 = dma.done [#allocation16], 5120
    $region189: #{tpu_custom_call.1} parent=1 // pred_fallthru
      _
    // Predicated region
    $region190: #{tpu_custom_call.1} parent=1 // pred_check
      _
    $region191: #{tpu_custom_call.1} parent=1 // pred_check_branch
      %450 = sbr.rel (0) target = $region193
    $region192: #{tpu_custom_call.1} parent=1 // pred_region
      %451 = dma.done [#allocation19], 16
    $region193: #{tpu_custom_call.1} parent=1 // pred_fallthru
      _
    // Predicated region
    $region194: #{tpu_custom_call.1} parent=1 // pred_check
      _
    $region195: #{tpu_custom_call.1} parent=1 // pred_check_branch
      %453 = sbr.rel (0) target = $region197
    $region196: #{tpu_custom_call.1} parent=1 // pred_region
      %454 = dma.done [#allocation19], 16
    $region197: #{tpu_custom_call.1} parent=1 // pred_fallthru
      _
    // Predicated region
    $region198: #{tpu_custom_call.1} parent=1 // pred_check
      _
    $region199: #{tpu_custom_call.1} parent=1 // pred_check_branch
      %456 = sbr.rel (0) target = $region201
    $region200: #{tpu_custom_call.1} parent=1 // pred_region
      %457 = dma.done [#allocation22], 3072
    $region201: #{tpu_custom_call.1} parent=1 // pred_fallthru
      _
    // Predicated region
    $region202: #{tpu_custom_call.1} parent=1 // pred_check
      _
    $region203: #{tpu_custom_call.1} parent=1 // pred_check_branch
      %459 = sbr.rel (0) target = $region205
    $region204: #{tpu_custom_call.1} parent=1 // pred_region
      %460 = dma.done [#allocation22], 16
    $region205: #{tpu_custom_call.1} parent=1 // pred_fallthru
      _
    // Predicated region
    $region206: #{tpu_custom_call.1} parent=1 // pred_check
      _
    $region207: #{tpu_custom_call.1} parent=1 // pred_check_branch
      %462 = sbr.rel (0) target = $region209
    $region208: #{tpu_custom_call.1} parent=1 // pred_region
      %463 = dma.done [#allocation25], 16
    $region209: #{tpu_custom_call.1} parent=1 // pred_fallthru
      _
    // Predicated region
    $region210: #{tpu_custom_call.1} parent=1 // pred_check
      _
    $region211: #{tpu_custom_call.1} parent=1 // pred_check_branch
      %465 = sbr.rel (0) target = $region213
    $region212: #{tpu_custom_call.1} parent=1 // pred_region
      %466 = dma.done [#allocation25], 1024
    $region213: #{tpu_custom_call.1} parent=1 // pred_fallthru
      _
    // Predicated region
    $region214: #{tpu_custom_call.1} parent=1 // pred_check
      _
    $region215: #{tpu_custom_call.1} parent=1 // pred_check_branch
      %468 = sbr.rel (0) target = $region217
    $region216: #{tpu_custom_call.1} parent=1 // pred_region
      %469 = dma.done [#allocation28], 16
    $region217: #{tpu_custom_call.1} parent=1 // pred_fallthru
      _
    // Predicated region
    $region218: #{tpu_custom_call.1} parent=1 // pred_check
      _
    $region219: #{tpu_custom_call.1} parent=1 // pred_check_branch
      %471 = sbr.rel (0) target = $region221
    $region220: #{tpu_custom_call.1} parent=1 // pred_region
      %472 = dma.done [#allocation28], 16
    $region221: #{tpu_custom_call.1} parent=1 // pred_fallthru
      _
    // Predicated region
    $region222: #{tpu_custom_call.1} parent=1 // pred_check
      _
    $region223: #{tpu_custom_call.1} parent=1 // pred_check_branch
      %474 = sbr.rel (0) target = $region225
    $region224: #{tpu_custom_call.1} parent=1 // pred_region
      %475 = dma.done [#allocation31], 8192
    $region225: #{tpu_custom_call.1} parent=1 // pred_fallthru
      _
    // Predicated region
    $region226: #{tpu_custom_call.1} parent=1 // pred_check
      _
    $region227: #{tpu_custom_call.1} parent=1 // pred_check_branch
      %477 = sbr.rel (0) target = $region229
    $region228: #{tpu_custom_call.1} parent=1 // pred_region
      %478 = dma.done [#allocation31], 16
    $region229: #{tpu_custom_call.1} parent=1 // pred_fallthru
      _
    // Predicated region
    $region230: #{tpu_custom_call.1} parent=1 // pred_check
      _
    $region231: #{tpu_custom_call.1} parent=1 // pred_check_branch
      %480 = sbr.rel (0) target = $region233
    $region232: #{tpu_custom_call.1} parent=1 // pred_region
      %481 = dma.done [#allocation34], 16
    $region233: #{tpu_custom_call.1} parent=1 // pred_fallthru
      _
    // Predicated region
    $region234: #{tpu_custom_call.1} parent=1 // pred_check
      _
    $region235: #{tpu_custom_call.1} parent=1 // pred_check_branch
      %483 = sbr.rel (0) target = $region237
    $region236: #{tpu_custom_call.1} parent=1 // pred_region
      %484 = dma.done [#allocation34], 5120
    $region237: #{tpu_custom_call.1} parent=1 // pred_fallthru
      _
    // Predicated region
    $region238: #{tpu_custom_call.1} parent=1 // pred_check
      _
    $region239: #{tpu_custom_call.1} parent=1 // pred_check_branch
      %486 = sbr.rel (0) target = $region241
    $region240: #{tpu_custom_call.1} parent=1 // pred_region
      %487 = dma.done [#allocation37], 16
    $region241: #{tpu_custom_call.1} parent=1 // pred_fallthru
      _
    // Predicated region
    $region242: #{tpu_custom_call.1} parent=1 // pred_check
      _
    $region243: #{tpu_custom_call.1} parent=1 // pred_check_branch
      %489 = sbr.rel (0) target = $region245
    $region244: #{tpu_custom_call.1} parent=1 // pred_region
      %490 = dma.done [#allocation37], 16
    $region245: #{tpu_custom_call.1} parent=1 // pred_fallthru
      _
    // Predicated region
    $region246: #{tpu_custom_call.1} parent=1 // pred_check
      _
    $region247: #{tpu_custom_call.1} parent=1 // pred_check_branch
      %492 = sbr.rel (0) target = $region249
    $region248: #{tpu_custom_call.1} parent=1 // pred_region
      %493 = dma.done [#allocation40], 3072
    $region249: #{tpu_custom_call.1} parent=1 // pred_fallthru
      _
    // Predicated region
    $region250: #{tpu_custom_call.1} parent=1 // pred_check
      _
    $region251: #{tpu_custom_call.1} parent=1 // pred_check_branch
      %495 = sbr.rel (0) target = $region253
    $region252: #{tpu_custom_call.1} parent=1 // pred_region
      %496 = dma.done [#allocation40], 16
    $region253: #{tpu_custom_call.1} parent=1 // pred_fallthru
      _
    // Predicated region
    $region254: #{tpu_custom_call.1} parent=1 // pred_check
      _
    $region255: #{tpu_custom_call.1} parent=1 // pred_check_branch
      %498 = sbr.rel (0) target = $region257
    $region256: #{tpu_custom_call.1} parent=1 // pred_region
      %499 = dma.done [#allocation43], 16
    $region257: #{tpu_custom_call.1} parent=1 // pred_fallthru
      _
    // Predicated region
    $region258: #{tpu_custom_call.1} parent=1 // pred_check
      _
    $region259: #{tpu_custom_call.1} parent=1 // pred_check_branch
      %501 = sbr.rel (0) target = $region261
    $region260: #{tpu_custom_call.1} parent=1 // pred_region
      %502 = dma.done [#allocation43], 16
    $region261: #{tpu_custom_call.1} parent=1 // pred_fallthru
      _
    // Predicated region
    $region262: #{tpu_custom_call.1} parent=1 // pred_check
      _
    $region263: #{tpu_custom_call.1} parent=1 // pred_check_branch
      %504 = sbr.rel (0) target = $region265
    $region264: #{tpu_custom_call.1} parent=1 // pred_region
      %505 = dma.done [#allocation46], 16
    $region265: #{tpu_custom_call.1} parent=1 // pred_fallthru
      _
    %v507 = vld [vmem:[#allocation3] sm:$0xf]
    %v508 = vld [vmem:[#allocation3 + $0x4] sm:$0xf]
    %v509 = vld [vmem:[#allocation3 + $0x8] sm:$0xf]
    %v510 = vld [vmem:[#allocation3 + $0xc] sm:$0xf]
    %511 = vst [vmem:[#allocation2] sm:$0xf] 0
    %512 = vst [vmem:[#allocation2 + $0x4] sm:$0xf] 0
    %vm513 = vcmask 1043456
    %vm514 = vsmask.f32 3328
    %vm515 = vmand %vm513, %vm514
    %v516 = vld [vmem:[#allocation2 + $0x8] sm:$0xf]
    %v517 = vsel %vm515, 0, %v516
    %518 = vst [vmem:[#allocation2 + $0x8] sm:$0xf] %v517
    %519 = vst [vmem:[#allocation2 + $0xc] sm:$0xf] 0
    %520 = vst [vmem:[#allocation2 + $0x10] sm:$0xf] 0
    %v521 = vld [vmem:[#allocation2 + $0x14] sm:$0xf]
    %v522 = vsel %vm515, 0, %v521
    %523 = vst [vmem:[#allocation2 + $0x14] sm:$0xf] %v522
    %vm524 = vsmask.f32 1280
    %vm525 = vsmask.f32 5392
    %vm526 = vmor %vm524, %vm525
    %v528 = vshrl.u32 %v507, 16
    %v530 = vrot.slane %v528, 6
    %v531 = vshll.u32 %v507, 16
    %v533 = vrot.slane %v531, 7
    %v534 = vor.u32 %v530, %v533
    %v535 = vrot.slane %v534, 4
    %v537 = vshrl.u32 %v508, 16
    %v539 = vrot.slane %v537, 6
    %v540 = vshll.u32 %v508, 16
    %v542 = vrot.slane %v540, 7
    %v543 = vor.u32 %v539, %v542
    %v544 = vsel %vm526, %v535, %v543
    %v545 = vrot.slane %v543, 4
    %v547 = vshrl.u32 %v509, 16
    %v549 = vrot.slane %v547, 6
    %v550 = vshll.u32 %v509, 16
    %v552 = vrot.slane %v550, 7
    %v553 = vor.u32 %v549, %v552
    %v554 = vrot.slane %v553, 4
    %v556 = vshrl.u32 %v510, 16
    %v558 = vrot.slane %v556, 6
    %v559 = vshll.u32 %v510, 16
    %v561 = vrot.slane %v559, 7
    %v562 = vor.u32 %v558, %v561
    %v563 = vsel %vm526, %v554, %v562
    %v564 = vrot.slane %v562, 4
    %vm571 = vcmask 1043457
    %vm572 = vsmask.f32 7942
    %vm573 = vmand %vm571, %vm572
    %v574 = vld [vmem:[#allocation2] sm:$0xe]
    %v575 = vsel %vm573, %v534, %v574
    %576 = vst [vmem:[#allocation2] sm:$0xe] %v575
    %577 = vst [vmem:[#allocation2 + $0x4] sm:$0xf] %v544
    %vm578 = vcmask 1041408
    %vm579 = vmand %vm578, %vm524
    %v580 = vld [vmem:[#allocation2 + $0x8] sm:$0x3]
    %v581 = vsel %vm579, %v545, %v580
    %582 = vst [vmem:[#allocation2 + $0x8] sm:$0x3] %v581
    %v583 = vld [vmem:[#allocation2 + $0xc] sm:$0xe]
    %v584 = vsel %vm573, %v553, %v583
    %585 = vst [vmem:[#allocation2 + $0xc] sm:$0xe] %v584
    %586 = vst [vmem:[#allocation2 + $0x10] sm:$0xf] %v563
    %v587 = vld [vmem:[#allocation2 + $0x14] sm:$0x3]
    %v588 = vsel %vm579, %v564, %v587
    %589 = vst [vmem:[#allocation2 + $0x14] sm:$0x3] %v588
    %v590 = vld [vmem:[#allocation2] sm:$0xf]
    %v591 = vld [vmem:[#allocation2 + $0x4] sm:$0xf]
    %v592 = vld [vmem:[#allocation2 + $0xc] sm:$0xf]
    %v593 = vld [vmem:[#allocation2 + $0x10] sm:$0xf]
    %v594 = vld [vmem:[#allocation6] sm:$0xf]
    %v595 = vld [vmem:[#allocation6 + $0x4] sm:$0xf]
    %v596 = vld [vmem:[#allocation6 + $0x8] sm:$0xf]
    %v597 = vld [vmem:[#allocation6 + $0xc] sm:$0xf]
    %v598 = vld [vmem:[#allocation6 + $0x10] sm:$0xf]
    %v599 = vld [vmem:[#allocation6 + $0x14] sm:$0xf]
    %v600 = vld [vmem:[#allocation6 + $0x18] sm:$0xf]
    %v601 = vld [vmem:[#allocation6 + $0x1c] sm:$0xf]
    %v602 = vld [vmem:[#allocation6 + $0x20] sm:$0xf]
    %v603 = vld [vmem:[#allocation6 + $0x24] sm:$0xf]
    %v604 = vld [vmem:[#allocation6 + $0x28] sm:$0xf]
    %v605 = vld [vmem:[#allocation6 + $0x2c] sm:$0xf]
    %v606 = vld [vmem:[#allocation6 + $0x30] sm:$0xf]
    %v607 = vld [vmem:[#allocation6 + $0x34] sm:$0xf]
    %v608 = vld [vmem:[#allocation6 + $0x38] sm:$0xf]
    %v609 = vld [vmem:[#allocation6 + $0x3c] sm:$0xf]
    %v610 = vld [vmem:[#allocation2 + $0x8] sm:$0x1]
    %v611 = vld [vmem:[#allocation2 + $0x14] sm:$0x1]
    %vm612 = vsmask.f32 7440
    %vm613 = vmor %vm514, %vm612
    %v615 = vshrl.u32 %v590, 16
    %v617 = vrot.slane %v615, 4
    %v618 = vshll.u32 %v590, 16
    %v620 = vrot.slane %v618, 5
    %v621 = vor.u32 %v617, %v620
    %v622 = vrot.slane %v621, 4
    %v624 = vshll.u32 %v591, 16
    %v626 = vrot.slane %v624, 5
    %v627 = vsel %vm613, %v622, %v626
    %v628 = vshrl.u32 %v591, 16
    %v630 = vrot.slane %v628, 4
    %v631 = vor.u32 %v630, %v626
    %v632 = vrot.slane %v631, 4
    %v634 = vshll.u32 %v610, 16
    %v636 = vrot.slane %v634, 5
    %v637 = vsel %vm613, %v632, %v636
    %v639 = vshrl.u32 %v592, 16
    %v641 = vrot.slane %v639, 4
    %v642 = vshll.u32 %v592, 16
    %v644 = vrot.slane %v642, 5
    %v645 = vor.u32 %v641, %v644
    %v646 = vrot.slane %v645, 4
    %v648 = vshll.u32 %v593, 16
    %v650 = vrot.slane %v648, 5
    %v651 = vsel %vm613, %v646, %v650
    %v652 = vshrl.u32 %v593, 16
    %v654 = vrot.slane %v652, 4
    %v655 = vor.u32 %v654, %v650
    %v656 = vrot.slane %v655, 4
    %v658 = vshll.u32 %v611, 16
    %v660 = vrot.slane %v658, 5
    %v661 = vsel %vm613, %v656, %v660
    %s662 = scalar_lea.vmem [#allocation6], 64
    %v663 = vld [vmem:[%s662] sm:$0xf]
    %v664 = vld [vmem:[%s662 + $0x4] sm:$0xf]
    %v665 = vld [vmem:[%s662 + $0x8] sm:$0xf]
    %v666 = vld [vmem:[%s662 + $0xc] sm:$0xf]
    %v667 = vld [vmem:[%s662 + $0x10] sm:$0xf]
    %v668 = vld [vmem:[%s662 + $0x14] sm:$0xf]
    %v669 = vld [vmem:[%s662 + $0x18] sm:$0xf]
    %v670 = vld [vmem:[%s662 + $0x1c] sm:$0xf]
    %v671 = vld [vmem:[%s662 + $0x20] sm:$0xf]
    %v672 = vld [vmem:[%s662 + $0x24] sm:$0xf]
    %v673 = vld [vmem:[%s662 + $0x28] sm:$0xf]
    %v674 = vld [vmem:[%s662 + $0x2c] sm:$0xf]
    %v675 = vld [vmem:[%s662 + $0x30] sm:$0xf]
    %v676 = vld [vmem:[%s662 + $0x34] sm:$0xf]
    %v677 = vld [vmem:[%s662 + $0x38] sm:$0xf]
    %v678 = vld [vmem:[%s662 + $0x3c] sm:$0xf]
    %v679 = vunpack.c.l.b16 %v627
    %v680 = vunpack.c.l.b16 %v637
    %v681 = vunpack.c.l.b16 %v651
    %v682 = vunpack.c.l.b16 %v661
    %v683 = vpack.c.b16 %v680, %v679
    %v684 = vpack.c.b16 %v682, %v681
    %v703 = vunpack.c.l.b16 %v663
    %v704 = vunpack.c.l.b16 %v664
    %v705 = vunpack.c.l.b16 %v665
    %v706 = vunpack.c.l.b16 %v666
    %v707 = vunpack.c.l.b16 %v667
    %v708 = vunpack.c.l.b16 %v668
    %v709 = vunpack.c.l.b16 %v669
    %v710 = vunpack.c.l.b16 %v670
    %v711 = vunpack.c.l.b16 %v671
    %v712 = vunpack.c.l.b16 %v672
    %v713 = vunpack.c.l.b16 %v673
    %v714 = vunpack.c.l.b16 %v674
    %v715 = vunpack.c.l.b16 %v675
    %v716 = vunpack.c.l.b16 %v676
    %v717 = vunpack.c.l.b16 %v677
    %v718 = vunpack.c.l.b16 %v678
    %v719 = vpack.c.b16 %v704, %v703
    %v720 = vpack.c.b16 %v706, %v705
    %v721 = vpack.c.b16 %v708, %v707
    %v722 = vpack.c.b16 %v710, %v709
    %v723 = vpack.c.b16 %v712, %v711
    %v724 = vpack.c.b16 %v714, %v713
    %v725 = vpack.c.b16 %v716, %v715
    %v726 = vpack.c.b16 %v718, %v717
    %735 = vmatprep.subr.bf16.mxu0 0
    %736 = vmatpush1.bf16.msra.mxu0 %v719
    %737 = vmatprep.subr.bf16.mxu0 0
    %738 = vmatpush1.bf16.msra.mxu0 %v720
    %739 = vmatprep.subr.bf16.mxu0 0
    %740 = vmatpush1.bf16.msra.mxu0 %v721
    %741 = vmatprep.subr.bf16.mxu0 0
    %742 = vmatpush1.bf16.msra.mxu0 %v722
    %743 = vmatprep.subr.bf16.mxu0 0
    %744 = vmatpush1.bf16.msra.mxu0 %v723
    %745 = vmatprep.subr.bf16.mxu0 0
    %746 = vmatpush1.bf16.msra.mxu0 %v724
    %747 = vmatprep.subr.bf16.mxu0 0
    %748 = vmatpush1.bf16.msra.mxu0 %v725
    %749 = vmatprep.subr.bf16.mxu0 0
    %750 = vmatpush1.bf16.msra.mxu0 %v726
    %751 = vmatprep.subr.bf16.mxu0 0
    %752 = vmatpush1.bf16.msra.mxu0 0
    %753 = vmatprep.subr.bf16.mxu0 0
    %754 = vmatpush1.bf16.msra.mxu0 0
    %755 = vmatprep.subr.bf16.mxu0 0
    %756 = vmatpush1.bf16.msra.mxu0 0
    %757 = vmatprep.subr.bf16.mxu0 0
    %758 = vmatpush1.bf16.msra.mxu0 0
    %759 = vmatprep.subr.bf16.mxu0 0
    %760 = vmatpush1.bf16.msra.mxu0 0
    %761 = vmatprep.subr.bf16.mxu0 0
    %762 = vmatpush1.bf16.msra.mxu0 0
    %763 = vmatprep.subr.bf16.mxu0 0
    %764 = vmatpush1.bf16.msra.mxu0 0
    %765 = vmatprep.subr.bf16.mxu0 0
    %766 = vmatpush1.bf16.msra.mxu0 0
    %767 = vmatprep.mubr.bf16.mxu0 0
    %768 = vmatmul.mubr.bf16.gmra.mrb[0].mxu0 %v683
    %v769 = vpop.f32.mrb[0].mxu0
    %v770 = vadd.f32 0.0, %v769
    %v771 = vpop.f32.mrb[0].mxu0
    %v772 = vpop.f32.mrb[0].mxu0
    %v773 = vadd.f32 0.0, %v772
    %v774 = vpop.f32.mrb[0].mxu0
    %775 = vmatprep.mubr.bf16.mxu0 0
    %776 = vmatmul.mubr.bf16.gmra.mrb[0].mxu0 %v684
    %v777 = vpop.f32.mrb[0].mxu0
    %v778 = vadd.f32 0.0, %v777
    %v779 = vpop.f32.mrb[0].mxu0
    %v780 = vpop.f32.mrb[0].mxu0
    %v781 = vadd.f32 0.0, %v780
    %v782 = vpop.f32.mrb[0].mxu0
    %783 = vdwg.mxu0
    %v788 = vunpack.c.l.b16 %v590
    %v789 = vunpack.c.l.b16 %v591
    %v790 = vunpack.c.l.b16 %v592
    %v791 = vunpack.c.l.b16 %v593
    %v792 = vpack.c.b16 %v789, %v788
    %v793 = vpack.c.b16 %v791, %v790
    %v812 = vunpack.c.l.b16 %v594
    %v813 = vunpack.c.l.b16 %v595
    %v814 = vunpack.c.l.b16 %v596
    %v815 = vunpack.c.l.b16 %v597
    %v816 = vunpack.c.l.b16 %v598
    %v817 = vunpack.c.l.b16 %v599
    %v818 = vunpack.c.l.b16 %v600
    %v819 = vunpack.c.l.b16 %v601
    %v820 = vunpack.c.l.b16 %v602
    %v821 = vunpack.c.l.b16 %v603
    %v822 = vunpack.c.l.b16 %v604
    %v823 = vunpack.c.l.b16 %v605
    %v824 = vunpack.c.l.b16 %v606
    %v825 = vunpack.c.l.b16 %v607
    %v826 = vunpack.c.l.b16 %v608
    %v827 = vunpack.c.l.b16 %v609
    %v828 = vpack.c.b16 %v813, %v812
    %v829 = vpack.c.b16 %v815, %v814
    %v830 = vpack.c.b16 %v817, %v816
    %v831 = vpack.c.b16 %v819, %v818
    %v832 = vpack.c.b16 %v821, %v820
    %v833 = vpack.c.b16 %v823, %v822
    %v834 = vpack.c.b16 %v825, %v824
    %v835 = vpack.c.b16 %v827, %v826
    %844 = vmatprep.subr.bf16.mxu0 0
    %845 = vmatpush1.bf16.msra.mxu0 %v828
    %846 = vmatprep.subr.bf16.mxu0 0
    %847 = vmatpush1.bf16.msra.mxu0 %v829
    %848 = vmatprep.subr.bf16.mxu0 0
    %849 = vmatpush1.bf16.msra.mxu0 %v830
    %850 = vmatprep.subr.bf16.mxu0 0
    %851 = vmatpush1.bf16.msra.mxu0 %v831
    %852 = vmatprep.subr.bf16.mxu0 0
    %853 = vmatpush1.bf16.msra.mxu0 %v832
    %854 = vmatprep.subr.bf16.mxu0 0
    %855 = vmatpush1.bf16.msra.mxu0 %v833
    %856 = vmatprep.subr.bf16.mxu0 0
    %857 = vmatpush1.bf16.msra.mxu0 %v834
    %858 = vmatprep.subr.bf16.mxu0 0
    %859 = vmatpush1.bf16.msra.mxu0 %v835
    %860 = vmatprep.subr.bf16.mxu0 0
    %861 = vmatpush1.bf16.msra.mxu0 0
    %862 = vmatprep.subr.bf16.mxu0 0
    %863 = vmatpush1.bf16.msra.mxu0 0
    %864 = vmatprep.subr.bf16.mxu0 0
    %865 = vmatpush1.bf16.msra.mxu0 0
    %866 = vmatprep.subr.bf16.mxu0 0
    %867 = vmatpush1.bf16.msra.mxu0 0
    %868 = vmatprep.subr.bf16.mxu0 0
    %869 = vmatpush1.bf16.msra.mxu0 0
    %870 = vmatprep.subr.bf16.mxu0 0
    %871 = vmatpush1.bf16.msra.mxu0 0
    %872 = vmatprep.subr.bf16.mxu0 0
    %873 = vmatpush1.bf16.msra.mxu0 0
    %874 = vmatprep.subr.bf16.mxu0 0
    %875 = vmatpush1.bf16.msra.mxu0 0
    %876 = vmatprep.mubr.bf16.mxu0 0
    %877 = vmatmul.mubr.bf16.gmra.mrb[0].mxu0 %v792
    %v878 = vpop.f32.mrb[0].mxu0
    %v879 = vadd.f32 %v770, %v878
    %v880 = vpop.f32.mrb[0].mxu0
    %v881 = vpop.f32.mrb[0].mxu0
    %v882 = vadd.f32 %v773, %v881
    %v883 = vpop.f32.mrb[0].mxu0
    %884 = vmatprep.mubr.bf16.mxu0 0
    %885 = vmatmul.mubr.bf16.gmra.mrb[0].mxu0 %v793
    %v886 = vpop.f32.mrb[0].mxu0
    %v887 = vadd.f32 %v778, %v886
    %v888 = vpop.f32.mrb[0].mxu0
    %v889 = vpop.f32.mrb[0].mxu0
    %v890 = vadd.f32 %v781, %v889
    %v891 = vpop.f32.mrb[0].mxu0
    %892 = vdwg.mxu0
    %v893 = vld [vmem:[#allocation2] sm:$0xe]
    %v894 = vld [vmem:[#allocation2 + $0xc] sm:$0xe]
    %vm899 = vcmask 1042432
    %vm900 = vcmask 1046532
    %vm901 = vmor %vm899, %vm900
    %v902 = vrot.slane %v893, 5
    %v903 = vrot.slane %v902, 4
    %v904 = vrot.slane %v591, 5
    %v905 = vsel %vm901, %v903, %v904
    %v906 = vrot.slane %v904, 4
    %v907 = vrot.slane %v610, 5
    %v908 = vsel %vm901, %v906, %v907
    %v909 = vrot.slane %v894, 5
    %v910 = vrot.slane %v909, 4
    %v911 = vrot.slane %v593, 5
    %v912 = vsel %vm901, %v910, %v911
    %v913 = vrot.slane %v911, 4
    %v914 = vrot.slane %v611, 5
    %v915 = vsel %vm901, %v913, %v914
    %s916 = scalar_lea.vmem [#allocation6], 128
    %v917 = vld [vmem:[%s916] sm:$0xf]
    %v918 = vld [vmem:[%s916 + $0x4] sm:$0xf]
    %v919 = vld [vmem:[%s916 + $0x8] sm:$0xf]
    %v920 = vld [vmem:[%s916 + $0xc] sm:$0xf]
    %v921 = vld [vmem:[%s916 + $0x10] sm:$0xf]
    %v922 = vld [vmem:[%s916 + $0x14] sm:$0xf]
    %v923 = vld [vmem:[%s916 + $0x18] sm:$0xf]
    %v924 = vld [vmem:[%s916 + $0x1c] sm:$0xf]
    %v925 = vld [vmem:[%s916 + $0x20] sm:$0xf]
    %v926 = vld [vmem:[%s916 + $0x24] sm:$0xf]
    %v927 = vld [vmem:[%s916 + $0x28] sm:$0xf]
    %v928 = vld [vmem:[%s916 + $0x2c] sm:$0xf]
    %v929 = vld [vmem:[%s916 + $0x30] sm:$0xf]
    %v930 = vld [vmem:[%s916 + $0x34] sm:$0xf]
    %v931 = vld [vmem:[%s916 + $0x38] sm:$0xf]
    %v932 = vld [vmem:[%s916 + $0x3c] sm:$0xf]
    %v933 = vunpack.c.l.b16 %v905
    %v934 = vunpack.c.l.b16 %v908
    %v935 = vunpack.c.l.b16 %v912
    %v936 = vunpack.c.l.b16 %v915
    %v937 = vpack.c.b16 %v934, %v933
    %v938 = vpack.c.b16 %v936, %v935
    %v957 = vunpack.c.l.b16 %v917
    %v958 = vunpack.c.l.b16 %v918
    %v959 = vunpack.c.l.b16 %v919
    %v960 = vunpack.c.l.b16 %v920
    %v961 = vunpack.c.l.b16 %v921
    %v962 = vunpack.c.l.b16 %v922
    %v963 = vunpack.c.l.b16 %v923
    %v964 = vunpack.c.l.b16 %v924
    %v965 = vunpack.c.l.b16 %v925
    %v966 = vunpack.c.l.b16 %v926
    %v967 = vunpack.c.l.b16 %v927
    %v968 = vunpack.c.l.b16 %v928
    %v969 = vunpack.c.l.b16 %v929
    %v970 = vunpack.c.l.b16 %v930
    %v971 = vunpack.c.l.b16 %v931
    %v972 = vunpack.c.l.b16 %v932
    %v973 = vpack.c.b16 %v958, %v957
    %v974 = vpack.c.b16 %v960, %v959
    %v975 = vpack.c.b16 %v962, %v961
    %v976 = vpack.c.b16 %v964, %v963
    %v977 = vpack.c.b16 %v966, %v965
    %v978 = vpack.c.b16 %v968, %v967
    %v979 = vpack.c.b16 %v970, %v969
    %v980 = vpack.c.b16 %v972, %v971
    %989 = vmatprep.subr.bf16.mxu0 0
    %990 = vmatpush1.bf16.msra.mxu0 %v973
    %991 = vmatprep.subr.bf16.mxu0 0
    %992 = vmatpush1.bf16.msra.mxu0 %v974
    %993 = vmatprep.subr.bf16.mxu0 0
    %994 = vmatpush1.bf16.msra.mxu0 %v975
    %995 = vmatprep.subr.bf16.mxu0 0
    %996 = vmatpush1.bf16.msra.mxu0 %v976
    %997 = vmatprep.subr.bf16.mxu0 0
    %998 = vmatpush1.bf16.msra.mxu0 %v977
    %999 = vmatprep.subr.bf16.mxu0 0
    %1000 = vmatpush1.bf16.msra.mxu0 %v978
    %1001 = vmatprep.subr.bf16.mxu0 0
    %1002 = vmatpush1.bf16.msra.mxu0 %v979
    %1003 = vmatprep.subr.bf16.mxu0 0
    %1004 = vmatpush1.bf16.msra.mxu0 %v980
    %1005 = vmatprep.subr.bf16.mxu0 0
    %1006 = vmatpush1.bf16.msra.mxu0 0
    %1007 = vmatprep.subr.bf16.mxu0 0
    %1008 = vmatpush1.bf16.msra.mxu0 0
    %1009 = vmatprep.subr.bf16.mxu0 0
    %1010 = vmatpush1.bf16.msra.mxu0 0
    %1011 = vmatprep.subr.bf16.mxu0 0
    %1012 = vmatpush1.bf16.msra.mxu0 0
    %1013 = vmatprep.subr.bf16.mxu0 0
    %1014 = vmatpush1.bf16.msra.mxu0 0
    %1015 = vmatprep.subr.bf16.mxu0 0
    %1016 = vmatpush1.bf16.msra.mxu0 0
    %1017 = vmatprep.subr.bf16.mxu0 0
    %1018 = vmatpush1.bf16.msra.mxu0 0
    %1019 = vmatprep.subr.bf16.mxu0 0
    %1020 = vmatpush1.bf16.msra.mxu0 0
    %1021 = vmatprep.mubr.bf16.mxu0 0
    %1022 = vmatmul.mubr.bf16.gmra.mrb[0].mxu0 %v937
    %v1023 = vpop.f32.mrb[0].mxu0
    %v1024 = vadd.f32 0.0, %v1023
    %v1025 = vpop.f32.mrb[0].mxu0
    %v1026 = vpop.f32.mrb[0].mxu0
    %v1027 = vadd.f32 0.0, %v1026
    %v1028 = vpop.f32.mrb[0].mxu0
    %1029 = vmatprep.mubr.bf16.mxu0 0
    %1030 = vmatmul.mubr.bf16.gmra.mrb[0].mxu0 %v938
    %v1031 = vpop.f32.mrb[0].mxu0
    %v1032 = vadd.f32 0.0, %v1031
    %v1033 = vpop.f32.mrb[0].mxu0
    %v1034 = vpop.f32.mrb[0].mxu0
    %v1035 = vadd.f32 0.0, %v1034
    %v1036 = vpop.f32.mrb[0].mxu0
    %1037 = vdwg.mxu0
    %v1038 = vadd.f32 %v879, %v1024
    %v1039 = vadd.f32 %v882, %v1027
    %v1040 = vadd.f32 %v887, %v1032
    %v1041 = vadd.f32 %v890, %v1035
    %v1042 = vld [vmem:[#allocation2 + $0x8] sm:$0x3]
    %v1043 = vld [vmem:[#allocation2 + $0x14] sm:$0x3]
    %vm1044 = vsmask.f32 2304
    %vm1045 = vsmask.f32 6416
    %vm1046 = vmor %vm1044, %vm1045
    %v1048 = vshrl.u32 %v893, 16
    %v1050 = vrot.slane %v1048, 5
    %v1051 = vshll.u32 %v893, 16
    %v1053 = vrot.slane %v1051, 6
    %v1054 = vor.u32 %v1050, %v1053
    %v1055 = vrot.slane %v1054, 4
    %v1056 = vrot.slane %v628, 5
    %v1057 = vrot.slane %v624, 6
    %v1058 = vor.u32 %v1056, %v1057
    %v1059 = vsel %vm1046, %v1055, %v1058
    %v1060 = vrot.slane %v1058, 4
    %v1062 = vshrl.u32 %v1042, 16
    %v1064 = vrot.slane %v1062, 5
    %v1065 = vshll.u32 %v1042, 16
    %v1067 = vrot.slane %v1065, 6
    %v1068 = vor.u32 %v1064, %v1067
    %v1069 = vsel %vm1046, %v1060, %v1068
    %v1071 = vshrl.u32 %v894, 16
    %v1073 = vrot.slane %v1071, 5
    %v1074 = vshll.u32 %v894, 16
    %v1076 = vrot.slane %v1074, 6
    %v1077 = vor.u32 %v1073, %v1076
    %v1078 = vrot.slane %v1077, 4
    %v1079 = vrot.slane %v652, 5
    %v1080 = vrot.slane %v648, 6
    %v1081 = vor.u32 %v1079, %v1080
    %v1082 = vsel %vm1046, %v1078, %v1081
    %v1083 = vrot.slane %v1081, 4
    %v1085 = vshrl.u32 %v1043, 16
    %v1087 = vrot.slane %v1085, 5
    %v1088 = vshll.u32 %v1043, 16
    %v1090 = vrot.slane %v1088, 6
    %v1091 = vor.u32 %v1087, %v1090
    %v1092 = vsel %vm1046, %v1083, %v1091
    %s1093 = scalar_lea.vmem [#allocation6], 192
    %v1094 = vld [vmem:[%s1093] sm:$0xf]
    %v1095 = vld [vmem:[%s1093 + $0x4] sm:$0xf]
    %v1096 = vld [vmem:[%s1093 + $0x8] sm:$0xf]
    %v1097 = vld [vmem:[%s1093 + $0xc] sm:$0xf]
    %v1098 = vld [vmem:[%s1093 + $0x10] sm:$0xf]
    %v1099 = vld [vmem:[%s1093 + $0x14] sm:$0xf]
    %v1100 = vld [vmem:[%s1093 + $0x18] sm:$0xf]
    %v1101 = vld [vmem:[%s1093 + $0x1c] sm:$0xf]
    %v1102 = vld [vmem:[%s1093 + $0x20] sm:$0xf]
    %v1103 = vld [vmem:[%s1093 + $0x24] sm:$0xf]
    %v1104 = vld [vmem:[%s1093 + $0x28] sm:$0xf]
    %v1105 = vld [vmem:[%s1093 + $0x2c] sm:$0xf]
    %v1106 = vld [vmem:[%s1093 + $0x30] sm:$0xf]
    %v1107 = vld [vmem:[%s1093 + $0x34] sm:$0xf]
    %v1108 = vld [vmem:[%s1093 + $0x38] sm:$0xf]
    %v1109 = vld [vmem:[%s1093 + $0x3c] sm:$0xf]
    %v1110 = vunpack.c.l.b16 %v1059
    %v1111 = vunpack.c.l.b16 %v1069
    %v1112 = vunpack.c.l.b16 %v1082
    %v1113 = vunpack.c.l.b16 %v1092
    %v1114 = vpack.c.b16 %v1111, %v1110
    %v1115 = vpack.c.b16 %v1113, %v1112
    %v1134 = vunpack.c.l.b16 %v1094
    %v1135 = vunpack.c.l.b16 %v1095
    %v1136 = vunpack.c.l.b16 %v1096
    %v1137 = vunpack.c.l.b16 %v1097
    %v1138 = vunpack.c.l.b16 %v1098
    %v1139 = vunpack.c.l.b16 %v1099
    %v1140 = vunpack.c.l.b16 %v1100
    %v1141 = vunpack.c.l.b16 %v1101
    %v1142 = vunpack.c.l.b16 %v1102
    %v1143 = vunpack.c.l.b16 %v1103
    %v1144 = vunpack.c.l.b16 %v1104
    %v1145 = vunpack.c.l.b16 %v1105
    %v1146 = vunpack.c.l.b16 %v1106
    %v1147 = vunpack.c.l.b16 %v1107
    %v1148 = vunpack.c.l.b16 %v1108
    %v1149 = vunpack.c.l.b16 %v1109
    %v1150 = vpack.c.b16 %v1135, %v1134
    %v1151 = vpack.c.b16 %v1137, %v1136
    %v1152 = vpack.c.b16 %v1139, %v1138
    %v1153 = vpack.c.b16 %v1141, %v1140
    %v1154 = vpack.c.b16 %v1143, %v1142
    %v1155 = vpack.c.b16 %v1145, %v1144
    %v1156 = vpack.c.b16 %v1147, %v1146
    %v1157 = vpack.c.b16 %v1149, %v1148
    %1166 = vmatprep.subr.bf16.mxu0 0
    %1167 = vmatpush1.bf16.msra.mxu0 %v1150
    %1168 = vmatprep.subr.bf16.mxu0 0
    %1169 = vmatpush1.bf16.msra.mxu0 %v1151
    %1170 = vmatprep.subr.bf16.mxu0 0
    %1171 = vmatpush1.bf16.msra.mxu0 %v1152
    %1172 = vmatprep.subr.bf16.mxu0 0
    %1173 = vmatpush1.bf16.msra.mxu0 %v1153
    %1174 = vmatprep.subr.bf16.mxu0 0
    %1175 = vmatpush1.bf16.msra.mxu0 %v1154
    %1176 = vmatprep.subr.bf16.mxu0 0
    %1177 = vmatpush1.bf16.msra.mxu0 %v1155
    %1178 = vmatprep.subr.bf16.mxu0 0
    %1179 = vmatpush1.bf16.msra.mxu0 %v1156
    %1180 = vmatprep.subr.bf16.mxu0 0
    %1181 = vmatpush1.bf16.msra.mxu0 %v1157
    %1182 = vmatprep.subr.bf16.mxu0 0
    %1183 = vmatpush1.bf16.msra.mxu0 0
    %1184 = vmatprep.subr.bf16.mxu0 0
    %1185 = vmatpush1.bf16.msra.mxu0 0
    %1186 = vmatprep.subr.bf16.mxu0 0
    %1187 = vmatpush1.bf16.msra.mxu0 0
    %1188 = vmatprep.subr.bf16.mxu0 0
    %1189 = vmatpush1.bf16.msra.mxu0 0
    %1190 = vmatprep.subr.bf16.mxu0 0
    %1191 = vmatpush1.bf16.msra.mxu0 0
    %1192 = vmatprep.subr.bf16.mxu0 0
    %1193 = vmatpush1.bf16.msra.mxu0 0
    %1194 = vmatprep.subr.bf16.mxu0 0
    %1195 = vmatpush1.bf16.msra.mxu0 0
    %1196 = vmatprep.subr.bf16.mxu0 0
    %1197 = vmatpush1.bf16.msra.mxu0 0
    %1198 = vmatprep.mubr.bf16.mxu0 0
    %1199 = vmatmul.mubr.bf16.gmra.mrb[0].mxu0 %v1114
    %v1200 = vpop.f32.mrb[0].mxu0
    %v1201 = vadd.f32 0.0, %v1200
    %v1202 = vpop.f32.mrb[0].mxu0
    %v1203 = vpop.f32.mrb[0].mxu0
    %v1204 = vadd.f32 0.0, %v1203
    %v1205 = vpop.f32.mrb[0].mxu0
    %1206 = vmatprep.mubr.bf16.mxu0 0
    %1207 = vmatmul.mubr.bf16.gmra.mrb[0].mxu0 %v1115
    %v1208 = vpop.f32.mrb[0].mxu0
    %v1209 = vadd.f32 0.0, %v1208
    %v1210 = vpop.f32.mrb[0].mxu0
    %v1211 = vpop.f32.mrb[0].mxu0
    %v1212 = vadd.f32 0.0, %v1211
    %v1213 = vpop.f32.mrb[0].mxu0
    %1214 = vdwg.mxu0
    %v1215 = vadd.f32 %v1038, %v1201
    %v1216 = vadd.f32 %v1039, %v1204
    %v1217 = vadd.f32 %v1040, %v1209
    %v1218 = vadd.f32 %v1041, %v1212
    %v1219 = vld [vmem:[#allocation2] sm:$0xc]
    %v1220 = vld [vmem:[#allocation2 + $0xc] sm:$0xc]
    %vm1225 = vcmask 1045508
    %vm1226 = vmor %vm578, %vm1225
    %v1227 = vrot.slane %v1219, 6
    %v1228 = vrot.slane %v1227, 4
    %v1229 = vrot.slane %v591, 6
    %v1230 = vsel %vm1226, %v1228, %v1229
    %v1231 = vrot.slane %v1229, 4
    %v1232 = vrot.slane %v1042, 6
    %v1233 = vsel %vm1226, %v1231, %v1232
    %v1234 = vrot.slane %v1220, 6
    %v1235 = vrot.slane %v1234, 4
    %v1236 = vrot.slane %v593, 6
    %v1237 = vsel %vm1226, %v1235, %v1236
    %v1238 = vrot.slane %v1236, 4
    %v1239 = vrot.slane %v1043, 6
    %v1240 = vsel %vm1226, %v1238, %v1239
    %s1241 = scalar_lea.vmem [#allocation6], 256
    %v1242 = vld [vmem:[%s1241] sm:$0xf]
    %v1243 = vld [vmem:[%s1241 + $0x4] sm:$0xf]
    %v1244 = vld [vmem:[%s1241 + $0x8] sm:$0xf]
    %v1245 = vld [vmem:[%s1241 + $0xc] sm:$0xf]
    %v1246 = vld [vmem:[%s1241 + $0x10] sm:$0xf]
    %v1247 = vld [vmem:[%s1241 + $0x14] sm:$0xf]
    %v1248 = vld [vmem:[%s1241 + $0x18] sm:$0xf]
    %v1249 = vld [vmem:[%s1241 + $0x1c] sm:$0xf]
    %v1250 = vld [vmem:[%s1241 + $0x20] sm:$0xf]
    %v1251 = vld [vmem:[%s1241 + $0x24] sm:$0xf]
    %v1252 = vld [vmem:[%s1241 + $0x28] sm:$0xf]
    %v1253 = vld [vmem:[%s1241 + $0x2c] sm:$0xf]
    %v1254 = vld [vmem:[%s1241 + $0x30] sm:$0xf]
    %v1255 = vld [vmem:[%s1241 + $0x34] sm:$0xf]
    %v1256 = vld [vmem:[%s1241 + $0x38] sm:$0xf]
    %v1257 = vld [vmem:[%s1241 + $0x3c] sm:$0xf]
    %v1258 = vunpack.c.l.b16 %v1230
    %v1259 = vunpack.c.l.b16 %v1233
    %v1260 = vunpack.c.l.b16 %v1237
    %v1261 = vunpack.c.l.b16 %v1240
    %v1262 = vpack.c.b16 %v1259, %v1258
    %v1263 = vpack.c.b16 %v1261, %v1260
    %v1282 = vunpack.c.l.b16 %v1242
    %v1283 = vunpack.c.l.b16 %v1243
    %v1284 = vunpack.c.l.b16 %v1244
    %v1285 = vunpack.c.l.b16 %v1245
    %v1286 = vunpack.c.l.b16 %v1246
    %v1287 = vunpack.c.l.b16 %v1247
    %v1288 = vunpack.c.l.b16 %v1248
    %v1289 = vunpack.c.l.b16 %v1249
    %v1290 = vunpack.c.l.b16 %v1250
    %v1291 = vunpack.c.l.b16 %v1251
    %v1292 = vunpack.c.l.b16 %v1252
    %v1293 = vunpack.c.l.b16 %v1253
    %v1294 = vunpack.c.l.b16 %v1254
    %v1295 = vunpack.c.l.b16 %v1255
    %v1296 = vunpack.c.l.b16 %v1256
    %v1297 = vunpack.c.l.b16 %v1257
    %v1298 = vpack.c.b16 %v1283, %v1282
    %v1299 = vpack.c.b16 %v1285, %v1284
    %v1300 = vpack.c.b16 %v1287, %v1286
    %v1301 = vpack.c.b16 %v1289, %v1288
    %v1302 = vpack.c.b16 %v1291, %v1290
    %v1303 = vpack.c.b16 %v1293, %v1292
    %v1304 = vpack.c.b16 %v1295, %v1294
    %v1305 = vpack.c.b16 %v1297, %v1296
    %1314 = vmatprep.subr.bf16.mxu0 0
    %1315 = vmatpush1.bf16.msra.mxu0 %v1298
    %1316 = vmatprep.subr.bf16.mxu0 0
    %1317 = vmatpush1.bf16.msra.mxu0 %v1299
    %1318 = vmatprep.subr.bf16.mxu0 0
    %1319 = vmatpush1.bf16.msra.mxu0 %v1300
    %1320 = vmatprep.subr.bf16.mxu0 0
    %1321 = vmatpush1.bf16.msra.mxu0 %v1301
    %1322 = vmatprep.subr.bf16.mxu0 0
    %1323 = vmatpush1.bf16.msra.mxu0 %v1302
    %1324 = vmatprep.subr.bf16.mxu0 0
    %1325 = vmatpush1.bf16.msra.mxu0 %v1303
    %1326 = vmatprep.subr.bf16.mxu0 0
    %1327 = vmatpush1.bf16.msra.mxu0 %v1304
    %1328 = vmatprep.subr.bf16.mxu0 0
    %1329 = vmatpush1.bf16.msra.mxu0 %v1305
    %1330 = vmatprep.subr.bf16.mxu0 0
    %1331 = vmatpush1.bf16.msra.mxu0 0
    %1332 = vmatprep.subr.bf16.mxu0 0
    %1333 = vmatpush1.bf16.msra.mxu0 0
    %1334 = vmatprep.subr.bf16.mxu0 0
    %1335 = vmatpush1.bf16.msra.mxu0 0
    %1336 = vmatprep.subr.bf16.mxu0 0
    %1337 = vmatpush1.bf16.msra.mxu0 0
    %1338 = vmatprep.subr.bf16.mxu0 0
    %1339 = vmatpush1.bf16.msra.mxu0 0
    %1340 = vmatprep.subr.bf16.mxu0 0
    %1341 = vmatpush1.bf16.msra.mxu0 0
    %1342 = vmatprep.subr.bf16.mxu0 0
    %1343 = vmatpush1.bf16.msra.mxu0 0
    %1344 = vmatprep.subr.bf16.mxu0 0
    %1345 = vmatpush1.bf16.msra.mxu0 0
    %1346 = vmatprep.mubr.bf16.mxu0 0
    %1347 = vmatmul.mubr.bf16.gmra.mrb[0].mxu0 %v1262
    %v1348 = vpop.f32.mrb[0].mxu0
    %v1349 = vadd.f32 0.0, %v1348
    %v1350 = vpop.f32.mrb[0].mxu0
    %v1351 = vpop.f32.mrb[0].mxu0
    %v1352 = vadd.f32 0.0, %v1351
    %v1353 = vpop.f32.mrb[0].mxu0
    %1354 = vmatprep.mubr.bf16.mxu0 0
    %1355 = vmatmul.mubr.bf16.gmra.mrb[0].mxu0 %v1263
    %v1356 = vpop.f32.mrb[0].mxu0
    %v1357 = vadd.f32 0.0, %v1356
    %v1358 = vpop.f32.mrb[0].mxu0
    %v1359 = vpop.f32.mrb[0].mxu0
    %v1360 = vadd.f32 0.0, %v1359
    %v1361 = vpop.f32.mrb[0].mxu0
    %1362 = vdwg.mxu0
    %v1363 = vadd.f32 %v1215, %v1349
    %v1364 = vadd.f32 %v1216, %v1352
    %v1365 = vadd.f32 %v1217, %v1357
    %v1366 = vadd.f32 %v1218, %v1360
    %v1367 = vld [vmem:[#allocation2 + $0x8] sm:$0x7]
    %v1368 = vld [vmem:[#allocation2 + $0x14] sm:$0x7]
    %v1370 = vshrl.u32 %v1219, 16
    %v1372 = vrot.slane %v1370, 6
    %v1373 = vshll.u32 %v1219, 16
    %v1375 = vrot.slane %v1373, 7
    %v1376 = vor.u32 %v1372, %v1375
    %v1377 = vrot.slane %v1376, 4
    %v1378 = vrot.slane %v628, 6
    %v1379 = vrot.slane %v624, 7
    %v1380 = vor.u32 %v1378, %v1379
    %v1381 = vsel %vm526, %v1377, %v1380
    %v1382 = vrot.slane %v1380, 4
    %v1384 = vshrl.u32 %v1367, 16
    %v1386 = vrot.slane %v1384, 6
    %v1387 = vshll.u32 %v1367, 16
    %v1389 = vrot.slane %v1387, 7
    %v1390 = vor.u32 %v1386, %v1389
    %v1391 = vsel %vm526, %v1382, %v1390
    %v1393 = vshrl.u32 %v1220, 16
    %v1395 = vrot.slane %v1393, 6
    %v1396 = vshll.u32 %v1220, 16
    %v1398 = vrot.slane %v1396, 7
    %v1399 = vor.u32 %v1395, %v1398
    %v1400 = vrot.slane %v1399, 4
    %v1401 = vrot.slane %v652, 6
    %v1402 = vrot.slane %v648, 7
    %v1403 = vor.u32 %v1401, %v1402
    %v1404 = vsel %vm526, %v1400, %v1403
    %v1405 = vrot.slane %v1403, 4
    %v1407 = vshrl.u32 %v1368, 16
    %v1409 = vrot.slane %v1407, 6
    %v1410 = vshll.u32 %v1368, 16
    %v1412 = vrot.slane %v1410, 7
    %v1413 = vor.u32 %v1409, %v1412
    %v1414 = vsel %vm526, %v1405, %v1413
    %s1415 = scalar_lea.vmem [#allocation6], 320
    %v1416 = vld [vmem:[%s1415] sm:$0xf]
    %v1417 = vld [vmem:[%s1415 + $0x4] sm:$0xf]
    %v1418 = vld [vmem:[%s1415 + $0x8] sm:$0xf]
    %v1419 = vld [vmem:[%s1415 + $0xc] sm:$0xf]
    %v1420 = vld [vmem:[%s1415 + $0x10] sm:$0xf]
    %v1421 = vld [vmem:[%s1415 + $0x14] sm:$0xf]
    %v1422 = vld [vmem:[%s1415 + $0x18] sm:$0xf]
    %v1423 = vld [vmem:[%s1415 + $0x1c] sm:$0xf]
    %v1424 = vld [vmem:[%s1415 + $0x20] sm:$0xf]
    %v1425 = vld [vmem:[%s1415 + $0x24] sm:$0xf]
    %v1426 = vld [vmem:[%s1415 + $0x28] sm:$0xf]
    %v1427 = vld [vmem:[%s1415 + $0x2c] sm:$0xf]
    %v1428 = vld [vmem:[%s1415 + $0x30] sm:$0xf]
    %v1429 = vld [vmem:[%s1415 + $0x34] sm:$0xf]
    %v1430 = vld [vmem:[%s1415 + $0x38] sm:$0xf]
    %v1431 = vld [vmem:[%s1415 + $0x3c] sm:$0xf]
    %v1432 = vunpack.c.l.b16 %v1381
    %v1433 = vunpack.c.l.b16 %v1391
    %v1434 = vunpack.c.l.b16 %v1404
    %v1435 = vunpack.c.l.b16 %v1414
    %v1436 = vpack.c.b16 %v1433, %v1432
    %v1437 = vpack.c.b16 %v1435, %v1434
    %v1456 = vunpack.c.l.b16 %v1416
    %v1457 = vunpack.c.l.b16 %v1417
    %v1458 = vunpack.c.l.b16 %v1418
    %v1459 = vunpack.c.l.b16 %v1419
    %v1460 = vunpack.c.l.b16 %v1420
    %v1461 = vunpack.c.l.b16 %v1421
    %v1462 = vunpack.c.l.b16 %v1422
    %v1463 = vunpack.c.l.b16 %v1423
    %v1464 = vunpack.c.l.b16 %v1424
    %v1465 = vunpack.c.l.b16 %v1425
    %v1466 = vunpack.c.l.b16 %v1426
    %v1467 = vunpack.c.l.b16 %v1427
    %v1468 = vunpack.c.l.b16 %v1428
    %v1469 = vunpack.c.l.b16 %v1429
    %v1470 = vunpack.c.l.b16 %v1430
    %v1471 = vunpack.c.l.b16 %v1431
    %v1472 = vpack.c.b16 %v1457, %v1456
    %v1473 = vpack.c.b16 %v1459, %v1458
    %v1474 = vpack.c.b16 %v1461, %v1460
    %v1475 = vpack.c.b16 %v1463, %v1462
    %v1476 = vpack.c.b16 %v1465, %v1464
    %v1477 = vpack.c.b16 %v1467, %v1466
    %v1478 = vpack.c.b16 %v1469, %v1468
    %v1479 = vpack.c.b16 %v1471, %v1470
    %1488 = vmatprep.subr.bf16.mxu0 0
    %1489 = vmatpush1.bf16.msra.mxu0 %v1472
    %1490 = vmatprep.subr.bf16.mxu0 0
    %1491 = vmatpush1.bf16.msra.mxu0 %v1473
    %1492 = vmatprep.subr.bf16.mxu0 0
    %1493 = vmatpush1.bf16.msra.mxu0 %v1474
    %1494 = vmatprep.subr.bf16.mxu0 0
    %1495 = vmatpush1.bf16.msra.mxu0 %v1475
    %1496 = vmatprep.subr.bf16.mxu0 0
    %1497 = vmatpush1.bf16.msra.mxu0 %v1476
    %1498 = vmatprep.subr.bf16.mxu0 0
    %1499 = vmatpush1.bf16.msra.mxu0 %v1477
    %1500 = vmatprep.subr.bf16.mxu0 0
    %1501 = vmatpush1.bf16.msra.mxu0 %v1478
    %1502 = vmatprep.subr.bf16.mxu0 0
    %1503 = vmatpush1.bf16.msra.mxu0 %v1479
    %1504 = vmatprep.subr.bf16.mxu0 0
    %1505 = vmatpush1.bf16.msra.mxu0 0
    %1506 = vmatprep.subr.bf16.mxu0 0
    %1507 = vmatpush1.bf16.msra.mxu0 0
    %1508 = vmatprep.subr.bf16.mxu0 0
    %1509 = vmatpush1.bf16.msra.mxu0 0
    %1510 = vmatprep.subr.bf16.mxu0 0
    %1511 = vmatpush1.bf16.msra.mxu0 0
    %1512 = vmatprep.subr.bf16.mxu0 0
    %1513 = vmatpush1.bf16.msra.mxu0 0
    %1514 = vmatprep.subr.bf16.mxu0 0
    %1515 = vmatpush1.bf16.msra.mxu0 0
    %1516 = vmatprep.subr.bf16.mxu0 0
    %1517 = vmatpush1.bf16.msra.mxu0 0
    %1518 = vmatprep.subr.bf16.mxu0 0
    %1519 = vmatpush1.bf16.msra.mxu0 0
    %1520 = vmatprep.mubr.bf16.mxu0 0
    %1521 = vmatmul.mubr.bf16.gmra.mrb[0].mxu0 %v1436
    %v1522 = vpop.f32.mrb[0].mxu0
    %v1523 = vadd.f32 0.0, %v1522
    %v1524 = vpop.f32.mrb[0].mxu0
    %v1525 = vpop.f32.mrb[0].mxu0
    %v1526 = vadd.f32 0.0, %v1525
    %v1527 = vpop.f32.mrb[0].mxu0
    %1528 = vmatprep.mubr.bf16.mxu0 0
    %1529 = vmatmul.mubr.bf16.gmra.mrb[0].mxu0 %v1437
    %v1530 = vpop.f32.mrb[0].mxu0
    %v1531 = vadd.f32 0.0, %v1530
    %v1532 = vpop.f32.mrb[0].mxu0
    %v1533 = vpop.f32.mrb[0].mxu0
    %v1534 = vadd.f32 0.0, %v1533
    %v1535 = vpop.f32.mrb[0].mxu0
    %1536 = vdwg.mxu0
    %v1537 = vadd.f32 %v1363, %v1523
    %v1538 = vadd.f32 %v1364, %v1526
    %v1539 = vadd.f32 %v1365, %v1531
    %v1540 = vadd.f32 %v1366, %v1534
    %v1541 = vld [vmem:[#allocation2] sm:$0x8]
    %v1542 = vld [vmem:[#allocation2 + $0xc] sm:$0x8]
    %vm1547 = vcmask 1040384
    %vm1548 = vcmask 1044484
    %vm1549 = vmor %vm1547, %vm1548
    %v1550 = vrot.slane %v1541, 7
    %v1551 = vrot.slane %v1550, 4
    %v1552 = vrot.slane %v591, 7
    %v1553 = vsel %vm1549, %v1551, %v1552
    %v1554 = vrot.slane %v1552, 4
    %v1555 = vrot.slane %v1367, 7
    %v1556 = vsel %vm1549, %v1554, %v1555
    %v1557 = vrot.slane %v1542, 7
    %v1558 = vrot.slane %v1557, 4
    %v1559 = vrot.slane %v593, 7
    %v1560 = vsel %vm1549, %v1558, %v1559
    %v1561 = vrot.slane %v1559, 4
    %v1562 = vrot.slane %v1368, 7
    %v1563 = vsel %vm1549, %v1561, %v1562
    %s1564 = scalar_lea.vmem [#allocation6], 384
    %v1565 = vld [vmem:[%s1564] sm:$0xf]
    %v1566 = vld [vmem:[%s1564 + $0x4] sm:$0xf]
    %v1567 = vld [vmem:[%s1564 + $0x8] sm:$0xf]
    %v1568 = vld [vmem:[%s1564 + $0xc] sm:$0xf]
    %v1569 = vld [vmem:[%s1564 + $0x10] sm:$0xf]
    %v1570 = vld [vmem:[%s1564 + $0x14] sm:$0xf]
    %v1571 = vld [vmem:[%s1564 + $0x18] sm:$0xf]
    %v1572 = vld [vmem:[%s1564 + $0x1c] sm:$0xf]
    %v1573 = vld [vmem:[%s1564 + $0x20] sm:$0xf]
    %v1574 = vld [vmem:[%s1564 + $0x24] sm:$0xf]
    %v1575 = vld [vmem:[%s1564 + $0x28] sm:$0xf]
    %v1576 = vld [vmem:[%s1564 + $0x2c] sm:$0xf]
    %v1577 = vld [vmem:[%s1564 + $0x30] sm:$0xf]
    %v1578 = vld [vmem:[%s1564 + $0x34] sm:$0xf]
    %v1579 = vld [vmem:[%s1564 + $0x38] sm:$0xf]
    %v1580 = vld [vmem:[%s1564 + $0x3c] sm:$0xf]
    %v1581 = vunpack.c.l.b16 %v1553
    %v1582 = vunpack.c.l.b16 %v1556
    %v1583 = vunpack.c.l.b16 %v1560
    %v1584 = vunpack.c.l.b16 %v1563
    %v1585 = vpack.c.b16 %v1582, %v1581
    %v1586 = vpack.c.b16 %v1584, %v1583
    %v1605 = vunpack.c.l.b16 %v1565
    %v1606 = vunpack.c.l.b16 %v1566
    %v1607 = vunpack.c.l.b16 %v1567
    %v1608 = vunpack.c.l.b16 %v1568
    %v1609 = vunpack.c.l.b16 %v1569
    %v1610 = vunpack.c.l.b16 %v1570
    %v1611 = vunpack.c.l.b16 %v1571
    %v1612 = vunpack.c.l.b16 %v1572
    %v1613 = vunpack.c.l.b16 %v1573
    %v1614 = vunpack.c.l.b16 %v1574
    %v1615 = vunpack.c.l.b16 %v1575
    %v1616 = vunpack.c.l.b16 %v1576
    %v1617 = vunpack.c.l.b16 %v1577
    %v1618 = vunpack.c.l.b16 %v1578
    %v1619 = vunpack.c.l.b16 %v1579
    %v1620 = vunpack.c.l.b16 %v1580
    %v1621 = vpack.c.b16 %v1606, %v1605
    %v1622 = vpack.c.b16 %v1608, %v1607
    %v1623 = vpack.c.b16 %v1610, %v1609
    %v1624 = vpack.c.b16 %v1612, %v1611
    %v1625 = vpack.c.b16 %v1614, %v1613
    %v1626 = vpack.c.b16 %v1616, %v1615
    %v1627 = vpack.c.b16 %v1618, %v1617
    %v1628 = vpack.c.b16 %v1620, %v1619
    %1637 = vmatprep.subr.bf16.mxu0 0
    %1638 = vmatpush1.bf16.msra.mxu0 %v1621
    %1639 = vmatprep.subr.bf16.mxu0 0
    %1640 = vmatpush1.bf16.msra.mxu0 %v1622
    %1641 = vmatprep.subr.bf16.mxu0 0
    %1642 = vmatpush1.bf16.msra.mxu0 %v1623
    %1643 = vmatprep.subr.bf16.mxu0 0
    %1644 = vmatpush1.bf16.msra.mxu0 %v1624
    %1645 = vmatprep.subr.bf16.mxu0 0
    %1646 = vmatpush1.bf16.msra.mxu0 %v1625
    %1647 = vmatprep.subr.bf16.mxu0 0
    %1648 = vmatpush1.bf16.msra.mxu0 %v1626
    %1649 = vmatprep.subr.bf16.mxu0 0
    %1650 = vmatpush1.bf16.msra.mxu0 %v1627
    %1651 = vmatprep.subr.bf16.mxu0 0
    %1652 = vmatpush1.bf16.msra.mxu0 %v1628
    %1653 = vmatprep.subr.bf16.mxu0 0
    %1654 = vmatpush1.bf16.msra.mxu0 0
    %1655 = vmatprep.subr.bf16.mxu0 0
    %1656 = vmatpush1.bf16.msra.mxu0 0
    %1657 = vmatprep.subr.bf16.mxu0 0
    %1658 = vmatpush1.bf16.msra.mxu0 0
    %1659 = vmatprep.subr.bf16.mxu0 0
    %1660 = vmatpush1.bf16.msra.mxu0 0
    %1661 = vmatprep.subr.bf16.mxu0 0
    %1662 = vmatpush1.bf16.msra.mxu0 0
    %1663 = vmatprep.subr.bf16.mxu0 0
    %1664 = vmatpush1.bf16.msra.mxu0 0
    %1665 = vmatprep.subr.bf16.mxu0 0
    %1666 = vmatpush1.bf16.msra.mxu0 0
    %1667 = vmatprep.subr.bf16.mxu0 0
    %1668 = vmatpush1.bf16.msra.mxu0 0
    %1669 = vmatprep.mubr.bf16.mxu0 0
    %1670 = vmatmul.mubr.bf16.gmra.mrb[0].mxu0 %v1585
    %v1671 = vpop.f32.mrb[0].mxu0
    %v1672 = vadd.f32 0.0, %v1671
    %v1673 = vpop.f32.mrb[0].mxu0
    %v1674 = vpop.f32.mrb[0].mxu0
    %v1675 = vadd.f32 0.0, %v1674
    %v1676 = vpop.f32.mrb[0].mxu0
    %1677 = vmatprep.mubr.bf16.mxu0 0
    %1678 = vmatmul.mubr.bf16.gmra.mrb[0].mxu0 %v1586
    %v1679 = vpop.f32.mrb[0].mxu0
    %v1680 = vadd.f32 0.0, %v1679
    %v1681 = vpop.f32.mrb[0].mxu0
    %v1682 = vpop.f32.mrb[0].mxu0
    %v1683 = vadd.f32 0.0, %v1682
    %v1684 = vpop.f32.mrb[0].mxu0
    %1685 = vdwg.mxu0
    %v1686 = vadd.f32 %v1537, %v1672
    %v1687 = vadd.f32 %v1538, %v1675
    %v1688 = vadd.f32 %v1539, %v1680
    %v1689 = vadd.f32 %v1540, %v1683
    %v1690 = vld [vmem:[#allocation2 + $0x8] sm:$0xf]
    %v1691 = vld [vmem:[#allocation2 + $0x14] sm:$0xf]
    %vm1692 = vsmask.f32 256
    %vm1693 = vsmask.f32 4368
    %vm1694 = vmor %vm1692, %vm1693
    %v1696 = vshrl.u32 %v1541, 16
    %v1698 = vrot.slane %v1696, 7
    %v1699 = vrot.slane %v1698, 4
    %v1700 = vrot.slane %v628, 7
    %v1701 = vor.u32 %v1700, %v624
    %v1702 = vsel %vm1694, %v1699, %v1701
    %v1703 = vrot.slane %v1700, 4
    %v1705 = vshrl.u32 %v1690, 16
    %v1707 = vrot.slane %v1705, 7
    %v1708 = vshll.u32 %v1690, 16
    %v1710 = vor.u32 %v1707, %v1708
    %v1711 = vsel %vm1694, %v1703, %v1710
    %v1713 = vshrl.u32 %v1542, 16
    %v1715 = vrot.slane %v1713, 7
    %v1716 = vrot.slane %v1715, 4
    %v1717 = vrot.slane %v652, 7
    %v1718 = vor.u32 %v1717, %v648
    %v1719 = vsel %vm1694, %v1716, %v1718
    %v1720 = vrot.slane %v1717, 4
    %v1722 = vshrl.u32 %v1691, 16
    %v1724 = vrot.slane %v1722, 7
    %v1725 = vshll.u32 %v1691, 16
    %v1727 = vor.u32 %v1724, %v1725
    %v1728 = vsel %vm1694, %v1720, %v1727
    %s1729 = scalar_lea.vmem [#allocation6], 448
    %v1730 = vld [vmem:[%s1729] sm:$0xf]
    %v1731 = vld [vmem:[%s1729 + $0x4] sm:$0xf]
    %v1732 = vld [vmem:[%s1729 + $0x8] sm:$0xf]
    %v1733 = vld [vmem:[%s1729 + $0xc] sm:$0xf]
    %v1734 = vld [vmem:[%s1729 + $0x10] sm:$0xf]
    %v1735 = vld [vmem:[%s1729 + $0x14] sm:$0xf]
    %v1736 = vld [vmem:[%s1729 + $0x18] sm:$0xf]
    %v1737 = vld [vmem:[%s1729 + $0x1c] sm:$0xf]
    %v1738 = vld [vmem:[%s1729 + $0x20] sm:$0xf]
    %v1739 = vld [vmem:[%s1729 + $0x24] sm:$0xf]
    %v1740 = vld [vmem:[%s1729 + $0x28] sm:$0xf]
    %v1741 = vld [vmem:[%s1729 + $0x2c] sm:$0xf]
    %v1742 = vld [vmem:[%s1729 + $0x30] sm:$0xf]
    %v1743 = vld [vmem:[%s1729 + $0x34] sm:$0xf]
    %v1744 = vld [vmem:[%s1729 + $0x38] sm:$0xf]
    %v1745 = vld [vmem:[%s1729 + $0x3c] sm:$0xf]
    %v1746 = vunpack.c.l.b16 %v1702
    %v1747 = vunpack.c.l.b16 %v1711
    %v1748 = vunpack.c.l.b16 %v1719
    %v1749 = vunpack.c.l.b16 %v1728
    %v1750 = vpack.c.b16 %v1747, %v1746
    %v1751 = vpack.c.b16 %v1749, %v1748
    %v1770 = vunpack.c.l.b16 %v1730
    %v1771 = vunpack.c.l.b16 %v1731
    %v1772 = vunpack.c.l.b16 %v1732
    %v1773 = vunpack.c.l.b16 %v1733
    %v1774 = vunpack.c.l.b16 %v1734
    %v1775 = vunpack.c.l.b16 %v1735
    %v1776 = vunpack.c.l.b16 %v1736
    %v1777 = vunpack.c.l.b16 %v1737
    %v1778 = vunpack.c.l.b16 %v1738
    %v1779 = vunpack.c.l.b16 %v1739
    %v1780 = vunpack.c.l.b16 %v1740
    %v1781 = vunpack.c.l.b16 %v1741
    %v1782 = vunpack.c.l.b16 %v1742
    %v1783 = vunpack.c.l.b16 %v1743
    %v1784 = vunpack.c.l.b16 %v1744
    %v1785 = vunpack.c.l.b16 %v1745
    %v1786 = vpack.c.b16 %v1771, %v1770
    %v1787 = vpack.c.b16 %v1773, %v1772
    %v1788 = vpack.c.b16 %v1775, %v1774
    %v1789 = vpack.c.b16 %v1777, %v1776
    %v1790 = vpack.c.b16 %v1779, %v1778
    %v1791 = vpack.c.b16 %v1781, %v1780
    %v1792 = vpack.c.b16 %v1783, %v1782
    %v1793 = vpack.c.b16 %v1785, %v1784
    %1802 = vmatprep.subr.bf16.mxu0 0
    %1803 = vmatpush1.bf16.msra.mxu0 %v1786
    %1804 = vmatprep.subr.bf16.mxu0 0
    %1805 = vmatpush1.bf16.msra.mxu0 %v1787
    %1806 = vmatprep.subr.bf16.mxu0 0
    %1807 = vmatpush1.bf16.msra.mxu0 %v1788
    %1808 = vmatprep.subr.bf16.mxu0 0
    %1809 = vmatpush1.bf16.msra.mxu0 %v1789
    %1810 = vmatprep.subr.bf16.mxu0 0
    %1811 = vmatpush1.bf16.msra.mxu0 %v1790
    %1812 = vmatprep.subr.bf16.mxu0 0
    %1813 = vmatpush1.bf16.msra.mxu0 %v1791
    %1814 = vmatprep.subr.bf16.mxu0 0
    %1815 = vmatpush1.bf16.msra.mxu0 %v1792
    %1816 = vmatprep.subr.bf16.mxu0 0
    %1817 = vmatpush1.bf16.msra.mxu0 %v1793
    %1818 = vmatprep.subr.bf16.mxu0 0
    %1819 = vmatpush1.bf16.msra.mxu0 0
    %1820 = vmatprep.subr.bf16.mxu0 0
    %1821 = vmatpush1.bf16.msra.mxu0 0
    %1822 = vmatprep.subr.bf16.mxu0 0
    %1823 = vmatpush1.bf16.msra.mxu0 0
    %1824 = vmatprep.subr.bf16.mxu0 0
    %1825 = vmatpush1.bf16.msra.mxu0 0
    %1826 = vmatprep.subr.bf16.mxu0 0
    %1827 = vmatpush1.bf16.msra.mxu0 0
    %1828 = vmatprep.subr.bf16.mxu0 0
    %1829 = vmatpush1.bf16.msra.mxu0 0
    %1830 = vmatprep.subr.bf16.mxu0 0
    %1831 = vmatpush1.bf16.msra.mxu0 0
    %1832 = vmatprep.subr.bf16.mxu0 0
    %1833 = vmatpush1.bf16.msra.mxu0 0
    %1834 = vmatprep.mubr.bf16.mxu0 0
    %1835 = vmatmul.mubr.bf16.gmra.mrb[0].mxu0 %v1750
    %v1836 = vpop.f32.mrb[0].mxu0
    %v1837 = vadd.f32 0.0, %v1836
    %v1838 = vpop.f32.mrb[0].mxu0
    %v1839 = vpop.f32.mrb[0].mxu0
    %v1840 = vadd.f32 0.0, %v1839
    %v1841 = vpop.f32.mrb[0].mxu0
    %1842 = vmatprep.mubr.bf16.mxu0 0
    %1843 = vmatmul.mubr.bf16.gmra.mrb[0].mxu0 %v1751
    %v1844 = vpop.f32.mrb[0].mxu0
    %v1845 = vadd.f32 0.0, %v1844
    %v1846 = vpop.f32.mrb[0].mxu0
    %v1847 = vpop.f32.mrb[0].mxu0
    %v1848 = vadd.f32 0.0, %v1847
    %v1849 = vpop.f32.mrb[0].mxu0
    %1850 = vdwg.mxu0
    %v1851 = vadd.f32 %v1686, %v1837
    %v1852 = vadd.f32 %v1687, %v1840
    %v1853 = vadd.f32 %v1688, %v1845
    %v1854 = vadd.f32 %v1689, %v1848
    %v1855 = vld [vmem:[%s5] sm:$0x1]
    %v1857 = vlaneseq
    %v1858 = vshrl.u32 %v1857, 7
    %v1859 = vsub.s32 0, %v1858
    %v1860 = vrot.slane %v1855, %v1859
    %v1862 = vmul.f32 %v1851, %v1860
    %v1863 = vmul.f32 %v1852, %v1860
    %v1864 = vmul.f32 %v1853, %v1860
    %v1865 = vmul.f32 %v1854, %v1860
    %v1866 = vld [vmem:[%s7] sm:$0x1]
    %v1868 = vlaneseq
    %v1869 = vshrl.u32 %v1868, 7
    %v1870 = vsub.s32 0, %v1869
    %v1871 = vrot.slane %v1866, %v1870
    %v1873 = vadd.f32 %v1862, %v1871
    %v1874 = vadd.f32 %v1863, %v1871
    %v1875 = vadd.f32 %v1864, %v1871
    %v1876 = vadd.f32 %v1865, %v1871
    %v1877 = vmax.f32 %v1873, 0.0
    %v1878 = vmax.f32 %v1874, 0.0
    %v1879 = vmax.f32 %v1875, 0.0
    %v1880 = vmax.f32 %v1876, 0.0
    %v1881 = vpack.c.bf16 %v1878, %v1877
    %v1882 = vpack.c.bf16 %v1880, %v1879
    %1883 = vst [vmem:[#allocation2] sm:$0xf] 0
    %1884 = vst [vmem:[#allocation2 + $0x4] sm:$0xf] 0
    %v1885 = vld [vmem:[#allocation2 + $0x8] sm:$0xf]
    %v1886 = vsel %vm515, 0, %v1885
    %1887 = vst [vmem:[#allocation2 + $0x8] sm:$0xf] %v1886
    %1888 = vst [vmem:[#allocation2 + $0xc] sm:$0xf] 0
    %1889 = vst [vmem:[#allocation2 + $0x10] sm:$0xf] 0
    %v1890 = vld [vmem:[#allocation2 + $0x14] sm:$0xf]
    %v1891 = vsel %vm515, 0, %v1890
    %1892 = vst [vmem:[#allocation2 + $0x14] sm:$0xf] %v1891
    %v1895 = vunpack.c.l.b16 %v1881
    %v1896 = vunpack.c.h.b16 %v1881
    %v1897 = vunpack.c.l.b16 %v1882
    %v1898 = vunpack.c.h.b16 %v1882
    %v1899 = vpack.c.b16 %v1895, %v1895
    %v1900 = vpack.c.b16 %v1896, %v1896
    %v1901 = vpack.c.b16 %v1897, %v1897
    %v1902 = vpack.c.b16 %v1898, %v1898
    %v1903 = vrot.slane %v1899, 7
    %v1904 = vrot.slane %v1903, 4
    %v1905 = vrot.slane %v1900, 7
    %v1906 = vsel %vm1549, %v1904, %v1905
    %v1907 = vrot.slane %v1905, 4
    %v1908 = vrot.slane %v1901, 7
    %v1909 = vrot.slane %v1908, 4
    %v1910 = vrot.slane %v1902, 7
    %v1911 = vsel %vm1549, %v1909, %v1910
    %v1912 = vrot.slane %v1910, 4
    %1919 = vst [vmem:[#allocation2] sm:$0xe] %v1903
    %1920 = vst [vmem:[#allocation2 + $0x4] sm:$0xf] %v1906
    %1921 = vst [vmem:[#allocation2 + $0x8] sm:$0x1] %v1907
    %1922 = vst [vmem:[#allocation2 + $0xc] sm:$0xe] %v1908
    %1923 = vst [vmem:[#allocation2 + $0x10] sm:$0xf] %v1911
    %1924 = vst [vmem:[#allocation2 + $0x14] sm:$0x1] %v1912
    %v1925 = vld [vmem:[#allocation2] sm:$0xf]
    %v1926 = vld [vmem:[#allocation2 + $0x4] sm:$0xf]
    %v1927 = vld [vmem:[#allocation2 + $0xc] sm:$0xf]
    %v1928 = vld [vmem:[#allocation2 + $0x10] sm:$0xf]
    %v1929 = vld [vmem:[#allocation8] sm:$0xf]
    %v1930 = vld [vmem:[#allocation8 + $0x4] sm:$0xf]
    %v1931 = vld [vmem:[#allocation8 + $0x8] sm:$0xf]
    %v1932 = vld [vmem:[#allocation8 + $0xc] sm:$0xf]
    %v1933 = vld [vmem:[#allocation8 + $0x10] sm:$0xf]
    %v1934 = vld [vmem:[#allocation8 + $0x14] sm:$0xf]
    %v1935 = vld [vmem:[#allocation8 + $0x18] sm:$0xf]
    %v1936 = vld [vmem:[#allocation8 + $0x1c] sm:$0xf]
    %v1937 = vld [vmem:[#allocation8 + $0x20] sm:$0xf]
    %v1938 = vld [vmem:[#allocation8 + $0x24] sm:$0xf]
    %v1939 = vld [vmem:[#allocation8 + $0x28] sm:$0xf]
    %v1940 = vld [vmem:[#allocation8 + $0x2c] sm:$0xf]
    %v1941 = vld [vmem:[#allocation8 + $0x30] sm:$0xf]
    %v1942 = vld [vmem:[#allocation8 + $0x34] sm:$0xf]
    %v1943 = vld [vmem:[#allocation8 + $0x38] sm:$0xf]
    %v1944 = vld [vmem:[#allocation8 + $0x3c] sm:$0xf]
    %v1945 = vld [vmem:[#allocation2 + $0x8] sm:$0x1]
    %v1946 = vld [vmem:[#allocation2 + $0x14] sm:$0x1]
    %v1948 = vshrl.u32 %v1925, 16
    %v1950 = vrot.slane %v1948, 4
    %v1951 = vshll.u32 %v1925, 16
    %v1953 = vrot.slane %v1951, 5
    %v1954 = vor.u32 %v1950, %v1953
    %v1955 = vrot.slane %v1954, 4
    %v1957 = vshll.u32 %v1926, 16
    %v1959 = vrot.slane %v1957, 5
    %v1960 = vsel %vm613, %v1955, %v1959
    %v1961 = vshrl.u32 %v1926, 16
    %v1963 = vrot.slane %v1961, 4
    %v1964 = vor.u32 %v1963, %v1959
    %v1965 = vrot.slane %v1964, 4
    %v1967 = vshll.u32 %v1945, 16
    %v1969 = vrot.slane %v1967, 5
    %v1970 = vsel %vm613, %v1965, %v1969
    %v1972 = vshrl.u32 %v1927, 16
    %v1974 = vrot.slane %v1972, 4
    %v1975 = vshll.u32 %v1927, 16
    %v1977 = vrot.slane %v1975, 5
    %v1978 = vor.u32 %v1974, %v1977
    %v1979 = vrot.slane %v1978, 4
    %v1981 = vshll.u32 %v1928, 16
    %v1983 = vrot.slane %v1981, 5
    %v1984 = vsel %vm613, %v1979, %v1983
    %v1985 = vshrl.u32 %v1928, 16
    %v1987 = vrot.slane %v1985, 4
    %v1988 = vor.u32 %v1987, %v1983
    %v1989 = vrot.slane %v1988, 4
    %v1991 = vshll.u32 %v1946, 16
    %v1993 = vrot.slane %v1991, 5
    %v1994 = vsel %vm613, %v1989, %v1993
    %s1995 = scalar_lea.vmem [#allocation8], 64
    %v1996 = vld [vmem:[%s1995] sm:$0xf]
    %v1997 = vld [vmem:[%s1995 + $0x4] sm:$0xf]
    %v1998 = vld [vmem:[%s1995 + $0x8] sm:$0xf]
    %v1999 = vld [vmem:[%s1995 + $0xc] sm:$0xf]
    %v2000 = vld [vmem:[%s1995 + $0x10] sm:$0xf]
    %v2001 = vld [vmem:[%s1995 + $0x14] sm:$0xf]
    %v2002 = vld [vmem:[%s1995 + $0x18] sm:$0xf]
    %v2003 = vld [vmem:[%s1995 + $0x1c] sm:$0xf]
    %v2004 = vld [vmem:[%s1995 + $0x20] sm:$0xf]
    %v2005 = vld [vmem:[%s1995 + $0x24] sm:$0xf]
    %v2006 = vld [vmem:[%s1995 + $0x28] sm:$0xf]
    %v2007 = vld [vmem:[%s1995 + $0x2c] sm:$0xf]
    %v2008 = vld [vmem:[%s1995 + $0x30] sm:$0xf]
    %v2009 = vld [vmem:[%s1995 + $0x34] sm:$0xf]
    %v2010 = vld [vmem:[%s1995 + $0x38] sm:$0xf]
    %v2011 = vld [vmem:[%s1995 + $0x3c] sm:$0xf]
    %v2012 = vunpack.c.l.b16 %v1960
    %v2013 = vunpack.c.l.b16 %v1970
    %v2014 = vunpack.c.l.b16 %v1984
    %v2015 = vunpack.c.l.b16 %v1994
    %v2016 = vpack.c.b16 %v2013, %v2012
    %v2017 = vpack.c.b16 %v2015, %v2014
    %v2036 = vunpack.c.l.b16 %v1996
    %v2037 = vunpack.c.l.b16 %v1997
    %v2038 = vunpack.c.l.b16 %v1998
    %v2039 = vunpack.c.l.b16 %v1999
    %v2040 = vunpack.c.l.b16 %v2000
    %v2041 = vunpack.c.l.b16 %v2001
    %v2042 = vunpack.c.l.b16 %v2002
    %v2043 = vunpack.c.l.b16 %v2003
    %v2044 = vunpack.c.l.b16 %v2004
    %v2045 = vunpack.c.l.b16 %v2005
    %v2046 = vunpack.c.l.b16 %v2006
    %v2047 = vunpack.c.l.b16 %v2007
    %v2048 = vunpack.c.l.b16 %v2008
    %v2049 = vunpack.c.l.b16 %v2009
    %v2050 = vunpack.c.l.b16 %v2010
    %v2051 = vunpack.c.l.b16 %v2011
    %v2052 = vpack.c.b16 %v2037, %v2036
    %v2053 = vpack.c.b16 %v2039, %v2038
    %v2054 = vpack.c.b16 %v2041, %v2040
    %v2055 = vpack.c.b16 %v2043, %v2042
    %v2056 = vpack.c.b16 %v2045, %v2044
    %v2057 = vpack.c.b16 %v2047, %v2046
    %v2058 = vpack.c.b16 %v2049, %v2048
    %v2059 = vpack.c.b16 %v2051, %v2050
    %2068 = vmatprep.subr.bf16.mxu0 0
    %2069 = vmatpush1.bf16.msra.mxu0 %v2052
    %2070 = vmatprep.subr.bf16.mxu0 0
    %2071 = vmatpush1.bf16.msra.mxu0 %v2053
    %2072 = vmatprep.subr.bf16.mxu0 0
    %2073 = vmatpush1.bf16.msra.mxu0 %v2054
    %2074 = vmatprep.subr.bf16.mxu0 0
    %2075 = vmatpush1.bf16.msra.mxu0 %v2055
    %2076 = vmatprep.subr.bf16.mxu0 0
    %2077 = vmatpush1.bf16.msra.mxu0 %v2056
    %2078 = vmatprep.subr.bf16.mxu0 0
    %2079 = vmatpush1.bf16.msra.mxu0 %v2057
    %2080 = vmatprep.subr.bf16.mxu0 0
    %2081 = vmatpush1.bf16.msra.mxu0 %v2058
    %2082 = vmatprep.subr.bf16.mxu0 0
    %2083 = vmatpush1.bf16.msra.mxu0 %v2059
    %2084 = vmatprep.subr.bf16.mxu0 0
    %2085 = vmatpush1.bf16.msra.mxu0 0
    %2086 = vmatprep.subr.bf16.mxu0 0
    %2087 = vmatpush1.bf16.msra.mxu0 0
    %2088 = vmatprep.subr.bf16.mxu0 0
    %2089 = vmatpush1.bf16.msra.mxu0 0
    %2090 = vmatprep.subr.bf16.mxu0 0
    %2091 = vmatpush1.bf16.msra.mxu0 0
    %2092 = vmatprep.subr.bf16.mxu0 0
    %2093 = vmatpush1.bf16.msra.mxu0 0
    %2094 = vmatprep.subr.bf16.mxu0 0
    %2095 = vmatpush1.bf16.msra.mxu0 0
    %2096 = vmatprep.subr.bf16.mxu0 0
    %2097 = vmatpush1.bf16.msra.mxu0 0
    %2098 = vmatprep.subr.bf16.mxu0 0
    %2099 = vmatpush1.bf16.msra.mxu0 0
    %2100 = vmatprep.mubr.bf16.mxu0 0
    %2101 = vmatmul.mubr.bf16.gmra.mrb[0].mxu0 %v2016
    %v2102 = vpop.f32.mrb[0].mxu0
    %v2103 = vadd.f32 0.0, %v2102
    %v2104 = vpop.f32.mrb[0].mxu0
    %v2105 = vpop.f32.mrb[0].mxu0
    %v2106 = vadd.f32 0.0, %v2105
    %v2107 = vpop.f32.mrb[0].mxu0
    %2108 = vmatprep.mubr.bf16.mxu0 0
    %2109 = vmatmul.mubr.bf16.gmra.mrb[0].mxu0 %v2017
    %v2110 = vpop.f32.mrb[0].mxu0
    %v2111 = vadd.f32 0.0, %v2110
    %v2112 = vpop.f32.mrb[0].mxu0
    %v2113 = vpop.f32.mrb[0].mxu0
    %v2114 = vadd.f32 0.0, %v2113
    %v2115 = vpop.f32.mrb[0].mxu0
    %2116 = vdwg.mxu0
    %v2121 = vunpack.c.l.b16 %v1925
    %v2122 = vunpack.c.l.b16 %v1926
    %v2123 = vunpack.c.l.b16 %v1927
    %v2124 = vunpack.c.l.b16 %v1928
    %v2125 = vpack.c.b16 %v2122, %v2121
    %v2126 = vpack.c.b16 %v2124, %v2123
    %v2145 = vunpack.c.l.b16 %v1929
    %v2146 = vunpack.c.l.b16 %v1930
    %v2147 = vunpack.c.l.b16 %v1931
    %v2148 = vunpack.c.l.b16 %v1932
    %v2149 = vunpack.c.l.b16 %v1933
    %v2150 = vunpack.c.l.b16 %v1934
    %v2151 = vunpack.c.l.b16 %v1935
    %v2152 = vunpack.c.l.b16 %v1936
    %v2153 = vunpack.c.l.b16 %v1937
    %v2154 = vunpack.c.l.b16 %v1938
    %v2155 = vunpack.c.l.b16 %v1939
    %v2156 = vunpack.c.l.b16 %v1940
    %v2157 = vunpack.c.l.b16 %v1941
    %v2158 = vunpack.c.l.b16 %v1942
    %v2159 = vunpack.c.l.b16 %v1943
    %v2160 = vunpack.c.l.b16 %v1944
    %v2161 = vpack.c.b16 %v2146, %v2145
    %v2162 = vpack.c.b16 %v2148, %v2147
    %v2163 = vpack.c.b16 %v2150, %v2149
    %v2164 = vpack.c.b16 %v2152, %v2151
    %v2165 = vpack.c.b16 %v2154, %v2153
    %v2166 = vpack.c.b16 %v2156, %v2155
    %v2167 = vpack.c.b16 %v2158, %v2157
    %v2168 = vpack.c.b16 %v2160, %v2159
    %2177 = vmatprep.subr.bf16.mxu0 0
    %2178 = vmatpush1.bf16.msra.mxu0 %v2161
    %2179 = vmatprep.subr.bf16.mxu0 0
    %2180 = vmatpush1.bf16.msra.mxu0 %v2162
    %2181 = vmatprep.subr.bf16.mxu0 0
    %2182 = vmatpush1.bf16.msra.mxu0 %v2163
    %2183 = vmatprep.subr.bf16.mxu0 0
    %2184 = vmatpush1.bf16.msra.mxu0 %v2164
    %2185 = vmatprep.subr.bf16.mxu0 0
    %2186 = vmatpush1.bf16.msra.mxu0 %v2165
    %2187 = vmatprep.subr.bf16.mxu0 0
    %2188 = vmatpush1.bf16.msra.mxu0 %v2166
    %2189 = vmatprep.subr.bf16.mxu0 0
    %2190 = vmatpush1.bf16.msra.mxu0 %v2167
    %2191 = vmatprep.subr.bf16.mxu0 0
    %2192 = vmatpush1.bf16.msra.mxu0 %v2168
    %2193 = vmatprep.subr.bf16.mxu0 0
    %2194 = vmatpush1.bf16.msra.mxu0 0
    %2195 = vmatprep.subr.bf16.mxu0 0
    %2196 = vmatpush1.bf16.msra.mxu0 0
    %2197 = vmatprep.subr.bf16.mxu0 0
    %2198 = vmatpush1.bf16.msra.mxu0 0
    %2199 = vmatprep.subr.bf16.mxu0 0
    %2200 = vmatpush1.bf16.msra.mxu0 0
    %2201 = vmatprep.subr.bf16.mxu0 0
    %2202 = vmatpush1.bf16.msra.mxu0 0
    %2203 = vmatprep.subr.bf16.mxu0 0
    %2204 = vmatpush1.bf16.msra.mxu0 0
    %2205 = vmatprep.subr.bf16.mxu0 0
    %2206 = vmatpush1.bf16.msra.mxu0 0
    %2207 = vmatprep.subr.bf16.mxu0 0
    %2208 = vmatpush1.bf16.msra.mxu0 0
    %2209 = vmatprep.mubr.bf16.mxu0 0
    %2210 = vmatmul.mubr.bf16.gmra.mrb[0].mxu0 %v2125
    %v2211 = vpop.f32.mrb[0].mxu0
    %v2212 = vadd.f32 %v2103, %v2211
    %v2213 = vpop.f32.mrb[0].mxu0
    %v2214 = vpop.f32.mrb[0].mxu0
    %v2215 = vadd.f32 %v2106, %v2214
    %v2216 = vpop.f32.mrb[0].mxu0
    %2217 = vmatprep.mubr.bf16.mxu0 0
    %2218 = vmatmul.mubr.bf16.gmra.mrb[0].mxu0 %v2126
    %v2219 = vpop.f32.mrb[0].mxu0
    %v2220 = vadd.f32 %v2111, %v2219
    %v2221 = vpop.f32.mrb[0].mxu0
    %v2222 = vpop.f32.mrb[0].mxu0
    %v2223 = vadd.f32 %v2114, %v2222
    %v2224 = vpop.f32.mrb[0].mxu0
    %2225 = vdwg.mxu0
    %v2226 = vld [vmem:[#allocation2] sm:$0xe]
    %v2227 = vld [vmem:[#allocation2 + $0xc] sm:$0xe]
    %v2232 = vrot.slane %v2226, 5
    %v2233 = vrot.slane %v2232, 4
    %v2234 = vrot.slane %v1926, 5
    %v2235 = vsel %vm901, %v2233, %v2234
    %v2236 = vrot.slane %v2234, 4
    %v2237 = vrot.slane %v1945, 5
    %v2238 = vsel %vm901, %v2236, %v2237
    %v2239 = vrot.slane %v2227, 5
    %v2240 = vrot.slane %v2239, 4
    %v2241 = vrot.slane %v1928, 5
    %v2242 = vsel %vm901, %v2240, %v2241
    %v2243 = vrot.slane %v2241, 4
    %v2244 = vrot.slane %v1946, 5
    %v2245 = vsel %vm901, %v2243, %v2244
    %s2246 = scalar_lea.vmem [#allocation8], 128
    %v2247 = vld [vmem:[%s2246] sm:$0xf]
    %v2248 = vld [vmem:[%s2246 + $0x4] sm:$0xf]
    %v2249 = vld [vmem:[%s2246 + $0x8] sm:$0xf]
    %v2250 = vld [vmem:[%s2246 + $0xc] sm:$0xf]
    %v2251 = vld [vmem:[%s2246 + $0x10] sm:$0xf]
    %v2252 = vld [vmem:[%s2246 + $0x14] sm:$0xf]
    %v2253 = vld [vmem:[%s2246 + $0x18] sm:$0xf]
    %v2254 = vld [vmem:[%s2246 + $0x1c] sm:$0xf]
    %v2255 = vld [vmem:[%s2246 + $0x20] sm:$0xf]
    %v2256 = vld [vmem:[%s2246 + $0x24] sm:$0xf]
    %v2257 = vld [vmem:[%s2246 + $0x28] sm:$0xf]
    %v2258 = vld [vmem:[%s2246 + $0x2c] sm:$0xf]
    %v2259 = vld [vmem:[%s2246 + $0x30] sm:$0xf]
    %v2260 = vld [vmem:[%s2246 + $0x34] sm:$0xf]
    %v2261 = vld [vmem:[%s2246 + $0x38] sm:$0xf]
    %v2262 = vld [vmem:[%s2246 + $0x3c] sm:$0xf]
    %v2263 = vunpack.c.l.b16 %v2235
    %v2264 = vunpack.c.l.b16 %v2238
    %v2265 = vunpack.c.l.b16 %v2242
    %v2266 = vunpack.c.l.b16 %v2245
    %v2267 = vpack.c.b16 %v2264, %v2263
    %v2268 = vpack.c.b16 %v2266, %v2265
    %v2287 = vunpack.c.l.b16 %v2247
    %v2288 = vunpack.c.l.b16 %v2248
    %v2289 = vunpack.c.l.b16 %v2249
    %v2290 = vunpack.c.l.b16 %v2250
    %v2291 = vunpack.c.l.b16 %v2251
    %v2292 = vunpack.c.l.b16 %v2252
    %v2293 = vunpack.c.l.b16 %v2253
    %v2294 = vunpack.c.l.b16 %v2254
    %v2295 = vunpack.c.l.b16 %v2255
    %v2296 = vunpack.c.l.b16 %v2256
    %v2297 = vunpack.c.l.b16 %v2257
    %v2298 = vunpack.c.l.b16 %v2258
    %v2299 = vunpack.c.l.b16 %v2259
    %v2300 = vunpack.c.l.b16 %v2260
    %v2301 = vunpack.c.l.b16 %v2261
    %v2302 = vunpack.c.l.b16 %v2262
    %v2303 = vpack.c.b16 %v2288, %v2287
    %v2304 = vpack.c.b16 %v2290, %v2289
    %v2305 = vpack.c.b16 %v2292, %v2291
    %v2306 = vpack.c.b16 %v2294, %v2293
    %v2307 = vpack.c.b16 %v2296, %v2295
    %v2308 = vpack.c.b16 %v2298, %v2297
    %v2309 = vpack.c.b16 %v2300, %v2299
    %v2310 = vpack.c.b16 %v2302, %v2301
    %2319 = vmatprep.subr.bf16.mxu0 0
    %2320 = vmatpush1.bf16.msra.mxu0 %v2303
    %2321 = vmatprep.subr.bf16.mxu0 0
    %2322 = vmatpush1.bf16.msra.mxu0 %v2304
    %2323 = vmatprep.subr.bf16.mxu0 0
    %2324 = vmatpush1.bf16.msra.mxu0 %v2305
    %2325 = vmatprep.subr.bf16.mxu0 0
    %2326 = vmatpush1.bf16.msra.mxu0 %v2306
    %2327 = vmatprep.subr.bf16.mxu0 0
    %2328 = vmatpush1.bf16.msra.mxu0 %v2307
    %2329 = vmatprep.subr.bf16.mxu0 0
    %2330 = vmatpush1.bf16.msra.mxu0 %v2308
    %2331 = vmatprep.subr.bf16.mxu0 0
    %2332 = vmatpush1.bf16.msra.mxu0 %v2309
    %2333 = vmatprep.subr.bf16.mxu0 0
    %2334 = vmatpush1.bf16.msra.mxu0 %v2310
    %2335 = vmatprep.subr.bf16.mxu0 0
    %2336 = vmatpush1.bf16.msra.mxu0 0
    %2337 = vmatprep.subr.bf16.mxu0 0
    %2338 = vmatpush1.bf16.msra.mxu0 0
    %2339 = vmatprep.subr.bf16.mxu0 0
    %2340 = vmatpush1.bf16.msra.mxu0 0
    %2341 = vmatprep.subr.bf16.mxu0 0
    %2342 = vmatpush1.bf16.msra.mxu0 0
    %2343 = vmatprep.subr.bf16.mxu0 0
    %2344 = vmatpush1.bf16.msra.mxu0 0
    %2345 = vmatprep.subr.bf16.mxu0 0
    %2346 = vmatpush1.bf16.msra.mxu0 0
    %2347 = vmatprep.subr.bf16.mxu0 0
    %2348 = vmatpush1.bf16.msra.mxu0 0
    %2349 = vmatprep.subr.bf16.mxu0 0
    %2350 = vmatpush1.bf16.msra.mxu0 0
    %2351 = vmatprep.mubr.bf16.mxu0 0
    %2352 = vmatmul.mubr.bf16.gmra.mrb[0].mxu0 %v2267
    %v2353 = vpop.f32.mrb[0].mxu0
    %v2354 = vadd.f32 0.0, %v2353
    %v2355 = vpop.f32.mrb[0].mxu0
    %v2356 = vpop.f32.mrb[0].mxu0
    %v2357 = vadd.f32 0.0, %v2356
    %v2358 = vpop.f32.mrb[0].mxu0
    %2359 = vmatprep.mubr.bf16.mxu0 0
    %2360 = vmatmul.mubr.bf16.gmra.mrb[0].mxu0 %v2268
    %v2361 = vpop.f32.mrb[0].mxu0
    %v2362 = vadd.f32 0.0, %v2361
    %v2363 = vpop.f32.mrb[0].mxu0
    %v2364 = vpop.f32.mrb[0].mxu0
    %v2365 = vadd.f32 0.0, %v2364
    %v2366 = vpop.f32.mrb[0].mxu0
    %2367 = vdwg.mxu0
    %v2368 = vadd.f32 %v2212, %v2354
    %v2369 = vadd.f32 %v2215, %v2357
    %v2370 = vadd.f32 %v2220, %v2362
    %v2371 = vadd.f32 %v2223, %v2365
    %v2372 = vld [vmem:[#allocation2 + $0x8] sm:$0x3]
    %v2373 = vld [vmem:[#allocation2 + $0x14] sm:$0x3]
    %v2375 = vshrl.u32 %v2226, 16
    %v2377 = vrot.slane %v2375, 5
    %v2378 = vshll.u32 %v2226, 16
    %v2380 = vrot.slane %v2378, 6
    %v2381 = vor.u32 %v2377, %v2380
    %v2382 = vrot.slane %v2381, 4
    %v2383 = vrot.slane %v1961, 5
    %v2384 = vrot.slane %v1957, 6
    %v2385 = vor.u32 %v2383, %v2384
    %v2386 = vsel %vm1046, %v2382, %v2385
    %v2387 = vrot.slane %v2385, 4
    %v2389 = vshrl.u32 %v2372, 16
    %v2391 = vrot.slane %v2389, 5
    %v2392 = vshll.u32 %v2372, 16
    %v2394 = vrot.slane %v2392, 6
    %v2395 = vor.u32 %v2391, %v2394
    %v2396 = vsel %vm1046, %v2387, %v2395
    %v2398 = vshrl.u32 %v2227, 16
    %v2400 = vrot.slane %v2398, 5
    %v2401 = vshll.u32 %v2227, 16
    %v2403 = vrot.slane %v2401, 6
    %v2404 = vor.u32 %v2400, %v2403
    %v2405 = vrot.slane %v2404, 4
    %v2406 = vrot.slane %v1985, 5
    %v2407 = vrot.slane %v1981, 6
    %v2408 = vor.u32 %v2406, %v2407
    %v2409 = vsel %vm1046, %v2405, %v2408
    %v2410 = vrot.slane %v2408, 4
    %v2412 = vshrl.u32 %v2373, 16
    %v2414 = vrot.slane %v2412, 5
    %v2415 = vshll.u32 %v2373, 16
    %v2417 = vrot.slane %v2415, 6
    %v2418 = vor.u32 %v2414, %v2417
    %v2419 = vsel %vm1046, %v2410, %v2418
    %s2420 = scalar_lea.vmem [#allocation8], 192
    %v2421 = vld [vmem:[%s2420] sm:$0xf]
    %v2422 = vld [vmem:[%s2420 + $0x4] sm:$0xf]
    %v2423 = vld [vmem:[%s2420 + $0x8] sm:$0xf]
    %v2424 = vld [vmem:[%s2420 + $0xc] sm:$0xf]
    %v2425 = vld [vmem:[%s2420 + $0x10] sm:$0xf]
    %v2426 = vld [vmem:[%s2420 + $0x14] sm:$0xf]
    %v2427 = vld [vmem:[%s2420 + $0x18] sm:$0xf]
    %v2428 = vld [vmem:[%s2420 + $0x1c] sm:$0xf]
    %v2429 = vld [vmem:[%s2420 + $0x20] sm:$0xf]
    %v2430 = vld [vmem:[%s2420 + $0x24] sm:$0xf]
    %v2431 = vld [vmem:[%s2420 + $0x28] sm:$0xf]
    %v2432 = vld [vmem:[%s2420 + $0x2c] sm:$0xf]
    %v2433 = vld [vmem:[%s2420 + $0x30] sm:$0xf]
    %v2434 = vld [vmem:[%s2420 + $0x34] sm:$0xf]
    %v2435 = vld [vmem:[%s2420 + $0x38] sm:$0xf]
    %v2436 = vld [vmem:[%s2420 + $0x3c] sm:$0xf]
    %v2437 = vunpack.c.l.b16 %v2386
    %v2438 = vunpack.c.l.b16 %v2396
    %v2439 = vunpack.c.l.b16 %v2409
    %v2440 = vunpack.c.l.b16 %v2419
    %v2441 = vpack.c.b16 %v2438, %v2437
    %v2442 = vpack.c.b16 %v2440, %v2439
    %v2461 = vunpack.c.l.b16 %v2421
    %v2462 = vunpack.c.l.b16 %v2422
    %v2463 = vunpack.c.l.b16 %v2423
    %v2464 = vunpack.c.l.b16 %v2424
    %v2465 = vunpack.c.l.b16 %v2425
    %v2466 = vunpack.c.l.b16 %v2426
    %v2467 = vunpack.c.l.b16 %v2427
    %v2468 = vunpack.c.l.b16 %v2428
    %v2469 = vunpack.c.l.b16 %v2429
    %v2470 = vunpack.c.l.b16 %v2430
    %v2471 = vunpack.c.l.b16 %v2431
    %v2472 = vunpack.c.l.b16 %v2432
    %v2473 = vunpack.c.l.b16 %v2433
    %v2474 = vunpack.c.l.b16 %v2434
    %v2475 = vunpack.c.l.b16 %v2435
    %v2476 = vunpack.c.l.b16 %v2436
    %v2477 = vpack.c.b16 %v2462, %v2461
    %v2478 = vpack.c.b16 %v2464, %v2463
    %v2479 = vpack.c.b16 %v2466, %v2465
    %v2480 = vpack.c.b16 %v2468, %v2467
    %v2481 = vpack.c.b16 %v2470, %v2469
    %v2482 = vpack.c.b16 %v2472, %v2471
    %v2483 = vpack.c.b16 %v2474, %v2473
    %v2484 = vpack.c.b16 %v2476, %v2475
    %2493 = vmatprep.subr.bf16.mxu0 0
    %2494 = vmatpush1.bf16.msra.mxu0 %v2477
    %2495 = vmatprep.subr.bf16.mxu0 0
    %2496 = vmatpush1.bf16.msra.mxu0 %v2478
    %2497 = vmatprep.subr.bf16.mxu0 0
    %2498 = vmatpush1.bf16.msra.mxu0 %v2479
    %2499 = vmatprep.subr.bf16.mxu0 0
    %2500 = vmatpush1.bf16.msra.mxu0 %v2480
    %2501 = vmatprep.subr.bf16.mxu0 0
    %2502 = vmatpush1.bf16.msra.mxu0 %v2481
    %2503 = vmatprep.subr.bf16.mxu0 0
    %2504 = vmatpush1.bf16.msra.mxu0 %v2482
    %2505 = vmatprep.subr.bf16.mxu0 0
    %2506 = vmatpush1.bf16.msra.mxu0 %v2483
    %2507 = vmatprep.subr.bf16.mxu0 0
    %2508 = vmatpush1.bf16.msra.mxu0 %v2484
    %2509 = vmatprep.subr.bf16.mxu0 0
    %2510 = vmatpush1.bf16.msra.mxu0 0
    %2511 = vmatprep.subr.bf16.mxu0 0
    %2512 = vmatpush1.bf16.msra.mxu0 0
    %2513 = vmatprep.subr.bf16.mxu0 0
    %2514 = vmatpush1.bf16.msra.mxu0 0
    %2515 = vmatprep.subr.bf16.mxu0 0
    %2516 = vmatpush1.bf16.msra.mxu0 0
    %2517 = vmatprep.subr.bf16.mxu0 0
    %2518 = vmatpush1.bf16.msra.mxu0 0
    %2519 = vmatprep.subr.bf16.mxu0 0
    %2520 = vmatpush1.bf16.msra.mxu0 0
    %2521 = vmatprep.subr.bf16.mxu0 0
    %2522 = vmatpush1.bf16.msra.mxu0 0
    %2523 = vmatprep.subr.bf16.mxu0 0
    %2524 = vmatpush1.bf16.msra.mxu0 0
    %2525 = vmatprep.mubr.bf16.mxu0 0
    %2526 = vmatmul.mubr.bf16.gmra.mrb[0].mxu0 %v2441
    %v2527 = vpop.f32.mrb[0].mxu0
    %v2528 = vadd.f32 0.0, %v2527
    %v2529 = vpop.f32.mrb[0].mxu0
    %v2530 = vpop.f32.mrb[0].mxu0
    %v2531 = vadd.f32 0.0, %v2530
    %v2532 = vpop.f32.mrb[0].mxu0
    %2533 = vmatprep.mubr.bf16.mxu0 0
    %2534 = vmatmul.mubr.bf16.gmra.mrb[0].mxu0 %v2442
    %v2535 = vpop.f32.mrb[0].mxu0
    %v2536 = vadd.f32 0.0, %v2535
    %v2537 = vpop.f32.mrb[0].mxu0
    %v2538 = vpop.f32.mrb[0].mxu0
    %v2539 = vadd.f32 0.0, %v2538
    %v2540 = vpop.f32.mrb[0].mxu0
    %2541 = vdwg.mxu0
    %v2542 = vadd.f32 %v2368, %v2528
    %v2543 = vadd.f32 %v2369, %v2531
    %v2544 = vadd.f32 %v2370, %v2536
    %v2545 = vadd.f32 %v2371, %v2539
    %v2546 = vld [vmem:[#allocation2] sm:$0xc]
    %v2547 = vld [vmem:[#allocation2 + $0xc] sm:$0xc]
    %v2552 = vrot.slane %v2546, 6
    %v2553 = vrot.slane %v2552, 4
    %v2554 = vrot.slane %v1926, 6
    %v2555 = vsel %vm1226, %v2553, %v2554
    %v2556 = vrot.slane %v2554, 4
    %v2557 = vrot.slane %v2372, 6
    %v2558 = vsel %vm1226, %v2556, %v2557
    %v2559 = vrot.slane %v2547, 6
    %v2560 = vrot.slane %v2559, 4
    %v2561 = vrot.slane %v1928, 6
    %v2562 = vsel %vm1226, %v2560, %v2561
    %v2563 = vrot.slane %v2561, 4
    %v2564 = vrot.slane %v2373, 6
    %v2565 = vsel %vm1226, %v2563, %v2564
    %s2566 = scalar_lea.vmem [#allocation8], 256
    %v2567 = vld [vmem:[%s2566] sm:$0xf]
    %v2568 = vld [vmem:[%s2566 + $0x4] sm:$0xf]
    %v2569 = vld [vmem:[%s2566 + $0x8] sm:$0xf]
    %v2570 = vld [vmem:[%s2566 + $0xc] sm:$0xf]
    %v2571 = vld [vmem:[%s2566 + $0x10] sm:$0xf]
    %v2572 = vld [vmem:[%s2566 + $0x14] sm:$0xf]
    %v2573 = vld [vmem:[%s2566 + $0x18] sm:$0xf]
    %v2574 = vld [vmem:[%s2566 + $0x1c] sm:$0xf]
    %v2575 = vld [vmem:[%s2566 + $0x20] sm:$0xf]
    %v2576 = vld [vmem:[%s2566 + $0x24] sm:$0xf]
    %v2577 = vld [vmem:[%s2566 + $0x28] sm:$0xf]
    %v2578 = vld [vmem:[%s2566 + $0x2c] sm:$0xf]
    %v2579 = vld [vmem:[%s2566 + $0x30] sm:$0xf]
    %v2580 = vld [vmem:[%s2566 + $0x34] sm:$0xf]
    %v2581 = vld [vmem:[%s2566 + $0x38] sm:$0xf]
    %v2582 = vld [vmem:[%s2566 + $0x3c] sm:$0xf]
    %v2583 = vunpack.c.l.b16 %v2555
    %v2584 = vunpack.c.l.b16 %v2558
    %v2585 = vunpack.c.l.b16 %v2562
    %v2586 = vunpack.c.l.b16 %v2565
    %v2587 = vpack.c.b16 %v2584, %v2583
    %v2588 = vpack.c.b16 %v2586, %v2585
    %v2607 = vunpack.c.l.b16 %v2567
    %v2608 = vunpack.c.l.b16 %v2568
    %v2609 = vunpack.c.l.b16 %v2569
    %v2610 = vunpack.c.l.b16 %v2570
    %v2611 = vunpack.c.l.b16 %v2571
    %v2612 = vunpack.c.l.b16 %v2572
    %v2613 = vunpack.c.l.b16 %v2573
    %v2614 = vunpack.c.l.b16 %v2574
    %v2615 = vunpack.c.l.b16 %v2575
    %v2616 = vunpack.c.l.b16 %v2576
    %v2617 = vunpack.c.l.b16 %v2577
    %v2618 = vunpack.c.l.b16 %v2578
    %v2619 = vunpack.c.l.b16 %v2579
    %v2620 = vunpack.c.l.b16 %v2580
    %v2621 = vunpack.c.l.b16 %v2581
    %v2622 = vunpack.c.l.b16 %v2582
    %v2623 = vpack.c.b16 %v2608, %v2607
    %v2624 = vpack.c.b16 %v2610, %v2609
    %v2625 = vpack.c.b16 %v2612, %v2611
    %v2626 = vpack.c.b16 %v2614, %v2613
    %v2627 = vpack.c.b16 %v2616, %v2615
    %v2628 = vpack.c.b16 %v2618, %v2617
    %v2629 = vpack.c.b16 %v2620, %v2619
    %v2630 = vpack.c.b16 %v2622, %v2621
    %2639 = vmatprep.subr.bf16.mxu0 0
    %2640 = vmatpush1.bf16.msra.mxu0 %v2623
    %2641 = vmatprep.subr.bf16.mxu0 0
    %2642 = vmatpush1.bf16.msra.mxu0 %v2624
    %2643 = vmatprep.subr.bf16.mxu0 0
    %2644 = vmatpush1.bf16.msra.mxu0 %v2625
    %2645 = vmatprep.subr.bf16.mxu0 0
    %2646 = vmatpush1.bf16.msra.mxu0 %v2626
    %2647 = vmatprep.subr.bf16.mxu0 0
    %2648 = vmatpush1.bf16.msra.mxu0 %v2627
    %2649 = vmatprep.subr.bf16.mxu0 0
    %2650 = vmatpush1.bf16.msra.mxu0 %v2628
    %2651 = vmatprep.subr.bf16.mxu0 0
    %2652 = vmatpush1.bf16.msra.mxu0 %v2629
    %2653 = vmatprep.subr.bf16.mxu0 0
    %2654 = vmatpush1.bf16.msra.mxu0 %v2630
    %2655 = vmatprep.subr.bf16.mxu0 0
    %2656 = vmatpush1.bf16.msra.mxu0 0
    %2657 = vmatprep.subr.bf16.mxu0 0
    %2658 = vmatpush1.bf16.msra.mxu0 0
    %2659 = vmatprep.subr.bf16.mxu0 0
    %2660 = vmatpush1.bf16.msra.mxu0 0
    %2661 = vmatprep.subr.bf16.mxu0 0
    %2662 = vmatpush1.bf16.msra.mxu0 0
    %2663 = vmatprep.subr.bf16.mxu0 0
    %2664 = vmatpush1.bf16.msra.mxu0 0
    %2665 = vmatprep.subr.bf16.mxu0 0
    %2666 = vmatpush1.bf16.msra.mxu0 0
    %2667 = vmatprep.subr.bf16.mxu0 0
    %2668 = vmatpush1.bf16.msra.mxu0 0
    %2669 = vmatprep.subr.bf16.mxu0 0
    %2670 = vmatpush1.bf16.msra.mxu0 0
    %2671 = vmatprep.mubr.bf16.mxu0 0
    %2672 = vmatmul.mubr.bf16.gmra.mrb[0].mxu0 %v2587
    %v2673 = vpop.f32.mrb[0].mxu0
    %v2674 = vadd.f32 0.0, %v2673
    %v2675 = vpop.f32.mrb[0].mxu0
    %v2676 = vpop.f32.mrb[0].mxu0
    %v2677 = vadd.f32 0.0, %v2676
    %v2678 = vpop.f32.mrb[0].mxu0
    %2679 = vmatprep.mubr.bf16.mxu0 0
    %2680 = vmatmul.mubr.bf16.gmra.mrb[0].mxu0 %v2588
    %v2681 = vpop.f32.mrb[0].mxu0
    %v2682 = vadd.f32 0.0, %v2681
    %v2683 = vpop.f32.mrb[0].mxu0
    %v2684 = vpop.f32.mrb[0].mxu0
    %v2685 = vadd.f32 0.0, %v2684
    %v2686 = vpop.f32.mrb[0].mxu0
    %2687 = vdwg.mxu0
    %v2688 = vadd.f32 %v2542, %v2674
    %v2689 = vadd.f32 %v2543, %v2677
    %v2690 = vadd.f32 %v2544, %v2682
    %v2691 = vadd.f32 %v2545, %v2685
    %v2692 = vld [vmem:[%s11] sm:$0x1]
    %v2694 = vlaneseq
    %v2695 = vshrl.u32 %v2694, 7
    %v2696 = vsub.s32 0, %v2695
    %v2697 = vrot.slane %v2692, %v2696
    %v2699 = vmul.f32 %v2688, %v2697
    %v2700 = vmul.f32 %v2689, %v2697
    %v2701 = vmul.f32 %v2690, %v2697
    %v2702 = vmul.f32 %v2691, %v2697
    %v2703 = vld [vmem:[%s13] sm:$0x1]
    %v2705 = vlaneseq
    %v2706 = vshrl.u32 %v2705, 7
    %v2707 = vsub.s32 0, %v2706
    %v2708 = vrot.slane %v2703, %v2707
    %v2710 = vadd.f32 %v2699, %v2708
    %v2711 = vadd.f32 %v2700, %v2708
    %v2712 = vadd.f32 %v2701, %v2708
    %v2713 = vadd.f32 %v2702, %v2708
    %v2714 = vmax.f32 %v2710, 0.0
    %v2715 = vmax.f32 %v2711, 0.0
    %v2716 = vmax.f32 %v2712, 0.0
    %v2717 = vmax.f32 %v2713, 0.0
    %v2718 = vpack.c.bf16 %v2715, %v2714
    %v2719 = vpack.c.bf16 %v2717, %v2716
    %2720 = vst [vmem:[#allocation2] sm:$0xf] 0
    %2721 = vst [vmem:[#allocation2 + $0x4] sm:$0xf] 0
    %v2722 = vld [vmem:[#allocation2 + $0x8] sm:$0xf]
    %v2723 = vsel %vm515, 0, %v2722
    %2724 = vst [vmem:[#allocation2 + $0x8] sm:$0xf] %v2723
    %2725 = vst [vmem:[#allocation2 + $0xc] sm:$0xf] 0
    %2726 = vst [vmem:[#allocation2 + $0x10] sm:$0xf] 0
    %v2727 = vld [vmem:[#allocation2 + $0x14] sm:$0xf]
    %v2728 = vsel %vm515, 0, %v2727
    %2729 = vst [vmem:[#allocation2 + $0x14] sm:$0xf] %v2728
    %v2732 = vunpack.c.l.b16 %v2718
    %v2733 = vunpack.c.h.b16 %v2718
    %v2734 = vunpack.c.l.b16 %v2719
    %v2735 = vunpack.c.h.b16 %v2719
    %v2736 = vpack.c.b16 %v2732, %v2732
    %v2737 = vpack.c.b16 %v2733, %v2733
    %v2738 = vpack.c.b16 %v2734, %v2734
    %v2739 = vpack.c.b16 %v2735, %v2735
    %v2741 = vshrl.u32 %v2736, 16
    %v2743 = vrot.slane %v2741, 7
    %v2744 = vshll.u32 %v2736, 16
    %v2746 = vor.u32 %v2743, %v2744
    %v2747 = vrot.slane %v2743, 4
    %v2749 = vshrl.u32 %v2737, 16
    %v2751 = vrot.slane %v2749, 7
    %v2752 = vshll.u32 %v2737, 16
    %v2754 = vor.u32 %v2751, %v2752
    %v2755 = vsel %vm1694, %v2747, %v2754
    %v2756 = vrot.slane %v2751, 4
    %v2758 = vshrl.u32 %v2738, 16
    %v2760 = vrot.slane %v2758, 7
    %v2761 = vshll.u32 %v2738, 16
    %v2763 = vor.u32 %v2760, %v2761
    %v2764 = vrot.slane %v2760, 4
    %v2766 = vshrl.u32 %v2739, 16
    %v2768 = vrot.slane %v2766, 7
    %v2769 = vshll.u32 %v2739, 16
    %v2771 = vor.u32 %v2768, %v2769
    %v2772 = vsel %vm1694, %v2764, %v2771
    %v2773 = vrot.slane %v2768, 4
    %vm2780 = vsmask.f32 7938
    %vm2781 = vmand %vm513, %vm2780
    %v2782 = vld [vmem:[#allocation2] sm:$0xf]
    %v2783 = vsel %vm2781, %v2746, %v2782
    %2784 = vst [vmem:[#allocation2] sm:$0xf] %v2783
    %2785 = vst [vmem:[#allocation2 + $0x4] sm:$0xf] %v2755
    %vm2786 = vmand %vm1547, %vm1692
    %v2787 = vld [vmem:[#allocation2 + $0x8] sm:$0x1]
    %v2788 = vsel %vm2786, %v2756, %v2787
    %2789 = vst [vmem:[#allocation2 + $0x8] sm:$0x1] %v2788
    %v2790 = vld [vmem:[#allocation2 + $0xc] sm:$0xf]
    %v2791 = vsel %vm2781, %v2763, %v2790
    %2792 = vst [vmem:[#allocation2 + $0xc] sm:$0xf] %v2791
    %2793 = vst [vmem:[#allocation2 + $0x10] sm:$0xf] %v2772
    %v2794 = vld [vmem:[#allocation2 + $0x14] sm:$0x1]
    %v2795 = vsel %vm2786, %v2773, %v2794
    %2796 = vst [vmem:[#allocation2 + $0x14] sm:$0x1] %v2795
    %v2797 = vld [vmem:[#allocation2] sm:$0xf]
    %v2798 = vld [vmem:[#allocation2 + $0x4] sm:$0xf]
    %v2799 = vld [vmem:[#allocation2 + $0xc] sm:$0xf]
    %v2800 = vld [vmem:[#allocation2 + $0x10] sm:$0xf]
    %v2801 = vld [vmem:[#allocation9] sm:$0xf]
    %v2802 = vld [vmem:[#allocation9 + $0x4] sm:$0xf]
    %v2803 = vld [vmem:[#allocation9 + $0x8] sm:$0xf]
    %v2804 = vld [vmem:[#allocation9 + $0xc] sm:$0xf]
    %v2805 = vld [vmem:[#allocation9 + $0x10] sm:$0xf]
    %v2806 = vld [vmem:[#allocation9 + $0x14] sm:$0xf]
    %v2807 = vld [vmem:[#allocation9 + $0x18] sm:$0xf]
    %v2808 = vld [vmem:[#allocation9 + $0x1c] sm:$0xf]
    %v2809 = vld [vmem:[#allocation9 + $0x20] sm:$0xf]
    %v2810 = vld [vmem:[#allocation9 + $0x24] sm:$0xf]
    %v2811 = vld [vmem:[#allocation9 + $0x28] sm:$0xf]
    %v2812 = vld [vmem:[#allocation9 + $0x2c] sm:$0xf]
    %v2813 = vld [vmem:[#allocation9 + $0x30] sm:$0xf]
    %v2814 = vld [vmem:[#allocation9 + $0x34] sm:$0xf]
    %v2815 = vld [vmem:[#allocation9 + $0x38] sm:$0xf]
    %v2816 = vld [vmem:[#allocation9 + $0x3c] sm:$0xf]
    %v2817 = vld [vmem:[#allocation2 + $0x8] sm:$0x1]
    %v2818 = vld [vmem:[#allocation2 + $0x14] sm:$0x1]
    %v2820 = vshrl.u32 %v2797, 16
    %v2822 = vrot.slane %v2820, 4
    %v2823 = vshll.u32 %v2797, 16
    %v2825 = vrot.slane %v2823, 5
    %v2826 = vor.u32 %v2822, %v2825
    %v2827 = vrot.slane %v2826, 4
    %v2829 = vshll.u32 %v2798, 16
    %v2831 = vrot.slane %v2829, 5
    %v2832 = vsel %vm613, %v2827, %v2831
    %v2833 = vshrl.u32 %v2798, 16
    %v2835 = vrot.slane %v2833, 4
    %v2836 = vor.u32 %v2835, %v2831
    %v2837 = vrot.slane %v2836, 4
    %v2839 = vshll.u32 %v2817, 16
    %v2841 = vrot.slane %v2839, 5
    %v2842 = vsel %vm613, %v2837, %v2841
    %v2844 = vshrl.u32 %v2799, 16
    %v2846 = vrot.slane %v2844, 4
    %v2847 = vshll.u32 %v2799, 16
    %v2849 = vrot.slane %v2847, 5
    %v2850 = vor.u32 %v2846, %v2849
    %v2851 = vrot.slane %v2850, 4
    %v2853 = vshll.u32 %v2800, 16
    %v2855 = vrot.slane %v2853, 5
    %v2856 = vsel %vm613, %v2851, %v2855
    %v2857 = vshrl.u32 %v2800, 16
    %v2859 = vrot.slane %v2857, 4
    %v2860 = vor.u32 %v2859, %v2855
    %v2861 = vrot.slane %v2860, 4
    %v2863 = vshll.u32 %v2818, 16
    %v2865 = vrot.slane %v2863, 5
    %v2866 = vsel %vm613, %v2861, %v2865
    %s2867 = scalar_lea.vmem [#allocation9], 64
    %v2868 = vld [vmem:[%s2867] sm:$0xf]
    %v2869 = vld [vmem:[%s2867 + $0x4] sm:$0xf]
    %v2870 = vld [vmem:[%s2867 + $0x8] sm:$0xf]
    %v2871 = vld [vmem:[%s2867 + $0xc] sm:$0xf]
    %v2872 = vld [vmem:[%s2867 + $0x10] sm:$0xf]
    %v2873 = vld [vmem:[%s2867 + $0x14] sm:$0xf]
    %v2874 = vld [vmem:[%s2867 + $0x18] sm:$0xf]
    %v2875 = vld [vmem:[%s2867 + $0x1c] sm:$0xf]
    %v2876 = vld [vmem:[%s2867 + $0x20] sm:$0xf]
    %v2877 = vld [vmem:[%s2867 + $0x24] sm:$0xf]
    %v2878 = vld [vmem:[%s2867 + $0x28] sm:$0xf]
    %v2879 = vld [vmem:[%s2867 + $0x2c] sm:$0xf]
    %v2880 = vld [vmem:[%s2867 + $0x30] sm:$0xf]
    %v2881 = vld [vmem:[%s2867 + $0x34] sm:$0xf]
    %v2882 = vld [vmem:[%s2867 + $0x38] sm:$0xf]
    %v2883 = vld [vmem:[%s2867 + $0x3c] sm:$0xf]
    %v2884 = vunpack.c.l.b16 %v2832
    %v2885 = vunpack.c.l.b16 %v2842
    %v2886 = vunpack.c.l.b16 %v2856
    %v2887 = vunpack.c.l.b16 %v2866
    %v2888 = vpack.c.b16 %v2885, %v2884
    %v2889 = vpack.c.b16 %v2887, %v2886
    %v2908 = vunpack.c.l.b16 %v2868
    %v2909 = vunpack.c.l.b16 %v2869
    %v2910 = vunpack.c.l.b16 %v2870
    %v2911 = vunpack.c.l.b16 %v2871
    %v2912 = vunpack.c.l.b16 %v2872
    %v2913 = vunpack.c.l.b16 %v2873
    %v2914 = vunpack.c.l.b16 %v2874
    %v2915 = vunpack.c.l.b16 %v2875
    %v2916 = vunpack.c.l.b16 %v2876
    %v2917 = vunpack.c.l.b16 %v2877
    %v2918 = vunpack.c.l.b16 %v2878
    %v2919 = vunpack.c.l.b16 %v2879
    %v2920 = vunpack.c.l.b16 %v2880
    %v2921 = vunpack.c.l.b16 %v2881
    %v2922 = vunpack.c.l.b16 %v2882
    %v2923 = vunpack.c.l.b16 %v2883
    %v2924 = vpack.c.b16 %v2909, %v2908
    %v2925 = vpack.c.b16 %v2911, %v2910
    %v2926 = vpack.c.b16 %v2913, %v2912
    %v2927 = vpack.c.b16 %v2915, %v2914
    %v2928 = vpack.c.b16 %v2917, %v2916
    %v2929 = vpack.c.b16 %v2919, %v2918
    %v2930 = vpack.c.b16 %v2921, %v2920
    %v2931 = vpack.c.b16 %v2923, %v2922
    %2940 = vmatprep.subr.bf16.mxu0 0
    %2941 = vmatpush1.bf16.msra.mxu0 %v2924
    %2942 = vmatprep.subr.bf16.mxu0 0
    %2943 = vmatpush1.bf16.msra.mxu0 %v2925
    %2944 = vmatprep.subr.bf16.mxu0 0
    %2945 = vmatpush1.bf16.msra.mxu0 %v2926
    %2946 = vmatprep.subr.bf16.mxu0 0
    %2947 = vmatpush1.bf16.msra.mxu0 %v2927
    %2948 = vmatprep.subr.bf16.mxu0 0
    %2949 = vmatpush1.bf16.msra.mxu0 %v2928
    %2950 = vmatprep.subr.bf16.mxu0 0
    %2951 = vmatpush1.bf16.msra.mxu0 %v2929
    %2952 = vmatprep.subr.bf16.mxu0 0
    %2953 = vmatpush1.bf16.msra.mxu0 %v2930
    %2954 = vmatprep.subr.bf16.mxu0 0
    %2955 = vmatpush1.bf16.msra.mxu0 %v2931
    %2956 = vmatprep.subr.bf16.mxu0 0
    %2957 = vmatpush1.bf16.msra.mxu0 0
    %2958 = vmatprep.subr.bf16.mxu0 0
    %2959 = vmatpush1.bf16.msra.mxu0 0
    %2960 = vmatprep.subr.bf16.mxu0 0
    %2961 = vmatpush1.bf16.msra.mxu0 0
    %2962 = vmatprep.subr.bf16.mxu0 0
    %2963 = vmatpush1.bf16.msra.mxu0 0
    %2964 = vmatprep.subr.bf16.mxu0 0
    %2965 = vmatpush1.bf16.msra.mxu0 0
    %2966 = vmatprep.subr.bf16.mxu0 0
    %2967 = vmatpush1.bf16.msra.mxu0 0
    %2968 = vmatprep.subr.bf16.mxu0 0
    %2969 = vmatpush1.bf16.msra.mxu0 0
    %2970 = vmatprep.subr.bf16.mxu0 0
    %2971 = vmatpush1.bf16.msra.mxu0 0
    %2972 = vmatprep.mubr.bf16.mxu0 0
    %2973 = vmatmul.mubr.bf16.gmra.mrb[0].mxu0 %v2888
    %v2974 = vpop.f32.mrb[0].mxu0
    %v2975 = vadd.f32 0.0, %v2974
    %v2976 = vpop.f32.mrb[0].mxu0
    %v2977 = vpop.f32.mrb[0].mxu0
    %v2978 = vadd.f32 0.0, %v2977
    %v2979 = vpop.f32.mrb[0].mxu0
    %2980 = vmatprep.mubr.bf16.mxu0 0
    %2981 = vmatmul.mubr.bf16.gmra.mrb[0].mxu0 %v2889
    %v2982 = vpop.f32.mrb[0].mxu0
    %v2983 = vadd.f32 0.0, %v2982
    %v2984 = vpop.f32.mrb[0].mxu0
    %v2985 = vpop.f32.mrb[0].mxu0
    %v2986 = vadd.f32 0.0, %v2985
    %v2987 = vpop.f32.mrb[0].mxu0
    %2988 = vdwg.mxu0
    %v2993 = vunpack.c.l.b16 %v2797
    %v2994 = vunpack.c.l.b16 %v2798
    %v2995 = vunpack.c.l.b16 %v2799
    %v2996 = vunpack.c.l.b16 %v2800
    %v2997 = vpack.c.b16 %v2994, %v2993
    %v2998 = vpack.c.b16 %v2996, %v2995
    %v3017 = vunpack.c.l.b16 %v2801
    %v3018 = vunpack.c.l.b16 %v2802
    %v3019 = vunpack.c.l.b16 %v2803
    %v3020 = vunpack.c.l.b16 %v2804
    %v3021 = vunpack.c.l.b16 %v2805
    %v3022 = vunpack.c.l.b16 %v2806
    %v3023 = vunpack.c.l.b16 %v2807
    %v3024 = vunpack.c.l.b16 %v2808
    %v3025 = vunpack.c.l.b16 %v2809
    %v3026 = vunpack.c.l.b16 %v2810
    %v3027 = vunpack.c.l.b16 %v2811
    %v3028 = vunpack.c.l.b16 %v2812
    %v3029 = vunpack.c.l.b16 %v2813
    %v3030 = vunpack.c.l.b16 %v2814
    %v3031 = vunpack.c.l.b16 %v2815
    %v3032 = vunpack.c.l.b16 %v2816
    %v3033 = vpack.c.b16 %v3018, %v3017
    %v3034 = vpack.c.b16 %v3020, %v3019
    %v3035 = vpack.c.b16 %v3022, %v3021
    %v3036 = vpack.c.b16 %v3024, %v3023
    %v3037 = vpack.c.b16 %v3026, %v3025
    %v3038 = vpack.c.b16 %v3028, %v3027
    %v3039 = vpack.c.b16 %v3030, %v3029
    %v3040 = vpack.c.b16 %v3032, %v3031
    %3049 = vmatprep.subr.bf16.mxu0 0
    %3050 = vmatpush1.bf16.msra.mxu0 %v3033
    %3051 = vmatprep.subr.bf16.mxu0 0
    %3052 = vmatpush1.bf16.msra.mxu0 %v3034
    %3053 = vmatprep.subr.bf16.mxu0 0
    %3054 = vmatpush1.bf16.msra.mxu0 %v3035
    %3055 = vmatprep.subr.bf16.mxu0 0
    %3056 = vmatpush1.bf16.msra.mxu0 %v3036
    %3057 = vmatprep.subr.bf16.mxu0 0
    %3058 = vmatpush1.bf16.msra.mxu0 %v3037
    %3059 = vmatprep.subr.bf16.mxu0 0
    %3060 = vmatpush1.bf16.msra.mxu0 %v3038
    %3061 = vmatprep.subr.bf16.mxu0 0
    %3062 = vmatpush1.bf16.msra.mxu0 %v3039
    %3063 = vmatprep.subr.bf16.mxu0 0
    %3064 = vmatpush1.bf16.msra.mxu0 %v3040
    %3065 = vmatprep.subr.bf16.mxu0 0
    %3066 = vmatpush1.bf16.msra.mxu0 0
    %3067 = vmatprep.subr.bf16.mxu0 0
    %3068 = vmatpush1.bf16.msra.mxu0 0
    %3069 = vmatprep.subr.bf16.mxu0 0
    %3070 = vmatpush1.bf16.msra.mxu0 0
    %3071 = vmatprep.subr.bf16.mxu0 0
    %3072 = vmatpush1.bf16.msra.mxu0 0
    %3073 = vmatprep.subr.bf16.mxu0 0
    %3074 = vmatpush1.bf16.msra.mxu0 0
    %3075 = vmatprep.subr.bf16.mxu0 0
    %3076 = vmatpush1.bf16.msra.mxu0 0
    %3077 = vmatprep.subr.bf16.mxu0 0
    %3078 = vmatpush1.bf16.msra.mxu0 0
    %3079 = vmatprep.subr.bf16.mxu0 0
    %3080 = vmatpush1.bf16.msra.mxu0 0
    %3081 = vmatprep.mubr.bf16.mxu0 0
    %3082 = vmatmul.mubr.bf16.gmra.mrb[0].mxu0 %v2997
    %v3083 = vpop.f32.mrb[0].mxu0
    %v3084 = vadd.f32 %v2975, %v3083
    %v3085 = vpop.f32.mrb[0].mxu0
    %v3086 = vpop.f32.mrb[0].mxu0
    %v3087 = vadd.f32 %v2978, %v3086
    %v3088 = vpop.f32.mrb[0].mxu0
    %3089 = vmatprep.mubr.bf16.mxu0 0
    %3090 = vmatmul.mubr.bf16.gmra.mrb[0].mxu0 %v2998
    %v3091 = vpop.f32.mrb[0].mxu0
    %v3092 = vadd.f32 %v2983, %v3091
    %v3093 = vpop.f32.mrb[0].mxu0
    %v3094 = vpop.f32.mrb[0].mxu0
    %v3095 = vadd.f32 %v2986, %v3094
    %v3096 = vpop.f32.mrb[0].mxu0
    %3097 = vdwg.mxu0
    %v3098 = vld [vmem:[#allocation2] sm:$0xe]
    %v3099 = vld [vmem:[#allocation2 + $0xc] sm:$0xe]
    %v3104 = vrot.slane %v3098, 5
    %v3105 = vrot.slane %v3104, 4
    %v3106 = vrot.slane %v2798, 5
    %v3107 = vsel %vm901, %v3105, %v3106
    %v3108 = vrot.slane %v3106, 4
    %v3109 = vrot.slane %v2817, 5
    %v3110 = vsel %vm901, %v3108, %v3109
    %v3111 = vrot.slane %v3099, 5
    %v3112 = vrot.slane %v3111, 4
    %v3113 = vrot.slane %v2800, 5
    %v3114 = vsel %vm901, %v3112, %v3113
    %v3115 = vrot.slane %v3113, 4
    %v3116 = vrot.slane %v2818, 5
    %v3117 = vsel %vm901, %v3115, %v3116
    %s3118 = scalar_lea.vmem [#allocation9], 128
    %v3119 = vld [vmem:[%s3118] sm:$0xf]
    %v3120 = vld [vmem:[%s3118 + $0x4] sm:$0xf]
    %v3121 = vld [vmem:[%s3118 + $0x8] sm:$0xf]
    %v3122 = vld [vmem:[%s3118 + $0xc] sm:$0xf]
    %v3123 = vld [vmem:[%s3118 + $0x10] sm:$0xf]
    %v3124 = vld [vmem:[%s3118 + $0x14] sm:$0xf]
    %v3125 = vld [vmem:[%s3118 + $0x18] sm:$0xf]
    %v3126 = vld [vmem:[%s3118 + $0x1c] sm:$0xf]
    %v3127 = vld [vmem:[%s3118 + $0x20] sm:$0xf]
    %v3128 = vld [vmem:[%s3118 + $0x24] sm:$0xf]
    %v3129 = vld [vmem:[%s3118 + $0x28] sm:$0xf]
    %v3130 = vld [vmem:[%s3118 + $0x2c] sm:$0xf]
    %v3131 = vld [vmem:[%s3118 + $0x30] sm:$0xf]
    %v3132 = vld [vmem:[%s3118 + $0x34] sm:$0xf]
    %v3133 = vld [vmem:[%s3118 + $0x38] sm:$0xf]
    %v3134 = vld [vmem:[%s3118 + $0x3c] sm:$0xf]
    %v3135 = vunpack.c.l.b16 %v3107
    %v3136 = vunpack.c.l.b16 %v3110
    %v3137 = vunpack.c.l.b16 %v3114
    %v3138 = vunpack.c.l.b16 %v3117
    %v3139 = vpack.c.b16 %v3136, %v3135
    %v3140 = vpack.c.b16 %v3138, %v3137
    %v3159 = vunpack.c.l.b16 %v3119
    %v3160 = vunpack.c.l.b16 %v3120
    %v3161 = vunpack.c.l.b16 %v3121
    %v3162 = vunpack.c.l.b16 %v3122
    %v3163 = vunpack.c.l.b16 %v3123
    %v3164 = vunpack.c.l.b16 %v3124
    %v3165 = vunpack.c.l.b16 %v3125
    %v3166 = vunpack.c.l.b16 %v3126
    %v3167 = vunpack.c.l.b16 %v3127
    %v3168 = vunpack.c.l.b16 %v3128
    %v3169 = vunpack.c.l.b16 %v3129
    %v3170 = vunpack.c.l.b16 %v3130
    %v3171 = vunpack.c.l.b16 %v3131
    %v3172 = vunpack.c.l.b16 %v3132
    %v3173 = vunpack.c.l.b16 %v3133
    %v3174 = vunpack.c.l.b16 %v3134
    %v3175 = vpack.c.b16 %v3160, %v3159
    %v3176 = vpack.c.b16 %v3162, %v3161
    %v3177 = vpack.c.b16 %v3164, %v3163
    %v3178 = vpack.c.b16 %v3166, %v3165
    %v3179 = vpack.c.b16 %v3168, %v3167
    %v3180 = vpack.c.b16 %v3170, %v3169
    %v3181 = vpack.c.b16 %v3172, %v3171
    %v3182 = vpack.c.b16 %v3174, %v3173
    %3191 = vmatprep.subr.bf16.mxu0 0
    %3192 = vmatpush1.bf16.msra.mxu0 %v3175
    %3193 = vmatprep.subr.bf16.mxu0 0
    %3194 = vmatpush1.bf16.msra.mxu0 %v3176
    %3195 = vmatprep.subr.bf16.mxu0 0
    %3196 = vmatpush1.bf16.msra.mxu0 %v3177
    %3197 = vmatprep.subr.bf16.mxu0 0
    %3198 = vmatpush1.bf16.msra.mxu0 %v3178
    %3199 = vmatprep.subr.bf16.mxu0 0
    %3200 = vmatpush1.bf16.msra.mxu0 %v3179
    %3201 = vmatprep.subr.bf16.mxu0 0
    %3202 = vmatpush1.bf16.msra.mxu0 %v3180
    %3203 = vmatprep.subr.bf16.mxu0 0
    %3204 = vmatpush1.bf16.msra.mxu0 %v3181
    %3205 = vmatprep.subr.bf16.mxu0 0
    %3206 = vmatpush1.bf16.msra.mxu0 %v3182
    %3207 = vmatprep.subr.bf16.mxu0 0
    %3208 = vmatpush1.bf16.msra.mxu0 0
    %3209 = vmatprep.subr.bf16.mxu0 0
    %3210 = vmatpush1.bf16.msra.mxu0 0
    %3211 = vmatprep.subr.bf16.mxu0 0
    %3212 = vmatpush1.bf16.msra.mxu0 0
    %3213 = vmatprep.subr.bf16.mxu0 0
    %3214 = vmatpush1.bf16.msra.mxu0 0
    %3215 = vmatprep.subr.bf16.mxu0 0
    %3216 = vmatpush1.bf16.msra.mxu0 0
    %3217 = vmatprep.subr.bf16.mxu0 0
    %3218 = vmatpush1.bf16.msra.mxu0 0
    %3219 = vmatprep.subr.bf16.mxu0 0
    %3220 = vmatpush1.bf16.msra.mxu0 0
    %3221 = vmatprep.subr.bf16.mxu0 0
    %3222 = vmatpush1.bf16.msra.mxu0 0
    %3223 = vmatprep.mubr.bf16.mxu0 0
    %3224 = vmatmul.mubr.bf16.gmra.mrb[0].mxu0 %v3139
    %v3225 = vpop.f32.mrb[0].mxu0
    %v3226 = vadd.f32 0.0, %v3225
    %v3227 = vpop.f32.mrb[0].mxu0
    %v3228 = vpop.f32.mrb[0].mxu0
    %v3229 = vadd.f32 0.0, %v3228
    %v3230 = vpop.f32.mrb[0].mxu0
    %3231 = vmatprep.mubr.bf16.mxu0 0
    %3232 = vmatmul.mubr.bf16.gmra.mrb[0].mxu0 %v3140
    %v3233 = vpop.f32.mrb[0].mxu0
    %v3234 = vadd.f32 0.0, %v3233
    %v3235 = vpop.f32.mrb[0].mxu0
    %v3236 = vpop.f32.mrb[0].mxu0
    %v3237 = vadd.f32 0.0, %v3236
    %v3238 = vpop.f32.mrb[0].mxu0
    %3239 = vdwg.mxu0
    %v3240 = vadd.f32 %v3084, %v3226
    %v3241 = vadd.f32 %v3087, %v3229
    %v3242 = vadd.f32 %v3092, %v3234
    %v3243 = vadd.f32 %v3095, %v3237
    %v3244 = vld [vmem:[%s17] sm:$0x1]
    %v3246 = vlaneseq
    %v3247 = vshrl.u32 %v3246, 7
    %v3248 = vsub.s32 0, %v3247
    %v3249 = vrot.slane %v3244, %v3248
    %v3251 = vmul.f32 %v3240, %v3249
    %v3252 = vmul.f32 %v3241, %v3249
    %v3253 = vmul.f32 %v3242, %v3249
    %v3254 = vmul.f32 %v3243, %v3249
    %v3255 = vld [vmem:[%s19] sm:$0x1]
    %v3257 = vlaneseq
    %v3258 = vshrl.u32 %v3257, 7
    %v3259 = vsub.s32 0, %v3258
    %v3260 = vrot.slane %v3255, %v3259
    %v3262 = vadd.f32 %v3251, %v3260
    %v3263 = vadd.f32 %v3252, %v3260
    %v3264 = vadd.f32 %v3253, %v3260
    %v3265 = vadd.f32 %v3254, %v3260
    %v3266 = vld [vmem:[#allocation11] sm:$0xf]
    %v3267 = vld [vmem:[#allocation11 + $0x4] sm:$0xf]
    %v3268 = vld [vmem:[#allocation11 + $0x8] sm:$0xf]
    %v3269 = vld [vmem:[#allocation11 + $0xc] sm:$0xf]
    %v3270 = vld [vmem:[#allocation11 + $0x10] sm:$0xf]
    %v3271 = vld [vmem:[#allocation11 + $0x14] sm:$0xf]
    %v3272 = vld [vmem:[#allocation11 + $0x18] sm:$0xf]
    %v3273 = vld [vmem:[#allocation11 + $0x1c] sm:$0xf]
    %v3274 = vld [vmem:[#allocation11 + $0x20] sm:$0xf]
    %v3275 = vld [vmem:[#allocation11 + $0x24] sm:$0xf]
    %v3276 = vld [vmem:[#allocation11 + $0x28] sm:$0xf]
    %v3277 = vld [vmem:[#allocation11 + $0x2c] sm:$0xf]
    %v3278 = vld [vmem:[#allocation11 + $0x30] sm:$0xf]
    %v3279 = vld [vmem:[#allocation11 + $0x34] sm:$0xf]
    %v3280 = vld [vmem:[#allocation11 + $0x38] sm:$0xf]
    %v3281 = vld [vmem:[#allocation11 + $0x3c] sm:$0xf]
    %v3286 = vunpack.c.l.b16 %v507
    %v3287 = vunpack.c.l.b16 %v508
    %v3288 = vunpack.c.l.b16 %v509
    %v3289 = vunpack.c.l.b16 %v510
    %v3290 = vpack.c.b16 %v3287, %v3286
    %v3291 = vpack.c.b16 %v3289, %v3288
    %v3310 = vunpack.c.l.b16 %v3266
    %v3311 = vunpack.c.l.b16 %v3267
    %v3312 = vunpack.c.l.b16 %v3268
    %v3313 = vunpack.c.l.b16 %v3269
    %v3314 = vunpack.c.l.b16 %v3270
    %v3315 = vunpack.c.l.b16 %v3271
    %v3316 = vunpack.c.l.b16 %v3272
    %v3317 = vunpack.c.l.b16 %v3273
    %v3318 = vunpack.c.l.b16 %v3274
    %v3319 = vunpack.c.l.b16 %v3275
    %v3320 = vunpack.c.l.b16 %v3276
    %v3321 = vunpack.c.l.b16 %v3277
    %v3322 = vunpack.c.l.b16 %v3278
    %v3323 = vunpack.c.l.b16 %v3279
    %v3324 = vunpack.c.l.b16 %v3280
    %v3325 = vunpack.c.l.b16 %v3281
    %v3326 = vpack.c.b16 %v3311, %v3310
    %v3327 = vpack.c.b16 %v3313, %v3312
    %v3328 = vpack.c.b16 %v3315, %v3314
    %v3329 = vpack.c.b16 %v3317, %v3316
    %v3330 = vpack.c.b16 %v3319, %v3318
    %v3331 = vpack.c.b16 %v3321, %v3320
    %v3332 = vpack.c.b16 %v3323, %v3322
    %v3333 = vpack.c.b16 %v3325, %v3324
    %3342 = vmatprep.subr.bf16.mxu0 0
    %3343 = vmatpush1.bf16.msra.mxu0 %v3326
    %3344 = vmatprep.subr.bf16.mxu0 0
    %3345 = vmatpush1.bf16.msra.mxu0 %v3327
    %3346 = vmatprep.subr.bf16.mxu0 0
    %3347 = vmatpush1.bf16.msra.mxu0 %v3328
    %3348 = vmatprep.subr.bf16.mxu0 0
    %3349 = vmatpush1.bf16.msra.mxu0 %v3329
    %3350 = vmatprep.subr.bf16.mxu0 0
    %3351 = vmatpush1.bf16.msra.mxu0 %v3330
    %3352 = vmatprep.subr.bf16.mxu0 0
    %3353 = vmatpush1.bf16.msra.mxu0 %v3331
    %3354 = vmatprep.subr.bf16.mxu0 0
    %3355 = vmatpush1.bf16.msra.mxu0 %v3332
    %3356 = vmatprep.subr.bf16.mxu0 0
    %3357 = vmatpush1.bf16.msra.mxu0 %v3333
    %3358 = vmatprep.subr.bf16.mxu0 0
    %3359 = vmatpush1.bf16.msra.mxu0 0
    %3360 = vmatprep.subr.bf16.mxu0 0
    %3361 = vmatpush1.bf16.msra.mxu0 0
    %3362 = vmatprep.subr.bf16.mxu0 0
    %3363 = vmatpush1.bf16.msra.mxu0 0
    %3364 = vmatprep.subr.bf16.mxu0 0
    %3365 = vmatpush1.bf16.msra.mxu0 0
    %3366 = vmatprep.subr.bf16.mxu0 0
    %3367 = vmatpush1.bf16.msra.mxu0 0
    %3368 = vmatprep.subr.bf16.mxu0 0
    %3369 = vmatpush1.bf16.msra.mxu0 0
    %3370 = vmatprep.subr.bf16.mxu0 0
    %3371 = vmatpush1.bf16.msra.mxu0 0
    %3372 = vmatprep.subr.bf16.mxu0 0
    %3373 = vmatpush1.bf16.msra.mxu0 0
    %3374 = vmatprep.mubr.bf16.mxu0 0
    %3375 = vmatmul.mubr.bf16.gmra.mrb[0].mxu0 %v3290
    %v3376 = vpop.f32.mrb[0].mxu0
    %v3377 = vadd.f32 0.0, %v3376
    %v3378 = vpop.f32.mrb[0].mxu0
    %v3379 = vpop.f32.mrb[0].mxu0
    %v3380 = vadd.f32 0.0, %v3379
    %v3381 = vpop.f32.mrb[0].mxu0
    %3382 = vmatprep.mubr.bf16.mxu0 0
    %3383 = vmatmul.mubr.bf16.gmra.mrb[0].mxu0 %v3291
    %v3384 = vpop.f32.mrb[0].mxu0
    %v3385 = vadd.f32 0.0, %v3384
    %v3386 = vpop.f32.mrb[0].mxu0
    %v3387 = vpop.f32.mrb[0].mxu0
    %v3388 = vadd.f32 0.0, %v3387
    %v3389 = vpop.f32.mrb[0].mxu0
    %3390 = vdwg.mxu0
    %v3391 = vld [vmem:[%s23] sm:$0x1]
    %v3393 = vlaneseq
    %v3394 = vshrl.u32 %v3393, 7
    %v3395 = vsub.s32 0, %v3394
    %v3396 = vrot.slane %v3391, %v3395
    %v3398 = vmul.f32 %v3377, %v3396
    %v3399 = vmul.f32 %v3380, %v3396
    %v3400 = vmul.f32 %v3385, %v3396
    %v3401 = vmul.f32 %v3388, %v3396
    %v3402 = vld [vmem:[%s25] sm:$0x1]
    %v3404 = vlaneseq
    %v3405 = vshrl.u32 %v3404, 7
    %v3406 = vsub.s32 0, %v3405
    %v3407 = vrot.slane %v3402, %v3406
    %v3409 = vadd.f32 %v3398, %v3407
    %v3410 = vadd.f32 %v3399, %v3407
    %v3411 = vadd.f32 %v3400, %v3407
    %v3412 = vadd.f32 %v3401, %v3407
    %v3413 = vadd.f32 %v3262, %v3409
    %v3414 = vadd.f32 %v3263, %v3410
    %v3415 = vadd.f32 %v3264, %v3411
    %v3416 = vadd.f32 %v3265, %v3412
    %v3417 = vmax.f32 %v3413, 0.0
    %v3418 = vmax.f32 %v3414, 0.0
    %v3419 = vmax.f32 %v3415, 0.0
    %v3420 = vmax.f32 %v3416, 0.0
    %v3421 = vpack.c.bf16 %v3418, %v3417
    %v3422 = vpack.c.bf16 %v3420, %v3419
    %3423 = vst [vmem:[#allocation2] sm:$0xf] 0
    %3424 = vst [vmem:[#allocation2 + $0x4] sm:$0xf] 0
    %v3425 = vld [vmem:[#allocation2 + $0x8] sm:$0xf]
    %v3426 = vsel %vm515, 0, %v3425
    %3427 = vst [vmem:[#allocation2 + $0x8] sm:$0xf] %v3426
    %3428 = vst [vmem:[#allocation2 + $0xc] sm:$0xf] 0
    %3429 = vst [vmem:[#allocation2 + $0x10] sm:$0xf] 0
    %v3430 = vld [vmem:[#allocation2 + $0x14] sm:$0xf]
    %v3431 = vsel %vm515, 0, %v3430
    %3432 = vst [vmem:[#allocation2 + $0x14] sm:$0xf] %v3431
    %v3435 = vunpack.c.l.b16 %v3421
    %v3436 = vunpack.c.h.b16 %v3421
    %v3437 = vunpack.c.l.b16 %v3422
    %v3438 = vunpack.c.h.b16 %v3422
    %v3439 = vpack.c.b16 %v3435, %v3435
    %v3440 = vpack.c.b16 %v3436, %v3436
    %v3441 = vpack.c.b16 %v3437, %v3437
    %v3442 = vpack.c.b16 %v3438, %v3438
    %v3444 = vshrl.u32 %v3439, 16
    %v3446 = vrot.slane %v3444, 6
    %v3447 = vshll.u32 %v3439, 16
    %v3449 = vrot.slane %v3447, 7
    %v3450 = vor.u32 %v3446, %v3449
    %v3451 = vrot.slane %v3450, 4
    %v3453 = vshrl.u32 %v3440, 16
    %v3455 = vrot.slane %v3453, 6
    %v3456 = vshll.u32 %v3440, 16
    %v3458 = vrot.slane %v3456, 7
    %v3459 = vor.u32 %v3455, %v3458
    %v3460 = vsel %vm526, %v3451, %v3459
    %v3461 = vrot.slane %v3459, 4
    %v3463 = vshrl.u32 %v3441, 16
    %v3465 = vrot.slane %v3463, 6
    %v3466 = vshll.u32 %v3441, 16
    %v3468 = vrot.slane %v3466, 7
    %v3469 = vor.u32 %v3465, %v3468
    %v3470 = vrot.slane %v3469, 4
    %v3472 = vshrl.u32 %v3442, 16
    %v3474 = vrot.slane %v3472, 6
    %v3475 = vshll.u32 %v3442, 16
    %v3477 = vrot.slane %v3475, 7
    %v3478 = vor.u32 %v3474, %v3477
    %v3479 = vsel %vm526, %v3470, %v3478
    %v3480 = vrot.slane %v3478, 4
    %v3487 = vld [vmem:[#allocation2] sm:$0xe]
    %v3488 = vsel %vm573, %v3450, %v3487
    %3489 = vst [vmem:[#allocation2] sm:$0xe] %v3488
    %3490 = vst [vmem:[#allocation2 + $0x4] sm:$0xf] %v3460
    %v3491 = vld [vmem:[#allocation2 + $0x8] sm:$0x3]
    %v3492 = vsel %vm579, %v3461, %v3491
    %3493 = vst [vmem:[#allocation2 + $0x8] sm:$0x3] %v3492
    %v3494 = vld [vmem:[#allocation2 + $0xc] sm:$0xe]
    %v3495 = vsel %vm573, %v3469, %v3494
    %3496 = vst [vmem:[#allocation2 + $0xc] sm:$0xe] %v3495
    %3497 = vst [vmem:[#allocation2 + $0x10] sm:$0xf] %v3479
    %v3498 = vld [vmem:[#allocation2 + $0x14] sm:$0x3]
    %v3499 = vsel %vm579, %v3480, %v3498
    %3500 = vst [vmem:[#allocation2 + $0x14] sm:$0x3] %v3499
    %v3501 = vld [vmem:[#allocation2] sm:$0xf]
    %v3502 = vld [vmem:[#allocation2 + $0x4] sm:$0xf]
    %v3503 = vld [vmem:[#allocation2 + $0xc] sm:$0xf]
    %v3504 = vld [vmem:[#allocation2 + $0x10] sm:$0xf]
    %v3505 = vld [vmem:[#allocation12] sm:$0xf]
    %v3506 = vld [vmem:[#allocation12 + $0x4] sm:$0xf]
    %v3507 = vld [vmem:[#allocation12 + $0x8] sm:$0xf]
    %v3508 = vld [vmem:[#allocation12 + $0xc] sm:$0xf]
    %v3509 = vld [vmem:[#allocation12 + $0x10] sm:$0xf]
    %v3510 = vld [vmem:[#allocation12 + $0x14] sm:$0xf]
    %v3511 = vld [vmem:[#allocation12 + $0x18] sm:$0xf]
    %v3512 = vld [vmem:[#allocation12 + $0x1c] sm:$0xf]
    %v3513 = vld [vmem:[#allocation12 + $0x20] sm:$0xf]
    %v3514 = vld [vmem:[#allocation12 + $0x24] sm:$0xf]
    %v3515 = vld [vmem:[#allocation12 + $0x28] sm:$0xf]
    %v3516 = vld [vmem:[#allocation12 + $0x2c] sm:$0xf]
    %v3517 = vld [vmem:[#allocation12 + $0x30] sm:$0xf]
    %v3518 = vld [vmem:[#allocation12 + $0x34] sm:$0xf]
    %v3519 = vld [vmem:[#allocation12 + $0x38] sm:$0xf]
    %v3520 = vld [vmem:[#allocation12 + $0x3c] sm:$0xf]
    %v3521 = vld [vmem:[#allocation2 + $0x8] sm:$0x1]
    %v3522 = vld [vmem:[#allocation2 + $0x14] sm:$0x1]
    %v3524 = vshrl.u32 %v3501, 16
    %v3526 = vrot.slane %v3524, 4
    %v3527 = vshll.u32 %v3501, 16
    %v3529 = vrot.slane %v3527, 5
    %v3530 = vor.u32 %v3526, %v3529
    %v3531 = vrot.slane %v3530, 4
    %v3533 = vshll.u32 %v3502, 16
    %v3535 = vrot.slane %v3533, 5
    %v3536 = vsel %vm613, %v3531, %v3535
    %v3537 = vshrl.u32 %v3502, 16
    %v3539 = vrot.slane %v3537, 4
    %v3540 = vor.u32 %v3539, %v3535
    %v3541 = vrot.slane %v3540, 4
    %v3543 = vshll.u32 %v3521, 16
    %v3545 = vrot.slane %v3543, 5
    %v3546 = vsel %vm613, %v3541, %v3545
    %v3548 = vshrl.u32 %v3503, 16
    %v3550 = vrot.slane %v3548, 4
    %v3551 = vshll.u32 %v3503, 16
    %v3553 = vrot.slane %v3551, 5
    %v3554 = vor.u32 %v3550, %v3553
    %v3555 = vrot.slane %v3554, 4
    %v3557 = vshll.u32 %v3504, 16
    %v3559 = vrot.slane %v3557, 5
    %v3560 = vsel %vm613, %v3555, %v3559
    %v3561 = vshrl.u32 %v3504, 16
    %v3563 = vrot.slane %v3561, 4
    %v3564 = vor.u32 %v3563, %v3559
    %v3565 = vrot.slane %v3564, 4
    %v3567 = vshll.u32 %v3522, 16
    %v3569 = vrot.slane %v3567, 5
    %v3570 = vsel %vm613, %v3565, %v3569
    %s3571 = scalar_lea.vmem [#allocation12], 64
    %v3572 = vld [vmem:[%s3571] sm:$0xf]
    %v3573 = vld [vmem:[%s3571 + $0x4] sm:$0xf]
    %v3574 = vld [vmem:[%s3571 + $0x8] sm:$0xf]
    %v3575 = vld [vmem:[%s3571 + $0xc] sm:$0xf]
    %v3576 = vld [vmem:[%s3571 + $0x10] sm:$0xf]
    %v3577 = vld [vmem:[%s3571 + $0x14] sm:$0xf]
    %v3578 = vld [vmem:[%s3571 + $0x18] sm:$0xf]
    %v3579 = vld [vmem:[%s3571 + $0x1c] sm:$0xf]
    %v3580 = vld [vmem:[%s3571 + $0x20] sm:$0xf]
    %v3581 = vld [vmem:[%s3571 + $0x24] sm:$0xf]
    %v3582 = vld [vmem:[%s3571 + $0x28] sm:$0xf]
    %v3583 = vld [vmem:[%s3571 + $0x2c] sm:$0xf]
    %v3584 = vld [vmem:[%s3571 + $0x30] sm:$0xf]
    %v3585 = vld [vmem:[%s3571 + $0x34] sm:$0xf]
    %v3586 = vld [vmem:[%s3571 + $0x38] sm:$0xf]
    %v3587 = vld [vmem:[%s3571 + $0x3c] sm:$0xf]
    %v3588 = vunpack.c.l.b16 %v3536
    %v3589 = vunpack.c.l.b16 %v3546
    %v3590 = vunpack.c.l.b16 %v3560
    %v3591 = vunpack.c.l.b16 %v3570
    %v3592 = vpack.c.b16 %v3589, %v3588
    %v3593 = vpack.c.b16 %v3591, %v3590
    %v3612 = vunpack.c.l.b16 %v3572
    %v3613 = vunpack.c.l.b16 %v3573
    %v3614 = vunpack.c.l.b16 %v3574
    %v3615 = vunpack.c.l.b16 %v3575
    %v3616 = vunpack.c.l.b16 %v3576
    %v3617 = vunpack.c.l.b16 %v3577
    %v3618 = vunpack.c.l.b16 %v3578
    %v3619 = vunpack.c.l.b16 %v3579
    %v3620 = vunpack.c.l.b16 %v3580
    %v3621 = vunpack.c.l.b16 %v3581
    %v3622 = vunpack.c.l.b16 %v3582
    %v3623 = vunpack.c.l.b16 %v3583
    %v3624 = vunpack.c.l.b16 %v3584
    %v3625 = vunpack.c.l.b16 %v3585
    %v3626 = vunpack.c.l.b16 %v3586
    %v3627 = vunpack.c.l.b16 %v3587
    %v3628 = vpack.c.b16 %v3613, %v3612
    %v3629 = vpack.c.b16 %v3615, %v3614
    %v3630 = vpack.c.b16 %v3617, %v3616
    %v3631 = vpack.c.b16 %v3619, %v3618
    %v3632 = vpack.c.b16 %v3621, %v3620
    %v3633 = vpack.c.b16 %v3623, %v3622
    %v3634 = vpack.c.b16 %v3625, %v3624
    %v3635 = vpack.c.b16 %v3627, %v3626
    %3644 = vmatprep.subr.bf16.mxu0 0
    %3645 = vmatpush1.bf16.msra.mxu0 %v3628
    %3646 = vmatprep.subr.bf16.mxu0 0
    %3647 = vmatpush1.bf16.msra.mxu0 %v3629
    %3648 = vmatprep.subr.bf16.mxu0 0
    %3649 = vmatpush1.bf16.msra.mxu0 %v3630
    %3650 = vmatprep.subr.bf16.mxu0 0
    %3651 = vmatpush1.bf16.msra.mxu0 %v3631
    %3652 = vmatprep.subr.bf16.mxu0 0
    %3653 = vmatpush1.bf16.msra.mxu0 %v3632
    %3654 = vmatprep.subr.bf16.mxu0 0
    %3655 = vmatpush1.bf16.msra.mxu0 %v3633
    %3656 = vmatprep.subr.bf16.mxu0 0
    %3657 = vmatpush1.bf16.msra.mxu0 %v3634
    %3658 = vmatprep.subr.bf16.mxu0 0
    %3659 = vmatpush1.bf16.msra.mxu0 %v3635
    %3660 = vmatprep.subr.bf16.mxu0 0
    %3661 = vmatpush1.bf16.msra.mxu0 0
    %3662 = vmatprep.subr.bf16.mxu0 0
    %3663 = vmatpush1.bf16.msra.mxu0 0
    %3664 = vmatprep.subr.bf16.mxu0 0
    %3665 = vmatpush1.bf16.msra.mxu0 0
    %3666 = vmatprep.subr.bf16.mxu0 0
    %3667 = vmatpush1.bf16.msra.mxu0 0
    %3668 = vmatprep.subr.bf16.mxu0 0
    %3669 = vmatpush1.bf16.msra.mxu0 0
    %3670 = vmatprep.subr.bf16.mxu0 0
    %3671 = vmatpush1.bf16.msra.mxu0 0
    %3672 = vmatprep.subr.bf16.mxu0 0
    %3673 = vmatpush1.bf16.msra.mxu0 0
    %3674 = vmatprep.subr.bf16.mxu0 0
    %3675 = vmatpush1.bf16.msra.mxu0 0
    %3676 = vmatprep.mubr.bf16.mxu0 0
    %3677 = vmatmul.mubr.bf16.gmra.mrb[0].mxu0 %v3592
    %v3678 = vpop.f32.mrb[0].mxu0
    %v3679 = vadd.f32 0.0, %v3678
    %v3680 = vpop.f32.mrb[0].mxu0
    %v3681 = vpop.f32.mrb[0].mxu0
    %v3682 = vadd.f32 0.0, %v3681
    %v3683 = vpop.f32.mrb[0].mxu0
    %3684 = vmatprep.mubr.bf16.mxu0 0
    %3685 = vmatmul.mubr.bf16.gmra.mrb[0].mxu0 %v3593
    %v3686 = vpop.f32.mrb[0].mxu0
    %v3687 = vadd.f32 0.0, %v3686
    %v3688 = vpop.f32.mrb[0].mxu0
    %v3689 = vpop.f32.mrb[0].mxu0
    %v3690 = vadd.f32 0.0, %v3689
    %v3691 = vpop.f32.mrb[0].mxu0
    %3692 = vdwg.mxu0
    %v3697 = vunpack.c.l.b16 %v3501
    %v3698 = vunpack.c.l.b16 %v3502
    %v3699 = vunpack.c.l.b16 %v3503
    %v3700 = vunpack.c.l.b16 %v3504
    %v3701 = vpack.c.b16 %v3698, %v3697
    %v3702 = vpack.c.b16 %v3700, %v3699
    %v3721 = vunpack.c.l.b16 %v3505
    %v3722 = vunpack.c.l.b16 %v3506
    %v3723 = vunpack.c.l.b16 %v3507
    %v3724 = vunpack.c.l.b16 %v3508
    %v3725 = vunpack.c.l.b16 %v3509
    %v3726 = vunpack.c.l.b16 %v3510
    %v3727 = vunpack.c.l.b16 %v3511
    %v3728 = vunpack.c.l.b16 %v3512
    %v3729 = vunpack.c.l.b16 %v3513
    %v3730 = vunpack.c.l.b16 %v3514
    %v3731 = vunpack.c.l.b16 %v3515
    %v3732 = vunpack.c.l.b16 %v3516
    %v3733 = vunpack.c.l.b16 %v3517
    %v3734 = vunpack.c.l.b16 %v3518
    %v3735 = vunpack.c.l.b16 %v3519
    %v3736 = vunpack.c.l.b16 %v3520
    %v3737 = vpack.c.b16 %v3722, %v3721
    %v3738 = vpack.c.b16 %v3724, %v3723
    %v3739 = vpack.c.b16 %v3726, %v3725
    %v3740 = vpack.c.b16 %v3728, %v3727
    %v3741 = vpack.c.b16 %v3730, %v3729
    %v3742 = vpack.c.b16 %v3732, %v3731
    %v3743 = vpack.c.b16 %v3734, %v3733
    %v3744 = vpack.c.b16 %v3736, %v3735
    %3753 = vmatprep.subr.bf16.mxu0 0
    %3754 = vmatpush1.bf16.msra.mxu0 %v3737
    %3755 = vmatprep.subr.bf16.mxu0 0
    %3756 = vmatpush1.bf16.msra.mxu0 %v3738
    %3757 = vmatprep.subr.bf16.mxu0 0
    %3758 = vmatpush1.bf16.msra.mxu0 %v3739
    %3759 = vmatprep.subr.bf16.mxu0 0
    %3760 = vmatpush1.bf16.msra.mxu0 %v3740
    %3761 = vmatprep.subr.bf16.mxu0 0
    %3762 = vmatpush1.bf16.msra.mxu0 %v3741
    %3763 = vmatprep.subr.bf16.mxu0 0
    %3764 = vmatpush1.bf16.msra.mxu0 %v3742
    %3765 = vmatprep.subr.bf16.mxu0 0
    %3766 = vmatpush1.bf16.msra.mxu0 %v3743
    %3767 = vmatprep.subr.bf16.mxu0 0
    %3768 = vmatpush1.bf16.msra.mxu0 %v3744
    %3769 = vmatprep.subr.bf16.mxu0 0
    %3770 = vmatpush1.bf16.msra.mxu0 0
    %3771 = vmatprep.subr.bf16.mxu0 0
    %3772 = vmatpush1.bf16.msra.mxu0 0
    %3773 = vmatprep.subr.bf16.mxu0 0
    %3774 = vmatpush1.bf16.msra.mxu0 0
    %3775 = vmatprep.subr.bf16.mxu0 0
    %3776 = vmatpush1.bf16.msra.mxu0 0
    %3777 = vmatprep.subr.bf16.mxu0 0
    %3778 = vmatpush1.bf16.msra.mxu0 0
    %3779 = vmatprep.subr.bf16.mxu0 0
    %3780 = vmatpush1.bf16.msra.mxu0 0
    %3781 = vmatprep.subr.bf16.mxu0 0
    %3782 = vmatpush1.bf16.msra.mxu0 0
    %3783 = vmatprep.subr.bf16.mxu0 0
    %3784 = vmatpush1.bf16.msra.mxu0 0
    %3785 = vmatprep.mubr.bf16.mxu0 0
    %3786 = vmatmul.mubr.bf16.gmra.mrb[0].mxu0 %v3701
    %v3787 = vpop.f32.mrb[0].mxu0
    %v3788 = vadd.f32 %v3679, %v3787
    %v3789 = vpop.f32.mrb[0].mxu0
    %v3790 = vpop.f32.mrb[0].mxu0
    %v3791 = vadd.f32 %v3682, %v3790
    %v3792 = vpop.f32.mrb[0].mxu0
    %3793 = vmatprep.mubr.bf16.mxu0 0
    %3794 = vmatmul.mubr.bf16.gmra.mrb[0].mxu0 %v3702
    %v3795 = vpop.f32.mrb[0].mxu0
    %v3796 = vadd.f32 %v3687, %v3795
    %v3797 = vpop.f32.mrb[0].mxu0
    %v3798 = vpop.f32.mrb[0].mxu0
    %v3799 = vadd.f32 %v3690, %v3798
    %v3800 = vpop.f32.mrb[0].mxu0
    %3801 = vdwg.mxu0
    %v3802 = vld [vmem:[#allocation2] sm:$0xe]
    %v3803 = vld [vmem:[#allocation2 + $0xc] sm:$0xe]
    %v3808 = vrot.slane %v3802, 5
    %v3809 = vrot.slane %v3808, 4
    %v3810 = vrot.slane %v3502, 5
    %v3811 = vsel %vm901, %v3809, %v3810
    %v3812 = vrot.slane %v3810, 4
    %v3813 = vrot.slane %v3521, 5
    %v3814 = vsel %vm901, %v3812, %v3813
    %v3815 = vrot.slane %v3803, 5
    %v3816 = vrot.slane %v3815, 4
    %v3817 = vrot.slane %v3504, 5
    %v3818 = vsel %vm901, %v3816, %v3817
    %v3819 = vrot.slane %v3817, 4
    %v3820 = vrot.slane %v3522, 5
    %v3821 = vsel %vm901, %v3819, %v3820
    %s3822 = scalar_lea.vmem [#allocation12], 128
    %v3823 = vld [vmem:[%s3822] sm:$0xf]
    %v3824 = vld [vmem:[%s3822 + $0x4] sm:$0xf]
    %v3825 = vld [vmem:[%s3822 + $0x8] sm:$0xf]
    %v3826 = vld [vmem:[%s3822 + $0xc] sm:$0xf]
    %v3827 = vld [vmem:[%s3822 + $0x10] sm:$0xf]
    %v3828 = vld [vmem:[%s3822 + $0x14] sm:$0xf]
    %v3829 = vld [vmem:[%s3822 + $0x18] sm:$0xf]
    %v3830 = vld [vmem:[%s3822 + $0x1c] sm:$0xf]
    %v3831 = vld [vmem:[%s3822 + $0x20] sm:$0xf]
    %v3832 = vld [vmem:[%s3822 + $0x24] sm:$0xf]
    %v3833 = vld [vmem:[%s3822 + $0x28] sm:$0xf]
    %v3834 = vld [vmem:[%s3822 + $0x2c] sm:$0xf]
    %v3835 = vld [vmem:[%s3822 + $0x30] sm:$0xf]
    %v3836 = vld [vmem:[%s3822 + $0x34] sm:$0xf]
    %v3837 = vld [vmem:[%s3822 + $0x38] sm:$0xf]
    %v3838 = vld [vmem:[%s3822 + $0x3c] sm:$0xf]
    %v3839 = vunpack.c.l.b16 %v3811
    %v3840 = vunpack.c.l.b16 %v3814
    %v3841 = vunpack.c.l.b16 %v3818
    %v3842 = vunpack.c.l.b16 %v3821
    %v3843 = vpack.c.b16 %v3840, %v3839
    %v3844 = vpack.c.b16 %v3842, %v3841
    %v3863 = vunpack.c.l.b16 %v3823
    %v3864 = vunpack.c.l.b16 %v3824
    %v3865 = vunpack.c.l.b16 %v3825
    %v3866 = vunpack.c.l.b16 %v3826
    %v3867 = vunpack.c.l.b16 %v3827
    %v3868 = vunpack.c.l.b16 %v3828
    %v3869 = vunpack.c.l.b16 %v3829
    %v3870 = vunpack.c.l.b16 %v3830
    %v3871 = vunpack.c.l.b16 %v3831
    %v3872 = vunpack.c.l.b16 %v3832
    %v3873 = vunpack.c.l.b16 %v3833
    %v3874 = vunpack.c.l.b16 %v3834
    %v3875 = vunpack.c.l.b16 %v3835
    %v3876 = vunpack.c.l.b16 %v3836
    %v3877 = vunpack.c.l.b16 %v3837
    %v3878 = vunpack.c.l.b16 %v3838
    %v3879 = vpack.c.b16 %v3864, %v3863
    %v3880 = vpack.c.b16 %v3866, %v3865
    %v3881 = vpack.c.b16 %v3868, %v3867
    %v3882 = vpack.c.b16 %v3870, %v3869
    %v3883 = vpack.c.b16 %v3872, %v3871
    %v3884 = vpack.c.b16 %v3874, %v3873
    %v3885 = vpack.c.b16 %v3876, %v3875
    %v3886 = vpack.c.b16 %v3878, %v3877
    %3895 = vmatprep.subr.bf16.mxu0 0
    %3896 = vmatpush1.bf16.msra.mxu0 %v3879
    %3897 = vmatprep.subr.bf16.mxu0 0
    %3898 = vmatpush1.bf16.msra.mxu0 %v3880
    %3899 = vmatprep.subr.bf16.mxu0 0
    %3900 = vmatpush1.bf16.msra.mxu0 %v3881
    %3901 = vmatprep.subr.bf16.mxu0 0
    %3902 = vmatpush1.bf16.msra.mxu0 %v3882
    %3903 = vmatprep.subr.bf16.mxu0 0
    %3904 = vmatpush1.bf16.msra.mxu0 %v3883
    %3905 = vmatprep.subr.bf16.mxu0 0
    %3906 = vmatpush1.bf16.msra.mxu0 %v3884
    %3907 = vmatprep.subr.bf16.mxu0 0
    %3908 = vmatpush1.bf16.msra.mxu0 %v3885
    %3909 = vmatprep.subr.bf16.mxu0 0
    %3910 = vmatpush1.bf16.msra.mxu0 %v3886
    %3911 = vmatprep.subr.bf16.mxu0 0
    %3912 = vmatpush1.bf16.msra.mxu0 0
    %3913 = vmatprep.subr.bf16.mxu0 0
    %3914 = vmatpush1.bf16.msra.mxu0 0
    %3915 = vmatprep.subr.bf16.mxu0 0
    %3916 = vmatpush1.bf16.msra.mxu0 0
    %3917 = vmatprep.subr.bf16.mxu0 0
    %3918 = vmatpush1.bf16.msra.mxu0 0
    %3919 = vmatprep.subr.bf16.mxu0 0
    %3920 = vmatpush1.bf16.msra.mxu0 0
    %3921 = vmatprep.subr.bf16.mxu0 0
    %3922 = vmatpush1.bf16.msra.mxu0 0
    %3923 = vmatprep.subr.bf16.mxu0 0
    %3924 = vmatpush1.bf16.msra.mxu0 0
    %3925 = vmatprep.subr.bf16.mxu0 0
    %3926 = vmatpush1.bf16.msra.mxu0 0
    %3927 = vmatprep.mubr.bf16.mxu0 0
    %3928 = vmatmul.mubr.bf16.gmra.mrb[0].mxu0 %v3843
    %v3929 = vpop.f32.mrb[0].mxu0
    %v3930 = vadd.f32 0.0, %v3929
    %v3931 = vpop.f32.mrb[0].mxu0
    %v3932 = vpop.f32.mrb[0].mxu0
    %v3933 = vadd.f32 0.0, %v3932
    %v3934 = vpop.f32.mrb[0].mxu0
    %3935 = vmatprep.mubr.bf16.mxu0 0
    %3936 = vmatmul.mubr.bf16.gmra.mrb[0].mxu0 %v3844
    %v3937 = vpop.f32.mrb[0].mxu0
    %v3938 = vadd.f32 0.0, %v3937
    %v3939 = vpop.f32.mrb[0].mxu0
    %v3940 = vpop.f32.mrb[0].mxu0
    %v3941 = vadd.f32 0.0, %v3940
    %v3942 = vpop.f32.mrb[0].mxu0
    %3943 = vdwg.mxu0
    %v3944 = vadd.f32 %v3788, %v3930
    %v3945 = vadd.f32 %v3791, %v3933
    %v3946 = vadd.f32 %v3796, %v3938
    %v3947 = vadd.f32 %v3799, %v3941
    %v3948 = vld [vmem:[#allocation2 + $0x8] sm:$0x3]
    %v3949 = vld [vmem:[#allocation2 + $0x14] sm:$0x3]
    %v3951 = vshrl.u32 %v3802, 16
    %v3953 = vrot.slane %v3951, 5
    %v3954 = vshll.u32 %v3802, 16
    %v3956 = vrot.slane %v3954, 6
    %v3957 = vor.u32 %v3953, %v3956
    %v3958 = vrot.slane %v3957, 4
    %v3959 = vrot.slane %v3537, 5
    %v3960 = vrot.slane %v3533, 6
    %v3961 = vor.u32 %v3959, %v3960
    %v3962 = vsel %vm1046, %v3958, %v3961
    %v3963 = vrot.slane %v3961, 4
    %v3965 = vshrl.u32 %v3948, 16
    %v3967 = vrot.slane %v3965, 5
    %v3968 = vshll.u32 %v3948, 16
    %v3970 = vrot.slane %v3968, 6
    %v3971 = vor.u32 %v3967, %v3970
    %v3972 = vsel %vm1046, %v3963, %v3971
    %v3974 = vshrl.u32 %v3803, 16
    %v3976 = vrot.slane %v3974, 5
    %v3977 = vshll.u32 %v3803, 16
    %v3979 = vrot.slane %v3977, 6
    %v3980 = vor.u32 %v3976, %v3979
    %v3981 = vrot.slane %v3980, 4
    %v3982 = vrot.slane %v3561, 5
    %v3983 = vrot.slane %v3557, 6
    %v3984 = vor.u32 %v3982, %v3983
    %v3985 = vsel %vm1046, %v3981, %v3984
    %v3986 = vrot.slane %v3984, 4
    %v3988 = vshrl.u32 %v3949, 16
    %v3990 = vrot.slane %v3988, 5
    %v3991 = vshll.u32 %v3949, 16
    %v3993 = vrot.slane %v3991, 6
    %v3994 = vor.u32 %v3990, %v3993
    %v3995 = vsel %vm1046, %v3986, %v3994
    %s3996 = scalar_lea.vmem [#allocation12], 192
    %v3997 = vld [vmem:[%s3996] sm:$0xf]
    %v3998 = vld [vmem:[%s3996 + $0x4] sm:$0xf]
    %v3999 = vld [vmem:[%s3996 + $0x8] sm:$0xf]
    %v4000 = vld [vmem:[%s3996 + $0xc] sm:$0xf]
    %v4001 = vld [vmem:[%s3996 + $0x10] sm:$0xf]
    %v4002 = vld [vmem:[%s3996 + $0x14] sm:$0xf]
    %v4003 = vld [vmem:[%s3996 + $0x18] sm:$0xf]
    %v4004 = vld [vmem:[%s3996 + $0x1c] sm:$0xf]
    %v4005 = vld [vmem:[%s3996 + $0x20] sm:$0xf]
    %v4006 = vld [vmem:[%s3996 + $0x24] sm:$0xf]
    %v4007 = vld [vmem:[%s3996 + $0x28] sm:$0xf]
    %v4008 = vld [vmem:[%s3996 + $0x2c] sm:$0xf]
    %v4009 = vld [vmem:[%s3996 + $0x30] sm:$0xf]
    %v4010 = vld [vmem:[%s3996 + $0x34] sm:$0xf]
    %v4011 = vld [vmem:[%s3996 + $0x38] sm:$0xf]
    %v4012 = vld [vmem:[%s3996 + $0x3c] sm:$0xf]
    %v4013 = vunpack.c.l.b16 %v3962
    %v4014 = vunpack.c.l.b16 %v3972
    %v4015 = vunpack.c.l.b16 %v3985
    %v4016 = vunpack.c.l.b16 %v3995
    %v4017 = vpack.c.b16 %v4014, %v4013
    %v4018 = vpack.c.b16 %v4016, %v4015
    %v4037 = vunpack.c.l.b16 %v3997
    %v4038 = vunpack.c.l.b16 %v3998
    %v4039 = vunpack.c.l.b16 %v3999
    %v4040 = vunpack.c.l.b16 %v4000
    %v4041 = vunpack.c.l.b16 %v4001
    %v4042 = vunpack.c.l.b16 %v4002
    %v4043 = vunpack.c.l.b16 %v4003
    %v4044 = vunpack.c.l.b16 %v4004
    %v4045 = vunpack.c.l.b16 %v4005
    %v4046 = vunpack.c.l.b16 %v4006
    %v4047 = vunpack.c.l.b16 %v4007
    %v4048 = vunpack.c.l.b16 %v4008
    %v4049 = vunpack.c.l.b16 %v4009
    %v4050 = vunpack.c.l.b16 %v4010
    %v4051 = vunpack.c.l.b16 %v4011
    %v4052 = vunpack.c.l.b16 %v4012
    %v4053 = vpack.c.b16 %v4038, %v4037
    %v4054 = vpack.c.b16 %v4040, %v4039
    %v4055 = vpack.c.b16 %v4042, %v4041
    %v4056 = vpack.c.b16 %v4044, %v4043
    %v4057 = vpack.c.b16 %v4046, %v4045
    %v4058 = vpack.c.b16 %v4048, %v4047
    %v4059 = vpack.c.b16 %v4050, %v4049
    %v4060 = vpack.c.b16 %v4052, %v4051
    %4069 = vmatprep.subr.bf16.mxu0 0
    %4070 = vmatpush1.bf16.msra.mxu0 %v4053
    %4071 = vmatprep.subr.bf16.mxu0 0
    %4072 = vmatpush1.bf16.msra.mxu0 %v4054
    %4073 = vmatprep.subr.bf16.mxu0 0
    %4074 = vmatpush1.bf16.msra.mxu0 %v4055
    %4075 = vmatprep.subr.bf16.mxu0 0
    %4076 = vmatpush1.bf16.msra.mxu0 %v4056
    %4077 = vmatprep.subr.bf16.mxu0 0
    %4078 = vmatpush1.bf16.msra.mxu0 %v4057
    %4079 = vmatprep.subr.bf16.mxu0 0
    %4080 = vmatpush1.bf16.msra.mxu0 %v4058
    %4081 = vmatprep.subr.bf16.mxu0 0
    %4082 = vmatpush1.bf16.msra.mxu0 %v4059
    %4083 = vmatprep.subr.bf16.mxu0 0
    %4084 = vmatpush1.bf16.msra.mxu0 %v4060
    %4085 = vmatprep.subr.bf16.mxu0 0
    %4086 = vmatpush1.bf16.msra.mxu0 0
    %4087 = vmatprep.subr.bf16.mxu0 0
    %4088 = vmatpush1.bf16.msra.mxu0 0
    %4089 = vmatprep.subr.bf16.mxu0 0
    %4090 = vmatpush1.bf16.msra.mxu0 0
    %4091 = vmatprep.subr.bf16.mxu0 0
    %4092 = vmatpush1.bf16.msra.mxu0 0
    %4093 = vmatprep.subr.bf16.mxu0 0
    %4094 = vmatpush1.bf16.msra.mxu0 0
    %4095 = vmatprep.subr.bf16.mxu0 0
    %4096 = vmatpush1.bf16.msra.mxu0 0
    %4097 = vmatprep.subr.bf16.mxu0 0
    %4098 = vmatpush1.bf16.msra.mxu0 0
    %4099 = vmatprep.subr.bf16.mxu0 0
    %4100 = vmatpush1.bf16.msra.mxu0 0
    %4101 = vmatprep.mubr.bf16.mxu0 0
    %4102 = vmatmul.mubr.bf16.gmra.mrb[0].mxu0 %v4017
    %v4103 = vpop.f32.mrb[0].mxu0
    %v4104 = vadd.f32 0.0, %v4103
    %v4105 = vpop.f32.mrb[0].mxu0
    %v4106 = vpop.f32.mrb[0].mxu0
    %v4107 = vadd.f32 0.0, %v4106
    %v4108 = vpop.f32.mrb[0].mxu0
    %4109 = vmatprep.mubr.bf16.mxu0 0
    %4110 = vmatmul.mubr.bf16.gmra.mrb[0].mxu0 %v4018
    %v4111 = vpop.f32.mrb[0].mxu0
    %v4112 = vadd.f32 0.0, %v4111
    %v4113 = vpop.f32.mrb[0].mxu0
    %v4114 = vpop.f32.mrb[0].mxu0
    %v4115 = vadd.f32 0.0, %v4114
    %v4116 = vpop.f32.mrb[0].mxu0
    %4117 = vdwg.mxu0
    %v4118 = vadd.f32 %v3944, %v4104
    %v4119 = vadd.f32 %v3945, %v4107
    %v4120 = vadd.f32 %v3946, %v4112
    %v4121 = vadd.f32 %v3947, %v4115
    %v4122 = vld [vmem:[#allocation2] sm:$0xc]
    %v4123 = vld [vmem:[#allocation2 + $0xc] sm:$0xc]
    %v4128 = vrot.slane %v4122, 6
    %v4129 = vrot.slane %v4128, 4
    %v4130 = vrot.slane %v3502, 6
    %v4131 = vsel %vm1226, %v4129, %v4130
    %v4132 = vrot.slane %v4130, 4
    %v4133 = vrot.slane %v3948, 6
    %v4134 = vsel %vm1226, %v4132, %v4133
    %v4135 = vrot.slane %v4123, 6
    %v4136 = vrot.slane %v4135, 4
    %v4137 = vrot.slane %v3504, 6
    %v4138 = vsel %vm1226, %v4136, %v4137
    %v4139 = vrot.slane %v4137, 4
    %v4140 = vrot.slane %v3949, 6
    %v4141 = vsel %vm1226, %v4139, %v4140
    %s4142 = scalar_lea.vmem [#allocation12], 256
    %v4143 = vld [vmem:[%s4142] sm:$0xf]
    %v4144 = vld [vmem:[%s4142 + $0x4] sm:$0xf]
    %v4145 = vld [vmem:[%s4142 + $0x8] sm:$0xf]
    %v4146 = vld [vmem:[%s4142 + $0xc] sm:$0xf]
    %v4147 = vld [vmem:[%s4142 + $0x10] sm:$0xf]
    %v4148 = vld [vmem:[%s4142 + $0x14] sm:$0xf]
    %v4149 = vld [vmem:[%s4142 + $0x18] sm:$0xf]
    %v4150 = vld [vmem:[%s4142 + $0x1c] sm:$0xf]
    %v4151 = vld [vmem:[%s4142 + $0x20] sm:$0xf]
    %v4152 = vld [vmem:[%s4142 + $0x24] sm:$0xf]
    %v4153 = vld [vmem:[%s4142 + $0x28] sm:$0xf]
    %v4154 = vld [vmem:[%s4142 + $0x2c] sm:$0xf]
    %v4155 = vld [vmem:[%s4142 + $0x30] sm:$0xf]
    %v4156 = vld [vmem:[%s4142 + $0x34] sm:$0xf]
    %v4157 = vld [vmem:[%s4142 + $0x38] sm:$0xf]
    %v4158 = vld [vmem:[%s4142 + $0x3c] sm:$0xf]
    %v4159 = vunpack.c.l.b16 %v4131
    %v4160 = vunpack.c.l.b16 %v4134
    %v4161 = vunpack.c.l.b16 %v4138
    %v4162 = vunpack.c.l.b16 %v4141
    %v4163 = vpack.c.b16 %v4160, %v4159
    %v4164 = vpack.c.b16 %v4162, %v4161
    %v4183 = vunpack.c.l.b16 %v4143
    %v4184 = vunpack.c.l.b16 %v4144
    %v4185 = vunpack.c.l.b16 %v4145
    %v4186 = vunpack.c.l.b16 %v4146
    %v4187 = vunpack.c.l.b16 %v4147
    %v4188 = vunpack.c.l.b16 %v4148
    %v4189 = vunpack.c.l.b16 %v4149
    %v4190 = vunpack.c.l.b16 %v4150
    %v4191 = vunpack.c.l.b16 %v4151
    %v4192 = vunpack.c.l.b16 %v4152
    %v4193 = vunpack.c.l.b16 %v4153
    %v4194 = vunpack.c.l.b16 %v4154
    %v4195 = vunpack.c.l.b16 %v4155
    %v4196 = vunpack.c.l.b16 %v4156
    %v4197 = vunpack.c.l.b16 %v4157
    %v4198 = vunpack.c.l.b16 %v4158
    %v4199 = vpack.c.b16 %v4184, %v4183
    %v4200 = vpack.c.b16 %v4186, %v4185
    %v4201 = vpack.c.b16 %v4188, %v4187
    %v4202 = vpack.c.b16 %v4190, %v4189
    %v4203 = vpack.c.b16 %v4192, %v4191
    %v4204 = vpack.c.b16 %v4194, %v4193
    %v4205 = vpack.c.b16 %v4196, %v4195
    %v4206 = vpack.c.b16 %v4198, %v4197
    %4215 = vmatprep.subr.bf16.mxu0 0
    %4216 = vmatpush1.bf16.msra.mxu0 %v4199
    %4217 = vmatprep.subr.bf16.mxu0 0
    %4218 = vmatpush1.bf16.msra.mxu0 %v4200
    %4219 = vmatprep.subr.bf16.mxu0 0
    %4220 = vmatpush1.bf16.msra.mxu0 %v4201
    %4221 = vmatprep.subr.bf16.mxu0 0
    %4222 = vmatpush1.bf16.msra.mxu0 %v4202
    %4223 = vmatprep.subr.bf16.mxu0 0
    %4224 = vmatpush1.bf16.msra.mxu0 %v4203
    %4225 = vmatprep.subr.bf16.mxu0 0
    %4226 = vmatpush1.bf16.msra.mxu0 %v4204
    %4227 = vmatprep.subr.bf16.mxu0 0
    %4228 = vmatpush1.bf16.msra.mxu0 %v4205
    %4229 = vmatprep.subr.bf16.mxu0 0
    %4230 = vmatpush1.bf16.msra.mxu0 %v4206
    %4231 = vmatprep.subr.bf16.mxu0 0
    %4232 = vmatpush1.bf16.msra.mxu0 0
    %4233 = vmatprep.subr.bf16.mxu0 0
    %4234 = vmatpush1.bf16.msra.mxu0 0
    %4235 = vmatprep.subr.bf16.mxu0 0
    %4236 = vmatpush1.bf16.msra.mxu0 0
    %4237 = vmatprep.subr.bf16.mxu0 0
    %4238 = vmatpush1.bf16.msra.mxu0 0
    %4239 = vmatprep.subr.bf16.mxu0 0
    %4240 = vmatpush1.bf16.msra.mxu0 0
    %4241 = vmatprep.subr.bf16.mxu0 0
    %4242 = vmatpush1.bf16.msra.mxu0 0
    %4243 = vmatprep.subr.bf16.mxu0 0
    %4244 = vmatpush1.bf16.msra.mxu0 0
    %4245 = vmatprep.subr.bf16.mxu0 0
    %4246 = vmatpush1.bf16.msra.mxu0 0
    %4247 = vmatprep.mubr.bf16.mxu0 0
    %4248 = vmatmul.mubr.bf16.gmra.mrb[0].mxu0 %v4163
    %v4249 = vpop.f32.mrb[0].mxu0
    %v4250 = vadd.f32 0.0, %v4249
    %v4251 = vpop.f32.mrb[0].mxu0
    %v4252 = vpop.f32.mrb[0].mxu0
    %v4253 = vadd.f32 0.0, %v4252
    %v4254 = vpop.f32.mrb[0].mxu0
    %4255 = vmatprep.mubr.bf16.mxu0 0
    %4256 = vmatmul.mubr.bf16.gmra.mrb[0].mxu0 %v4164
    %v4257 = vpop.f32.mrb[0].mxu0
    %v4258 = vadd.f32 0.0, %v4257
    %v4259 = vpop.f32.mrb[0].mxu0
    %v4260 = vpop.f32.mrb[0].mxu0
    %v4261 = vadd.f32 0.0, %v4260
    %v4262 = vpop.f32.mrb[0].mxu0
    %4263 = vdwg.mxu0
    %v4264 = vadd.f32 %v4118, %v4250
    %v4265 = vadd.f32 %v4119, %v4253
    %v4266 = vadd.f32 %v4120, %v4258
    %v4267 = vadd.f32 %v4121, %v4261
    %v4268 = vld [vmem:[#allocation2 + $0x8] sm:$0x7]
    %v4269 = vld [vmem:[#allocation2 + $0x14] sm:$0x7]
    %v4271 = vshrl.u32 %v4122, 16
    %v4273 = vrot.slane %v4271, 6
    %v4274 = vshll.u32 %v4122, 16
    %v4276 = vrot.slane %v4274, 7
    %v4277 = vor.u32 %v4273, %v4276
    %v4278 = vrot.slane %v4277, 4
    %v4279 = vrot.slane %v3537, 6
    %v4280 = vrot.slane %v3533, 7
    %v4281 = vor.u32 %v4279, %v4280
    %v4282 = vsel %vm526, %v4278, %v4281
    %v4283 = vrot.slane %v4281, 4
    %v4285 = vshrl.u32 %v4268, 16
    %v4287 = vrot.slane %v4285, 6
    %v4288 = vshll.u32 %v4268, 16
    %v4290 = vrot.slane %v4288, 7
    %v4291 = vor.u32 %v4287, %v4290
    %v4292 = vsel %vm526, %v4283, %v4291
    %v4294 = vshrl.u32 %v4123, 16
    %v4296 = vrot.slane %v4294, 6
    %v4297 = vshll.u32 %v4123, 16
    %v4299 = vrot.slane %v4297, 7
    %v4300 = vor.u32 %v4296, %v4299
    %v4301 = vrot.slane %v4300, 4
    %v4302 = vrot.slane %v3561, 6
    %v4303 = vrot.slane %v3557, 7
    %v4304 = vor.u32 %v4302, %v4303
    %v4305 = vsel %vm526, %v4301, %v4304
    %v4306 = vrot.slane %v4304, 4
    %v4308 = vshrl.u32 %v4269, 16
    %v4310 = vrot.slane %v4308, 6
    %v4311 = vshll.u32 %v4269, 16
    %v4313 = vrot.slane %v4311, 7
    %v4314 = vor.u32 %v4310, %v4313
    %v4315 = vsel %vm526, %v4306, %v4314
    %s4316 = scalar_lea.vmem [#allocation12], 320
    %v4317 = vld [vmem:[%s4316] sm:$0xf]
    %v4318 = vld [vmem:[%s4316 + $0x4] sm:$0xf]
    %v4319 = vld [vmem:[%s4316 + $0x8] sm:$0xf]
    %v4320 = vld [vmem:[%s4316 + $0xc] sm:$0xf]
    %v4321 = vld [vmem:[%s4316 + $0x10] sm:$0xf]
    %v4322 = vld [vmem:[%s4316 + $0x14] sm:$0xf]
    %v4323 = vld [vmem:[%s4316 + $0x18] sm:$0xf]
    %v4324 = vld [vmem:[%s4316 + $0x1c] sm:$0xf]
    %v4325 = vld [vmem:[%s4316 + $0x20] sm:$0xf]
    %v4326 = vld [vmem:[%s4316 + $0x24] sm:$0xf]
    %v4327 = vld [vmem:[%s4316 + $0x28] sm:$0xf]
    %v4328 = vld [vmem:[%s4316 + $0x2c] sm:$0xf]
    %v4329 = vld [vmem:[%s4316 + $0x30] sm:$0xf]
    %v4330 = vld [vmem:[%s4316 + $0x34] sm:$0xf]
    %v4331 = vld [vmem:[%s4316 + $0x38] sm:$0xf]
    %v4332 = vld [vmem:[%s4316 + $0x3c] sm:$0xf]
    %v4333 = vunpack.c.l.b16 %v4282
    %v4334 = vunpack.c.l.b16 %v4292
    %v4335 = vunpack.c.l.b16 %v4305
    %v4336 = vunpack.c.l.b16 %v4315
    %v4337 = vpack.c.b16 %v4334, %v4333
    %v4338 = vpack.c.b16 %v4336, %v4335
    %v4357 = vunpack.c.l.b16 %v4317
    %v4358 = vunpack.c.l.b16 %v4318
    %v4359 = vunpack.c.l.b16 %v4319
    %v4360 = vunpack.c.l.b16 %v4320
    %v4361 = vunpack.c.l.b16 %v4321
    %v4362 = vunpack.c.l.b16 %v4322
    %v4363 = vunpack.c.l.b16 %v4323
    %v4364 = vunpack.c.l.b16 %v4324
    %v4365 = vunpack.c.l.b16 %v4325
    %v4366 = vunpack.c.l.b16 %v4326
    %v4367 = vunpack.c.l.b16 %v4327
    %v4368 = vunpack.c.l.b16 %v4328
    %v4369 = vunpack.c.l.b16 %v4329
    %v4370 = vunpack.c.l.b16 %v4330
    %v4371 = vunpack.c.l.b16 %v4331
    %v4372 = vunpack.c.l.b16 %v4332
    %v4373 = vpack.c.b16 %v4358, %v4357
    %v4374 = vpack.c.b16 %v4360, %v4359
    %v4375 = vpack.c.b16 %v4362, %v4361
    %v4376 = vpack.c.b16 %v4364, %v4363
    %v4377 = vpack.c.b16 %v4366, %v4365
    %v4378 = vpack.c.b16 %v4368, %v4367
    %v4379 = vpack.c.b16 %v4370, %v4369
    %v4380 = vpack.c.b16 %v4372, %v4371
    %4389 = vmatprep.subr.bf16.mxu0 0
    %4390 = vmatpush1.bf16.msra.mxu0 %v4373
    %4391 = vmatprep.subr.bf16.mxu0 0
    %4392 = vmatpush1.bf16.msra.mxu0 %v4374
    %4393 = vmatprep.subr.bf16.mxu0 0
    %4394 = vmatpush1.bf16.msra.mxu0 %v4375
    %4395 = vmatprep.subr.bf16.mxu0 0
    %4396 = vmatpush1.bf16.msra.mxu0 %v4376
    %4397 = vmatprep.subr.bf16.mxu0 0
    %4398 = vmatpush1.bf16.msra.mxu0 %v4377
    %4399 = vmatprep.subr.bf16.mxu0 0
    %4400 = vmatpush1.bf16.msra.mxu0 %v4378
    %4401 = vmatprep.subr.bf16.mxu0 0
    %4402 = vmatpush1.bf16.msra.mxu0 %v4379
    %4403 = vmatprep.subr.bf16.mxu0 0
    %4404 = vmatpush1.bf16.msra.mxu0 %v4380
    %4405 = vmatprep.subr.bf16.mxu0 0
    %4406 = vmatpush1.bf16.msra.mxu0 0
    %4407 = vmatprep.subr.bf16.mxu0 0
    %4408 = vmatpush1.bf16.msra.mxu0 0
    %4409 = vmatprep.subr.bf16.mxu0 0
    %4410 = vmatpush1.bf16.msra.mxu0 0
    %4411 = vmatprep.subr.bf16.mxu0 0
    %4412 = vmatpush1.bf16.msra.mxu0 0
    %4413 = vmatprep.subr.bf16.mxu0 0
    %4414 = vmatpush1.bf16.msra.mxu0 0
    %4415 = vmatprep.subr.bf16.mxu0 0
    %4416 = vmatpush1.bf16.msra.mxu0 0
    %4417 = vmatprep.subr.bf16.mxu0 0
    %4418 = vmatpush1.bf16.msra.mxu0 0
    %4419 = vmatprep.subr.bf16.mxu0 0
    %4420 = vmatpush1.bf16.msra.mxu0 0
    %4421 = vmatprep.mubr.bf16.mxu0 0
    %4422 = vmatmul.mubr.bf16.gmra.mrb[0].mxu0 %v4337
    %v4423 = vpop.f32.mrb[0].mxu0
    %v4424 = vadd.f32 0.0, %v4423
    %v4425 = vpop.f32.mrb[0].mxu0
    %v4426 = vpop.f32.mrb[0].mxu0
    %v4427 = vadd.f32 0.0, %v4426
    %v4428 = vpop.f32.mrb[0].mxu0
    %4429 = vmatprep.mubr.bf16.mxu0 0
    %4430 = vmatmul.mubr.bf16.gmra.mrb[0].mxu0 %v4338
    %v4431 = vpop.f32.mrb[0].mxu0
    %v4432 = vadd.f32 0.0, %v4431
    %v4433 = vpop.f32.mrb[0].mxu0
    %v4434 = vpop.f32.mrb[0].mxu0
    %v4435 = vadd.f32 0.0, %v4434
    %v4436 = vpop.f32.mrb[0].mxu0
    %4437 = vdwg.mxu0
    %v4438 = vadd.f32 %v4264, %v4424
    %v4439 = vadd.f32 %v4265, %v4427
    %v4440 = vadd.f32 %v4266, %v4432
    %v4441 = vadd.f32 %v4267, %v4435
    %v4442 = vld [vmem:[#allocation2] sm:$0x8]
    %v4443 = vld [vmem:[#allocation2 + $0xc] sm:$0x8]
    %v4448 = vrot.slane %v4442, 7
    %v4449 = vrot.slane %v4448, 4
    %v4450 = vrot.slane %v3502, 7
    %v4451 = vsel %vm1549, %v4449, %v4450
    %v4452 = vrot.slane %v4450, 4
    %v4453 = vrot.slane %v4268, 7
    %v4454 = vsel %vm1549, %v4452, %v4453
    %v4455 = vrot.slane %v4443, 7
    %v4456 = vrot.slane %v4455, 4
    %v4457 = vrot.slane %v3504, 7
    %v4458 = vsel %vm1549, %v4456, %v4457
    %v4459 = vrot.slane %v4457, 4
    %v4460 = vrot.slane %v4269, 7
    %v4461 = vsel %vm1549, %v4459, %v4460
    %s4462 = scalar_lea.vmem [#allocation12], 384
    %v4463 = vld [vmem:[%s4462] sm:$0xf]
    %v4464 = vld [vmem:[%s4462 + $0x4] sm:$0xf]
    %v4465 = vld [vmem:[%s4462 + $0x8] sm:$0xf]
    %v4466 = vld [vmem:[%s4462 + $0xc] sm:$0xf]
    %v4467 = vld [vmem:[%s4462 + $0x10] sm:$0xf]
    %v4468 = vld [vmem:[%s4462 + $0x14] sm:$0xf]
    %v4469 = vld [vmem:[%s4462 + $0x18] sm:$0xf]
    %v4470 = vld [vmem:[%s4462 + $0x1c] sm:$0xf]
    %v4471 = vld [vmem:[%s4462 + $0x20] sm:$0xf]
    %v4472 = vld [vmem:[%s4462 + $0x24] sm:$0xf]
    %v4473 = vld [vmem:[%s4462 + $0x28] sm:$0xf]
    %v4474 = vld [vmem:[%s4462 + $0x2c] sm:$0xf]
    %v4475 = vld [vmem:[%s4462 + $0x30] sm:$0xf]
    %v4476 = vld [vmem:[%s4462 + $0x34] sm:$0xf]
    %v4477 = vld [vmem:[%s4462 + $0x38] sm:$0xf]
    %v4478 = vld [vmem:[%s4462 + $0x3c] sm:$0xf]
    %v4479 = vunpack.c.l.b16 %v4451
    %v4480 = vunpack.c.l.b16 %v4454
    %v4481 = vunpack.c.l.b16 %v4458
    %v4482 = vunpack.c.l.b16 %v4461
    %v4483 = vpack.c.b16 %v4480, %v4479
    %v4484 = vpack.c.b16 %v4482, %v4481
    %v4503 = vunpack.c.l.b16 %v4463
    %v4504 = vunpack.c.l.b16 %v4464
    %v4505 = vunpack.c.l.b16 %v4465
    %v4506 = vunpack.c.l.b16 %v4466
    %v4507 = vunpack.c.l.b16 %v4467
    %v4508 = vunpack.c.l.b16 %v4468
    %v4509 = vunpack.c.l.b16 %v4469
    %v4510 = vunpack.c.l.b16 %v4470
    %v4511 = vunpack.c.l.b16 %v4471
    %v4512 = vunpack.c.l.b16 %v4472
    %v4513 = vunpack.c.l.b16 %v4473
    %v4514 = vunpack.c.l.b16 %v4474
    %v4515 = vunpack.c.l.b16 %v4475
    %v4516 = vunpack.c.l.b16 %v4476
    %v4517 = vunpack.c.l.b16 %v4477
    %v4518 = vunpack.c.l.b16 %v4478
    %v4519 = vpack.c.b16 %v4504, %v4503
    %v4520 = vpack.c.b16 %v4506, %v4505
    %v4521 = vpack.c.b16 %v4508, %v4507
    %v4522 = vpack.c.b16 %v4510, %v4509
    %v4523 = vpack.c.b16 %v4512, %v4511
    %v4524 = vpack.c.b16 %v4514, %v4513
    %v4525 = vpack.c.b16 %v4516, %v4515
    %v4526 = vpack.c.b16 %v4518, %v4517
    %4535 = vmatprep.subr.bf16.mxu0 0
    %4536 = vmatpush1.bf16.msra.mxu0 %v4519
    %4537 = vmatprep.subr.bf16.mxu0 0
    %4538 = vmatpush1.bf16.msra.mxu0 %v4520
    %4539 = vmatprep.subr.bf16.mxu0 0
    %4540 = vmatpush1.bf16.msra.mxu0 %v4521
    %4541 = vmatprep.subr.bf16.mxu0 0
    %4542 = vmatpush1.bf16.msra.mxu0 %v4522
    %4543 = vmatprep.subr.bf16.mxu0 0
    %4544 = vmatpush1.bf16.msra.mxu0 %v4523
    %4545 = vmatprep.subr.bf16.mxu0 0
    %4546 = vmatpush1.bf16.msra.mxu0 %v4524
    %4547 = vmatprep.subr.bf16.mxu0 0
    %4548 = vmatpush1.bf16.msra.mxu0 %v4525
    %4549 = vmatprep.subr.bf16.mxu0 0
    %4550 = vmatpush1.bf16.msra.mxu0 %v4526
    %4551 = vmatprep.subr.bf16.mxu0 0
    %4552 = vmatpush1.bf16.msra.mxu0 0
    %4553 = vmatprep.subr.bf16.mxu0 0
    %4554 = vmatpush1.bf16.msra.mxu0 0
    %4555 = vmatprep.subr.bf16.mxu0 0
    %4556 = vmatpush1.bf16.msra.mxu0 0
    %4557 = vmatprep.subr.bf16.mxu0 0
    %4558 = vmatpush1.bf16.msra.mxu0 0
    %4559 = vmatprep.subr.bf16.mxu0 0
    %4560 = vmatpush1.bf16.msra.mxu0 0
    %4561 = vmatprep.subr.bf16.mxu0 0
    %4562 = vmatpush1.bf16.msra.mxu0 0
    %4563 = vmatprep.subr.bf16.mxu0 0
    %4564 = vmatpush1.bf16.msra.mxu0 0
    %4565 = vmatprep.subr.bf16.mxu0 0
    %4566 = vmatpush1.bf16.msra.mxu0 0
    %4567 = vmatprep.mubr.bf16.mxu0 0
    %4568 = vmatmul.mubr.bf16.gmra.mrb[0].mxu0 %v4483
    %v4569 = vpop.f32.mrb[0].mxu0
    %v4570 = vadd.f32 0.0, %v4569
    %v4571 = vpop.f32.mrb[0].mxu0
    %v4572 = vpop.f32.mrb[0].mxu0
    %v4573 = vadd.f32 0.0, %v4572
    %v4574 = vpop.f32.mrb[0].mxu0
    %4575 = vmatprep.mubr.bf16.mxu0 0
    %4576 = vmatmul.mubr.bf16.gmra.mrb[0].mxu0 %v4484
    %v4577 = vpop.f32.mrb[0].mxu0
    %v4578 = vadd.f32 0.0, %v4577
    %v4579 = vpop.f32.mrb[0].mxu0
    %v4580 = vpop.f32.mrb[0].mxu0
    %v4581 = vadd.f32 0.0, %v4580
    %v4582 = vpop.f32.mrb[0].mxu0
    %4583 = vdwg.mxu0
    %v4584 = vadd.f32 %v4438, %v4570
    %v4585 = vadd.f32 %v4439, %v4573
    %v4586 = vadd.f32 %v4440, %v4578
    %v4587 = vadd.f32 %v4441, %v4581
    %v4588 = vld [vmem:[#allocation2 + $0x8] sm:$0xf]
    %v4589 = vld [vmem:[#allocation2 + $0x14] sm:$0xf]
    %v4591 = vshrl.u32 %v4442, 16
    %v4593 = vrot.slane %v4591, 7
    %v4594 = vrot.slane %v4593, 4
    %v4595 = vrot.slane %v3537, 7
    %v4596 = vor.u32 %v4595, %v3533
    %v4597 = vsel %vm1694, %v4594, %v4596
    %v4598 = vrot.slane %v4595, 4
    %v4600 = vshrl.u32 %v4588, 16
    %v4602 = vrot.slane %v4600, 7
    %v4603 = vshll.u32 %v4588, 16
    %v4605 = vor.u32 %v4602, %v4603
    %v4606 = vsel %vm1694, %v4598, %v4605
    %v4608 = vshrl.u32 %v4443, 16
    %v4610 = vrot.slane %v4608, 7
    %v4611 = vrot.slane %v4610, 4
    %v4612 = vrot.slane %v3561, 7
    %v4613 = vor.u32 %v4612, %v3557
    %v4614 = vsel %vm1694, %v4611, %v4613
    %v4615 = vrot.slane %v4612, 4
    %v4617 = vshrl.u32 %v4589, 16
    %v4619 = vrot.slane %v4617, 7
    %v4620 = vshll.u32 %v4589, 16
    %v4622 = vor.u32 %v4619, %v4620
    %v4623 = vsel %vm1694, %v4615, %v4622
    %s4624 = scalar_lea.vmem [#allocation12], 448
    %v4625 = vld [vmem:[%s4624] sm:$0xf]
    %v4626 = vld [vmem:[%s4624 + $0x4] sm:$0xf]
    %v4627 = vld [vmem:[%s4624 + $0x8] sm:$0xf]
    %v4628 = vld [vmem:[%s4624 + $0xc] sm:$0xf]
    %v4629 = vld [vmem:[%s4624 + $0x10] sm:$0xf]
    %v4630 = vld [vmem:[%s4624 + $0x14] sm:$0xf]
    %v4631 = vld [vmem:[%s4624 + $0x18] sm:$0xf]
    %v4632 = vld [vmem:[%s4624 + $0x1c] sm:$0xf]
    %v4633 = vld [vmem:[%s4624 + $0x20] sm:$0xf]
    %v4634 = vld [vmem:[%s4624 + $0x24] sm:$0xf]
    %v4635 = vld [vmem:[%s4624 + $0x28] sm:$0xf]
    %v4636 = vld [vmem:[%s4624 + $0x2c] sm:$0xf]
    %v4637 = vld [vmem:[%s4624 + $0x30] sm:$0xf]
    %v4638 = vld [vmem:[%s4624 + $0x34] sm:$0xf]
    %v4639 = vld [vmem:[%s4624 + $0x38] sm:$0xf]
    %v4640 = vld [vmem:[%s4624 + $0x3c] sm:$0xf]
    %v4641 = vunpack.c.l.b16 %v4597
    %v4642 = vunpack.c.l.b16 %v4606
    %v4643 = vunpack.c.l.b16 %v4614
    %v4644 = vunpack.c.l.b16 %v4623
    %v4645 = vpack.c.b16 %v4642, %v4641
    %v4646 = vpack.c.b16 %v4644, %v4643
    %v4665 = vunpack.c.l.b16 %v4625
    %v4666 = vunpack.c.l.b16 %v4626
    %v4667 = vunpack.c.l.b16 %v4627
    %v4668 = vunpack.c.l.b16 %v4628
    %v4669 = vunpack.c.l.b16 %v4629
    %v4670 = vunpack.c.l.b16 %v4630
    %v4671 = vunpack.c.l.b16 %v4631
    %v4672 = vunpack.c.l.b16 %v4632
    %v4673 = vunpack.c.l.b16 %v4633
    %v4674 = vunpack.c.l.b16 %v4634
    %v4675 = vunpack.c.l.b16 %v4635
    %v4676 = vunpack.c.l.b16 %v4636
    %v4677 = vunpack.c.l.b16 %v4637
    %v4678 = vunpack.c.l.b16 %v4638
    %v4679 = vunpack.c.l.b16 %v4639
    %v4680 = vunpack.c.l.b16 %v4640
    %v4681 = vpack.c.b16 %v4666, %v4665
    %v4682 = vpack.c.b16 %v4668, %v4667
    %v4683 = vpack.c.b16 %v4670, %v4669
    %v4684 = vpack.c.b16 %v4672, %v4671
    %v4685 = vpack.c.b16 %v4674, %v4673
    %v4686 = vpack.c.b16 %v4676, %v4675
    %v4687 = vpack.c.b16 %v4678, %v4677
    %v4688 = vpack.c.b16 %v4680, %v4679
    %4697 = vmatprep.subr.bf16.mxu0 0
    %4698 = vmatpush1.bf16.msra.mxu0 %v4681
    %4699 = vmatprep.subr.bf16.mxu0 0
    %4700 = vmatpush1.bf16.msra.mxu0 %v4682
    %4701 = vmatprep.subr.bf16.mxu0 0
    %4702 = vmatpush1.bf16.msra.mxu0 %v4683
    %4703 = vmatprep.subr.bf16.mxu0 0
    %4704 = vmatpush1.bf16.msra.mxu0 %v4684
    %4705 = vmatprep.subr.bf16.mxu0 0
    %4706 = vmatpush1.bf16.msra.mxu0 %v4685
    %4707 = vmatprep.subr.bf16.mxu0 0
    %4708 = vmatpush1.bf16.msra.mxu0 %v4686
    %4709 = vmatprep.subr.bf16.mxu0 0
    %4710 = vmatpush1.bf16.msra.mxu0 %v4687
    %4711 = vmatprep.subr.bf16.mxu0 0
    %4712 = vmatpush1.bf16.msra.mxu0 %v4688
    %4713 = vmatprep.subr.bf16.mxu0 0
    %4714 = vmatpush1.bf16.msra.mxu0 0
    %4715 = vmatprep.subr.bf16.mxu0 0
    %4716 = vmatpush1.bf16.msra.mxu0 0
    %4717 = vmatprep.subr.bf16.mxu0 0
    %4718 = vmatpush1.bf16.msra.mxu0 0
    %4719 = vmatprep.subr.bf16.mxu0 0
    %4720 = vmatpush1.bf16.msra.mxu0 0
    %4721 = vmatprep.subr.bf16.mxu0 0
    %4722 = vmatpush1.bf16.msra.mxu0 0
    %4723 = vmatprep.subr.bf16.mxu0 0
    %4724 = vmatpush1.bf16.msra.mxu0 0
    %4725 = vmatprep.subr.bf16.mxu0 0
    %4726 = vmatpush1.bf16.msra.mxu0 0
    %4727 = vmatprep.subr.bf16.mxu0 0
    %4728 = vmatpush1.bf16.msra.mxu0 0
    %4729 = vmatprep.mubr.bf16.mxu0 0
    %4730 = vmatmul.mubr.bf16.gmra.mrb[0].mxu0 %v4645
    %v4731 = vpop.f32.mrb[0].mxu0
    %v4732 = vadd.f32 0.0, %v4731
    %v4733 = vpop.f32.mrb[0].mxu0
    %v4734 = vpop.f32.mrb[0].mxu0
    %v4735 = vadd.f32 0.0, %v4734
    %v4736 = vpop.f32.mrb[0].mxu0
    %4737 = vmatprep.mubr.bf16.mxu0 0
    %4738 = vmatmul.mubr.bf16.gmra.mrb[0].mxu0 %v4646
    %v4739 = vpop.f32.mrb[0].mxu0
    %v4740 = vadd.f32 0.0, %v4739
    %v4741 = vpop.f32.mrb[0].mxu0
    %v4742 = vpop.f32.mrb[0].mxu0
    %v4743 = vadd.f32 0.0, %v4742
    %v4744 = vpop.f32.mrb[0].mxu0
    %4745 = vdwg.mxu0
    %v4746 = vadd.f32 %v4584, %v4732
    %v4747 = vadd.f32 %v4585, %v4735
    %v4748 = vadd.f32 %v4586, %v4740
    %v4749 = vadd.f32 %v4587, %v4743
    %v4750 = vld [vmem:[#allocation14] sm:$0x1]
    %v4752 = vlaneseq
    %v4753 = vshrl.u32 %v4752, 7
    %v4754 = vsub.s32 0, %v4753
    %v4755 = vrot.slane %v4750, %v4754
    %v4757 = vmul.f32 %v4746, %v4755
    %v4758 = vmul.f32 %v4747, %v4755
    %v4759 = vmul.f32 %v4748, %v4755
    %v4760 = vmul.f32 %v4749, %v4755
    %v4761 = vld [vmem:[#allocation15] sm:$0x1]
    %v4763 = vlaneseq
    %v4764 = vshrl.u32 %v4763, 7
    %v4765 = vsub.s32 0, %v4764
    %v4766 = vrot.slane %v4761, %v4765
    %v4768 = vadd.f32 %v4757, %v4766
    %v4769 = vadd.f32 %v4758, %v4766
    %v4770 = vadd.f32 %v4759, %v4766
    %v4771 = vadd.f32 %v4760, %v4766
    %v4772 = vmax.f32 %v4768, 0.0
    %v4773 = vmax.f32 %v4769, 0.0
    %v4774 = vmax.f32 %v4770, 0.0
    %v4775 = vmax.f32 %v4771, 0.0
    %v4776 = vpack.c.bf16 %v4773, %v4772
    %v4777 = vpack.c.bf16 %v4775, %v4774
    %4778 = vst [vmem:[#allocation2] sm:$0xf] 0
    %4779 = vst [vmem:[#allocation2 + $0x4] sm:$0xf] 0
    %v4780 = vld [vmem:[#allocation2 + $0x8] sm:$0xf]
    %v4781 = vsel %vm515, 0, %v4780
    %4782 = vst [vmem:[#allocation2 + $0x8] sm:$0xf] %v4781
    %4783 = vst [vmem:[#allocation2 + $0xc] sm:$0xf] 0
    %4784 = vst [vmem:[#allocation2 + $0x10] sm:$0xf] 0
    %v4785 = vld [vmem:[#allocation2 + $0x14] sm:$0xf]
    %v4786 = vsel %vm515, 0, %v4785
    %4787 = vst [vmem:[#allocation2 + $0x14] sm:$0xf] %v4786
    %v4790 = vunpack.c.l.b16 %v4776
    %v4791 = vunpack.c.h.b16 %v4776
    %v4792 = vunpack.c.l.b16 %v4777
    %v4793 = vunpack.c.h.b16 %v4777
    %v4794 = vpack.c.b16 %v4790, %v4790
    %v4795 = vpack.c.b16 %v4791, %v4791
    %v4796 = vpack.c.b16 %v4792, %v4792
    %v4797 = vpack.c.b16 %v4793, %v4793
    %v4798 = vrot.slane %v4794, 7
    %v4799 = vrot.slane %v4798, 4
    %v4800 = vrot.slane %v4795, 7
    %v4801 = vsel %vm1549, %v4799, %v4800
    %v4802 = vrot.slane %v4800, 4
    %v4803 = vrot.slane %v4796, 7
    %v4804 = vrot.slane %v4803, 4
    %v4805 = vrot.slane %v4797, 7
    %v4806 = vsel %vm1549, %v4804, %v4805
    %v4807 = vrot.slane %v4805, 4
    %4814 = vst [vmem:[#allocation2] sm:$0xe] %v4798
    %4815 = vst [vmem:[#allocation2 + $0x4] sm:$0xf] %v4801
    %4816 = vst [vmem:[#allocation2 + $0x8] sm:$0x1] %v4802
    %4817 = vst [vmem:[#allocation2 + $0xc] sm:$0xe] %v4803
    %4818 = vst [vmem:[#allocation2 + $0x10] sm:$0xf] %v4806
    %4819 = vst [vmem:[#allocation2 + $0x14] sm:$0x1] %v4807
    %v4820 = vld [vmem:[#allocation2] sm:$0xf]
    %v4821 = vld [vmem:[#allocation2 + $0x4] sm:$0xf]
    %v4822 = vld [vmem:[#allocation2 + $0xc] sm:$0xf]
    %v4823 = vld [vmem:[#allocation2 + $0x10] sm:$0xf]
    %v4824 = vld [vmem:[#allocation17] sm:$0xf]
    %v4825 = vld [vmem:[#allocation17 + $0x4] sm:$0xf]
    %v4826 = vld [vmem:[#allocation17 + $0x8] sm:$0xf]
    %v4827 = vld [vmem:[#allocation17 + $0xc] sm:$0xf]
    %v4828 = vld [vmem:[#allocation17 + $0x10] sm:$0xf]
    %v4829 = vld [vmem:[#allocation17 + $0x14] sm:$0xf]
    %v4830 = vld [vmem:[#allocation17 + $0x18] sm:$0xf]
    %v4831 = vld [vmem:[#allocation17 + $0x1c] sm:$0xf]
    %v4832 = vld [vmem:[#allocation17 + $0x20] sm:$0xf]
    %v4833 = vld [vmem:[#allocation17 + $0x24] sm:$0xf]
    %v4834 = vld [vmem:[#allocation17 + $0x28] sm:$0xf]
    %v4835 = vld [vmem:[#allocation17 + $0x2c] sm:$0xf]
    %v4836 = vld [vmem:[#allocation17 + $0x30] sm:$0xf]
    %v4837 = vld [vmem:[#allocation17 + $0x34] sm:$0xf]
    %v4838 = vld [vmem:[#allocation17 + $0x38] sm:$0xf]
    %v4839 = vld [vmem:[#allocation17 + $0x3c] sm:$0xf]
    %v4840 = vld [vmem:[#allocation2 + $0x8] sm:$0x1]
    %v4841 = vld [vmem:[#allocation2 + $0x14] sm:$0x1]
    %v4843 = vshrl.u32 %v4820, 16
    %v4845 = vrot.slane %v4843, 4
    %v4846 = vshll.u32 %v4820, 16
    %v4848 = vrot.slane %v4846, 5
    %v4849 = vor.u32 %v4845, %v4848
    %v4850 = vrot.slane %v4849, 4
    %v4852 = vshll.u32 %v4821, 16
    %v4854 = vrot.slane %v4852, 5
    %v4855 = vsel %vm613, %v4850, %v4854
    %v4856 = vshrl.u32 %v4821, 16
    %v4858 = vrot.slane %v4856, 4
    %v4859 = vor.u32 %v4858, %v4854
    %v4860 = vrot.slane %v4859, 4
    %v4862 = vshll.u32 %v4840, 16
    %v4864 = vrot.slane %v4862, 5
    %v4865 = vsel %vm613, %v4860, %v4864
    %v4867 = vshrl.u32 %v4822, 16
    %v4869 = vrot.slane %v4867, 4
    %v4870 = vshll.u32 %v4822, 16
    %v4872 = vrot.slane %v4870, 5
    %v4873 = vor.u32 %v4869, %v4872
    %v4874 = vrot.slane %v4873, 4
    %v4876 = vshll.u32 %v4823, 16
    %v4878 = vrot.slane %v4876, 5
    %v4879 = vsel %vm613, %v4874, %v4878
    %v4880 = vshrl.u32 %v4823, 16
    %v4882 = vrot.slane %v4880, 4
    %v4883 = vor.u32 %v4882, %v4878
    %v4884 = vrot.slane %v4883, 4
    %v4886 = vshll.u32 %v4841, 16
    %v4888 = vrot.slane %v4886, 5
    %v4889 = vsel %vm613, %v4884, %v4888
    %s4890 = scalar_lea.vmem [#allocation17], 64
    %v4891 = vld [vmem:[%s4890] sm:$0xf]
    %v4892 = vld [vmem:[%s4890 + $0x4] sm:$0xf]
    %v4893 = vld [vmem:[%s4890 + $0x8] sm:$0xf]
    %v4894 = vld [vmem:[%s4890 + $0xc] sm:$0xf]
    %v4895 = vld [vmem:[%s4890 + $0x10] sm:$0xf]
    %v4896 = vld [vmem:[%s4890 + $0x14] sm:$0xf]
    %v4897 = vld [vmem:[%s4890 + $0x18] sm:$0xf]
    %v4898 = vld [vmem:[%s4890 + $0x1c] sm:$0xf]
    %v4899 = vld [vmem:[%s4890 + $0x20] sm:$0xf]
    %v4900 = vld [vmem:[%s4890 + $0x24] sm:$0xf]
    %v4901 = vld [vmem:[%s4890 + $0x28] sm:$0xf]
    %v4902 = vld [vmem:[%s4890 + $0x2c] sm:$0xf]
    %v4903 = vld [vmem:[%s4890 + $0x30] sm:$0xf]
    %v4904 = vld [vmem:[%s4890 + $0x34] sm:$0xf]
    %v4905 = vld [vmem:[%s4890 + $0x38] sm:$0xf]
    %v4906 = vld [vmem:[%s4890 + $0x3c] sm:$0xf]
    %v4907 = vunpack.c.l.b16 %v4855
    %v4908 = vunpack.c.l.b16 %v4865
    %v4909 = vunpack.c.l.b16 %v4879
    %v4910 = vunpack.c.l.b16 %v4889
    %v4911 = vpack.c.b16 %v4908, %v4907
    %v4912 = vpack.c.b16 %v4910, %v4909
    %v4931 = vunpack.c.l.b16 %v4891
    %v4932 = vunpack.c.l.b16 %v4892
    %v4933 = vunpack.c.l.b16 %v4893
    %v4934 = vunpack.c.l.b16 %v4894
    %v4935 = vunpack.c.l.b16 %v4895
    %v4936 = vunpack.c.l.b16 %v4896
    %v4937 = vunpack.c.l.b16 %v4897
    %v4938 = vunpack.c.l.b16 %v4898
    %v4939 = vunpack.c.l.b16 %v4899
    %v4940 = vunpack.c.l.b16 %v4900
    %v4941 = vunpack.c.l.b16 %v4901
    %v4942 = vunpack.c.l.b16 %v4902
    %v4943 = vunpack.c.l.b16 %v4903
    %v4944 = vunpack.c.l.b16 %v4904
    %v4945 = vunpack.c.l.b16 %v4905
    %v4946 = vunpack.c.l.b16 %v4906
    %v4947 = vpack.c.b16 %v4932, %v4931
    %v4948 = vpack.c.b16 %v4934, %v4933
    %v4949 = vpack.c.b16 %v4936, %v4935
    %v4950 = vpack.c.b16 %v4938, %v4937
    %v4951 = vpack.c.b16 %v4940, %v4939
    %v4952 = vpack.c.b16 %v4942, %v4941
    %v4953 = vpack.c.b16 %v4944, %v4943
    %v4954 = vpack.c.b16 %v4946, %v4945
    %4963 = vmatprep.subr.bf16.mxu0 0
    %4964 = vmatpush1.bf16.msra.mxu0 %v4947
    %4965 = vmatprep.subr.bf16.mxu0 0
    %4966 = vmatpush1.bf16.msra.mxu0 %v4948
    %4967 = vmatprep.subr.bf16.mxu0 0
    %4968 = vmatpush1.bf16.msra.mxu0 %v4949
    %4969 = vmatprep.subr.bf16.mxu0 0
    %4970 = vmatpush1.bf16.msra.mxu0 %v4950
    %4971 = vmatprep.subr.bf16.mxu0 0
    %4972 = vmatpush1.bf16.msra.mxu0 %v4951
    %4973 = vmatprep.subr.bf16.mxu0 0
    %4974 = vmatpush1.bf16.msra.mxu0 %v4952
    %4975 = vmatprep.subr.bf16.mxu0 0
    %4976 = vmatpush1.bf16.msra.mxu0 %v4953
    %4977 = vmatprep.subr.bf16.mxu0 0
    %4978 = vmatpush1.bf16.msra.mxu0 %v4954
    %4979 = vmatprep.subr.bf16.mxu0 0
    %4980 = vmatpush1.bf16.msra.mxu0 0
    %4981 = vmatprep.subr.bf16.mxu0 0
    %4982 = vmatpush1.bf16.msra.mxu0 0
    %4983 = vmatprep.subr.bf16.mxu0 0
    %4984 = vmatpush1.bf16.msra.mxu0 0
    %4985 = vmatprep.subr.bf16.mxu0 0
    %4986 = vmatpush1.bf16.msra.mxu0 0
    %4987 = vmatprep.subr.bf16.mxu0 0
    %4988 = vmatpush1.bf16.msra.mxu0 0
    %4989 = vmatprep.subr.bf16.mxu0 0
    %4990 = vmatpush1.bf16.msra.mxu0 0
    %4991 = vmatprep.subr.bf16.mxu0 0
    %4992 = vmatpush1.bf16.msra.mxu0 0
    %4993 = vmatprep.subr.bf16.mxu0 0
    %4994 = vmatpush1.bf16.msra.mxu0 0
    %4995 = vmatprep.mubr.bf16.mxu0 0
    %4996 = vmatmul.mubr.bf16.gmra.mrb[0].mxu0 %v4911
    %v4997 = vpop.f32.mrb[0].mxu0
    %v4998 = vadd.f32 0.0, %v4997
    %v4999 = vpop.f32.mrb[0].mxu0
    %v5000 = vpop.f32.mrb[0].mxu0
    %v5001 = vadd.f32 0.0, %v5000
    %v5002 = vpop.f32.mrb[0].mxu0
    %5003 = vmatprep.mubr.bf16.mxu0 0
    %5004 = vmatmul.mubr.bf16.gmra.mrb[0].mxu0 %v4912
    %v5005 = vpop.f32.mrb[0].mxu0
    %v5006 = vadd.f32 0.0, %v5005
    %v5007 = vpop.f32.mrb[0].mxu0
    %v5008 = vpop.f32.mrb[0].mxu0
    %v5009 = vadd.f32 0.0, %v5008
    %v5010 = vpop.f32.mrb[0].mxu0
    %5011 = vdwg.mxu0
    %v5016 = vunpack.c.l.b16 %v4820
    %v5017 = vunpack.c.l.b16 %v4821
    %v5018 = vunpack.c.l.b16 %v4822
    %v5019 = vunpack.c.l.b16 %v4823
    %v5020 = vpack.c.b16 %v5017, %v5016
    %v5021 = vpack.c.b16 %v5019, %v5018
    %v5040 = vunpack.c.l.b16 %v4824
    %v5041 = vunpack.c.l.b16 %v4825
    %v5042 = vunpack.c.l.b16 %v4826
    %v5043 = vunpack.c.l.b16 %v4827
    %v5044 = vunpack.c.l.b16 %v4828
    %v5045 = vunpack.c.l.b16 %v4829
    %v5046 = vunpack.c.l.b16 %v4830
    %v5047 = vunpack.c.l.b16 %v4831
    %v5048 = vunpack.c.l.b16 %v4832
    %v5049 = vunpack.c.l.b16 %v4833
    %v5050 = vunpack.c.l.b16 %v4834
    %v5051 = vunpack.c.l.b16 %v4835
    %v5052 = vunpack.c.l.b16 %v4836
    %v5053 = vunpack.c.l.b16 %v4837
    %v5054 = vunpack.c.l.b16 %v4838
    %v5055 = vunpack.c.l.b16 %v4839
    %v5056 = vpack.c.b16 %v5041, %v5040
    %v5057 = vpack.c.b16 %v5043, %v5042
    %v5058 = vpack.c.b16 %v5045, %v5044
    %v5059 = vpack.c.b16 %v5047, %v5046
    %v5060 = vpack.c.b16 %v5049, %v5048
    %v5061 = vpack.c.b16 %v5051, %v5050
    %v5062 = vpack.c.b16 %v5053, %v5052
    %v5063 = vpack.c.b16 %v5055, %v5054
    %5072 = vmatprep.subr.bf16.mxu0 0
    %5073 = vmatpush1.bf16.msra.mxu0 %v5056
    %5074 = vmatprep.subr.bf16.mxu0 0
    %5075 = vmatpush1.bf16.msra.mxu0 %v5057
    %5076 = vmatprep.subr.bf16.mxu0 0
    %5077 = vmatpush1.bf16.msra.mxu0 %v5058
    %5078 = vmatprep.subr.bf16.mxu0 0
    %5079 = vmatpush1.bf16.msra.mxu0 %v5059
    %5080 = vmatprep.subr.bf16.mxu0 0
    %5081 = vmatpush1.bf16.msra.mxu0 %v5060
    %5082 = vmatprep.subr.bf16.mxu0 0
    %5083 = vmatpush1.bf16.msra.mxu0 %v5061
    %5084 = vmatprep.subr.bf16.mxu0 0
    %5085 = vmatpush1.bf16.msra.mxu0 %v5062
    %5086 = vmatprep.subr.bf16.mxu0 0
    %5087 = vmatpush1.bf16.msra.mxu0 %v5063
    %5088 = vmatprep.subr.bf16.mxu0 0
    %5089 = vmatpush1.bf16.msra.mxu0 0
    %5090 = vmatprep.subr.bf16.mxu0 0
    %5091 = vmatpush1.bf16.msra.mxu0 0
    %5092 = vmatprep.subr.bf16.mxu0 0
    %5093 = vmatpush1.bf16.msra.mxu0 0
    %5094 = vmatprep.subr.bf16.mxu0 0
    %5095 = vmatpush1.bf16.msra.mxu0 0
    %5096 = vmatprep.subr.bf16.mxu0 0
    %5097 = vmatpush1.bf16.msra.mxu0 0
    %5098 = vmatprep.subr.bf16.mxu0 0
    %5099 = vmatpush1.bf16.msra.mxu0 0
    %5100 = vmatprep.subr.bf16.mxu0 0
    %5101 = vmatpush1.bf16.msra.mxu0 0
    %5102 = vmatprep.subr.bf16.mxu0 0
    %5103 = vmatpush1.bf16.msra.mxu0 0
    %5104 = vmatprep.mubr.bf16.mxu0 0
    %5105 = vmatmul.mubr.bf16.gmra.mrb[0].mxu0 %v5020
    %v5106 = vpop.f32.mrb[0].mxu0
    %v5107 = vadd.f32 %v4998, %v5106
    %v5108 = vpop.f32.mrb[0].mxu0
    %v5109 = vpop.f32.mrb[0].mxu0
    %v5110 = vadd.f32 %v5001, %v5109
    %v5111 = vpop.f32.mrb[0].mxu0
    %5112 = vmatprep.mubr.bf16.mxu0 0
    %5113 = vmatmul.mubr.bf16.gmra.mrb[0].mxu0 %v5021
    %v5114 = vpop.f32.mrb[0].mxu0
    %v5115 = vadd.f32 %v5006, %v5114
    %v5116 = vpop.f32.mrb[0].mxu0
    %v5117 = vpop.f32.mrb[0].mxu0
    %v5118 = vadd.f32 %v5009, %v5117
    %v5119 = vpop.f32.mrb[0].mxu0
    %5120 = vdwg.mxu0
    %v5121 = vld [vmem:[#allocation2] sm:$0xe]
    %v5122 = vld [vmem:[#allocation2 + $0xc] sm:$0xe]
    %v5127 = vrot.slane %v5121, 5
    %v5128 = vrot.slane %v5127, 4
    %v5129 = vrot.slane %v4821, 5
    %v5130 = vsel %vm901, %v5128, %v5129
    %v5131 = vrot.slane %v5129, 4
    %v5132 = vrot.slane %v4840, 5
    %v5133 = vsel %vm901, %v5131, %v5132
    %v5134 = vrot.slane %v5122, 5
    %v5135 = vrot.slane %v5134, 4
    %v5136 = vrot.slane %v4823, 5
    %v5137 = vsel %vm901, %v5135, %v5136
    %v5138 = vrot.slane %v5136, 4
    %v5139 = vrot.slane %v4841, 5
    %v5140 = vsel %vm901, %v5138, %v5139
    %s5141 = scalar_lea.vmem [#allocation17], 128
    %v5142 = vld [vmem:[%s5141] sm:$0xf]
    %v5143 = vld [vmem:[%s5141 + $0x4] sm:$0xf]
    %v5144 = vld [vmem:[%s5141 + $0x8] sm:$0xf]
    %v5145 = vld [vmem:[%s5141 + $0xc] sm:$0xf]
    %v5146 = vld [vmem:[%s5141 + $0x10] sm:$0xf]
    %v5147 = vld [vmem:[%s5141 + $0x14] sm:$0xf]
    %v5148 = vld [vmem:[%s5141 + $0x18] sm:$0xf]
    %v5149 = vld [vmem:[%s5141 + $0x1c] sm:$0xf]
    %v5150 = vld [vmem:[%s5141 + $0x20] sm:$0xf]
    %v5151 = vld [vmem:[%s5141 + $0x24] sm:$0xf]
    %v5152 = vld [vmem:[%s5141 + $0x28] sm:$0xf]
    %v5153 = vld [vmem:[%s5141 + $0x2c] sm:$0xf]
    %v5154 = vld [vmem:[%s5141 + $0x30] sm:$0xf]
    %v5155 = vld [vmem:[%s5141 + $0x34] sm:$0xf]
    %v5156 = vld [vmem:[%s5141 + $0x38] sm:$0xf]
    %v5157 = vld [vmem:[%s5141 + $0x3c] sm:$0xf]
    %v5158 = vunpack.c.l.b16 %v5130
    %v5159 = vunpack.c.l.b16 %v5133
    %v5160 = vunpack.c.l.b16 %v5137
    %v5161 = vunpack.c.l.b16 %v5140
    %v5162 = vpack.c.b16 %v5159, %v5158
    %v5163 = vpack.c.b16 %v5161, %v5160
    %v5182 = vunpack.c.l.b16 %v5142
    %v5183 = vunpack.c.l.b16 %v5143
    %v5184 = vunpack.c.l.b16 %v5144
    %v5185 = vunpack.c.l.b16 %v5145
    %v5186 = vunpack.c.l.b16 %v5146
    %v5187 = vunpack.c.l.b16 %v5147
    %v5188 = vunpack.c.l.b16 %v5148
    %v5189 = vunpack.c.l.b16 %v5149
    %v5190 = vunpack.c.l.b16 %v5150
    %v5191 = vunpack.c.l.b16 %v5151
    %v5192 = vunpack.c.l.b16 %v5152
    %v5193 = vunpack.c.l.b16 %v5153
    %v5194 = vunpack.c.l.b16 %v5154
    %v5195 = vunpack.c.l.b16 %v5155
    %v5196 = vunpack.c.l.b16 %v5156
    %v5197 = vunpack.c.l.b16 %v5157
    %v5198 = vpack.c.b16 %v5183, %v5182
    %v5199 = vpack.c.b16 %v5185, %v5184
    %v5200 = vpack.c.b16 %v5187, %v5186
    %v5201 = vpack.c.b16 %v5189, %v5188
    %v5202 = vpack.c.b16 %v5191, %v5190
    %v5203 = vpack.c.b16 %v5193, %v5192
    %v5204 = vpack.c.b16 %v5195, %v5194
    %v5205 = vpack.c.b16 %v5197, %v5196
    %5214 = vmatprep.subr.bf16.mxu0 0
    %5215 = vmatpush1.bf16.msra.mxu0 %v5198
    %5216 = vmatprep.subr.bf16.mxu0 0
    %5217 = vmatpush1.bf16.msra.mxu0 %v5199
    %5218 = vmatprep.subr.bf16.mxu0 0
    %5219 = vmatpush1.bf16.msra.mxu0 %v5200
    %5220 = vmatprep.subr.bf16.mxu0 0
    %5221 = vmatpush1.bf16.msra.mxu0 %v5201
    %5222 = vmatprep.subr.bf16.mxu0 0
    %5223 = vmatpush1.bf16.msra.mxu0 %v5202
    %5224 = vmatprep.subr.bf16.mxu0 0
    %5225 = vmatpush1.bf16.msra.mxu0 %v5203
    %5226 = vmatprep.subr.bf16.mxu0 0
    %5227 = vmatpush1.bf16.msra.mxu0 %v5204
    %5228 = vmatprep.subr.bf16.mxu0 0
    %5229 = vmatpush1.bf16.msra.mxu0 %v5205
    %5230 = vmatprep.subr.bf16.mxu0 0
    %5231 = vmatpush1.bf16.msra.mxu0 0
    %5232 = vmatprep.subr.bf16.mxu0 0
    %5233 = vmatpush1.bf16.msra.mxu0 0
    %5234 = vmatprep.subr.bf16.mxu0 0
    %5235 = vmatpush1.bf16.msra.mxu0 0
    %5236 = vmatprep.subr.bf16.mxu0 0
    %5237 = vmatpush1.bf16.msra.mxu0 0
    %5238 = vmatprep.subr.bf16.mxu0 0
    %5239 = vmatpush1.bf16.msra.mxu0 0
    %5240 = vmatprep.subr.bf16.mxu0 0
    %5241 = vmatpush1.bf16.msra.mxu0 0
    %5242 = vmatprep.subr.bf16.mxu0 0
    %5243 = vmatpush1.bf16.msra.mxu0 0
    %5244 = vmatprep.subr.bf16.mxu0 0
    %5245 = vmatpush1.bf16.msra.mxu0 0
    %5246 = vmatprep.mubr.bf16.mxu0 0
    %5247 = vmatmul.mubr.bf16.gmra.mrb[0].mxu0 %v5162
    %v5248 = vpop.f32.mrb[0].mxu0
    %v5249 = vadd.f32 0.0, %v5248
    %v5250 = vpop.f32.mrb[0].mxu0
    %v5251 = vpop.f32.mrb[0].mxu0
    %v5252 = vadd.f32 0.0, %v5251
    %v5253 = vpop.f32.mrb[0].mxu0
    %5254 = vmatprep.mubr.bf16.mxu0 0
    %5255 = vmatmul.mubr.bf16.gmra.mrb[0].mxu0 %v5163
    %v5256 = vpop.f32.mrb[0].mxu0
    %v5257 = vadd.f32 0.0, %v5256
    %v5258 = vpop.f32.mrb[0].mxu0
    %v5259 = vpop.f32.mrb[0].mxu0
    %v5260 = vadd.f32 0.0, %v5259
    %v5261 = vpop.f32.mrb[0].mxu0
    %5262 = vdwg.mxu0
    %v5263 = vadd.f32 %v5107, %v5249
    %v5264 = vadd.f32 %v5110, %v5252
    %v5265 = vadd.f32 %v5115, %v5257
    %v5266 = vadd.f32 %v5118, %v5260
    %v5267 = vld [vmem:[#allocation2 + $0x8] sm:$0x3]
    %v5268 = vld [vmem:[#allocation2 + $0x14] sm:$0x3]
    %v5270 = vshrl.u32 %v5121, 16
    %v5272 = vrot.slane %v5270, 5
    %v5273 = vshll.u32 %v5121, 16
    %v5275 = vrot.slane %v5273, 6
    %v5276 = vor.u32 %v5272, %v5275
    %v5277 = vrot.slane %v5276, 4
    %v5278 = vrot.slane %v4856, 5
    %v5279 = vrot.slane %v4852, 6
    %v5280 = vor.u32 %v5278, %v5279
    %v5281 = vsel %vm1046, %v5277, %v5280
    %v5282 = vrot.slane %v5280, 4
    %v5284 = vshrl.u32 %v5267, 16
    %v5286 = vrot.slane %v5284, 5
    %v5287 = vshll.u32 %v5267, 16
    %v5289 = vrot.slane %v5287, 6
    %v5290 = vor.u32 %v5286, %v5289
    %v5291 = vsel %vm1046, %v5282, %v5290
    %v5293 = vshrl.u32 %v5122, 16
    %v5295 = vrot.slane %v5293, 5
    %v5296 = vshll.u32 %v5122, 16
    %v5298 = vrot.slane %v5296, 6
    %v5299 = vor.u32 %v5295, %v5298
    %v5300 = vrot.slane %v5299, 4
    %v5301 = vrot.slane %v4880, 5
    %v5302 = vrot.slane %v4876, 6
    %v5303 = vor.u32 %v5301, %v5302
    %v5304 = vsel %vm1046, %v5300, %v5303
    %v5305 = vrot.slane %v5303, 4
    %v5307 = vshrl.u32 %v5268, 16
    %v5309 = vrot.slane %v5307, 5
    %v5310 = vshll.u32 %v5268, 16
    %v5312 = vrot.slane %v5310, 6
    %v5313 = vor.u32 %v5309, %v5312
    %v5314 = vsel %vm1046, %v5305, %v5313
    %s5315 = scalar_lea.vmem [#allocation17], 192
    %v5316 = vld [vmem:[%s5315] sm:$0xf]
    %v5317 = vld [vmem:[%s5315 + $0x4] sm:$0xf]
    %v5318 = vld [vmem:[%s5315 + $0x8] sm:$0xf]
    %v5319 = vld [vmem:[%s5315 + $0xc] sm:$0xf]
    %v5320 = vld [vmem:[%s5315 + $0x10] sm:$0xf]
    %v5321 = vld [vmem:[%s5315 + $0x14] sm:$0xf]
    %v5322 = vld [vmem:[%s5315 + $0x18] sm:$0xf]
    %v5323 = vld [vmem:[%s5315 + $0x1c] sm:$0xf]
    %v5324 = vld [vmem:[%s5315 + $0x20] sm:$0xf]
    %v5325 = vld [vmem:[%s5315 + $0x24] sm:$0xf]
    %v5326 = vld [vmem:[%s5315 + $0x28] sm:$0xf]
    %v5327 = vld [vmem:[%s5315 + $0x2c] sm:$0xf]
    %v5328 = vld [vmem:[%s5315 + $0x30] sm:$0xf]
    %v5329 = vld [vmem:[%s5315 + $0x34] sm:$0xf]
    %v5330 = vld [vmem:[%s5315 + $0x38] sm:$0xf]
    %v5331 = vld [vmem:[%s5315 + $0x3c] sm:$0xf]
    %v5332 = vunpack.c.l.b16 %v5281
    %v5333 = vunpack.c.l.b16 %v5291
    %v5334 = vunpack.c.l.b16 %v5304
    %v5335 = vunpack.c.l.b16 %v5314
    %v5336 = vpack.c.b16 %v5333, %v5332
    %v5337 = vpack.c.b16 %v5335, %v5334
    %v5356 = vunpack.c.l.b16 %v5316
    %v5357 = vunpack.c.l.b16 %v5317
    %v5358 = vunpack.c.l.b16 %v5318
    %v5359 = vunpack.c.l.b16 %v5319
    %v5360 = vunpack.c.l.b16 %v5320
    %v5361 = vunpack.c.l.b16 %v5321
    %v5362 = vunpack.c.l.b16 %v5322
    %v5363 = vunpack.c.l.b16 %v5323
    %v5364 = vunpack.c.l.b16 %v5324
    %v5365 = vunpack.c.l.b16 %v5325
    %v5366 = vunpack.c.l.b16 %v5326
    %v5367 = vunpack.c.l.b16 %v5327
    %v5368 = vunpack.c.l.b16 %v5328
    %v5369 = vunpack.c.l.b16 %v5329
    %v5370 = vunpack.c.l.b16 %v5330
    %v5371 = vunpack.c.l.b16 %v5331
    %v5372 = vpack.c.b16 %v5357, %v5356
    %v5373 = vpack.c.b16 %v5359, %v5358
    %v5374 = vpack.c.b16 %v5361, %v5360
    %v5375 = vpack.c.b16 %v5363, %v5362
    %v5376 = vpack.c.b16 %v5365, %v5364
    %v5377 = vpack.c.b16 %v5367, %v5366
    %v5378 = vpack.c.b16 %v5369, %v5368
    %v5379 = vpack.c.b16 %v5371, %v5370
    %5388 = vmatprep.subr.bf16.mxu0 0
    %5389 = vmatpush1.bf16.msra.mxu0 %v5372
    %5390 = vmatprep.subr.bf16.mxu0 0
    %5391 = vmatpush1.bf16.msra.mxu0 %v5373
    %5392 = vmatprep.subr.bf16.mxu0 0
    %5393 = vmatpush1.bf16.msra.mxu0 %v5374
    %5394 = vmatprep.subr.bf16.mxu0 0
    %5395 = vmatpush1.bf16.msra.mxu0 %v5375
    %5396 = vmatprep.subr.bf16.mxu0 0
    %5397 = vmatpush1.bf16.msra.mxu0 %v5376
    %5398 = vmatprep.subr.bf16.mxu0 0
    %5399 = vmatpush1.bf16.msra.mxu0 %v5377
    %5400 = vmatprep.subr.bf16.mxu0 0
    %5401 = vmatpush1.bf16.msra.mxu0 %v5378
    %5402 = vmatprep.subr.bf16.mxu0 0
    %5403 = vmatpush1.bf16.msra.mxu0 %v5379
    %5404 = vmatprep.subr.bf16.mxu0 0
    %5405 = vmatpush1.bf16.msra.mxu0 0
    %5406 = vmatprep.subr.bf16.mxu0 0
    %5407 = vmatpush1.bf16.msra.mxu0 0
    %5408 = vmatprep.subr.bf16.mxu0 0
    %5409 = vmatpush1.bf16.msra.mxu0 0
    %5410 = vmatprep.subr.bf16.mxu0 0
    %5411 = vmatpush1.bf16.msra.mxu0 0
    %5412 = vmatprep.subr.bf16.mxu0 0
    %5413 = vmatpush1.bf16.msra.mxu0 0
    %5414 = vmatprep.subr.bf16.mxu0 0
    %5415 = vmatpush1.bf16.msra.mxu0 0
    %5416 = vmatprep.subr.bf16.mxu0 0
    %5417 = vmatpush1.bf16.msra.mxu0 0
    %5418 = vmatprep.subr.bf16.mxu0 0
    %5419 = vmatpush1.bf16.msra.mxu0 0
    %5420 = vmatprep.mubr.bf16.mxu0 0
    %5421 = vmatmul.mubr.bf16.gmra.mrb[0].mxu0 %v5336
    %v5422 = vpop.f32.mrb[0].mxu0
    %v5423 = vadd.f32 0.0, %v5422
    %v5424 = vpop.f32.mrb[0].mxu0
    %v5425 = vpop.f32.mrb[0].mxu0
    %v5426 = vadd.f32 0.0, %v5425
    %v5427 = vpop.f32.mrb[0].mxu0
    %5428 = vmatprep.mubr.bf16.mxu0 0
    %5429 = vmatmul.mubr.bf16.gmra.mrb[0].mxu0 %v5337
    %v5430 = vpop.f32.mrb[0].mxu0
    %v5431 = vadd.f32 0.0, %v5430
    %v5432 = vpop.f32.mrb[0].mxu0
    %v5433 = vpop.f32.mrb[0].mxu0
    %v5434 = vadd.f32 0.0, %v5433
    %v5435 = vpop.f32.mrb[0].mxu0
    %5436 = vdwg.mxu0
    %v5437 = vadd.f32 %v5263, %v5423
    %v5438 = vadd.f32 %v5264, %v5426
    %v5439 = vadd.f32 %v5265, %v5431
    %v5440 = vadd.f32 %v5266, %v5434
    %v5441 = vld [vmem:[#allocation2] sm:$0xc]
    %v5442 = vld [vmem:[#allocation2 + $0xc] sm:$0xc]
    %v5447 = vrot.slane %v5441, 6
    %v5448 = vrot.slane %v5447, 4
    %v5449 = vrot.slane %v4821, 6
    %v5450 = vsel %vm1226, %v5448, %v5449
    %v5451 = vrot.slane %v5449, 4
    %v5452 = vrot.slane %v5267, 6
    %v5453 = vsel %vm1226, %v5451, %v5452
    %v5454 = vrot.slane %v5442, 6
    %v5455 = vrot.slane %v5454, 4
    %v5456 = vrot.slane %v4823, 6
    %v5457 = vsel %vm1226, %v5455, %v5456
    %v5458 = vrot.slane %v5456, 4
    %v5459 = vrot.slane %v5268, 6
    %v5460 = vsel %vm1226, %v5458, %v5459
    %s5461 = scalar_lea.vmem [#allocation17], 256
    %v5462 = vld [vmem:[%s5461] sm:$0xf]
    %v5463 = vld [vmem:[%s5461 + $0x4] sm:$0xf]
    %v5464 = vld [vmem:[%s5461 + $0x8] sm:$0xf]
    %v5465 = vld [vmem:[%s5461 + $0xc] sm:$0xf]
    %v5466 = vld [vmem:[%s5461 + $0x10] sm:$0xf]
    %v5467 = vld [vmem:[%s5461 + $0x14] sm:$0xf]
    %v5468 = vld [vmem:[%s5461 + $0x18] sm:$0xf]
    %v5469 = vld [vmem:[%s5461 + $0x1c] sm:$0xf]
    %v5470 = vld [vmem:[%s5461 + $0x20] sm:$0xf]
    %v5471 = vld [vmem:[%s5461 + $0x24] sm:$0xf]
    %v5472 = vld [vmem:[%s5461 + $0x28] sm:$0xf]
    %v5473 = vld [vmem:[%s5461 + $0x2c] sm:$0xf]
    %v5474 = vld [vmem:[%s5461 + $0x30] sm:$0xf]
    %v5475 = vld [vmem:[%s5461 + $0x34] sm:$0xf]
    %v5476 = vld [vmem:[%s5461 + $0x38] sm:$0xf]
    %v5477 = vld [vmem:[%s5461 + $0x3c] sm:$0xf]
    %v5478 = vunpack.c.l.b16 %v5450
    %v5479 = vunpack.c.l.b16 %v5453
    %v5480 = vunpack.c.l.b16 %v5457
    %v5481 = vunpack.c.l.b16 %v5460
    %v5482 = vpack.c.b16 %v5479, %v5478
    %v5483 = vpack.c.b16 %v5481, %v5480
    %v5502 = vunpack.c.l.b16 %v5462
    %v5503 = vunpack.c.l.b16 %v5463
    %v5504 = vunpack.c.l.b16 %v5464
    %v5505 = vunpack.c.l.b16 %v5465
    %v5506 = vunpack.c.l.b16 %v5466
    %v5507 = vunpack.c.l.b16 %v5467
    %v5508 = vunpack.c.l.b16 %v5468
    %v5509 = vunpack.c.l.b16 %v5469
    %v5510 = vunpack.c.l.b16 %v5470
    %v5511 = vunpack.c.l.b16 %v5471
    %v5512 = vunpack.c.l.b16 %v5472
    %v5513 = vunpack.c.l.b16 %v5473
    %v5514 = vunpack.c.l.b16 %v5474
    %v5515 = vunpack.c.l.b16 %v5475
    %v5516 = vunpack.c.l.b16 %v5476
    %v5517 = vunpack.c.l.b16 %v5477
    %v5518 = vpack.c.b16 %v5503, %v5502
    %v5519 = vpack.c.b16 %v5505, %v5504
    %v5520 = vpack.c.b16 %v5507, %v5506
    %v5521 = vpack.c.b16 %v5509, %v5508
    %v5522 = vpack.c.b16 %v5511, %v5510
    %v5523 = vpack.c.b16 %v5513, %v5512
    %v5524 = vpack.c.b16 %v5515, %v5514
    %v5525 = vpack.c.b16 %v5517, %v5516
    %5534 = vmatprep.subr.bf16.mxu0 0
    %5535 = vmatpush1.bf16.msra.mxu0 %v5518
    %5536 = vmatprep.subr.bf16.mxu0 0
    %5537 = vmatpush1.bf16.msra.mxu0 %v5519
    %5538 = vmatprep.subr.bf16.mxu0 0
    %5539 = vmatpush1.bf16.msra.mxu0 %v5520
    %5540 = vmatprep.subr.bf16.mxu0 0
    %5541 = vmatpush1.bf16.msra.mxu0 %v5521
    %5542 = vmatprep.subr.bf16.mxu0 0
    %5543 = vmatpush1.bf16.msra.mxu0 %v5522
    %5544 = vmatprep.subr.bf16.mxu0 0
    %5545 = vmatpush1.bf16.msra.mxu0 %v5523
    %5546 = vmatprep.subr.bf16.mxu0 0
    %5547 = vmatpush1.bf16.msra.mxu0 %v5524
    %5548 = vmatprep.subr.bf16.mxu0 0
    %5549 = vmatpush1.bf16.msra.mxu0 %v5525
    %5550 = vmatprep.subr.bf16.mxu0 0
    %5551 = vmatpush1.bf16.msra.mxu0 0
    %5552 = vmatprep.subr.bf16.mxu0 0
    %5553 = vmatpush1.bf16.msra.mxu0 0
    %5554 = vmatprep.subr.bf16.mxu0 0
    %5555 = vmatpush1.bf16.msra.mxu0 0
    %5556 = vmatprep.subr.bf16.mxu0 0
    %5557 = vmatpush1.bf16.msra.mxu0 0
    %5558 = vmatprep.subr.bf16.mxu0 0
    %5559 = vmatpush1.bf16.msra.mxu0 0
    %5560 = vmatprep.subr.bf16.mxu0 0
    %5561 = vmatpush1.bf16.msra.mxu0 0
    %5562 = vmatprep.subr.bf16.mxu0 0
    %5563 = vmatpush1.bf16.msra.mxu0 0
    %5564 = vmatprep.subr.bf16.mxu0 0
    %5565 = vmatpush1.bf16.msra.mxu0 0
    %5566 = vmatprep.mubr.bf16.mxu0 0
    %5567 = vmatmul.mubr.bf16.gmra.mrb[0].mxu0 %v5482
    %v5568 = vpop.f32.mrb[0].mxu0
    %v5569 = vadd.f32 0.0, %v5568
    %v5570 = vpop.f32.mrb[0].mxu0
    %v5571 = vpop.f32.mrb[0].mxu0
    %v5572 = vadd.f32 0.0, %v5571
    %v5573 = vpop.f32.mrb[0].mxu0
    %5574 = vmatprep.mubr.bf16.mxu0 0
    %5575 = vmatmul.mubr.bf16.gmra.mrb[0].mxu0 %v5483
    %v5576 = vpop.f32.mrb[0].mxu0
    %v5577 = vadd.f32 0.0, %v5576
    %v5578 = vpop.f32.mrb[0].mxu0
    %v5579 = vpop.f32.mrb[0].mxu0
    %v5580 = vadd.f32 0.0, %v5579
    %v5581 = vpop.f32.mrb[0].mxu0
    %5582 = vdwg.mxu0
    %v5583 = vadd.f32 %v5437, %v5569
    %v5584 = vadd.f32 %v5438, %v5572
    %v5585 = vadd.f32 %v5439, %v5577
    %v5586 = vadd.f32 %v5440, %v5580
    %v5587 = vld [vmem:[#allocation18] sm:$0x1]
    %v5589 = vlaneseq
    %v5590 = vshrl.u32 %v5589, 7
    %v5591 = vsub.s32 0, %v5590
    %v5592 = vrot.slane %v5587, %v5591
    %v5594 = vmul.f32 %v5583, %v5592
    %v5595 = vmul.f32 %v5584, %v5592
    %v5596 = vmul.f32 %v5585, %v5592
    %v5597 = vmul.f32 %v5586, %v5592
    %v5598 = vld [vmem:[#allocation20] sm:$0x1]
    %v5600 = vlaneseq
    %v5601 = vshrl.u32 %v5600, 7
    %v5602 = vsub.s32 0, %v5601
    %v5603 = vrot.slane %v5598, %v5602
    %v5605 = vadd.f32 %v5594, %v5603
    %v5606 = vadd.f32 %v5595, %v5603
    %v5607 = vadd.f32 %v5596, %v5603
    %v5608 = vadd.f32 %v5597, %v5603
    %v5609 = vmax.f32 %v5605, 0.0
    %v5610 = vmax.f32 %v5606, 0.0
    %v5611 = vmax.f32 %v5607, 0.0
    %v5612 = vmax.f32 %v5608, 0.0
    %v5613 = vpack.c.bf16 %v5610, %v5609
    %v5614 = vpack.c.bf16 %v5612, %v5611
    %5615 = vst [vmem:[#allocation2] sm:$0xf] 0
    %5616 = vst [vmem:[#allocation2 + $0x4] sm:$0xf] 0
    %v5617 = vld [vmem:[#allocation2 + $0x8] sm:$0xf]
    %v5618 = vsel %vm515, 0, %v5617
    %5619 = vst [vmem:[#allocation2 + $0x8] sm:$0xf] %v5618
    %5620 = vst [vmem:[#allocation2 + $0xc] sm:$0xf] 0
    %5621 = vst [vmem:[#allocation2 + $0x10] sm:$0xf] 0
    %v5622 = vld [vmem:[#allocation2 + $0x14] sm:$0xf]
    %v5623 = vsel %vm515, 0, %v5622
    %5624 = vst [vmem:[#allocation2 + $0x14] sm:$0xf] %v5623
    %v5627 = vunpack.c.l.b16 %v5613
    %v5628 = vunpack.c.h.b16 %v5613
    %v5629 = vunpack.c.l.b16 %v5614
    %v5630 = vunpack.c.h.b16 %v5614
    %v5631 = vpack.c.b16 %v5627, %v5627
    %v5632 = vpack.c.b16 %v5628, %v5628
    %v5633 = vpack.c.b16 %v5629, %v5629
    %v5634 = vpack.c.b16 %v5630, %v5630
    %v5636 = vshrl.u32 %v5631, 16
    %v5638 = vrot.slane %v5636, 7
    %v5639 = vshll.u32 %v5631, 16
    %v5641 = vor.u32 %v5638, %v5639
    %v5642 = vrot.slane %v5638, 4
    %v5644 = vshrl.u32 %v5632, 16
    %v5646 = vrot.slane %v5644, 7
    %v5647 = vshll.u32 %v5632, 16
    %v5649 = vor.u32 %v5646, %v5647
    %v5650 = vsel %vm1694, %v5642, %v5649
    %v5651 = vrot.slane %v5646, 4
    %v5653 = vshrl.u32 %v5633, 16
    %v5655 = vrot.slane %v5653, 7
    %v5656 = vshll.u32 %v5633, 16
    %v5658 = vor.u32 %v5655, %v5656
    %v5659 = vrot.slane %v5655, 4
    %v5661 = vshrl.u32 %v5634, 16
    %v5663 = vrot.slane %v5661, 7
    %v5664 = vshll.u32 %v5634, 16
    %v5666 = vor.u32 %v5663, %v5664
    %v5667 = vsel %vm1694, %v5659, %v5666
    %v5668 = vrot.slane %v5663, 4
    %v5675 = vld [vmem:[#allocation2] sm:$0xf]
    %v5676 = vsel %vm2781, %v5641, %v5675
    %5677 = vst [vmem:[#allocation2] sm:$0xf] %v5676
    %5678 = vst [vmem:[#allocation2 + $0x4] sm:$0xf] %v5650
    %v5679 = vld [vmem:[#allocation2 + $0x8] sm:$0x1]
    %v5680 = vsel %vm2786, %v5651, %v5679
    %5681 = vst [vmem:[#allocation2 + $0x8] sm:$0x1] %v5680
    %v5682 = vld [vmem:[#allocation2 + $0xc] sm:$0xf]
    %v5683 = vsel %vm2781, %v5658, %v5682
    %5684 = vst [vmem:[#allocation2 + $0xc] sm:$0xf] %v5683
    %5685 = vst [vmem:[#allocation2 + $0x10] sm:$0xf] %v5667
    %v5686 = vld [vmem:[#allocation2 + $0x14] sm:$0x1]
    %v5687 = vsel %vm2786, %v5668, %v5686
    %5688 = vst [vmem:[#allocation2 + $0x14] sm:$0x1] %v5687
    %v5689 = vld [vmem:[#allocation2] sm:$0xf]
    %v5690 = vld [vmem:[#allocation2 + $0x4] sm:$0xf]
    %v5691 = vld [vmem:[#allocation2 + $0xc] sm:$0xf]
    %v5692 = vld [vmem:[#allocation2 + $0x10] sm:$0xf]
    %v5693 = vld [vmem:[#allocation21] sm:$0xf]
    %v5694 = vld [vmem:[#allocation21 + $0x4] sm:$0xf]
    %v5695 = vld [vmem:[#allocation21 + $0x8] sm:$0xf]
    %v5696 = vld [vmem:[#allocation21 + $0xc] sm:$0xf]
    %v5697 = vld [vmem:[#allocation21 + $0x10] sm:$0xf]
    %v5698 = vld [vmem:[#allocation21 + $0x14] sm:$0xf]
    %v5699 = vld [vmem:[#allocation21 + $0x18] sm:$0xf]
    %v5700 = vld [vmem:[#allocation21 + $0x1c] sm:$0xf]
    %v5701 = vld [vmem:[#allocation21 + $0x20] sm:$0xf]
    %v5702 = vld [vmem:[#allocation21 + $0x24] sm:$0xf]
    %v5703 = vld [vmem:[#allocation21 + $0x28] sm:$0xf]
    %v5704 = vld [vmem:[#allocation21 + $0x2c] sm:$0xf]
    %v5705 = vld [vmem:[#allocation21 + $0x30] sm:$0xf]
    %v5706 = vld [vmem:[#allocation21 + $0x34] sm:$0xf]
    %v5707 = vld [vmem:[#allocation21 + $0x38] sm:$0xf]
    %v5708 = vld [vmem:[#allocation21 + $0x3c] sm:$0xf]
    %v5709 = vld [vmem:[#allocation2 + $0x8] sm:$0x1]
    %v5710 = vld [vmem:[#allocation2 + $0x14] sm:$0x1]
    %v5712 = vshrl.u32 %v5689, 16
    %v5714 = vrot.slane %v5712, 4
    %v5715 = vshll.u32 %v5689, 16
    %v5717 = vrot.slane %v5715, 5
    %v5718 = vor.u32 %v5714, %v5717
    %v5719 = vrot.slane %v5718, 4
    %v5721 = vshll.u32 %v5690, 16
    %v5723 = vrot.slane %v5721, 5
    %v5724 = vsel %vm613, %v5719, %v5723
    %v5725 = vshrl.u32 %v5690, 16
    %v5727 = vrot.slane %v5725, 4
    %v5728 = vor.u32 %v5727, %v5723
    %v5729 = vrot.slane %v5728, 4
    %v5731 = vshll.u32 %v5709, 16
    %v5733 = vrot.slane %v5731, 5
    %v5734 = vsel %vm613, %v5729, %v5733
    %v5736 = vshrl.u32 %v5691, 16
    %v5738 = vrot.slane %v5736, 4
    %v5739 = vshll.u32 %v5691, 16
    %v5741 = vrot.slane %v5739, 5
    %v5742 = vor.u32 %v5738, %v5741
    %v5743 = vrot.slane %v5742, 4
    %v5745 = vshll.u32 %v5692, 16
    %v5747 = vrot.slane %v5745, 5
    %v5748 = vsel %vm613, %v5743, %v5747
    %v5749 = vshrl.u32 %v5692, 16
    %v5751 = vrot.slane %v5749, 4
    %v5752 = vor.u32 %v5751, %v5747
    %v5753 = vrot.slane %v5752, 4
    %v5755 = vshll.u32 %v5710, 16
    %v5757 = vrot.slane %v5755, 5
    %v5758 = vsel %vm613, %v5753, %v5757
    %s5759 = scalar_lea.vmem [#allocation21], 64
    %v5760 = vld [vmem:[%s5759] sm:$0xf]
    %v5761 = vld [vmem:[%s5759 + $0x4] sm:$0xf]
    %v5762 = vld [vmem:[%s5759 + $0x8] sm:$0xf]
    %v5763 = vld [vmem:[%s5759 + $0xc] sm:$0xf]
    %v5764 = vld [vmem:[%s5759 + $0x10] sm:$0xf]
    %v5765 = vld [vmem:[%s5759 + $0x14] sm:$0xf]
    %v5766 = vld [vmem:[%s5759 + $0x18] sm:$0xf]
    %v5767 = vld [vmem:[%s5759 + $0x1c] sm:$0xf]
    %v5768 = vld [vmem:[%s5759 + $0x20] sm:$0xf]
    %v5769 = vld [vmem:[%s5759 + $0x24] sm:$0xf]
    %v5770 = vld [vmem:[%s5759 + $0x28] sm:$0xf]
    %v5771 = vld [vmem:[%s5759 + $0x2c] sm:$0xf]
    %v5772 = vld [vmem:[%s5759 + $0x30] sm:$0xf]
    %v5773 = vld [vmem:[%s5759 + $0x34] sm:$0xf]
    %v5774 = vld [vmem:[%s5759 + $0x38] sm:$0xf]
    %v5775 = vld [vmem:[%s5759 + $0x3c] sm:$0xf]
    %v5776 = vunpack.c.l.b16 %v5724
    %v5777 = vunpack.c.l.b16 %v5734
    %v5778 = vunpack.c.l.b16 %v5748
    %v5779 = vunpack.c.l.b16 %v5758
    %v5780 = vpack.c.b16 %v5777, %v5776
    %v5781 = vpack.c.b16 %v5779, %v5778
    %v5800 = vunpack.c.l.b16 %v5760
    %v5801 = vunpack.c.l.b16 %v5761
    %v5802 = vunpack.c.l.b16 %v5762
    %v5803 = vunpack.c.l.b16 %v5763
    %v5804 = vunpack.c.l.b16 %v5764
    %v5805 = vunpack.c.l.b16 %v5765
    %v5806 = vunpack.c.l.b16 %v5766
    %v5807 = vunpack.c.l.b16 %v5767
    %v5808 = vunpack.c.l.b16 %v5768
    %v5809 = vunpack.c.l.b16 %v5769
    %v5810 = vunpack.c.l.b16 %v5770
    %v5811 = vunpack.c.l.b16 %v5771
    %v5812 = vunpack.c.l.b16 %v5772
    %v5813 = vunpack.c.l.b16 %v5773
    %v5814 = vunpack.c.l.b16 %v5774
    %v5815 = vunpack.c.l.b16 %v5775
    %v5816 = vpack.c.b16 %v5801, %v5800
    %v5817 = vpack.c.b16 %v5803, %v5802
    %v5818 = vpack.c.b16 %v5805, %v5804
    %v5819 = vpack.c.b16 %v5807, %v5806
    %v5820 = vpack.c.b16 %v5809, %v5808
    %v5821 = vpack.c.b16 %v5811, %v5810
    %v5822 = vpack.c.b16 %v5813, %v5812
    %v5823 = vpack.c.b16 %v5815, %v5814
    %5832 = vmatprep.subr.bf16.mxu0 0
    %5833 = vmatpush1.bf16.msra.mxu0 %v5816
    %5834 = vmatprep.subr.bf16.mxu0 0
    %5835 = vmatpush1.bf16.msra.mxu0 %v5817
    %5836 = vmatprep.subr.bf16.mxu0 0
    %5837 = vmatpush1.bf16.msra.mxu0 %v5818
    %5838 = vmatprep.subr.bf16.mxu0 0
    %5839 = vmatpush1.bf16.msra.mxu0 %v5819
    %5840 = vmatprep.subr.bf16.mxu0 0
    %5841 = vmatpush1.bf16.msra.mxu0 %v5820
    %5842 = vmatprep.subr.bf16.mxu0 0
    %5843 = vmatpush1.bf16.msra.mxu0 %v5821
    %5844 = vmatprep.subr.bf16.mxu0 0
    %5845 = vmatpush1.bf16.msra.mxu0 %v5822
    %5846 = vmatprep.subr.bf16.mxu0 0
    %5847 = vmatpush1.bf16.msra.mxu0 %v5823
    %5848 = vmatprep.subr.bf16.mxu0 0
    %5849 = vmatpush1.bf16.msra.mxu0 0
    %5850 = vmatprep.subr.bf16.mxu0 0
    %5851 = vmatpush1.bf16.msra.mxu0 0
    %5852 = vmatprep.subr.bf16.mxu0 0
    %5853 = vmatpush1.bf16.msra.mxu0 0
    %5854 = vmatprep.subr.bf16.mxu0 0
    %5855 = vmatpush1.bf16.msra.mxu0 0
    %5856 = vmatprep.subr.bf16.mxu0 0
    %5857 = vmatpush1.bf16.msra.mxu0 0
    %5858 = vmatprep.subr.bf16.mxu0 0
    %5859 = vmatpush1.bf16.msra.mxu0 0
    %5860 = vmatprep.subr.bf16.mxu0 0
    %5861 = vmatpush1.bf16.msra.mxu0 0
    %5862 = vmatprep.subr.bf16.mxu0 0
    %5863 = vmatpush1.bf16.msra.mxu0 0
    %5864 = vmatprep.mubr.bf16.mxu0 0
    %5865 = vmatmul.mubr.bf16.gmra.mrb[0].mxu0 %v5780
    %v5866 = vpop.f32.mrb[0].mxu0
    %v5867 = vadd.f32 0.0, %v5866
    %v5868 = vpop.f32.mrb[0].mxu0
    %v5869 = vpop.f32.mrb[0].mxu0
    %v5870 = vadd.f32 0.0, %v5869
    %v5871 = vpop.f32.mrb[0].mxu0
    %5872 = vmatprep.mubr.bf16.mxu0 0
    %5873 = vmatmul.mubr.bf16.gmra.mrb[0].mxu0 %v5781
    %v5874 = vpop.f32.mrb[0].mxu0
    %v5875 = vadd.f32 0.0, %v5874
    %v5876 = vpop.f32.mrb[0].mxu0
    %v5877 = vpop.f32.mrb[0].mxu0
    %v5878 = vadd.f32 0.0, %v5877
    %v5879 = vpop.f32.mrb[0].mxu0
    %5880 = vdwg.mxu0
    %v5885 = vunpack.c.l.b16 %v5689
    %v5886 = vunpack.c.l.b16 %v5690
    %v5887 = vunpack.c.l.b16 %v5691
    %v5888 = vunpack.c.l.b16 %v5692
    %v5889 = vpack.c.b16 %v5886, %v5885
    %v5890 = vpack.c.b16 %v5888, %v5887
    %v5909 = vunpack.c.l.b16 %v5693
    %v5910 = vunpack.c.l.b16 %v5694
    %v5911 = vunpack.c.l.b16 %v5695
    %v5912 = vunpack.c.l.b16 %v5696
    %v5913 = vunpack.c.l.b16 %v5697
    %v5914 = vunpack.c.l.b16 %v5698
    %v5915 = vunpack.c.l.b16 %v5699
    %v5916 = vunpack.c.l.b16 %v5700
    %v5917 = vunpack.c.l.b16 %v5701
    %v5918 = vunpack.c.l.b16 %v5702
    %v5919 = vunpack.c.l.b16 %v5703
    %v5920 = vunpack.c.l.b16 %v5704
    %v5921 = vunpack.c.l.b16 %v5705
    %v5922 = vunpack.c.l.b16 %v5706
    %v5923 = vunpack.c.l.b16 %v5707
    %v5924 = vunpack.c.l.b16 %v5708
    %v5925 = vpack.c.b16 %v5910, %v5909
    %v5926 = vpack.c.b16 %v5912, %v5911
    %v5927 = vpack.c.b16 %v5914, %v5913
    %v5928 = vpack.c.b16 %v5916, %v5915
    %v5929 = vpack.c.b16 %v5918, %v5917
    %v5930 = vpack.c.b16 %v5920, %v5919
    %v5931 = vpack.c.b16 %v5922, %v5921
    %v5932 = vpack.c.b16 %v5924, %v5923
    %5941 = vmatprep.subr.bf16.mxu0 0
    %5942 = vmatpush1.bf16.msra.mxu0 %v5925
    %5943 = vmatprep.subr.bf16.mxu0 0
    %5944 = vmatpush1.bf16.msra.mxu0 %v5926
    %5945 = vmatprep.subr.bf16.mxu0 0
    %5946 = vmatpush1.bf16.msra.mxu0 %v5927
    %5947 = vmatprep.subr.bf16.mxu0 0
    %5948 = vmatpush1.bf16.msra.mxu0 %v5928
    %5949 = vmatprep.subr.bf16.mxu0 0
    %5950 = vmatpush1.bf16.msra.mxu0 %v5929
    %5951 = vmatprep.subr.bf16.mxu0 0
    %5952 = vmatpush1.bf16.msra.mxu0 %v5930
    %5953 = vmatprep.subr.bf16.mxu0 0
    %5954 = vmatpush1.bf16.msra.mxu0 %v5931
    %5955 = vmatprep.subr.bf16.mxu0 0
    %5956 = vmatpush1.bf16.msra.mxu0 %v5932
    %5957 = vmatprep.subr.bf16.mxu0 0
    %5958 = vmatpush1.bf16.msra.mxu0 0
    %5959 = vmatprep.subr.bf16.mxu0 0
    %5960 = vmatpush1.bf16.msra.mxu0 0
    %5961 = vmatprep.subr.bf16.mxu0 0
    %5962 = vmatpush1.bf16.msra.mxu0 0
    %5963 = vmatprep.subr.bf16.mxu0 0
    %5964 = vmatpush1.bf16.msra.mxu0 0
    %5965 = vmatprep.subr.bf16.mxu0 0
    %5966 = vmatpush1.bf16.msra.mxu0 0
    %5967 = vmatprep.subr.bf16.mxu0 0
    %5968 = vmatpush1.bf16.msra.mxu0 0
    %5969 = vmatprep.subr.bf16.mxu0 0
    %5970 = vmatpush1.bf16.msra.mxu0 0
    %5971 = vmatprep.subr.bf16.mxu0 0
    %5972 = vmatpush1.bf16.msra.mxu0 0
    %5973 = vmatprep.mubr.bf16.mxu0 0
    %5974 = vmatmul.mubr.bf16.gmra.mrb[0].mxu0 %v5889
    %v5975 = vpop.f32.mrb[0].mxu0
    %v5976 = vadd.f32 %v5867, %v5975
    %v5977 = vpop.f32.mrb[0].mxu0
    %v5978 = vpop.f32.mrb[0].mxu0
    %v5979 = vadd.f32 %v5870, %v5978
    %v5980 = vpop.f32.mrb[0].mxu0
    %5981 = vmatprep.mubr.bf16.mxu0 0
    %5982 = vmatmul.mubr.bf16.gmra.mrb[0].mxu0 %v5890
    %v5983 = vpop.f32.mrb[0].mxu0
    %v5984 = vadd.f32 %v5875, %v5983
    %v5985 = vpop.f32.mrb[0].mxu0
    %v5986 = vpop.f32.mrb[0].mxu0
    %v5987 = vadd.f32 %v5878, %v5986
    %v5988 = vpop.f32.mrb[0].mxu0
    %5989 = vdwg.mxu0
    %v5990 = vld [vmem:[#allocation2] sm:$0xe]
    %v5991 = vld [vmem:[#allocation2 + $0xc] sm:$0xe]
    %v5996 = vrot.slane %v5990, 5
    %v5997 = vrot.slane %v5996, 4
    %v5998 = vrot.slane %v5690, 5
    %v5999 = vsel %vm901, %v5997, %v5998
    %v6000 = vrot.slane %v5998, 4
    %v6001 = vrot.slane %v5709, 5
    %v6002 = vsel %vm901, %v6000, %v6001
    %v6003 = vrot.slane %v5991, 5
    %v6004 = vrot.slane %v6003, 4
    %v6005 = vrot.slane %v5692, 5
    %v6006 = vsel %vm901, %v6004, %v6005
    %v6007 = vrot.slane %v6005, 4
    %v6008 = vrot.slane %v5710, 5
    %v6009 = vsel %vm901, %v6007, %v6008
    %s6010 = scalar_lea.vmem [#allocation21], 128
    %v6011 = vld [vmem:[%s6010] sm:$0xf]
    %v6012 = vld [vmem:[%s6010 + $0x4] sm:$0xf]
    %v6013 = vld [vmem:[%s6010 + $0x8] sm:$0xf]
    %v6014 = vld [vmem:[%s6010 + $0xc] sm:$0xf]
    %v6015 = vld [vmem:[%s6010 + $0x10] sm:$0xf]
    %v6016 = vld [vmem:[%s6010 + $0x14] sm:$0xf]
    %v6017 = vld [vmem:[%s6010 + $0x18] sm:$0xf]
    %v6018 = vld [vmem:[%s6010 + $0x1c] sm:$0xf]
    %v6019 = vld [vmem:[%s6010 + $0x20] sm:$0xf]
    %v6020 = vld [vmem:[%s6010 + $0x24] sm:$0xf]
    %v6021 = vld [vmem:[%s6010 + $0x28] sm:$0xf]
    %v6022 = vld [vmem:[%s6010 + $0x2c] sm:$0xf]
    %v6023 = vld [vmem:[%s6010 + $0x30] sm:$0xf]
    %v6024 = vld [vmem:[%s6010 + $0x34] sm:$0xf]
    %v6025 = vld [vmem:[%s6010 + $0x38] sm:$0xf]
    %v6026 = vld [vmem:[%s6010 + $0x3c] sm:$0xf]
    %v6027 = vunpack.c.l.b16 %v5999
    %v6028 = vunpack.c.l.b16 %v6002
    %v6029 = vunpack.c.l.b16 %v6006
    %v6030 = vunpack.c.l.b16 %v6009
    %v6031 = vpack.c.b16 %v6028, %v6027
    %v6032 = vpack.c.b16 %v6030, %v6029
    %v6051 = vunpack.c.l.b16 %v6011
    %v6052 = vunpack.c.l.b16 %v6012
    %v6053 = vunpack.c.l.b16 %v6013
    %v6054 = vunpack.c.l.b16 %v6014
    %v6055 = vunpack.c.l.b16 %v6015
    %v6056 = vunpack.c.l.b16 %v6016
    %v6057 = vunpack.c.l.b16 %v6017
    %v6058 = vunpack.c.l.b16 %v6018
    %v6059 = vunpack.c.l.b16 %v6019
    %v6060 = vunpack.c.l.b16 %v6020
    %v6061 = vunpack.c.l.b16 %v6021
    %v6062 = vunpack.c.l.b16 %v6022
    %v6063 = vunpack.c.l.b16 %v6023
    %v6064 = vunpack.c.l.b16 %v6024
    %v6065 = vunpack.c.l.b16 %v6025
    %v6066 = vunpack.c.l.b16 %v6026
    %v6067 = vpack.c.b16 %v6052, %v6051
    %v6068 = vpack.c.b16 %v6054, %v6053
    %v6069 = vpack.c.b16 %v6056, %v6055
    %v6070 = vpack.c.b16 %v6058, %v6057
    %v6071 = vpack.c.b16 %v6060, %v6059
    %v6072 = vpack.c.b16 %v6062, %v6061
    %v6073 = vpack.c.b16 %v6064, %v6063
    %v6074 = vpack.c.b16 %v6066, %v6065
    %6083 = vmatprep.subr.bf16.mxu0 0
    %6084 = vmatpush1.bf16.msra.mxu0 %v6067
    %6085 = vmatprep.subr.bf16.mxu0 0
    %6086 = vmatpush1.bf16.msra.mxu0 %v6068
    %6087 = vmatprep.subr.bf16.mxu0 0
    %6088 = vmatpush1.bf16.msra.mxu0 %v6069
    %6089 = vmatprep.subr.bf16.mxu0 0
    %6090 = vmatpush1.bf16.msra.mxu0 %v6070
    %6091 = vmatprep.subr.bf16.mxu0 0
    %6092 = vmatpush1.bf16.msra.mxu0 %v6071
    %6093 = vmatprep.subr.bf16.mxu0 0
    %6094 = vmatpush1.bf16.msra.mxu0 %v6072
    %6095 = vmatprep.subr.bf16.mxu0 0
    %6096 = vmatpush1.bf16.msra.mxu0 %v6073
    %6097 = vmatprep.subr.bf16.mxu0 0
    %6098 = vmatpush1.bf16.msra.mxu0 %v6074
    %6099 = vmatprep.subr.bf16.mxu0 0
    %6100 = vmatpush1.bf16.msra.mxu0 0
    %6101 = vmatprep.subr.bf16.mxu0 0
    %6102 = vmatpush1.bf16.msra.mxu0 0
    %6103 = vmatprep.subr.bf16.mxu0 0
    %6104 = vmatpush1.bf16.msra.mxu0 0
    %6105 = vmatprep.subr.bf16.mxu0 0
    %6106 = vmatpush1.bf16.msra.mxu0 0
    %6107 = vmatprep.subr.bf16.mxu0 0
    %6108 = vmatpush1.bf16.msra.mxu0 0
    %6109 = vmatprep.subr.bf16.mxu0 0
    %6110 = vmatpush1.bf16.msra.mxu0 0
    %6111 = vmatprep.subr.bf16.mxu0 0
    %6112 = vmatpush1.bf16.msra.mxu0 0
    %6113 = vmatprep.subr.bf16.mxu0 0
    %6114 = vmatpush1.bf16.msra.mxu0 0
    %6115 = vmatprep.mubr.bf16.mxu0 0
    %6116 = vmatmul.mubr.bf16.gmra.mrb[0].mxu0 %v6031
    %v6117 = vpop.f32.mrb[0].mxu0
    %v6118 = vadd.f32 0.0, %v6117
    %v6119 = vpop.f32.mrb[0].mxu0
    %v6120 = vpop.f32.mrb[0].mxu0
    %v6121 = vadd.f32 0.0, %v6120
    %v6122 = vpop.f32.mrb[0].mxu0
    %6123 = vmatprep.mubr.bf16.mxu0 0
    %6124 = vmatmul.mubr.bf16.gmra.mrb[0].mxu0 %v6032
    %v6125 = vpop.f32.mrb[0].mxu0
    %v6126 = vadd.f32 0.0, %v6125
    %v6127 = vpop.f32.mrb[0].mxu0
    %v6128 = vpop.f32.mrb[0].mxu0
    %v6129 = vadd.f32 0.0, %v6128
    %v6130 = vpop.f32.mrb[0].mxu0
    %6131 = vdwg.mxu0
    %v6132 = vadd.f32 %v5976, %v6118
    %v6133 = vadd.f32 %v5979, %v6121
    %v6134 = vadd.f32 %v5984, %v6126
    %v6135 = vadd.f32 %v5987, %v6129
    %v6136 = vld [vmem:[#allocation23] sm:$0x1]
    %v6138 = vlaneseq
    %v6139 = vshrl.u32 %v6138, 7
    %v6140 = vsub.s32 0, %v6139
    %v6141 = vrot.slane %v6136, %v6140
    %v6143 = vmul.f32 %v6132, %v6141
    %v6144 = vmul.f32 %v6133, %v6141
    %v6145 = vmul.f32 %v6134, %v6141
    %v6146 = vmul.f32 %v6135, %v6141
    %v6147 = vld [vmem:[#allocation24] sm:$0x1]
    %v6149 = vlaneseq
    %v6150 = vshrl.u32 %v6149, 7
    %v6151 = vsub.s32 0, %v6150
    %v6152 = vrot.slane %v6147, %v6151
    %v6154 = vadd.f32 %v6143, %v6152
    %v6155 = vadd.f32 %v6144, %v6152
    %v6156 = vadd.f32 %v6145, %v6152
    %v6157 = vadd.f32 %v6146, %v6152
    %v6158 = vld [vmem:[#allocation26] sm:$0xf]
    %v6159 = vld [vmem:[#allocation26 + $0x4] sm:$0xf]
    %v6160 = vld [vmem:[#allocation26 + $0x8] sm:$0xf]
    %v6161 = vld [vmem:[#allocation26 + $0xc] sm:$0xf]
    %v6162 = vld [vmem:[#allocation26 + $0x10] sm:$0xf]
    %v6163 = vld [vmem:[#allocation26 + $0x14] sm:$0xf]
    %v6164 = vld [vmem:[#allocation26 + $0x18] sm:$0xf]
    %v6165 = vld [vmem:[#allocation26 + $0x1c] sm:$0xf]
    %v6166 = vld [vmem:[#allocation26 + $0x20] sm:$0xf]
    %v6167 = vld [vmem:[#allocation26 + $0x24] sm:$0xf]
    %v6168 = vld [vmem:[#allocation26 + $0x28] sm:$0xf]
    %v6169 = vld [vmem:[#allocation26 + $0x2c] sm:$0xf]
    %v6170 = vld [vmem:[#allocation26 + $0x30] sm:$0xf]
    %v6171 = vld [vmem:[#allocation26 + $0x34] sm:$0xf]
    %v6172 = vld [vmem:[#allocation26 + $0x38] sm:$0xf]
    %v6173 = vld [vmem:[#allocation26 + $0x3c] sm:$0xf]
    %v6190 = vunpack.c.l.b16 %v6158
    %v6191 = vunpack.c.l.b16 %v6159
    %v6192 = vunpack.c.l.b16 %v6160
    %v6193 = vunpack.c.l.b16 %v6161
    %v6194 = vunpack.c.l.b16 %v6162
    %v6195 = vunpack.c.l.b16 %v6163
    %v6196 = vunpack.c.l.b16 %v6164
    %v6197 = vunpack.c.l.b16 %v6165
    %v6198 = vunpack.c.l.b16 %v6166
    %v6199 = vunpack.c.l.b16 %v6167
    %v6200 = vunpack.c.l.b16 %v6168
    %v6201 = vunpack.c.l.b16 %v6169
    %v6202 = vunpack.c.l.b16 %v6170
    %v6203 = vunpack.c.l.b16 %v6171
    %v6204 = vunpack.c.l.b16 %v6172
    %v6205 = vunpack.c.l.b16 %v6173
    %v6206 = vpack.c.b16 %v6191, %v6190
    %v6207 = vpack.c.b16 %v6193, %v6192
    %v6208 = vpack.c.b16 %v6195, %v6194
    %v6209 = vpack.c.b16 %v6197, %v6196
    %v6210 = vpack.c.b16 %v6199, %v6198
    %v6211 = vpack.c.b16 %v6201, %v6200
    %v6212 = vpack.c.b16 %v6203, %v6202
    %v6213 = vpack.c.b16 %v6205, %v6204
    %6222 = vmatprep.subr.bf16.mxu0 0
    %6223 = vmatpush1.bf16.msra.mxu0 %v6206
    %6224 = vmatprep.subr.bf16.mxu0 0
    %6225 = vmatpush1.bf16.msra.mxu0 %v6207
    %6226 = vmatprep.subr.bf16.mxu0 0
    %6227 = vmatpush1.bf16.msra.mxu0 %v6208
    %6228 = vmatprep.subr.bf16.mxu0 0
    %6229 = vmatpush1.bf16.msra.mxu0 %v6209
    %6230 = vmatprep.subr.bf16.mxu0 0
    %6231 = vmatpush1.bf16.msra.mxu0 %v6210
    %6232 = vmatprep.subr.bf16.mxu0 0
    %6233 = vmatpush1.bf16.msra.mxu0 %v6211
    %6234 = vmatprep.subr.bf16.mxu0 0
    %6235 = vmatpush1.bf16.msra.mxu0 %v6212
    %6236 = vmatprep.subr.bf16.mxu0 0
    %6237 = vmatpush1.bf16.msra.mxu0 %v6213
    %6238 = vmatprep.subr.bf16.mxu0 0
    %6239 = vmatpush1.bf16.msra.mxu0 0
    %6240 = vmatprep.subr.bf16.mxu0 0
    %6241 = vmatpush1.bf16.msra.mxu0 0
    %6242 = vmatprep.subr.bf16.mxu0 0
    %6243 = vmatpush1.bf16.msra.mxu0 0
    %6244 = vmatprep.subr.bf16.mxu0 0
    %6245 = vmatpush1.bf16.msra.mxu0 0
    %6246 = vmatprep.subr.bf16.mxu0 0
    %6247 = vmatpush1.bf16.msra.mxu0 0
    %6248 = vmatprep.subr.bf16.mxu0 0
    %6249 = vmatpush1.bf16.msra.mxu0 0
    %6250 = vmatprep.subr.bf16.mxu0 0
    %6251 = vmatpush1.bf16.msra.mxu0 0
    %6252 = vmatprep.subr.bf16.mxu0 0
    %6253 = vmatpush1.bf16.msra.mxu0 0
    %6254 = vmatprep.mubr.bf16.mxu0 0
    %6255 = vmatmul.mubr.bf16.gmra.mrb[0].mxu0 %v3421
    %v6256 = vpop.f32.mrb[0].mxu0
    %v6257 = vadd.f32 0.0, %v6256
    %v6258 = vpop.f32.mrb[0].mxu0
    %v6259 = vpop.f32.mrb[0].mxu0
    %v6260 = vadd.f32 0.0, %v6259
    %v6261 = vpop.f32.mrb[0].mxu0
    %6262 = vmatprep.mubr.bf16.mxu0 0
    %6263 = vmatmul.mubr.bf16.gmra.mrb[0].mxu0 %v3422
    %v6264 = vpop.f32.mrb[0].mxu0
    %v6265 = vadd.f32 0.0, %v6264
    %v6266 = vpop.f32.mrb[0].mxu0
    %v6267 = vpop.f32.mrb[0].mxu0
    %v6268 = vadd.f32 0.0, %v6267
    %v6269 = vpop.f32.mrb[0].mxu0
    %6270 = vdwg.mxu0
    %v6271 = vld [vmem:[#allocation27] sm:$0x1]
    %v6273 = vlaneseq
    %v6274 = vshrl.u32 %v6273, 7
    %v6275 = vsub.s32 0, %v6274
    %v6276 = vrot.slane %v6271, %v6275
    %v6278 = vmul.f32 %v6257, %v6276
    %v6279 = vmul.f32 %v6260, %v6276
    %v6280 = vmul.f32 %v6265, %v6276
    %v6281 = vmul.f32 %v6268, %v6276
    %v6282 = vld [vmem:[#allocation29] sm:$0x1]
    %v6284 = vlaneseq
    %v6285 = vshrl.u32 %v6284, 7
    %v6286 = vsub.s32 0, %v6285
    %v6287 = vrot.slane %v6282, %v6286
    %v6289 = vadd.f32 %v6278, %v6287
    %v6290 = vadd.f32 %v6279, %v6287
    %v6291 = vadd.f32 %v6280, %v6287
    %v6292 = vadd.f32 %v6281, %v6287
    %v6293 = vadd.f32 %v6154, %v6289
    %v6294 = vadd.f32 %v6155, %v6290
    %v6295 = vadd.f32 %v6156, %v6291
    %v6296 = vadd.f32 %v6157, %v6292
    %v6297 = vmax.f32 %v6293, 0.0
    %v6298 = vmax.f32 %v6294, 0.0
    %v6299 = vmax.f32 %v6295, 0.0
    %v6300 = vmax.f32 %v6296, 0.0
    %v6301 = vpack.c.bf16 %v6298, %v6297
    %v6302 = vpack.c.bf16 %v6300, %v6299
    %6303 = vst [vmem:[#allocation2] sm:$0xf] 0
    %6304 = vst [vmem:[#allocation2 + $0x4] sm:$0xf] 0
    %v6305 = vld [vmem:[#allocation2 + $0x8] sm:$0xf]
    %v6306 = vsel %vm515, 0, %v6305
    %6307 = vst [vmem:[#allocation2 + $0x8] sm:$0xf] %v6306
    %6308 = vst [vmem:[#allocation2 + $0xc] sm:$0xf] 0
    %6309 = vst [vmem:[#allocation2 + $0x10] sm:$0xf] 0
    %v6310 = vld [vmem:[#allocation2 + $0x14] sm:$0xf]
    %v6311 = vsel %vm515, 0, %v6310
    %6312 = vst [vmem:[#allocation2 + $0x14] sm:$0xf] %v6311
    %v6315 = vunpack.c.l.b16 %v6301
    %v6316 = vunpack.c.h.b16 %v6301
    %v6317 = vunpack.c.l.b16 %v6302
    %v6318 = vunpack.c.h.b16 %v6302
    %v6319 = vpack.c.b16 %v6315, %v6315
    %v6320 = vpack.c.b16 %v6316, %v6316
    %v6321 = vpack.c.b16 %v6317, %v6317
    %v6322 = vpack.c.b16 %v6318, %v6318
    %v6324 = vshrl.u32 %v6319, 16
    %v6326 = vrot.slane %v6324, 6
    %v6327 = vshll.u32 %v6319, 16
    %v6329 = vrot.slane %v6327, 7
    %v6330 = vor.u32 %v6326, %v6329
    %v6331 = vrot.slane %v6330, 4
    %v6333 = vshrl.u32 %v6320, 16
    %v6335 = vrot.slane %v6333, 6
    %v6336 = vshll.u32 %v6320, 16
    %v6338 = vrot.slane %v6336, 7
    %v6339 = vor.u32 %v6335, %v6338
    %v6340 = vsel %vm526, %v6331, %v6339
    %v6341 = vrot.slane %v6339, 4
    %v6343 = vshrl.u32 %v6321, 16
    %v6345 = vrot.slane %v6343, 6
    %v6346 = vshll.u32 %v6321, 16
    %v6348 = vrot.slane %v6346, 7
    %v6349 = vor.u32 %v6345, %v6348
    %v6350 = vrot.slane %v6349, 4
    %v6352 = vshrl.u32 %v6322, 16
    %v6354 = vrot.slane %v6352, 6
    %v6355 = vshll.u32 %v6322, 16
    %v6357 = vrot.slane %v6355, 7
    %v6358 = vor.u32 %v6354, %v6357
    %v6359 = vsel %vm526, %v6350, %v6358
    %v6360 = vrot.slane %v6358, 4
    %v6367 = vld [vmem:[#allocation2] sm:$0xe]
    %v6368 = vsel %vm573, %v6330, %v6367
    %6369 = vst [vmem:[#allocation2] sm:$0xe] %v6368
    %6370 = vst [vmem:[#allocation2 + $0x4] sm:$0xf] %v6340
    %v6371 = vld [vmem:[#allocation2 + $0x8] sm:$0x3]
    %v6372 = vsel %vm579, %v6341, %v6371
    %6373 = vst [vmem:[#allocation2 + $0x8] sm:$0x3] %v6372
    %v6374 = vld [vmem:[#allocation2 + $0xc] sm:$0xe]
    %v6375 = vsel %vm573, %v6349, %v6374
    %6376 = vst [vmem:[#allocation2 + $0xc] sm:$0xe] %v6375
    %6377 = vst [vmem:[#allocation2 + $0x10] sm:$0xf] %v6359
    %v6378 = vld [vmem:[#allocation2 + $0x14] sm:$0x3]
    %v6379 = vsel %vm579, %v6360, %v6378
    %6380 = vst [vmem:[#allocation2 + $0x14] sm:$0x3] %v6379
    %v6381 = vld [vmem:[#allocation2] sm:$0xf]
    %v6382 = vld [vmem:[#allocation2 + $0x4] sm:$0xf]
    %v6383 = vld [vmem:[#allocation2 + $0xc] sm:$0xf]
    %v6384 = vld [vmem:[#allocation2 + $0x10] sm:$0xf]
    %v6385 = vld [vmem:[#allocation30] sm:$0xf]
    %v6386 = vld [vmem:[#allocation30 + $0x4] sm:$0xf]
    %v6387 = vld [vmem:[#allocation30 + $0x8] sm:$0xf]
    %v6388 = vld [vmem:[#allocation30 + $0xc] sm:$0xf]
    %v6389 = vld [vmem:[#allocation30 + $0x10] sm:$0xf]
    %v6390 = vld [vmem:[#allocation30 + $0x14] sm:$0xf]
    %v6391 = vld [vmem:[#allocation30 + $0x18] sm:$0xf]
    %v6392 = vld [vmem:[#allocation30 + $0x1c] sm:$0xf]
    %v6393 = vld [vmem:[#allocation30 + $0x20] sm:$0xf]
    %v6394 = vld [vmem:[#allocation30 + $0x24] sm:$0xf]
    %v6395 = vld [vmem:[#allocation30 + $0x28] sm:$0xf]
    %v6396 = vld [vmem:[#allocation30 + $0x2c] sm:$0xf]
    %v6397 = vld [vmem:[#allocation30 + $0x30] sm:$0xf]
    %v6398 = vld [vmem:[#allocation30 + $0x34] sm:$0xf]
    %v6399 = vld [vmem:[#allocation30 + $0x38] sm:$0xf]
    %v6400 = vld [vmem:[#allocation30 + $0x3c] sm:$0xf]
    %v6401 = vld [vmem:[#allocation2 + $0x8] sm:$0x1]
    %v6402 = vld [vmem:[#allocation2 + $0x14] sm:$0x1]
    %v6404 = vshrl.u32 %v6381, 16
    %v6406 = vrot.slane %v6404, 4
    %v6407 = vshll.u32 %v6381, 16
    %v6409 = vrot.slane %v6407, 5
    %v6410 = vor.u32 %v6406, %v6409
    %v6411 = vrot.slane %v6410, 4
    %v6413 = vshll.u32 %v6382, 16
    %v6415 = vrot.slane %v6413, 5
    %v6416 = vsel %vm613, %v6411, %v6415
    %v6417 = vshrl.u32 %v6382, 16
    %v6419 = vrot.slane %v6417, 4
    %v6420 = vor.u32 %v6419, %v6415
    %v6421 = vrot.slane %v6420, 4
    %v6423 = vshll.u32 %v6401, 16
    %v6425 = vrot.slane %v6423, 5
    %v6426 = vsel %vm613, %v6421, %v6425
    %v6428 = vshrl.u32 %v6383, 16
    %v6430 = vrot.slane %v6428, 4
    %v6431 = vshll.u32 %v6383, 16
    %v6433 = vrot.slane %v6431, 5
    %v6434 = vor.u32 %v6430, %v6433
    %v6435 = vrot.slane %v6434, 4
    %v6437 = vshll.u32 %v6384, 16
    %v6439 = vrot.slane %v6437, 5
    %v6440 = vsel %vm613, %v6435, %v6439
    %v6441 = vshrl.u32 %v6384, 16
    %v6443 = vrot.slane %v6441, 4
    %v6444 = vor.u32 %v6443, %v6439
    %v6445 = vrot.slane %v6444, 4
    %v6447 = vshll.u32 %v6402, 16
    %v6449 = vrot.slane %v6447, 5
    %v6450 = vsel %vm613, %v6445, %v6449
    %s6451 = scalar_lea.vmem [#allocation30], 64
    %v6452 = vld [vmem:[%s6451] sm:$0xf]
    %v6453 = vld [vmem:[%s6451 + $0x4] sm:$0xf]
    %v6454 = vld [vmem:[%s6451 + $0x8] sm:$0xf]
    %v6455 = vld [vmem:[%s6451 + $0xc] sm:$0xf]
    %v6456 = vld [vmem:[%s6451 + $0x10] sm:$0xf]
    %v6457 = vld [vmem:[%s6451 + $0x14] sm:$0xf]
    %v6458 = vld [vmem:[%s6451 + $0x18] sm:$0xf]
    %v6459 = vld [vmem:[%s6451 + $0x1c] sm:$0xf]
    %v6460 = vld [vmem:[%s6451 + $0x20] sm:$0xf]
    %v6461 = vld [vmem:[%s6451 + $0x24] sm:$0xf]
    %v6462 = vld [vmem:[%s6451 + $0x28] sm:$0xf]
    %v6463 = vld [vmem:[%s6451 + $0x2c] sm:$0xf]
    %v6464 = vld [vmem:[%s6451 + $0x30] sm:$0xf]
    %v6465 = vld [vmem:[%s6451 + $0x34] sm:$0xf]
    %v6466 = vld [vmem:[%s6451 + $0x38] sm:$0xf]
    %v6467 = vld [vmem:[%s6451 + $0x3c] sm:$0xf]
    %v6468 = vunpack.c.l.b16 %v6416
    %v6469 = vunpack.c.l.b16 %v6426
    %v6470 = vunpack.c.l.b16 %v6440
    %v6471 = vunpack.c.l.b16 %v6450
    %v6472 = vpack.c.b16 %v6469, %v6468
    %v6473 = vpack.c.b16 %v6471, %v6470
    %v6492 = vunpack.c.l.b16 %v6452
    %v6493 = vunpack.c.l.b16 %v6453
    %v6494 = vunpack.c.l.b16 %v6454
    %v6495 = vunpack.c.l.b16 %v6455
    %v6496 = vunpack.c.l.b16 %v6456
    %v6497 = vunpack.c.l.b16 %v6457
    %v6498 = vunpack.c.l.b16 %v6458
    %v6499 = vunpack.c.l.b16 %v6459
    %v6500 = vunpack.c.l.b16 %v6460
    %v6501 = vunpack.c.l.b16 %v6461
    %v6502 = vunpack.c.l.b16 %v6462
    %v6503 = vunpack.c.l.b16 %v6463
    %v6504 = vunpack.c.l.b16 %v6464
    %v6505 = vunpack.c.l.b16 %v6465
    %v6506 = vunpack.c.l.b16 %v6466
    %v6507 = vunpack.c.l.b16 %v6467
    %v6508 = vpack.c.b16 %v6493, %v6492
    %v6509 = vpack.c.b16 %v6495, %v6494
    %v6510 = vpack.c.b16 %v6497, %v6496
    %v6511 = vpack.c.b16 %v6499, %v6498
    %v6512 = vpack.c.b16 %v6501, %v6500
    %v6513 = vpack.c.b16 %v6503, %v6502
    %v6514 = vpack.c.b16 %v6505, %v6504
    %v6515 = vpack.c.b16 %v6507, %v6506
    %6524 = vmatprep.subr.bf16.mxu0 0
    %6525 = vmatpush1.bf16.msra.mxu0 %v6508
    %6526 = vmatprep.subr.bf16.mxu0 0
    %6527 = vmatpush1.bf16.msra.mxu0 %v6509
    %6528 = vmatprep.subr.bf16.mxu0 0
    %6529 = vmatpush1.bf16.msra.mxu0 %v6510
    %6530 = vmatprep.subr.bf16.mxu0 0
    %6531 = vmatpush1.bf16.msra.mxu0 %v6511
    %6532 = vmatprep.subr.bf16.mxu0 0
    %6533 = vmatpush1.bf16.msra.mxu0 %v6512
    %6534 = vmatprep.subr.bf16.mxu0 0
    %6535 = vmatpush1.bf16.msra.mxu0 %v6513
    %6536 = vmatprep.subr.bf16.mxu0 0
    %6537 = vmatpush1.bf16.msra.mxu0 %v6514
    %6538 = vmatprep.subr.bf16.mxu0 0
    %6539 = vmatpush1.bf16.msra.mxu0 %v6515
    %6540 = vmatprep.subr.bf16.mxu0 0
    %6541 = vmatpush1.bf16.msra.mxu0 0
    %6542 = vmatprep.subr.bf16.mxu0 0
    %6543 = vmatpush1.bf16.msra.mxu0 0
    %6544 = vmatprep.subr.bf16.mxu0 0
    %6545 = vmatpush1.bf16.msra.mxu0 0
    %6546 = vmatprep.subr.bf16.mxu0 0
    %6547 = vmatpush1.bf16.msra.mxu0 0
    %6548 = vmatprep.subr.bf16.mxu0 0
    %6549 = vmatpush1.bf16.msra.mxu0 0
    %6550 = vmatprep.subr.bf16.mxu0 0
    %6551 = vmatpush1.bf16.msra.mxu0 0
    %6552 = vmatprep.subr.bf16.mxu0 0
    %6553 = vmatpush1.bf16.msra.mxu0 0
    %6554 = vmatprep.subr.bf16.mxu0 0
    %6555 = vmatpush1.bf16.msra.mxu0 0
    %6556 = vmatprep.mubr.bf16.mxu0 0
    %6557 = vmatmul.mubr.bf16.gmra.mrb[0].mxu0 %v6472
    %v6558 = vpop.f32.mrb[0].mxu0
    %v6559 = vadd.f32 0.0, %v6558
    %v6560 = vpop.f32.mrb[0].mxu0
    %v6561 = vpop.f32.mrb[0].mxu0
    %v6562 = vadd.f32 0.0, %v6561
    %v6563 = vpop.f32.mrb[0].mxu0
    %6564 = vmatprep.mubr.bf16.mxu0 0
    %6565 = vmatmul.mubr.bf16.gmra.mrb[0].mxu0 %v6473
    %v6566 = vpop.f32.mrb[0].mxu0
    %v6567 = vadd.f32 0.0, %v6566
    %v6568 = vpop.f32.mrb[0].mxu0
    %v6569 = vpop.f32.mrb[0].mxu0
    %v6570 = vadd.f32 0.0, %v6569
    %v6571 = vpop.f32.mrb[0].mxu0
    %6572 = vdwg.mxu0
    %v6577 = vunpack.c.l.b16 %v6381
    %v6578 = vunpack.c.l.b16 %v6382
    %v6579 = vunpack.c.l.b16 %v6383
    %v6580 = vunpack.c.l.b16 %v6384
    %v6581 = vpack.c.b16 %v6578, %v6577
    %v6582 = vpack.c.b16 %v6580, %v6579
    %v6601 = vunpack.c.l.b16 %v6385
    %v6602 = vunpack.c.l.b16 %v6386
    %v6603 = vunpack.c.l.b16 %v6387
    %v6604 = vunpack.c.l.b16 %v6388
    %v6605 = vunpack.c.l.b16 %v6389
    %v6606 = vunpack.c.l.b16 %v6390
    %v6607 = vunpack.c.l.b16 %v6391
    %v6608 = vunpack.c.l.b16 %v6392
    %v6609 = vunpack.c.l.b16 %v6393
    %v6610 = vunpack.c.l.b16 %v6394
    %v6611 = vunpack.c.l.b16 %v6395
    %v6612 = vunpack.c.l.b16 %v6396
    %v6613 = vunpack.c.l.b16 %v6397
    %v6614 = vunpack.c.l.b16 %v6398
    %v6615 = vunpack.c.l.b16 %v6399
    %v6616 = vunpack.c.l.b16 %v6400
    %v6617 = vpack.c.b16 %v6602, %v6601
    %v6618 = vpack.c.b16 %v6604, %v6603
    %v6619 = vpack.c.b16 %v6606, %v6605
    %v6620 = vpack.c.b16 %v6608, %v6607
    %v6621 = vpack.c.b16 %v6610, %v6609
    %v6622 = vpack.c.b16 %v6612, %v6611
    %v6623 = vpack.c.b16 %v6614, %v6613
    %v6624 = vpack.c.b16 %v6616, %v6615
    %6633 = vmatprep.subr.bf16.mxu0 0
    %6634 = vmatpush1.bf16.msra.mxu0 %v6617
    %6635 = vmatprep.subr.bf16.mxu0 0
    %6636 = vmatpush1.bf16.msra.mxu0 %v6618
    %6637 = vmatprep.subr.bf16.mxu0 0
    %6638 = vmatpush1.bf16.msra.mxu0 %v6619
    %6639 = vmatprep.subr.bf16.mxu0 0
    %6640 = vmatpush1.bf16.msra.mxu0 %v6620
    %6641 = vmatprep.subr.bf16.mxu0 0
    %6642 = vmatpush1.bf16.msra.mxu0 %v6621
    %6643 = vmatprep.subr.bf16.mxu0 0
    %6644 = vmatpush1.bf16.msra.mxu0 %v6622
    %6645 = vmatprep.subr.bf16.mxu0 0
    %6646 = vmatpush1.bf16.msra.mxu0 %v6623
    %6647 = vmatprep.subr.bf16.mxu0 0
    %6648 = vmatpush1.bf16.msra.mxu0 %v6624
    %6649 = vmatprep.subr.bf16.mxu0 0
    %6650 = vmatpush1.bf16.msra.mxu0 0
    %6651 = vmatprep.subr.bf16.mxu0 0
    %6652 = vmatpush1.bf16.msra.mxu0 0
    %6653 = vmatprep.subr.bf16.mxu0 0
    %6654 = vmatpush1.bf16.msra.mxu0 0
    %6655 = vmatprep.subr.bf16.mxu0 0
    %6656 = vmatpush1.bf16.msra.mxu0 0
    %6657 = vmatprep.subr.bf16.mxu0 0
    %6658 = vmatpush1.bf16.msra.mxu0 0
    %6659 = vmatprep.subr.bf16.mxu0 0
    %6660 = vmatpush1.bf16.msra.mxu0 0
    %6661 = vmatprep.subr.bf16.mxu0 0
    %6662 = vmatpush1.bf16.msra.mxu0 0
    %6663 = vmatprep.subr.bf16.mxu0 0
    %6664 = vmatpush1.bf16.msra.mxu0 0
    %6665 = vmatprep.mubr.bf16.mxu0 0
    %6666 = vmatmul.mubr.bf16.gmra.mrb[0].mxu0 %v6581
    %v6667 = vpop.f32.mrb[0].mxu0
    %v6668 = vadd.f32 %v6559, %v6667
    %v6669 = vpop.f32.mrb[0].mxu0
    %v6670 = vpop.f32.mrb[0].mxu0
    %v6671 = vadd.f32 %v6562, %v6670
    %v6672 = vpop.f32.mrb[0].mxu0
    %6673 = vmatprep.mubr.bf16.mxu0 0
    %6674 = vmatmul.mubr.bf16.gmra.mrb[0].mxu0 %v6582
    %v6675 = vpop.f32.mrb[0].mxu0
    %v6676 = vadd.f32 %v6567, %v6675
    %v6677 = vpop.f32.mrb[0].mxu0
    %v6678 = vpop.f32.mrb[0].mxu0
    %v6679 = vadd.f32 %v6570, %v6678
    %v6680 = vpop.f32.mrb[0].mxu0
    %6681 = vdwg.mxu0
    %v6682 = vld [vmem:[#allocation2] sm:$0xe]
    %v6683 = vld [vmem:[#allocation2 + $0xc] sm:$0xe]
    %v6688 = vrot.slane %v6682, 5
    %v6689 = vrot.slane %v6688, 4
    %v6690 = vrot.slane %v6382, 5
    %v6691 = vsel %vm901, %v6689, %v6690
    %v6692 = vrot.slane %v6690, 4
    %v6693 = vrot.slane %v6401, 5
    %v6694 = vsel %vm901, %v6692, %v6693
    %v6695 = vrot.slane %v6683, 5
    %v6696 = vrot.slane %v6695, 4
    %v6697 = vrot.slane %v6384, 5
    %v6698 = vsel %vm901, %v6696, %v6697
    %v6699 = vrot.slane %v6697, 4
    %v6700 = vrot.slane %v6402, 5
    %v6701 = vsel %vm901, %v6699, %v6700
    %s6702 = scalar_lea.vmem [#allocation30], 128
    %v6703 = vld [vmem:[%s6702] sm:$0xf]
    %v6704 = vld [vmem:[%s6702 + $0x4] sm:$0xf]
    %v6705 = vld [vmem:[%s6702 + $0x8] sm:$0xf]
    %v6706 = vld [vmem:[%s6702 + $0xc] sm:$0xf]
    %v6707 = vld [vmem:[%s6702 + $0x10] sm:$0xf]
    %v6708 = vld [vmem:[%s6702 + $0x14] sm:$0xf]
    %v6709 = vld [vmem:[%s6702 + $0x18] sm:$0xf]
    %v6710 = vld [vmem:[%s6702 + $0x1c] sm:$0xf]
    %v6711 = vld [vmem:[%s6702 + $0x20] sm:$0xf]
    %v6712 = vld [vmem:[%s6702 + $0x24] sm:$0xf]
    %v6713 = vld [vmem:[%s6702 + $0x28] sm:$0xf]
    %v6714 = vld [vmem:[%s6702 + $0x2c] sm:$0xf]
    %v6715 = vld [vmem:[%s6702 + $0x30] sm:$0xf]
    %v6716 = vld [vmem:[%s6702 + $0x34] sm:$0xf]
    %v6717 = vld [vmem:[%s6702 + $0x38] sm:$0xf]
    %v6718 = vld [vmem:[%s6702 + $0x3c] sm:$0xf]
    %v6719 = vunpack.c.l.b16 %v6691
    %v6720 = vunpack.c.l.b16 %v6694
    %v6721 = vunpack.c.l.b16 %v6698
    %v6722 = vunpack.c.l.b16 %v6701
    %v6723 = vpack.c.b16 %v6720, %v6719
    %v6724 = vpack.c.b16 %v6722, %v6721
    %v6743 = vunpack.c.l.b16 %v6703
    %v6744 = vunpack.c.l.b16 %v6704
    %v6745 = vunpack.c.l.b16 %v6705
    %v6746 = vunpack.c.l.b16 %v6706
    %v6747 = vunpack.c.l.b16 %v6707
    %v6748 = vunpack.c.l.b16 %v6708
    %v6749 = vunpack.c.l.b16 %v6709
    %v6750 = vunpack.c.l.b16 %v6710
    %v6751 = vunpack.c.l.b16 %v6711
    %v6752 = vunpack.c.l.b16 %v6712
    %v6753 = vunpack.c.l.b16 %v6713
    %v6754 = vunpack.c.l.b16 %v6714
    %v6755 = vunpack.c.l.b16 %v6715
    %v6756 = vunpack.c.l.b16 %v6716
    %v6757 = vunpack.c.l.b16 %v6717
    %v6758 = vunpack.c.l.b16 %v6718
    %v6759 = vpack.c.b16 %v6744, %v6743
    %v6760 = vpack.c.b16 %v6746, %v6745
    %v6761 = vpack.c.b16 %v6748, %v6747
    %v6762 = vpack.c.b16 %v6750, %v6749
    %v6763 = vpack.c.b16 %v6752, %v6751
    %v6764 = vpack.c.b16 %v6754, %v6753
    %v6765 = vpack.c.b16 %v6756, %v6755
    %v6766 = vpack.c.b16 %v6758, %v6757
    %6775 = vmatprep.subr.bf16.mxu0 0
    %6776 = vmatpush1.bf16.msra.mxu0 %v6759
    %6777 = vmatprep.subr.bf16.mxu0 0
    %6778 = vmatpush1.bf16.msra.mxu0 %v6760
    %6779 = vmatprep.subr.bf16.mxu0 0
    %6780 = vmatpush1.bf16.msra.mxu0 %v6761
    %6781 = vmatprep.subr.bf16.mxu0 0
    %6782 = vmatpush1.bf16.msra.mxu0 %v6762
    %6783 = vmatprep.subr.bf16.mxu0 0
    %6784 = vmatpush1.bf16.msra.mxu0 %v6763
    %6785 = vmatprep.subr.bf16.mxu0 0
    %6786 = vmatpush1.bf16.msra.mxu0 %v6764
    %6787 = vmatprep.subr.bf16.mxu0 0
    %6788 = vmatpush1.bf16.msra.mxu0 %v6765
    %6789 = vmatprep.subr.bf16.mxu0 0
    %6790 = vmatpush1.bf16.msra.mxu0 %v6766
    %6791 = vmatprep.subr.bf16.mxu0 0
    %6792 = vmatpush1.bf16.msra.mxu0 0
    %6793 = vmatprep.subr.bf16.mxu0 0
    %6794 = vmatpush1.bf16.msra.mxu0 0
    %6795 = vmatprep.subr.bf16.mxu0 0
    %6796 = vmatpush1.bf16.msra.mxu0 0
    %6797 = vmatprep.subr.bf16.mxu0 0
    %6798 = vmatpush1.bf16.msra.mxu0 0
    %6799 = vmatprep.subr.bf16.mxu0 0
    %6800 = vmatpush1.bf16.msra.mxu0 0
    %6801 = vmatprep.subr.bf16.mxu0 0
    %6802 = vmatpush1.bf16.msra.mxu0 0
    %6803 = vmatprep.subr.bf16.mxu0 0
    %6804 = vmatpush1.bf16.msra.mxu0 0
    %6805 = vmatprep.subr.bf16.mxu0 0
    %6806 = vmatpush1.bf16.msra.mxu0 0
    %6807 = vmatprep.mubr.bf16.mxu0 0
    %6808 = vmatmul.mubr.bf16.gmra.mrb[0].mxu0 %v6723
    %v6809 = vpop.f32.mrb[0].mxu0
    %v6810 = vadd.f32 0.0, %v6809
    %v6811 = vpop.f32.mrb[0].mxu0
    %v6812 = vpop.f32.mrb[0].mxu0
    %v6813 = vadd.f32 0.0, %v6812
    %v6814 = vpop.f32.mrb[0].mxu0
    %6815 = vmatprep.mubr.bf16.mxu0 0
    %6816 = vmatmul.mubr.bf16.gmra.mrb[0].mxu0 %v6724
    %v6817 = vpop.f32.mrb[0].mxu0
    %v6818 = vadd.f32 0.0, %v6817
    %v6819 = vpop.f32.mrb[0].mxu0
    %v6820 = vpop.f32.mrb[0].mxu0
    %v6821 = vadd.f32 0.0, %v6820
    %v6822 = vpop.f32.mrb[0].mxu0
    %6823 = vdwg.mxu0
    %v6824 = vadd.f32 %v6668, %v6810
    %v6825 = vadd.f32 %v6671, %v6813
    %v6826 = vadd.f32 %v6676, %v6818
    %v6827 = vadd.f32 %v6679, %v6821
    %v6828 = vld [vmem:[#allocation2 + $0x8] sm:$0x3]
    %v6829 = vld [vmem:[#allocation2 + $0x14] sm:$0x3]
    %v6831 = vshrl.u32 %v6682, 16
    %v6833 = vrot.slane %v6831, 5
    %v6834 = vshll.u32 %v6682, 16
    %v6836 = vrot.slane %v6834, 6
    %v6837 = vor.u32 %v6833, %v6836
    %v6838 = vrot.slane %v6837, 4
    %v6839 = vrot.slane %v6417, 5
    %v6840 = vrot.slane %v6413, 6
    %v6841 = vor.u32 %v6839, %v6840
    %v6842 = vsel %vm1046, %v6838, %v6841
    %v6843 = vrot.slane %v6841, 4
    %v6845 = vshrl.u32 %v6828, 16
    %v6847 = vrot.slane %v6845, 5
    %v6848 = vshll.u32 %v6828, 16
    %v6850 = vrot.slane %v6848, 6
    %v6851 = vor.u32 %v6847, %v6850
    %v6852 = vsel %vm1046, %v6843, %v6851
    %v6854 = vshrl.u32 %v6683, 16
    %v6856 = vrot.slane %v6854, 5
    %v6857 = vshll.u32 %v6683, 16
    %v6859 = vrot.slane %v6857, 6
    %v6860 = vor.u32 %v6856, %v6859
    %v6861 = vrot.slane %v6860, 4
    %v6862 = vrot.slane %v6441, 5
    %v6863 = vrot.slane %v6437, 6
    %v6864 = vor.u32 %v6862, %v6863
    %v6865 = vsel %vm1046, %v6861, %v6864
    %v6866 = vrot.slane %v6864, 4
    %v6868 = vshrl.u32 %v6829, 16
    %v6870 = vrot.slane %v6868, 5
    %v6871 = vshll.u32 %v6829, 16
    %v6873 = vrot.slane %v6871, 6
    %v6874 = vor.u32 %v6870, %v6873
    %v6875 = vsel %vm1046, %v6866, %v6874
    %s6876 = scalar_lea.vmem [#allocation30], 192
    %v6877 = vld [vmem:[%s6876] sm:$0xf]
    %v6878 = vld [vmem:[%s6876 + $0x4] sm:$0xf]
    %v6879 = vld [vmem:[%s6876 + $0x8] sm:$0xf]
    %v6880 = vld [vmem:[%s6876 + $0xc] sm:$0xf]
    %v6881 = vld [vmem:[%s6876 + $0x10] sm:$0xf]
    %v6882 = vld [vmem:[%s6876 + $0x14] sm:$0xf]
    %v6883 = vld [vmem:[%s6876 + $0x18] sm:$0xf]
    %v6884 = vld [vmem:[%s6876 + $0x1c] sm:$0xf]
    %v6885 = vld [vmem:[%s6876 + $0x20] sm:$0xf]
    %v6886 = vld [vmem:[%s6876 + $0x24] sm:$0xf]
    %v6887 = vld [vmem:[%s6876 + $0x28] sm:$0xf]
    %v6888 = vld [vmem:[%s6876 + $0x2c] sm:$0xf]
    %v6889 = vld [vmem:[%s6876 + $0x30] sm:$0xf]
    %v6890 = vld [vmem:[%s6876 + $0x34] sm:$0xf]
    %v6891 = vld [vmem:[%s6876 + $0x38] sm:$0xf]
    %v6892 = vld [vmem:[%s6876 + $0x3c] sm:$0xf]
    %v6893 = vunpack.c.l.b16 %v6842
    %v6894 = vunpack.c.l.b16 %v6852
    %v6895 = vunpack.c.l.b16 %v6865
    %v6896 = vunpack.c.l.b16 %v6875
    %v6897 = vpack.c.b16 %v6894, %v6893
    %v6898 = vpack.c.b16 %v6896, %v6895
    %v6917 = vunpack.c.l.b16 %v6877
    %v6918 = vunpack.c.l.b16 %v6878
    %v6919 = vunpack.c.l.b16 %v6879
    %v6920 = vunpack.c.l.b16 %v6880
    %v6921 = vunpack.c.l.b16 %v6881
    %v6922 = vunpack.c.l.b16 %v6882
    %v6923 = vunpack.c.l.b16 %v6883
    %v6924 = vunpack.c.l.b16 %v6884
    %v6925 = vunpack.c.l.b16 %v6885
    %v6926 = vunpack.c.l.b16 %v6886
    %v6927 = vunpack.c.l.b16 %v6887
    %v6928 = vunpack.c.l.b16 %v6888
    %v6929 = vunpack.c.l.b16 %v6889
    %v6930 = vunpack.c.l.b16 %v6890
    %v6931 = vunpack.c.l.b16 %v6891
    %v6932 = vunpack.c.l.b16 %v6892
    %v6933 = vpack.c.b16 %v6918, %v6917
    %v6934 = vpack.c.b16 %v6920, %v6919
    %v6935 = vpack.c.b16 %v6922, %v6921
    %v6936 = vpack.c.b16 %v6924, %v6923
    %v6937 = vpack.c.b16 %v6926, %v6925
    %v6938 = vpack.c.b16 %v6928, %v6927
    %v6939 = vpack.c.b16 %v6930, %v6929
    %v6940 = vpack.c.b16 %v6932, %v6931
    %6949 = vmatprep.subr.bf16.mxu0 0
    %6950 = vmatpush1.bf16.msra.mxu0 %v6933
    %6951 = vmatprep.subr.bf16.mxu0 0
    %6952 = vmatpush1.bf16.msra.mxu0 %v6934
    %6953 = vmatprep.subr.bf16.mxu0 0
    %6954 = vmatpush1.bf16.msra.mxu0 %v6935
    %6955 = vmatprep.subr.bf16.mxu0 0
    %6956 = vmatpush1.bf16.msra.mxu0 %v6936
    %6957 = vmatprep.subr.bf16.mxu0 0
    %6958 = vmatpush1.bf16.msra.mxu0 %v6937
    %6959 = vmatprep.subr.bf16.mxu0 0
    %6960 = vmatpush1.bf16.msra.mxu0 %v6938
    %6961 = vmatprep.subr.bf16.mxu0 0
    %6962 = vmatpush1.bf16.msra.mxu0 %v6939
    %6963 = vmatprep.subr.bf16.mxu0 0
    %6964 = vmatpush1.bf16.msra.mxu0 %v6940
    %6965 = vmatprep.subr.bf16.mxu0 0
    %6966 = vmatpush1.bf16.msra.mxu0 0
    %6967 = vmatprep.subr.bf16.mxu0 0
    %6968 = vmatpush1.bf16.msra.mxu0 0
    %6969 = vmatprep.subr.bf16.mxu0 0
    %6970 = vmatpush1.bf16.msra.mxu0 0
    %6971 = vmatprep.subr.bf16.mxu0 0
    %6972 = vmatpush1.bf16.msra.mxu0 0
    %6973 = vmatprep.subr.bf16.mxu0 0
    %6974 = vmatpush1.bf16.msra.mxu0 0
    %6975 = vmatprep.subr.bf16.mxu0 0
    %6976 = vmatpush1.bf16.msra.mxu0 0
    %6977 = vmatprep.subr.bf16.mxu0 0
    %6978 = vmatpush1.bf16.msra.mxu0 0
    %6979 = vmatprep.subr.bf16.mxu0 0
    %6980 = vmatpush1.bf16.msra.mxu0 0
    %6981 = vmatprep.mubr.bf16.mxu0 0
    %6982 = vmatmul.mubr.bf16.gmra.mrb[0].mxu0 %v6897
    %v6983 = vpop.f32.mrb[0].mxu0
    %v6984 = vadd.f32 0.0, %v6983
    %v6985 = vpop.f32.mrb[0].mxu0
    %v6986 = vpop.f32.mrb[0].mxu0
    %v6987 = vadd.f32 0.0, %v6986
    %v6988 = vpop.f32.mrb[0].mxu0
    %6989 = vmatprep.mubr.bf16.mxu0 0
    %6990 = vmatmul.mubr.bf16.gmra.mrb[0].mxu0 %v6898
    %v6991 = vpop.f32.mrb[0].mxu0
    %v6992 = vadd.f32 0.0, %v6991
    %v6993 = vpop.f32.mrb[0].mxu0
    %v6994 = vpop.f32.mrb[0].mxu0
    %v6995 = vadd.f32 0.0, %v6994
    %v6996 = vpop.f32.mrb[0].mxu0
    %6997 = vdwg.mxu0
    %v6998 = vadd.f32 %v6824, %v6984
    %v6999 = vadd.f32 %v6825, %v6987
    %v7000 = vadd.f32 %v6826, %v6992
    %v7001 = vadd.f32 %v6827, %v6995
    %v7002 = vld [vmem:[#allocation2] sm:$0xc]
    %v7003 = vld [vmem:[#allocation2 + $0xc] sm:$0xc]
    %v7008 = vrot.slane %v7002, 6
    %v7009 = vrot.slane %v7008, 4
    %v7010 = vrot.slane %v6382, 6
    %v7011 = vsel %vm1226, %v7009, %v7010
    %v7012 = vrot.slane %v7010, 4
    %v7013 = vrot.slane %v6828, 6
    %v7014 = vsel %vm1226, %v7012, %v7013
    %v7015 = vrot.slane %v7003, 6
    %v7016 = vrot.slane %v7015, 4
    %v7017 = vrot.slane %v6384, 6
    %v7018 = vsel %vm1226, %v7016, %v7017
    %v7019 = vrot.slane %v7017, 4
    %v7020 = vrot.slane %v6829, 6
    %v7021 = vsel %vm1226, %v7019, %v7020
    %s7022 = scalar_lea.vmem [#allocation30], 256
    %v7023 = vld [vmem:[%s7022] sm:$0xf]
    %v7024 = vld [vmem:[%s7022 + $0x4] sm:$0xf]
    %v7025 = vld [vmem:[%s7022 + $0x8] sm:$0xf]
    %v7026 = vld [vmem:[%s7022 + $0xc] sm:$0xf]
    %v7027 = vld [vmem:[%s7022 + $0x10] sm:$0xf]
    %v7028 = vld [vmem:[%s7022 + $0x14] sm:$0xf]
    %v7029 = vld [vmem:[%s7022 + $0x18] sm:$0xf]
    %v7030 = vld [vmem:[%s7022 + $0x1c] sm:$0xf]
    %v7031 = vld [vmem:[%s7022 + $0x20] sm:$0xf]
    %v7032 = vld [vmem:[%s7022 + $0x24] sm:$0xf]
    %v7033 = vld [vmem:[%s7022 + $0x28] sm:$0xf]
    %v7034 = vld [vmem:[%s7022 + $0x2c] sm:$0xf]
    %v7035 = vld [vmem:[%s7022 + $0x30] sm:$0xf]
    %v7036 = vld [vmem:[%s7022 + $0x34] sm:$0xf]
    %v7037 = vld [vmem:[%s7022 + $0x38] sm:$0xf]
    %v7038 = vld [vmem:[%s7022 + $0x3c] sm:$0xf]
    %v7039 = vunpack.c.l.b16 %v7011
    %v7040 = vunpack.c.l.b16 %v7014
    %v7041 = vunpack.c.l.b16 %v7018
    %v7042 = vunpack.c.l.b16 %v7021
    %v7043 = vpack.c.b16 %v7040, %v7039
    %v7044 = vpack.c.b16 %v7042, %v7041
    %v7063 = vunpack.c.l.b16 %v7023
    %v7064 = vunpack.c.l.b16 %v7024
    %v7065 = vunpack.c.l.b16 %v7025
    %v7066 = vunpack.c.l.b16 %v7026
    %v7067 = vunpack.c.l.b16 %v7027
    %v7068 = vunpack.c.l.b16 %v7028
    %v7069 = vunpack.c.l.b16 %v7029
    %v7070 = vunpack.c.l.b16 %v7030
    %v7071 = vunpack.c.l.b16 %v7031
    %v7072 = vunpack.c.l.b16 %v7032
    %v7073 = vunpack.c.l.b16 %v7033
    %v7074 = vunpack.c.l.b16 %v7034
    %v7075 = vunpack.c.l.b16 %v7035
    %v7076 = vunpack.c.l.b16 %v7036
    %v7077 = vunpack.c.l.b16 %v7037
    %v7078 = vunpack.c.l.b16 %v7038
    %v7079 = vpack.c.b16 %v7064, %v7063
    %v7080 = vpack.c.b16 %v7066, %v7065
    %v7081 = vpack.c.b16 %v7068, %v7067
    %v7082 = vpack.c.b16 %v7070, %v7069
    %v7083 = vpack.c.b16 %v7072, %v7071
    %v7084 = vpack.c.b16 %v7074, %v7073
    %v7085 = vpack.c.b16 %v7076, %v7075
    %v7086 = vpack.c.b16 %v7078, %v7077
    %7095 = vmatprep.subr.bf16.mxu0 0
    %7096 = vmatpush1.bf16.msra.mxu0 %v7079
    %7097 = vmatprep.subr.bf16.mxu0 0
    %7098 = vmatpush1.bf16.msra.mxu0 %v7080
    %7099 = vmatprep.subr.bf16.mxu0 0
    %7100 = vmatpush1.bf16.msra.mxu0 %v7081
    %7101 = vmatprep.subr.bf16.mxu0 0
    %7102 = vmatpush1.bf16.msra.mxu0 %v7082
    %7103 = vmatprep.subr.bf16.mxu0 0
    %7104 = vmatpush1.bf16.msra.mxu0 %v7083
    %7105 = vmatprep.subr.bf16.mxu0 0
    %7106 = vmatpush1.bf16.msra.mxu0 %v7084
    %7107 = vmatprep.subr.bf16.mxu0 0
    %7108 = vmatpush1.bf16.msra.mxu0 %v7085
    %7109 = vmatprep.subr.bf16.mxu0 0
    %7110 = vmatpush1.bf16.msra.mxu0 %v7086
    %7111 = vmatprep.subr.bf16.mxu0 0
    %7112 = vmatpush1.bf16.msra.mxu0 0
    %7113 = vmatprep.subr.bf16.mxu0 0
    %7114 = vmatpush1.bf16.msra.mxu0 0
    %7115 = vmatprep.subr.bf16.mxu0 0
    %7116 = vmatpush1.bf16.msra.mxu0 0
    %7117 = vmatprep.subr.bf16.mxu0 0
    %7118 = vmatpush1.bf16.msra.mxu0 0
    %7119 = vmatprep.subr.bf16.mxu0 0
    %7120 = vmatpush1.bf16.msra.mxu0 0
    %7121 = vmatprep.subr.bf16.mxu0 0
    %7122 = vmatpush1.bf16.msra.mxu0 0
    %7123 = vmatprep.subr.bf16.mxu0 0
    %7124 = vmatpush1.bf16.msra.mxu0 0
    %7125 = vmatprep.subr.bf16.mxu0 0
    %7126 = vmatpush1.bf16.msra.mxu0 0
    %7127 = vmatprep.mubr.bf16.mxu0 0
    %7128 = vmatmul.mubr.bf16.gmra.mrb[0].mxu0 %v7043
    %v7129 = vpop.f32.mrb[0].mxu0
    %v7130 = vadd.f32 0.0, %v7129
    %v7131 = vpop.f32.mrb[0].mxu0
    %v7132 = vpop.f32.mrb[0].mxu0
    %v7133 = vadd.f32 0.0, %v7132
    %v7134 = vpop.f32.mrb[0].mxu0
    %7135 = vmatprep.mubr.bf16.mxu0 0
    %7136 = vmatmul.mubr.bf16.gmra.mrb[0].mxu0 %v7044
    %v7137 = vpop.f32.mrb[0].mxu0
    %v7138 = vadd.f32 0.0, %v7137
    %v7139 = vpop.f32.mrb[0].mxu0
    %v7140 = vpop.f32.mrb[0].mxu0
    %v7141 = vadd.f32 0.0, %v7140
    %v7142 = vpop.f32.mrb[0].mxu0
    %7143 = vdwg.mxu0
    %v7144 = vadd.f32 %v6998, %v7130
    %v7145 = vadd.f32 %v6999, %v7133
    %v7146 = vadd.f32 %v7000, %v7138
    %v7147 = vadd.f32 %v7001, %v7141
    %v7148 = vld [vmem:[#allocation2 + $0x8] sm:$0x7]
    %v7149 = vld [vmem:[#allocation2 + $0x14] sm:$0x7]
    %v7151 = vshrl.u32 %v7002, 16
    %v7153 = vrot.slane %v7151, 6
    %v7154 = vshll.u32 %v7002, 16
    %v7156 = vrot.slane %v7154, 7
    %v7157 = vor.u32 %v7153, %v7156
    %v7158 = vrot.slane %v7157, 4
    %v7159 = vrot.slane %v6417, 6
    %v7160 = vrot.slane %v6413, 7
    %v7161 = vor.u32 %v7159, %v7160
    %v7162 = vsel %vm526, %v7158, %v7161
    %v7163 = vrot.slane %v7161, 4
    %v7165 = vshrl.u32 %v7148, 16
    %v7167 = vrot.slane %v7165, 6
    %v7168 = vshll.u32 %v7148, 16
    %v7170 = vrot.slane %v7168, 7
    %v7171 = vor.u32 %v7167, %v7170
    %v7172 = vsel %vm526, %v7163, %v7171
    %v7174 = vshrl.u32 %v7003, 16
    %v7176 = vrot.slane %v7174, 6
    %v7177 = vshll.u32 %v7003, 16
    %v7179 = vrot.slane %v7177, 7
    %v7180 = vor.u32 %v7176, %v7179
    %v7181 = vrot.slane %v7180, 4
    %v7182 = vrot.slane %v6441, 6
    %v7183 = vrot.slane %v6437, 7
    %v7184 = vor.u32 %v7182, %v7183
    %v7185 = vsel %vm526, %v7181, %v7184
    %v7186 = vrot.slane %v7184, 4
    %v7188 = vshrl.u32 %v7149, 16
    %v7190 = vrot.slane %v7188, 6
    %v7191 = vshll.u32 %v7149, 16
    %v7193 = vrot.slane %v7191, 7
    %v7194 = vor.u32 %v7190, %v7193
    %v7195 = vsel %vm526, %v7186, %v7194
    %s7196 = scalar_lea.vmem [#allocation30], 320
    %v7197 = vld [vmem:[%s7196] sm:$0xf]
    %v7198 = vld [vmem:[%s7196 + $0x4] sm:$0xf]
    %v7199 = vld [vmem:[%s7196 + $0x8] sm:$0xf]
    %v7200 = vld [vmem:[%s7196 + $0xc] sm:$0xf]
    %v7201 = vld [vmem:[%s7196 + $0x10] sm:$0xf]
    %v7202 = vld [vmem:[%s7196 + $0x14] sm:$0xf]
    %v7203 = vld [vmem:[%s7196 + $0x18] sm:$0xf]
    %v7204 = vld [vmem:[%s7196 + $0x1c] sm:$0xf]
    %v7205 = vld [vmem:[%s7196 + $0x20] sm:$0xf]
    %v7206 = vld [vmem:[%s7196 + $0x24] sm:$0xf]
    %v7207 = vld [vmem:[%s7196 + $0x28] sm:$0xf]
    %v7208 = vld [vmem:[%s7196 + $0x2c] sm:$0xf]
    %v7209 = vld [vmem:[%s7196 + $0x30] sm:$0xf]
    %v7210 = vld [vmem:[%s7196 + $0x34] sm:$0xf]
    %v7211 = vld [vmem:[%s7196 + $0x38] sm:$0xf]
    %v7212 = vld [vmem:[%s7196 + $0x3c] sm:$0xf]
    %v7213 = vunpack.c.l.b16 %v7162
    %v7214 = vunpack.c.l.b16 %v7172
    %v7215 = vunpack.c.l.b16 %v7185
    %v7216 = vunpack.c.l.b16 %v7195
    %v7217 = vpack.c.b16 %v7214, %v7213
    %v7218 = vpack.c.b16 %v7216, %v7215
    %v7237 = vunpack.c.l.b16 %v7197
    %v7238 = vunpack.c.l.b16 %v7198
    %v7239 = vunpack.c.l.b16 %v7199
    %v7240 = vunpack.c.l.b16 %v7200
    %v7241 = vunpack.c.l.b16 %v7201
    %v7242 = vunpack.c.l.b16 %v7202
    %v7243 = vunpack.c.l.b16 %v7203
    %v7244 = vunpack.c.l.b16 %v7204
    %v7245 = vunpack.c.l.b16 %v7205
    %v7246 = vunpack.c.l.b16 %v7206
    %v7247 = vunpack.c.l.b16 %v7207
    %v7248 = vunpack.c.l.b16 %v7208
    %v7249 = vunpack.c.l.b16 %v7209
    %v7250 = vunpack.c.l.b16 %v7210
    %v7251 = vunpack.c.l.b16 %v7211
    %v7252 = vunpack.c.l.b16 %v7212
    %v7253 = vpack.c.b16 %v7238, %v7237
    %v7254 = vpack.c.b16 %v7240, %v7239
    %v7255 = vpack.c.b16 %v7242, %v7241
    %v7256 = vpack.c.b16 %v7244, %v7243
    %v7257 = vpack.c.b16 %v7246, %v7245
    %v7258 = vpack.c.b16 %v7248, %v7247
    %v7259 = vpack.c.b16 %v7250, %v7249
    %v7260 = vpack.c.b16 %v7252, %v7251
    %7269 = vmatprep.subr.bf16.mxu0 0
    %7270 = vmatpush1.bf16.msra.mxu0 %v7253
    %7271 = vmatprep.subr.bf16.mxu0 0
    %7272 = vmatpush1.bf16.msra.mxu0 %v7254
    %7273 = vmatprep.subr.bf16.mxu0 0
    %7274 = vmatpush1.bf16.msra.mxu0 %v7255
    %7275 = vmatprep.subr.bf16.mxu0 0
    %7276 = vmatpush1.bf16.msra.mxu0 %v7256
    %7277 = vmatprep.subr.bf16.mxu0 0
    %7278 = vmatpush1.bf16.msra.mxu0 %v7257
    %7279 = vmatprep.subr.bf16.mxu0 0
    %7280 = vmatpush1.bf16.msra.mxu0 %v7258
    %7281 = vmatprep.subr.bf16.mxu0 0
    %7282 = vmatpush1.bf16.msra.mxu0 %v7259
    %7283 = vmatprep.subr.bf16.mxu0 0
    %7284 = vmatpush1.bf16.msra.mxu0 %v7260
    %7285 = vmatprep.subr.bf16.mxu0 0
    %7286 = vmatpush1.bf16.msra.mxu0 0
    %7287 = vmatprep.subr.bf16.mxu0 0
    %7288 = vmatpush1.bf16.msra.mxu0 0
    %7289 = vmatprep.subr.bf16.mxu0 0
    %7290 = vmatpush1.bf16.msra.mxu0 0
    %7291 = vmatprep.subr.bf16.mxu0 0
    %7292 = vmatpush1.bf16.msra.mxu0 0
    %7293 = vmatprep.subr.bf16.mxu0 0
    %7294 = vmatpush1.bf16.msra.mxu0 0
    %7295 = vmatprep.subr.bf16.mxu0 0
    %7296 = vmatpush1.bf16.msra.mxu0 0
    %7297 = vmatprep.subr.bf16.mxu0 0
    %7298 = vmatpush1.bf16.msra.mxu0 0
    %7299 = vmatprep.subr.bf16.mxu0 0
    %7300 = vmatpush1.bf16.msra.mxu0 0
    %7301 = vmatprep.mubr.bf16.mxu0 0
    %7302 = vmatmul.mubr.bf16.gmra.mrb[0].mxu0 %v7217
    %v7303 = vpop.f32.mrb[0].mxu0
    %v7304 = vadd.f32 0.0, %v7303
    %v7305 = vpop.f32.mrb[0].mxu0
    %v7306 = vpop.f32.mrb[0].mxu0
    %v7307 = vadd.f32 0.0, %v7306
    %v7308 = vpop.f32.mrb[0].mxu0
    %7309 = vmatprep.mubr.bf16.mxu0 0
    %7310 = vmatmul.mubr.bf16.gmra.mrb[0].mxu0 %v7218
    %v7311 = vpop.f32.mrb[0].mxu0
    %v7312 = vadd.f32 0.0, %v7311
    %v7313 = vpop.f32.mrb[0].mxu0
    %v7314 = vpop.f32.mrb[0].mxu0
    %v7315 = vadd.f32 0.0, %v7314
    %v7316 = vpop.f32.mrb[0].mxu0
    %7317 = vdwg.mxu0
    %v7318 = vadd.f32 %v7144, %v7304
    %v7319 = vadd.f32 %v7145, %v7307
    %v7320 = vadd.f32 %v7146, %v7312
    %v7321 = vadd.f32 %v7147, %v7315
    %v7322 = vld [vmem:[#allocation2] sm:$0x8]
    %v7323 = vld [vmem:[#allocation2 + $0xc] sm:$0x8]
    %v7328 = vrot.slane %v7322, 7
    %v7329 = vrot.slane %v7328, 4
    %v7330 = vrot.slane %v6382, 7
    %v7331 = vsel %vm1549, %v7329, %v7330
    %v7332 = vrot.slane %v7330, 4
    %v7333 = vrot.slane %v7148, 7
    %v7334 = vsel %vm1549, %v7332, %v7333
    %v7335 = vrot.slane %v7323, 7
    %v7336 = vrot.slane %v7335, 4
    %v7337 = vrot.slane %v6384, 7
    %v7338 = vsel %vm1549, %v7336, %v7337
    %v7339 = vrot.slane %v7337, 4
    %v7340 = vrot.slane %v7149, 7
    %v7341 = vsel %vm1549, %v7339, %v7340
    %s7342 = scalar_lea.vmem [#allocation30], 384
    %v7343 = vld [vmem:[%s7342] sm:$0xf]
    %v7344 = vld [vmem:[%s7342 + $0x4] sm:$0xf]
    %v7345 = vld [vmem:[%s7342 + $0x8] sm:$0xf]
    %v7346 = vld [vmem:[%s7342 + $0xc] sm:$0xf]
    %v7347 = vld [vmem:[%s7342 + $0x10] sm:$0xf]
    %v7348 = vld [vmem:[%s7342 + $0x14] sm:$0xf]
    %v7349 = vld [vmem:[%s7342 + $0x18] sm:$0xf]
    %v7350 = vld [vmem:[%s7342 + $0x1c] sm:$0xf]
    %v7351 = vld [vmem:[%s7342 + $0x20] sm:$0xf]
    %v7352 = vld [vmem:[%s7342 + $0x24] sm:$0xf]
    %v7353 = vld [vmem:[%s7342 + $0x28] sm:$0xf]
    %v7354 = vld [vmem:[%s7342 + $0x2c] sm:$0xf]
    %v7355 = vld [vmem:[%s7342 + $0x30] sm:$0xf]
    %v7356 = vld [vmem:[%s7342 + $0x34] sm:$0xf]
    %v7357 = vld [vmem:[%s7342 + $0x38] sm:$0xf]
    %v7358 = vld [vmem:[%s7342 + $0x3c] sm:$0xf]
    %v7359 = vunpack.c.l.b16 %v7331
    %v7360 = vunpack.c.l.b16 %v7334
    %v7361 = vunpack.c.l.b16 %v7338
    %v7362 = vunpack.c.l.b16 %v7341
    %v7363 = vpack.c.b16 %v7360, %v7359
    %v7364 = vpack.c.b16 %v7362, %v7361
    %v7383 = vunpack.c.l.b16 %v7343
    %v7384 = vunpack.c.l.b16 %v7344
    %v7385 = vunpack.c.l.b16 %v7345
    %v7386 = vunpack.c.l.b16 %v7346
    %v7387 = vunpack.c.l.b16 %v7347
    %v7388 = vunpack.c.l.b16 %v7348
    %v7389 = vunpack.c.l.b16 %v7349
    %v7390 = vunpack.c.l.b16 %v7350
    %v7391 = vunpack.c.l.b16 %v7351
    %v7392 = vunpack.c.l.b16 %v7352
    %v7393 = vunpack.c.l.b16 %v7353
    %v7394 = vunpack.c.l.b16 %v7354
    %v7395 = vunpack.c.l.b16 %v7355
    %v7396 = vunpack.c.l.b16 %v7356
    %v7397 = vunpack.c.l.b16 %v7357
    %v7398 = vunpack.c.l.b16 %v7358
    %v7399 = vpack.c.b16 %v7384, %v7383
    %v7400 = vpack.c.b16 %v7386, %v7385
    %v7401 = vpack.c.b16 %v7388, %v7387
    %v7402 = vpack.c.b16 %v7390, %v7389
    %v7403 = vpack.c.b16 %v7392, %v7391
    %v7404 = vpack.c.b16 %v7394, %v7393
    %v7405 = vpack.c.b16 %v7396, %v7395
    %v7406 = vpack.c.b16 %v7398, %v7397
    %7415 = vmatprep.subr.bf16.mxu0 0
    %7416 = vmatpush1.bf16.msra.mxu0 %v7399
    %7417 = vmatprep.subr.bf16.mxu0 0
    %7418 = vmatpush1.bf16.msra.mxu0 %v7400
    %7419 = vmatprep.subr.bf16.mxu0 0
    %7420 = vmatpush1.bf16.msra.mxu0 %v7401
    %7421 = vmatprep.subr.bf16.mxu0 0
    %7422 = vmatpush1.bf16.msra.mxu0 %v7402
    %7423 = vmatprep.subr.bf16.mxu0 0
    %7424 = vmatpush1.bf16.msra.mxu0 %v7403
    %7425 = vmatprep.subr.bf16.mxu0 0
    %7426 = vmatpush1.bf16.msra.mxu0 %v7404
    %7427 = vmatprep.subr.bf16.mxu0 0
    %7428 = vmatpush1.bf16.msra.mxu0 %v7405
    %7429 = vmatprep.subr.bf16.mxu0 0
    %7430 = vmatpush1.bf16.msra.mxu0 %v7406
    %7431 = vmatprep.subr.bf16.mxu0 0
    %7432 = vmatpush1.bf16.msra.mxu0 0
    %7433 = vmatprep.subr.bf16.mxu0 0
    %7434 = vmatpush1.bf16.msra.mxu0 0
    %7435 = vmatprep.subr.bf16.mxu0 0
    %7436 = vmatpush1.bf16.msra.mxu0 0
    %7437 = vmatprep.subr.bf16.mxu0 0
    %7438 = vmatpush1.bf16.msra.mxu0 0
    %7439 = vmatprep.subr.bf16.mxu0 0
    %7440 = vmatpush1.bf16.msra.mxu0 0
    %7441 = vmatprep.subr.bf16.mxu0 0
    %7442 = vmatpush1.bf16.msra.mxu0 0
    %7443 = vmatprep.subr.bf16.mxu0 0
    %7444 = vmatpush1.bf16.msra.mxu0 0
    %7445 = vmatprep.subr.bf16.mxu0 0
    %7446 = vmatpush1.bf16.msra.mxu0 0
    %7447 = vmatprep.mubr.bf16.mxu0 0
    %7448 = vmatmul.mubr.bf16.gmra.mrb[0].mxu0 %v7363
    %v7449 = vpop.f32.mrb[0].mxu0
    %v7450 = vadd.f32 0.0, %v7449
    %v7451 = vpop.f32.mrb[0].mxu0
    %v7452 = vpop.f32.mrb[0].mxu0
    %v7453 = vadd.f32 0.0, %v7452
    %v7454 = vpop.f32.mrb[0].mxu0
    %7455 = vmatprep.mubr.bf16.mxu0 0
    %7456 = vmatmul.mubr.bf16.gmra.mrb[0].mxu0 %v7364
    %v7457 = vpop.f32.mrb[0].mxu0
    %v7458 = vadd.f32 0.0, %v7457
    %v7459 = vpop.f32.mrb[0].mxu0
    %v7460 = vpop.f32.mrb[0].mxu0
    %v7461 = vadd.f32 0.0, %v7460
    %v7462 = vpop.f32.mrb[0].mxu0
    %7463 = vdwg.mxu0
    %v7464 = vadd.f32 %v7318, %v7450
    %v7465 = vadd.f32 %v7319, %v7453
    %v7466 = vadd.f32 %v7320, %v7458
    %v7467 = vadd.f32 %v7321, %v7461
    %v7468 = vld [vmem:[#allocation2 + $0x8] sm:$0xf]
    %v7469 = vld [vmem:[#allocation2 + $0x14] sm:$0xf]
    %v7471 = vshrl.u32 %v7322, 16
    %v7473 = vrot.slane %v7471, 7
    %v7474 = vrot.slane %v7473, 4
    %v7475 = vrot.slane %v6417, 7
    %v7476 = vor.u32 %v7475, %v6413
    %v7477 = vsel %vm1694, %v7474, %v7476
    %v7478 = vrot.slane %v7475, 4
    %v7480 = vshrl.u32 %v7468, 16
    %v7482 = vrot.slane %v7480, 7
    %v7483 = vshll.u32 %v7468, 16
    %v7485 = vor.u32 %v7482, %v7483
    %v7486 = vsel %vm1694, %v7478, %v7485
    %v7488 = vshrl.u32 %v7323, 16
    %v7490 = vrot.slane %v7488, 7
    %v7491 = vrot.slane %v7490, 4
    %v7492 = vrot.slane %v6441, 7
    %v7493 = vor.u32 %v7492, %v6437
    %v7494 = vsel %vm1694, %v7491, %v7493
    %v7495 = vrot.slane %v7492, 4
    %v7497 = vshrl.u32 %v7469, 16
    %v7499 = vrot.slane %v7497, 7
    %v7500 = vshll.u32 %v7469, 16
    %v7502 = vor.u32 %v7499, %v7500
    %v7503 = vsel %vm1694, %v7495, %v7502
    %s7504 = scalar_lea.vmem [#allocation30], 448
    %v7505 = vld [vmem:[%s7504] sm:$0xf]
    %v7506 = vld [vmem:[%s7504 + $0x4] sm:$0xf]
    %v7507 = vld [vmem:[%s7504 + $0x8] sm:$0xf]
    %v7508 = vld [vmem:[%s7504 + $0xc] sm:$0xf]
    %v7509 = vld [vmem:[%s7504 + $0x10] sm:$0xf]
    %v7510 = vld [vmem:[%s7504 + $0x14] sm:$0xf]
    %v7511 = vld [vmem:[%s7504 + $0x18] sm:$0xf]
    %v7512 = vld [vmem:[%s7504 + $0x1c] sm:$0xf]
    %v7513 = vld [vmem:[%s7504 + $0x20] sm:$0xf]
    %v7514 = vld [vmem:[%s7504 + $0x24] sm:$0xf]
    %v7515 = vld [vmem:[%s7504 + $0x28] sm:$0xf]
    %v7516 = vld [vmem:[%s7504 + $0x2c] sm:$0xf]
    %v7517 = vld [vmem:[%s7504 + $0x30] sm:$0xf]
    %v7518 = vld [vmem:[%s7504 + $0x34] sm:$0xf]
    %v7519 = vld [vmem:[%s7504 + $0x38] sm:$0xf]
    %v7520 = vld [vmem:[%s7504 + $0x3c] sm:$0xf]
    %v7521 = vunpack.c.l.b16 %v7477
    %v7522 = vunpack.c.l.b16 %v7486
    %v7523 = vunpack.c.l.b16 %v7494
    %v7524 = vunpack.c.l.b16 %v7503
    %v7525 = vpack.c.b16 %v7522, %v7521
    %v7526 = vpack.c.b16 %v7524, %v7523
    %v7545 = vunpack.c.l.b16 %v7505
    %v7546 = vunpack.c.l.b16 %v7506
    %v7547 = vunpack.c.l.b16 %v7507
    %v7548 = vunpack.c.l.b16 %v7508
    %v7549 = vunpack.c.l.b16 %v7509
    %v7550 = vunpack.c.l.b16 %v7510
    %v7551 = vunpack.c.l.b16 %v7511
    %v7552 = vunpack.c.l.b16 %v7512
    %v7553 = vunpack.c.l.b16 %v7513
    %v7554 = vunpack.c.l.b16 %v7514
    %v7555 = vunpack.c.l.b16 %v7515
    %v7556 = vunpack.c.l.b16 %v7516
    %v7557 = vunpack.c.l.b16 %v7517
    %v7558 = vunpack.c.l.b16 %v7518
    %v7559 = vunpack.c.l.b16 %v7519
    %v7560 = vunpack.c.l.b16 %v7520
    %v7561 = vpack.c.b16 %v7546, %v7545
    %v7562 = vpack.c.b16 %v7548, %v7547
    %v7563 = vpack.c.b16 %v7550, %v7549
    %v7564 = vpack.c.b16 %v7552, %v7551
    %v7565 = vpack.c.b16 %v7554, %v7553
    %v7566 = vpack.c.b16 %v7556, %v7555
    %v7567 = vpack.c.b16 %v7558, %v7557
    %v7568 = vpack.c.b16 %v7560, %v7559
    %7577 = vmatprep.subr.bf16.mxu0 0
    %7578 = vmatpush1.bf16.msra.mxu0 %v7561
    %7579 = vmatprep.subr.bf16.mxu0 0
    %7580 = vmatpush1.bf16.msra.mxu0 %v7562
    %7581 = vmatprep.subr.bf16.mxu0 0
    %7582 = vmatpush1.bf16.msra.mxu0 %v7563
    %7583 = vmatprep.subr.bf16.mxu0 0
    %7584 = vmatpush1.bf16.msra.mxu0 %v7564
    %7585 = vmatprep.subr.bf16.mxu0 0
    %7586 = vmatpush1.bf16.msra.mxu0 %v7565
    %7587 = vmatprep.subr.bf16.mxu0 0
    %7588 = vmatpush1.bf16.msra.mxu0 %v7566
    %7589 = vmatprep.subr.bf16.mxu0 0
    %7590 = vmatpush1.bf16.msra.mxu0 %v7567
    %7591 = vmatprep.subr.bf16.mxu0 0
    %7592 = vmatpush1.bf16.msra.mxu0 %v7568
    %7593 = vmatprep.subr.bf16.mxu0 0
    %7594 = vmatpush1.bf16.msra.mxu0 0
    %7595 = vmatprep.subr.bf16.mxu0 0
    %7596 = vmatpush1.bf16.msra.mxu0 0
    %7597 = vmatprep.subr.bf16.mxu0 0
    %7598 = vmatpush1.bf16.msra.mxu0 0
    %7599 = vmatprep.subr.bf16.mxu0 0
    %7600 = vmatpush1.bf16.msra.mxu0 0
    %7601 = vmatprep.subr.bf16.mxu0 0
    %7602 = vmatpush1.bf16.msra.mxu0 0
    %7603 = vmatprep.subr.bf16.mxu0 0
    %7604 = vmatpush1.bf16.msra.mxu0 0
    %7605 = vmatprep.subr.bf16.mxu0 0
    %7606 = vmatpush1.bf16.msra.mxu0 0
    %7607 = vmatprep.subr.bf16.mxu0 0
    %7608 = vmatpush1.bf16.msra.mxu0 0
    %7609 = vmatprep.mubr.bf16.mxu0 0
    %7610 = vmatmul.mubr.bf16.gmra.mrb[0].mxu0 %v7525
    %v7611 = vpop.f32.mrb[0].mxu0
    %v7612 = vadd.f32 0.0, %v7611
    %v7613 = vpop.f32.mrb[0].mxu0
    %v7614 = vpop.f32.mrb[0].mxu0
    %v7615 = vadd.f32 0.0, %v7614
    %v7616 = vpop.f32.mrb[0].mxu0
    %7617 = vmatprep.mubr.bf16.mxu0 0
    %7618 = vmatmul.mubr.bf16.gmra.mrb[0].mxu0 %v7526
    %v7619 = vpop.f32.mrb[0].mxu0
    %v7620 = vadd.f32 0.0, %v7619
    %v7621 = vpop.f32.mrb[0].mxu0
    %v7622 = vpop.f32.mrb[0].mxu0
    %v7623 = vadd.f32 0.0, %v7622
    %v7624 = vpop.f32.mrb[0].mxu0
    %7625 = vdwg.mxu0
    %v7626 = vadd.f32 %v7464, %v7612
    %v7627 = vadd.f32 %v7465, %v7615
    %v7628 = vadd.f32 %v7466, %v7620
    %v7629 = vadd.f32 %v7467, %v7623
    %v7630 = vld [vmem:[#allocation32] sm:$0x1]
    %v7632 = vlaneseq
    %v7633 = vshrl.u32 %v7632, 7
    %v7634 = vsub.s32 0, %v7633
    %v7635 = vrot.slane %v7630, %v7634
    %v7637 = vmul.f32 %v7626, %v7635
    %v7638 = vmul.f32 %v7627, %v7635
    %v7639 = vmul.f32 %v7628, %v7635
    %v7640 = vmul.f32 %v7629, %v7635
    %v7641 = vld [vmem:[#allocation33] sm:$0x1]
    %v7643 = vlaneseq
    %v7644 = vshrl.u32 %v7643, 7
    %v7645 = vsub.s32 0, %v7644
    %v7646 = vrot.slane %v7641, %v7645
    %v7648 = vadd.f32 %v7637, %v7646
    %v7649 = vadd.f32 %v7638, %v7646
    %v7650 = vadd.f32 %v7639, %v7646
    %v7651 = vadd.f32 %v7640, %v7646
    %v7652 = vmax.f32 %v7648, 0.0
    %v7653 = vmax.f32 %v7649, 0.0
    %v7654 = vmax.f32 %v7650, 0.0
    %v7655 = vmax.f32 %v7651, 0.0
    %v7656 = vpack.c.bf16 %v7653, %v7652
    %v7657 = vpack.c.bf16 %v7655, %v7654
    %7658 = vst [vmem:[#allocation2] sm:$0xf] 0
    %7659 = vst [vmem:[#allocation2 + $0x4] sm:$0xf] 0
    %v7660 = vld [vmem:[#allocation2 + $0x8] sm:$0xf]
    %v7661 = vsel %vm515, 0, %v7660
    %7662 = vst [vmem:[#allocation2 + $0x8] sm:$0xf] %v7661
    %7663 = vst [vmem:[#allocation2 + $0xc] sm:$0xf] 0
    %7664 = vst [vmem:[#allocation2 + $0x10] sm:$0xf] 0
    %v7665 = vld [vmem:[#allocation2 + $0x14] sm:$0xf]
    %v7666 = vsel %vm515, 0, %v7665
    %7667 = vst [vmem:[#allocation2 + $0x14] sm:$0xf] %v7666
    %v7670 = vunpack.c.l.b16 %v7656
    %v7671 = vunpack.c.h.b16 %v7656
    %v7672 = vunpack.c.l.b16 %v7657
    %v7673 = vunpack.c.h.b16 %v7657
    %v7674 = vpack.c.b16 %v7670, %v7670
    %v7675 = vpack.c.b16 %v7671, %v7671
    %v7676 = vpack.c.b16 %v7672, %v7672
    %v7677 = vpack.c.b16 %v7673, %v7673
    %v7678 = vrot.slane %v7674, 7
    %v7679 = vrot.slane %v7678, 4
    %v7680 = vrot.slane %v7675, 7
    %v7681 = vsel %vm1549, %v7679, %v7680
    %v7682 = vrot.slane %v7680, 4
    %v7683 = vrot.slane %v7676, 7
    %v7684 = vrot.slane %v7683, 4
    %v7685 = vrot.slane %v7677, 7
    %v7686 = vsel %vm1549, %v7684, %v7685
    %v7687 = vrot.slane %v7685, 4
    %7694 = vst [vmem:[#allocation2] sm:$0xe] %v7678
    %7695 = vst [vmem:[#allocation2 + $0x4] sm:$0xf] %v7681
    %7696 = vst [vmem:[#allocation2 + $0x8] sm:$0x1] %v7682
    %7697 = vst [vmem:[#allocation2 + $0xc] sm:$0xe] %v7683
    %7698 = vst [vmem:[#allocation2 + $0x10] sm:$0xf] %v7686
    %7699 = vst [vmem:[#allocation2 + $0x14] sm:$0x1] %v7687
    %v7700 = vld [vmem:[#allocation2] sm:$0xf]
    %v7701 = vld [vmem:[#allocation2 + $0x4] sm:$0xf]
    %v7702 = vld [vmem:[#allocation2 + $0xc] sm:$0xf]
    %v7703 = vld [vmem:[#allocation2 + $0x10] sm:$0xf]
    %v7704 = vld [vmem:[#allocation35] sm:$0xf]
    %v7705 = vld [vmem:[#allocation35 + $0x4] sm:$0xf]
    %v7706 = vld [vmem:[#allocation35 + $0x8] sm:$0xf]
    %v7707 = vld [vmem:[#allocation35 + $0xc] sm:$0xf]
    %v7708 = vld [vmem:[#allocation35 + $0x10] sm:$0xf]
    %v7709 = vld [vmem:[#allocation35 + $0x14] sm:$0xf]
    %v7710 = vld [vmem:[#allocation35 + $0x18] sm:$0xf]
    %v7711 = vld [vmem:[#allocation35 + $0x1c] sm:$0xf]
    %v7712 = vld [vmem:[#allocation35 + $0x20] sm:$0xf]
    %v7713 = vld [vmem:[#allocation35 + $0x24] sm:$0xf]
    %v7714 = vld [vmem:[#allocation35 + $0x28] sm:$0xf]
    %v7715 = vld [vmem:[#allocation35 + $0x2c] sm:$0xf]
    %v7716 = vld [vmem:[#allocation35 + $0x30] sm:$0xf]
    %v7717 = vld [vmem:[#allocation35 + $0x34] sm:$0xf]
    %v7718 = vld [vmem:[#allocation35 + $0x38] sm:$0xf]
    %v7719 = vld [vmem:[#allocation35 + $0x3c] sm:$0xf]
    %v7720 = vld [vmem:[#allocation2 + $0x8] sm:$0x1]
    %v7721 = vld [vmem:[#allocation2 + $0x14] sm:$0x1]
    %v7723 = vshrl.u32 %v7700, 16
    %v7725 = vrot.slane %v7723, 4
    %v7726 = vshll.u32 %v7700, 16
    %v7728 = vrot.slane %v7726, 5
    %v7729 = vor.u32 %v7725, %v7728
    %v7730 = vrot.slane %v7729, 4
    %v7732 = vshll.u32 %v7701, 16
    %v7734 = vrot.slane %v7732, 5
    %v7735 = vsel %vm613, %v7730, %v7734
    %v7736 = vshrl.u32 %v7701, 16
    %v7738 = vrot.slane %v7736, 4
    %v7739 = vor.u32 %v7738, %v7734
    %v7740 = vrot.slane %v7739, 4
    %v7742 = vshll.u32 %v7720, 16
    %v7744 = vrot.slane %v7742, 5
    %v7745 = vsel %vm613, %v7740, %v7744
    %v7747 = vshrl.u32 %v7702, 16
    %v7749 = vrot.slane %v7747, 4
    %v7750 = vshll.u32 %v7702, 16
    %v7752 = vrot.slane %v7750, 5
    %v7753 = vor.u32 %v7749, %v7752
    %v7754 = vrot.slane %v7753, 4
    %v7756 = vshll.u32 %v7703, 16
    %v7758 = vrot.slane %v7756, 5
    %v7759 = vsel %vm613, %v7754, %v7758
    %v7760 = vshrl.u32 %v7703, 16
    %v7762 = vrot.slane %v7760, 4
    %v7763 = vor.u32 %v7762, %v7758
    %v7764 = vrot.slane %v7763, 4
    %v7766 = vshll.u32 %v7721, 16
    %v7768 = vrot.slane %v7766, 5
    %v7769 = vsel %vm613, %v7764, %v7768
    %s7770 = scalar_lea.vmem [#allocation35], 64
    %v7771 = vld [vmem:[%s7770] sm:$0xf]
    %v7772 = vld [vmem:[%s7770 + $0x4] sm:$0xf]
    %v7773 = vld [vmem:[%s7770 + $0x8] sm:$0xf]
    %v7774 = vld [vmem:[%s7770 + $0xc] sm:$0xf]
    %v7775 = vld [vmem:[%s7770 + $0x10] sm:$0xf]
    %v7776 = vld [vmem:[%s7770 + $0x14] sm:$0xf]
    %v7777 = vld [vmem:[%s7770 + $0x18] sm:$0xf]
    %v7778 = vld [vmem:[%s7770 + $0x1c] sm:$0xf]
    %v7779 = vld [vmem:[%s7770 + $0x20] sm:$0xf]
    %v7780 = vld [vmem:[%s7770 + $0x24] sm:$0xf]
    %v7781 = vld [vmem:[%s7770 + $0x28] sm:$0xf]
    %v7782 = vld [vmem:[%s7770 + $0x2c] sm:$0xf]
    %v7783 = vld [vmem:[%s7770 + $0x30] sm:$0xf]
    %v7784 = vld [vmem:[%s7770 + $0x34] sm:$0xf]
    %v7785 = vld [vmem:[%s7770 + $0x38] sm:$0xf]
    %v7786 = vld [vmem:[%s7770 + $0x3c] sm:$0xf]
    %v7787 = vunpack.c.l.b16 %v7735
    %v7788 = vunpack.c.l.b16 %v7745
    %v7789 = vunpack.c.l.b16 %v7759
    %v7790 = vunpack.c.l.b16 %v7769
    %v7791 = vpack.c.b16 %v7788, %v7787
    %v7792 = vpack.c.b16 %v7790, %v7789
    %v7811 = vunpack.c.l.b16 %v7771
    %v7812 = vunpack.c.l.b16 %v7772
    %v7813 = vunpack.c.l.b16 %v7773
    %v7814 = vunpack.c.l.b16 %v7774
    %v7815 = vunpack.c.l.b16 %v7775
    %v7816 = vunpack.c.l.b16 %v7776
    %v7817 = vunpack.c.l.b16 %v7777
    %v7818 = vunpack.c.l.b16 %v7778
    %v7819 = vunpack.c.l.b16 %v7779
    %v7820 = vunpack.c.l.b16 %v7780
    %v7821 = vunpack.c.l.b16 %v7781
    %v7822 = vunpack.c.l.b16 %v7782
    %v7823 = vunpack.c.l.b16 %v7783
    %v7824 = vunpack.c.l.b16 %v7784
    %v7825 = vunpack.c.l.b16 %v7785
    %v7826 = vunpack.c.l.b16 %v7786
    %v7827 = vpack.c.b16 %v7812, %v7811
    %v7828 = vpack.c.b16 %v7814, %v7813
    %v7829 = vpack.c.b16 %v7816, %v7815
    %v7830 = vpack.c.b16 %v7818, %v7817
    %v7831 = vpack.c.b16 %v7820, %v7819
    %v7832 = vpack.c.b16 %v7822, %v7821
    %v7833 = vpack.c.b16 %v7824, %v7823
    %v7834 = vpack.c.b16 %v7826, %v7825
    %7843 = vmatprep.subr.bf16.mxu0 0
    %7844 = vmatpush1.bf16.msra.mxu0 %v7827
    %7845 = vmatprep.subr.bf16.mxu0 0
    %7846 = vmatpush1.bf16.msra.mxu0 %v7828
    %7847 = vmatprep.subr.bf16.mxu0 0
    %7848 = vmatpush1.bf16.msra.mxu0 %v7829
    %7849 = vmatprep.subr.bf16.mxu0 0
    %7850 = vmatpush1.bf16.msra.mxu0 %v7830
    %7851 = vmatprep.subr.bf16.mxu0 0
    %7852 = vmatpush1.bf16.msra.mxu0 %v7831
    %7853 = vmatprep.subr.bf16.mxu0 0
    %7854 = vmatpush1.bf16.msra.mxu0 %v7832
    %7855 = vmatprep.subr.bf16.mxu0 0
    %7856 = vmatpush1.bf16.msra.mxu0 %v7833
    %7857 = vmatprep.subr.bf16.mxu0 0
    %7858 = vmatpush1.bf16.msra.mxu0 %v7834
    %7859 = vmatprep.subr.bf16.mxu0 0
    %7860 = vmatpush1.bf16.msra.mxu0 0
    %7861 = vmatprep.subr.bf16.mxu0 0
    %7862 = vmatpush1.bf16.msra.mxu0 0
    %7863 = vmatprep.subr.bf16.mxu0 0
    %7864 = vmatpush1.bf16.msra.mxu0 0
    %7865 = vmatprep.subr.bf16.mxu0 0
    %7866 = vmatpush1.bf16.msra.mxu0 0
    %7867 = vmatprep.subr.bf16.mxu0 0
    %7868 = vmatpush1.bf16.msra.mxu0 0
    %7869 = vmatprep.subr.bf16.mxu0 0
    %7870 = vmatpush1.bf16.msra.mxu0 0
    %7871 = vmatprep.subr.bf16.mxu0 0
    %7872 = vmatpush1.bf16.msra.mxu0 0
    %7873 = vmatprep.subr.bf16.mxu0 0
    %7874 = vmatpush1.bf16.msra.mxu0 0
    %7875 = vmatprep.mubr.bf16.mxu0 0
    %7876 = vmatmul.mubr.bf16.gmra.mrb[0].mxu0 %v7791
    %v7877 = vpop.f32.mrb[0].mxu0
    %v7878 = vadd.f32 0.0, %v7877
    %v7879 = vpop.f32.mrb[0].mxu0
    %v7880 = vpop.f32.mrb[0].mxu0
    %v7881 = vadd.f32 0.0, %v7880
    %v7882 = vpop.f32.mrb[0].mxu0
    %7883 = vmatprep.mubr.bf16.mxu0 0
    %7884 = vmatmul.mubr.bf16.gmra.mrb[0].mxu0 %v7792
    %v7885 = vpop.f32.mrb[0].mxu0
    %v7886 = vadd.f32 0.0, %v7885
    %v7887 = vpop.f32.mrb[0].mxu0
    %v7888 = vpop.f32.mrb[0].mxu0
    %v7889 = vadd.f32 0.0, %v7888
    %v7890 = vpop.f32.mrb[0].mxu0
    %7891 = vdwg.mxu0
    %v7896 = vunpack.c.l.b16 %v7700
    %v7897 = vunpack.c.l.b16 %v7701
    %v7898 = vunpack.c.l.b16 %v7702
    %v7899 = vunpack.c.l.b16 %v7703
    %v7900 = vpack.c.b16 %v7897, %v7896
    %v7901 = vpack.c.b16 %v7899, %v7898
    %v7920 = vunpack.c.l.b16 %v7704
    %v7921 = vunpack.c.l.b16 %v7705
    %v7922 = vunpack.c.l.b16 %v7706
    %v7923 = vunpack.c.l.b16 %v7707
    %v7924 = vunpack.c.l.b16 %v7708
    %v7925 = vunpack.c.l.b16 %v7709
    %v7926 = vunpack.c.l.b16 %v7710
    %v7927 = vunpack.c.l.b16 %v7711
    %v7928 = vunpack.c.l.b16 %v7712
    %v7929 = vunpack.c.l.b16 %v7713
    %v7930 = vunpack.c.l.b16 %v7714
    %v7931 = vunpack.c.l.b16 %v7715
    %v7932 = vunpack.c.l.b16 %v7716
    %v7933 = vunpack.c.l.b16 %v7717
    %v7934 = vunpack.c.l.b16 %v7718
    %v7935 = vunpack.c.l.b16 %v7719
    %v7936 = vpack.c.b16 %v7921, %v7920
    %v7937 = vpack.c.b16 %v7923, %v7922
    %v7938 = vpack.c.b16 %v7925, %v7924
    %v7939 = vpack.c.b16 %v7927, %v7926
    %v7940 = vpack.c.b16 %v7929, %v7928
    %v7941 = vpack.c.b16 %v7931, %v7930
    %v7942 = vpack.c.b16 %v7933, %v7932
    %v7943 = vpack.c.b16 %v7935, %v7934
    %7952 = vmatprep.subr.bf16.mxu0 0
    %7953 = vmatpush1.bf16.msra.mxu0 %v7936
    %7954 = vmatprep.subr.bf16.mxu0 0
    %7955 = vmatpush1.bf16.msra.mxu0 %v7937
    %7956 = vmatprep.subr.bf16.mxu0 0
    %7957 = vmatpush1.bf16.msra.mxu0 %v7938
    %7958 = vmatprep.subr.bf16.mxu0 0
    %7959 = vmatpush1.bf16.msra.mxu0 %v7939
    %7960 = vmatprep.subr.bf16.mxu0 0
    %7961 = vmatpush1.bf16.msra.mxu0 %v7940
    %7962 = vmatprep.subr.bf16.mxu0 0
    %7963 = vmatpush1.bf16.msra.mxu0 %v7941
    %7964 = vmatprep.subr.bf16.mxu0 0
    %7965 = vmatpush1.bf16.msra.mxu0 %v7942
    %7966 = vmatprep.subr.bf16.mxu0 0
    %7967 = vmatpush1.bf16.msra.mxu0 %v7943
    %7968 = vmatprep.subr.bf16.mxu0 0
    %7969 = vmatpush1.bf16.msra.mxu0 0
    %7970 = vmatprep.subr.bf16.mxu0 0
    %7971 = vmatpush1.bf16.msra.mxu0 0
    %7972 = vmatprep.subr.bf16.mxu0 0
    %7973 = vmatpush1.bf16.msra.mxu0 0
    %7974 = vmatprep.subr.bf16.mxu0 0
    %7975 = vmatpush1.bf16.msra.mxu0 0
    %7976 = vmatprep.subr.bf16.mxu0 0
    %7977 = vmatpush1.bf16.msra.mxu0 0
    %7978 = vmatprep.subr.bf16.mxu0 0
    %7979 = vmatpush1.bf16.msra.mxu0 0
    %7980 = vmatprep.subr.bf16.mxu0 0
    %7981 = vmatpush1.bf16.msra.mxu0 0
    %7982 = vmatprep.subr.bf16.mxu0 0
    %7983 = vmatpush1.bf16.msra.mxu0 0
    %7984 = vmatprep.mubr.bf16.mxu0 0
    %7985 = vmatmul.mubr.bf16.gmra.mrb[0].mxu0 %v7900
    %v7986 = vpop.f32.mrb[0].mxu0
    %v7987 = vadd.f32 %v7878, %v7986
    %v7988 = vpop.f32.mrb[0].mxu0
    %v7989 = vpop.f32.mrb[0].mxu0
    %v7990 = vadd.f32 %v7881, %v7989
    %v7991 = vpop.f32.mrb[0].mxu0
    %7992 = vmatprep.mubr.bf16.mxu0 0
    %7993 = vmatmul.mubr.bf16.gmra.mrb[0].mxu0 %v7901
    %v7994 = vpop.f32.mrb[0].mxu0
    %v7995 = vadd.f32 %v7886, %v7994
    %v7996 = vpop.f32.mrb[0].mxu0
    %v7997 = vpop.f32.mrb[0].mxu0
    %v7998 = vadd.f32 %v7889, %v7997
    %v7999 = vpop.f32.mrb[0].mxu0
    %8000 = vdwg.mxu0
    %v8001 = vld [vmem:[#allocation2] sm:$0xe]
    %v8002 = vld [vmem:[#allocation2 + $0xc] sm:$0xe]
    %v8007 = vrot.slane %v8001, 5
    %v8008 = vrot.slane %v8007, 4
    %v8009 = vrot.slane %v7701, 5
    %v8010 = vsel %vm901, %v8008, %v8009
    %v8011 = vrot.slane %v8009, 4
    %v8012 = vrot.slane %v7720, 5
    %v8013 = vsel %vm901, %v8011, %v8012
    %v8014 = vrot.slane %v8002, 5
    %v8015 = vrot.slane %v8014, 4
    %v8016 = vrot.slane %v7703, 5
    %v8017 = vsel %vm901, %v8015, %v8016
    %v8018 = vrot.slane %v8016, 4
    %v8019 = vrot.slane %v7721, 5
    %v8020 = vsel %vm901, %v8018, %v8019
    %s8021 = scalar_lea.vmem [#allocation35], 128
    %v8022 = vld [vmem:[%s8021] sm:$0xf]
    %v8023 = vld [vmem:[%s8021 + $0x4] sm:$0xf]
    %v8024 = vld [vmem:[%s8021 + $0x8] sm:$0xf]
    %v8025 = vld [vmem:[%s8021 + $0xc] sm:$0xf]
    %v8026 = vld [vmem:[%s8021 + $0x10] sm:$0xf]
    %v8027 = vld [vmem:[%s8021 + $0x14] sm:$0xf]
    %v8028 = vld [vmem:[%s8021 + $0x18] sm:$0xf]
    %v8029 = vld [vmem:[%s8021 + $0x1c] sm:$0xf]
    %v8030 = vld [vmem:[%s8021 + $0x20] sm:$0xf]
    %v8031 = vld [vmem:[%s8021 + $0x24] sm:$0xf]
    %v8032 = vld [vmem:[%s8021 + $0x28] sm:$0xf]
    %v8033 = vld [vmem:[%s8021 + $0x2c] sm:$0xf]
    %v8034 = vld [vmem:[%s8021 + $0x30] sm:$0xf]
    %v8035 = vld [vmem:[%s8021 + $0x34] sm:$0xf]
    %v8036 = vld [vmem:[%s8021 + $0x38] sm:$0xf]
    %v8037 = vld [vmem:[%s8021 + $0x3c] sm:$0xf]
    %v8038 = vunpack.c.l.b16 %v8010
    %v8039 = vunpack.c.l.b16 %v8013
    %v8040 = vunpack.c.l.b16 %v8017
    %v8041 = vunpack.c.l.b16 %v8020
    %v8042 = vpack.c.b16 %v8039, %v8038
    %v8043 = vpack.c.b16 %v8041, %v8040
    %v8062 = vunpack.c.l.b16 %v8022
    %v8063 = vunpack.c.l.b16 %v8023
    %v8064 = vunpack.c.l.b16 %v8024
    %v8065 = vunpack.c.l.b16 %v8025
    %v8066 = vunpack.c.l.b16 %v8026
    %v8067 = vunpack.c.l.b16 %v8027
    %v8068 = vunpack.c.l.b16 %v8028
    %v8069 = vunpack.c.l.b16 %v8029
    %v8070 = vunpack.c.l.b16 %v8030
    %v8071 = vunpack.c.l.b16 %v8031
    %v8072 = vunpack.c.l.b16 %v8032
    %v8073 = vunpack.c.l.b16 %v8033
    %v8074 = vunpack.c.l.b16 %v8034
    %v8075 = vunpack.c.l.b16 %v8035
    %v8076 = vunpack.c.l.b16 %v8036
    %v8077 = vunpack.c.l.b16 %v8037
    %v8078 = vpack.c.b16 %v8063, %v8062
    %v8079 = vpack.c.b16 %v8065, %v8064
    %v8080 = vpack.c.b16 %v8067, %v8066
    %v8081 = vpack.c.b16 %v8069, %v8068
    %v8082 = vpack.c.b16 %v8071, %v8070
    %v8083 = vpack.c.b16 %v8073, %v8072
    %v8084 = vpack.c.b16 %v8075, %v8074
    %v8085 = vpack.c.b16 %v8077, %v8076
    %8094 = vmatprep.subr.bf16.mxu0 0
    %8095 = vmatpush1.bf16.msra.mxu0 %v8078
    %8096 = vmatprep.subr.bf16.mxu0 0
    %8097 = vmatpush1.bf16.msra.mxu0 %v8079
    %8098 = vmatprep.subr.bf16.mxu0 0
    %8099 = vmatpush1.bf16.msra.mxu0 %v8080
    %8100 = vmatprep.subr.bf16.mxu0 0
    %8101 = vmatpush1.bf16.msra.mxu0 %v8081
    %8102 = vmatprep.subr.bf16.mxu0 0
    %8103 = vmatpush1.bf16.msra.mxu0 %v8082
    %8104 = vmatprep.subr.bf16.mxu0 0
    %8105 = vmatpush1.bf16.msra.mxu0 %v8083
    %8106 = vmatprep.subr.bf16.mxu0 0
    %8107 = vmatpush1.bf16.msra.mxu0 %v8084
    %8108 = vmatprep.subr.bf16.mxu0 0
    %8109 = vmatpush1.bf16.msra.mxu0 %v8085
    %8110 = vmatprep.subr.bf16.mxu0 0
    %8111 = vmatpush1.bf16.msra.mxu0 0
    %8112 = vmatprep.subr.bf16.mxu0 0
    %8113 = vmatpush1.bf16.msra.mxu0 0
    %8114 = vmatprep.subr.bf16.mxu0 0
    %8115 = vmatpush1.bf16.msra.mxu0 0
    %8116 = vmatprep.subr.bf16.mxu0 0
    %8117 = vmatpush1.bf16.msra.mxu0 0
    %8118 = vmatprep.subr.bf16.mxu0 0
    %8119 = vmatpush1.bf16.msra.mxu0 0
    %8120 = vmatprep.subr.bf16.mxu0 0
    %8121 = vmatpush1.bf16.msra.mxu0 0
    %8122 = vmatprep.subr.bf16.mxu0 0
    %8123 = vmatpush1.bf16.msra.mxu0 0
    %8124 = vmatprep.subr.bf16.mxu0 0
    %8125 = vmatpush1.bf16.msra.mxu0 0
    %8126 = vmatprep.mubr.bf16.mxu0 0
    %8127 = vmatmul.mubr.bf16.gmra.mrb[0].mxu0 %v8042
    %v8128 = vpop.f32.mrb[0].mxu0
    %v8129 = vadd.f32 0.0, %v8128
    %v8130 = vpop.f32.mrb[0].mxu0
    %v8131 = vpop.f32.mrb[0].mxu0
    %v8132 = vadd.f32 0.0, %v8131
    %v8133 = vpop.f32.mrb[0].mxu0
    %8134 = vmatprep.mubr.bf16.mxu0 0
    %8135 = vmatmul.mubr.bf16.gmra.mrb[0].mxu0 %v8043
    %v8136 = vpop.f32.mrb[0].mxu0
    %v8137 = vadd.f32 0.0, %v8136
    %v8138 = vpop.f32.mrb[0].mxu0
    %v8139 = vpop.f32.mrb[0].mxu0
    %v8140 = vadd.f32 0.0, %v8139
    %v8141 = vpop.f32.mrb[0].mxu0
    %8142 = vdwg.mxu0
    %v8143 = vadd.f32 %v7987, %v8129
    %v8144 = vadd.f32 %v7990, %v8132
    %v8145 = vadd.f32 %v7995, %v8137
    %v8146 = vadd.f32 %v7998, %v8140
    %v8147 = vld [vmem:[#allocation2 + $0x8] sm:$0x3]
    %v8148 = vld [vmem:[#allocation2 + $0x14] sm:$0x3]
    %v8150 = vshrl.u32 %v8001, 16
    %v8152 = vrot.slane %v8150, 5
    %v8153 = vshll.u32 %v8001, 16
    %v8155 = vrot.slane %v8153, 6
    %v8156 = vor.u32 %v8152, %v8155
    %v8157 = vrot.slane %v8156, 4
    %v8158 = vrot.slane %v7736, 5
    %v8159 = vrot.slane %v7732, 6
    %v8160 = vor.u32 %v8158, %v8159
    %v8161 = vsel %vm1046, %v8157, %v8160
    %v8162 = vrot.slane %v8160, 4
    %v8164 = vshrl.u32 %v8147, 16
    %v8166 = vrot.slane %v8164, 5
    %v8167 = vshll.u32 %v8147, 16
    %v8169 = vrot.slane %v8167, 6
    %v8170 = vor.u32 %v8166, %v8169
    %v8171 = vsel %vm1046, %v8162, %v8170
    %v8173 = vshrl.u32 %v8002, 16
    %v8175 = vrot.slane %v8173, 5
    %v8176 = vshll.u32 %v8002, 16
    %v8178 = vrot.slane %v8176, 6
    %v8179 = vor.u32 %v8175, %v8178
    %v8180 = vrot.slane %v8179, 4
    %v8181 = vrot.slane %v7760, 5
    %v8182 = vrot.slane %v7756, 6
    %v8183 = vor.u32 %v8181, %v8182
    %v8184 = vsel %vm1046, %v8180, %v8183
    %v8185 = vrot.slane %v8183, 4
    %v8187 = vshrl.u32 %v8148, 16
    %v8189 = vrot.slane %v8187, 5
    %v8190 = vshll.u32 %v8148, 16
    %v8192 = vrot.slane %v8190, 6
    %v8193 = vor.u32 %v8189, %v8192
    %v8194 = vsel %vm1046, %v8185, %v8193
    %s8195 = scalar_lea.vmem [#allocation35], 192
    %v8196 = vld [vmem:[%s8195] sm:$0xf]
    %v8197 = vld [vmem:[%s8195 + $0x4] sm:$0xf]
    %v8198 = vld [vmem:[%s8195 + $0x8] sm:$0xf]
    %v8199 = vld [vmem:[%s8195 + $0xc] sm:$0xf]
    %v8200 = vld [vmem:[%s8195 + $0x10] sm:$0xf]
    %v8201 = vld [vmem:[%s8195 + $0x14] sm:$0xf]
    %v8202 = vld [vmem:[%s8195 + $0x18] sm:$0xf]
    %v8203 = vld [vmem:[%s8195 + $0x1c] sm:$0xf]
    %v8204 = vld [vmem:[%s8195 + $0x20] sm:$0xf]
    %v8205 = vld [vmem:[%s8195 + $0x24] sm:$0xf]
    %v8206 = vld [vmem:[%s8195 + $0x28] sm:$0xf]
    %v8207 = vld [vmem:[%s8195 + $0x2c] sm:$0xf]
    %v8208 = vld [vmem:[%s8195 + $0x30] sm:$0xf]
    %v8209 = vld [vmem:[%s8195 + $0x34] sm:$0xf]
    %v8210 = vld [vmem:[%s8195 + $0x38] sm:$0xf]
    %v8211 = vld [vmem:[%s8195 + $0x3c] sm:$0xf]
    %v8212 = vunpack.c.l.b16 %v8161
    %v8213 = vunpack.c.l.b16 %v8171
    %v8214 = vunpack.c.l.b16 %v8184
    %v8215 = vunpack.c.l.b16 %v8194
    %v8216 = vpack.c.b16 %v8213, %v8212
    %v8217 = vpack.c.b16 %v8215, %v8214
    %v8236 = vunpack.c.l.b16 %v8196
    %v8237 = vunpack.c.l.b16 %v8197
    %v8238 = vunpack.c.l.b16 %v8198
    %v8239 = vunpack.c.l.b16 %v8199
    %v8240 = vunpack.c.l.b16 %v8200
    %v8241 = vunpack.c.l.b16 %v8201
    %v8242 = vunpack.c.l.b16 %v8202
    %v8243 = vunpack.c.l.b16 %v8203
    %v8244 = vunpack.c.l.b16 %v8204
    %v8245 = vunpack.c.l.b16 %v8205
    %v8246 = vunpack.c.l.b16 %v8206
    %v8247 = vunpack.c.l.b16 %v8207
    %v8248 = vunpack.c.l.b16 %v8208
    %v8249 = vunpack.c.l.b16 %v8209
    %v8250 = vunpack.c.l.b16 %v8210
    %v8251 = vunpack.c.l.b16 %v8211
    %v8252 = vpack.c.b16 %v8237, %v8236
    %v8253 = vpack.c.b16 %v8239, %v8238
    %v8254 = vpack.c.b16 %v8241, %v8240
    %v8255 = vpack.c.b16 %v8243, %v8242
    %v8256 = vpack.c.b16 %v8245, %v8244
    %v8257 = vpack.c.b16 %v8247, %v8246
    %v8258 = vpack.c.b16 %v8249, %v8248
    %v8259 = vpack.c.b16 %v8251, %v8250
    %8268 = vmatprep.subr.bf16.mxu0 0
    %8269 = vmatpush1.bf16.msra.mxu0 %v8252
    %8270 = vmatprep.subr.bf16.mxu0 0
    %8271 = vmatpush1.bf16.msra.mxu0 %v8253
    %8272 = vmatprep.subr.bf16.mxu0 0
    %8273 = vmatpush1.bf16.msra.mxu0 %v8254
    %8274 = vmatprep.subr.bf16.mxu0 0
    %8275 = vmatpush1.bf16.msra.mxu0 %v8255
    %8276 = vmatprep.subr.bf16.mxu0 0
    %8277 = vmatpush1.bf16.msra.mxu0 %v8256
    %8278 = vmatprep.subr.bf16.mxu0 0
    %8279 = vmatpush1.bf16.msra.mxu0 %v8257
    %8280 = vmatprep.subr.bf16.mxu0 0
    %8281 = vmatpush1.bf16.msra.mxu0 %v8258
    %8282 = vmatprep.subr.bf16.mxu0 0
    %8283 = vmatpush1.bf16.msra.mxu0 %v8259
    %8284 = vmatprep.subr.bf16.mxu0 0
    %8285 = vmatpush1.bf16.msra.mxu0 0
    %8286 = vmatprep.subr.bf16.mxu0 0
    %8287 = vmatpush1.bf16.msra.mxu0 0
    %8288 = vmatprep.subr.bf16.mxu0 0
    %8289 = vmatpush1.bf16.msra.mxu0 0
    %8290 = vmatprep.subr.bf16.mxu0 0
    %8291 = vmatpush1.bf16.msra.mxu0 0
    %8292 = vmatprep.subr.bf16.mxu0 0
    %8293 = vmatpush1.bf16.msra.mxu0 0
    %8294 = vmatprep.subr.bf16.mxu0 0
    %8295 = vmatpush1.bf16.msra.mxu0 0
    %8296 = vmatprep.subr.bf16.mxu0 0
    %8297 = vmatpush1.bf16.msra.mxu0 0
    %8298 = vmatprep.subr.bf16.mxu0 0
    %8299 = vmatpush1.bf16.msra.mxu0 0
    %8300 = vmatprep.mubr.bf16.mxu0 0
    %8301 = vmatmul.mubr.bf16.gmra.mrb[0].mxu0 %v8216
    %v8302 = vpop.f32.mrb[0].mxu0
    %v8303 = vadd.f32 0.0, %v8302
    %v8304 = vpop.f32.mrb[0].mxu0
    %v8305 = vpop.f32.mrb[0].mxu0
    %v8306 = vadd.f32 0.0, %v8305
    %v8307 = vpop.f32.mrb[0].mxu0
    %8308 = vmatprep.mubr.bf16.mxu0 0
    %8309 = vmatmul.mubr.bf16.gmra.mrb[0].mxu0 %v8217
    %v8310 = vpop.f32.mrb[0].mxu0
    %v8311 = vadd.f32 0.0, %v8310
    %v8312 = vpop.f32.mrb[0].mxu0
    %v8313 = vpop.f32.mrb[0].mxu0
    %v8314 = vadd.f32 0.0, %v8313
    %v8315 = vpop.f32.mrb[0].mxu0
    %8316 = vdwg.mxu0
    %v8317 = vadd.f32 %v8143, %v8303
    %v8318 = vadd.f32 %v8144, %v8306
    %v8319 = vadd.f32 %v8145, %v8311
    %v8320 = vadd.f32 %v8146, %v8314
    %v8321 = vld [vmem:[#allocation2] sm:$0xc]
    %v8322 = vld [vmem:[#allocation2 + $0xc] sm:$0xc]
    %v8327 = vrot.slane %v8321, 6
    %v8328 = vrot.slane %v8327, 4
    %v8329 = vrot.slane %v7701, 6
    %v8330 = vsel %vm1226, %v8328, %v8329
    %v8331 = vrot.slane %v8329, 4
    %v8332 = vrot.slane %v8147, 6
    %v8333 = vsel %vm1226, %v8331, %v8332
    %v8334 = vrot.slane %v8322, 6
    %v8335 = vrot.slane %v8334, 4
    %v8336 = vrot.slane %v7703, 6
    %v8337 = vsel %vm1226, %v8335, %v8336
    %v8338 = vrot.slane %v8336, 4
    %v8339 = vrot.slane %v8148, 6
    %v8340 = vsel %vm1226, %v8338, %v8339
    %s8341 = scalar_lea.vmem [#allocation35], 256
    %v8342 = vld [vmem:[%s8341] sm:$0xf]
    %v8343 = vld [vmem:[%s8341 + $0x4] sm:$0xf]
    %v8344 = vld [vmem:[%s8341 + $0x8] sm:$0xf]
    %v8345 = vld [vmem:[%s8341 + $0xc] sm:$0xf]
    %v8346 = vld [vmem:[%s8341 + $0x10] sm:$0xf]
    %v8347 = vld [vmem:[%s8341 + $0x14] sm:$0xf]
    %v8348 = vld [vmem:[%s8341 + $0x18] sm:$0xf]
    %v8349 = vld [vmem:[%s8341 + $0x1c] sm:$0xf]
    %v8350 = vld [vmem:[%s8341 + $0x20] sm:$0xf]
    %v8351 = vld [vmem:[%s8341 + $0x24] sm:$0xf]
    %v8352 = vld [vmem:[%s8341 + $0x28] sm:$0xf]
    %v8353 = vld [vmem:[%s8341 + $0x2c] sm:$0xf]
    %v8354 = vld [vmem:[%s8341 + $0x30] sm:$0xf]
    %v8355 = vld [vmem:[%s8341 + $0x34] sm:$0xf]
    %v8356 = vld [vmem:[%s8341 + $0x38] sm:$0xf]
    %v8357 = vld [vmem:[%s8341 + $0x3c] sm:$0xf]
    %v8358 = vunpack.c.l.b16 %v8330
    %v8359 = vunpack.c.l.b16 %v8333
    %v8360 = vunpack.c.l.b16 %v8337
    %v8361 = vunpack.c.l.b16 %v8340
    %v8362 = vpack.c.b16 %v8359, %v8358
    %v8363 = vpack.c.b16 %v8361, %v8360
    %v8382 = vunpack.c.l.b16 %v8342
    %v8383 = vunpack.c.l.b16 %v8343
    %v8384 = vunpack.c.l.b16 %v8344
    %v8385 = vunpack.c.l.b16 %v8345
    %v8386 = vunpack.c.l.b16 %v8346
    %v8387 = vunpack.c.l.b16 %v8347
    %v8388 = vunpack.c.l.b16 %v8348
    %v8389 = vunpack.c.l.b16 %v8349
    %v8390 = vunpack.c.l.b16 %v8350
    %v8391 = vunpack.c.l.b16 %v8351
    %v8392 = vunpack.c.l.b16 %v8352
    %v8393 = vunpack.c.l.b16 %v8353
    %v8394 = vunpack.c.l.b16 %v8354
    %v8395 = vunpack.c.l.b16 %v8355
    %v8396 = vunpack.c.l.b16 %v8356
    %v8397 = vunpack.c.l.b16 %v8357
    %v8398 = vpack.c.b16 %v8383, %v8382
    %v8399 = vpack.c.b16 %v8385, %v8384
    %v8400 = vpack.c.b16 %v8387, %v8386
    %v8401 = vpack.c.b16 %v8389, %v8388
    %v8402 = vpack.c.b16 %v8391, %v8390
    %v8403 = vpack.c.b16 %v8393, %v8392
    %v8404 = vpack.c.b16 %v8395, %v8394
    %v8405 = vpack.c.b16 %v8397, %v8396
    %8414 = vmatprep.subr.bf16.mxu0 0
    %8415 = vmatpush1.bf16.msra.mxu0 %v8398
    %8416 = vmatprep.subr.bf16.mxu0 0
    %8417 = vmatpush1.bf16.msra.mxu0 %v8399
    %8418 = vmatprep.subr.bf16.mxu0 0
    %8419 = vmatpush1.bf16.msra.mxu0 %v8400
    %8420 = vmatprep.subr.bf16.mxu0 0
    %8421 = vmatpush1.bf16.msra.mxu0 %v8401
    %8422 = vmatprep.subr.bf16.mxu0 0
    %8423 = vmatpush1.bf16.msra.mxu0 %v8402
    %8424 = vmatprep.subr.bf16.mxu0 0
    %8425 = vmatpush1.bf16.msra.mxu0 %v8403
    %8426 = vmatprep.subr.bf16.mxu0 0
    %8427 = vmatpush1.bf16.msra.mxu0 %v8404
    %8428 = vmatprep.subr.bf16.mxu0 0
    %8429 = vmatpush1.bf16.msra.mxu0 %v8405
    %8430 = vmatprep.subr.bf16.mxu0 0
    %8431 = vmatpush1.bf16.msra.mxu0 0
    %8432 = vmatprep.subr.bf16.mxu0 0
    %8433 = vmatpush1.bf16.msra.mxu0 0
    %8434 = vmatprep.subr.bf16.mxu0 0
    %8435 = vmatpush1.bf16.msra.mxu0 0
    %8436 = vmatprep.subr.bf16.mxu0 0
    %8437 = vmatpush1.bf16.msra.mxu0 0
    %8438 = vmatprep.subr.bf16.mxu0 0
    %8439 = vmatpush1.bf16.msra.mxu0 0
    %8440 = vmatprep.subr.bf16.mxu0 0
    %8441 = vmatpush1.bf16.msra.mxu0 0
    %8442 = vmatprep.subr.bf16.mxu0 0
    %8443 = vmatpush1.bf16.msra.mxu0 0
    %8444 = vmatprep.subr.bf16.mxu0 0
    %8445 = vmatpush1.bf16.msra.mxu0 0
    %8446 = vmatprep.mubr.bf16.mxu0 0
    %8447 = vmatmul.mubr.bf16.gmra.mrb[0].mxu0 %v8362
    %v8448 = vpop.f32.mrb[0].mxu0
    %v8449 = vadd.f32 0.0, %v8448
    %v8450 = vpop.f32.mrb[0].mxu0
    %v8451 = vpop.f32.mrb[0].mxu0
    %v8452 = vadd.f32 0.0, %v8451
    %v8453 = vpop.f32.mrb[0].mxu0
    %8454 = vmatprep.mubr.bf16.mxu0 0
    %8455 = vmatmul.mubr.bf16.gmra.mrb[0].mxu0 %v8363
    %v8456 = vpop.f32.mrb[0].mxu0
    %v8457 = vadd.f32 0.0, %v8456
    %v8458 = vpop.f32.mrb[0].mxu0
    %v8459 = vpop.f32.mrb[0].mxu0
    %v8460 = vadd.f32 0.0, %v8459
    %v8461 = vpop.f32.mrb[0].mxu0
    %8462 = vdwg.mxu0
    %v8463 = vadd.f32 %v8317, %v8449
    %v8464 = vadd.f32 %v8318, %v8452
    %v8465 = vadd.f32 %v8319, %v8457
    %v8466 = vadd.f32 %v8320, %v8460
    %v8467 = vld [vmem:[#allocation36] sm:$0x1]
    %v8469 = vlaneseq
    %v8470 = vshrl.u32 %v8469, 7
    %v8471 = vsub.s32 0, %v8470
    %v8472 = vrot.slane %v8467, %v8471
    %v8474 = vmul.f32 %v8463, %v8472
    %v8475 = vmul.f32 %v8464, %v8472
    %v8476 = vmul.f32 %v8465, %v8472
    %v8477 = vmul.f32 %v8466, %v8472
    %v8478 = vld [vmem:[#allocation38] sm:$0x1]
    %v8480 = vlaneseq
    %v8481 = vshrl.u32 %v8480, 7
    %v8482 = vsub.s32 0, %v8481
    %v8483 = vrot.slane %v8478, %v8482
    %v8485 = vadd.f32 %v8474, %v8483
    %v8486 = vadd.f32 %v8475, %v8483
    %v8487 = vadd.f32 %v8476, %v8483
    %v8488 = vadd.f32 %v8477, %v8483
    %v8489 = vmax.f32 %v8485, 0.0
    %v8490 = vmax.f32 %v8486, 0.0
    %v8491 = vmax.f32 %v8487, 0.0
    %v8492 = vmax.f32 %v8488, 0.0
    %v8493 = vpack.c.bf16 %v8490, %v8489
    %v8494 = vpack.c.bf16 %v8492, %v8491
    %8495 = vst [vmem:[#allocation2] sm:$0xf] 0
    %8496 = vst [vmem:[#allocation2 + $0x4] sm:$0xf] 0
    %v8497 = vld [vmem:[#allocation2 + $0x8] sm:$0xf]
    %v8498 = vsel %vm515, 0, %v8497
    %8499 = vst [vmem:[#allocation2 + $0x8] sm:$0xf] %v8498
    %8500 = vst [vmem:[#allocation2 + $0xc] sm:$0xf] 0
    %8501 = vst [vmem:[#allocation2 + $0x10] sm:$0xf] 0
    %v8502 = vld [vmem:[#allocation2 + $0x14] sm:$0xf]
    %v8503 = vsel %vm515, 0, %v8502
    %8504 = vst [vmem:[#allocation2 + $0x14] sm:$0xf] %v8503
    %v8507 = vunpack.c.l.b16 %v8493
    %v8508 = vunpack.c.h.b16 %v8493
    %v8509 = vunpack.c.l.b16 %v8494
    %v8510 = vunpack.c.h.b16 %v8494
    %v8511 = vpack.c.b16 %v8507, %v8507
    %v8512 = vpack.c.b16 %v8508, %v8508
    %v8513 = vpack.c.b16 %v8509, %v8509
    %v8514 = vpack.c.b16 %v8510, %v8510
    %v8516 = vshrl.u32 %v8511, 16
    %v8518 = vrot.slane %v8516, 7
    %v8519 = vshll.u32 %v8511, 16
    %v8521 = vor.u32 %v8518, %v8519
    %v8522 = vrot.slane %v8518, 4
    %v8524 = vshrl.u32 %v8512, 16
    %v8526 = vrot.slane %v8524, 7
    %v8527 = vshll.u32 %v8512, 16
    %v8529 = vor.u32 %v8526, %v8527
    %v8530 = vsel %vm1694, %v8522, %v8529
    %v8531 = vrot.slane %v8526, 4
    %v8533 = vshrl.u32 %v8513, 16
    %v8535 = vrot.slane %v8533, 7
    %v8536 = vshll.u32 %v8513, 16
    %v8538 = vor.u32 %v8535, %v8536
    %v8539 = vrot.slane %v8535, 4
    %v8541 = vshrl.u32 %v8514, 16
    %v8543 = vrot.slane %v8541, 7
    %v8544 = vshll.u32 %v8514, 16
    %v8546 = vor.u32 %v8543, %v8544
    %v8547 = vsel %vm1694, %v8539, %v8546
    %v8548 = vrot.slane %v8543, 4
    %v8555 = vld [vmem:[#allocation2] sm:$0xf]
    %v8556 = vsel %vm2781, %v8521, %v8555
    %8557 = vst [vmem:[#allocation2] sm:$0xf] %v8556
    %8558 = vst [vmem:[#allocation2 + $0x4] sm:$0xf] %v8530
    %v8559 = vld [vmem:[#allocation2 + $0x8] sm:$0x1]
    %v8560 = vsel %vm2786, %v8531, %v8559
    %8561 = vst [vmem:[#allocation2 + $0x8] sm:$0x1] %v8560
    %v8562 = vld [vmem:[#allocation2 + $0xc] sm:$0xf]
    %v8563 = vsel %vm2781, %v8538, %v8562
    %8564 = vst [vmem:[#allocation2 + $0xc] sm:$0xf] %v8563
    %8565 = vst [vmem:[#allocation2 + $0x10] sm:$0xf] %v8547
    %v8566 = vld [vmem:[#allocation2 + $0x14] sm:$0x1]
    %v8567 = vsel %vm2786, %v8548, %v8566
    %8568 = vst [vmem:[#allocation2 + $0x14] sm:$0x1] %v8567
    %v8569 = vld [vmem:[#allocation2] sm:$0xf]
    %v8570 = vld [vmem:[#allocation2 + $0x4] sm:$0xf]
    %v8571 = vld [vmem:[#allocation2 + $0xc] sm:$0xf]
    %v8572 = vld [vmem:[#allocation2 + $0x10] sm:$0xf]
    %v8573 = vld [vmem:[#allocation39] sm:$0xf]
    %v8574 = vld [vmem:[#allocation39 + $0x4] sm:$0xf]
    %v8575 = vld [vmem:[#allocation39 + $0x8] sm:$0xf]
    %v8576 = vld [vmem:[#allocation39 + $0xc] sm:$0xf]
    %v8577 = vld [vmem:[#allocation39 + $0x10] sm:$0xf]
    %v8578 = vld [vmem:[#allocation39 + $0x14] sm:$0xf]
    %v8579 = vld [vmem:[#allocation39 + $0x18] sm:$0xf]
    %v8580 = vld [vmem:[#allocation39 + $0x1c] sm:$0xf]
    %v8581 = vld [vmem:[#allocation39 + $0x20] sm:$0xf]
    %v8582 = vld [vmem:[#allocation39 + $0x24] sm:$0xf]
    %v8583 = vld [vmem:[#allocation39 + $0x28] sm:$0xf]
    %v8584 = vld [vmem:[#allocation39 + $0x2c] sm:$0xf]
    %v8585 = vld [vmem:[#allocation39 + $0x30] sm:$0xf]
    %v8586 = vld [vmem:[#allocation39 + $0x34] sm:$0xf]
    %v8587 = vld [vmem:[#allocation39 + $0x38] sm:$0xf]
    %v8588 = vld [vmem:[#allocation39 + $0x3c] sm:$0xf]
    %v8589 = vld [vmem:[#allocation2 + $0x8] sm:$0x1]
    %v8590 = vld [vmem:[#allocation2 + $0x14] sm:$0x1]
    %v8592 = vshrl.u32 %v8569, 16
    %v8594 = vrot.slane %v8592, 4
    %v8595 = vshll.u32 %v8569, 16
    %v8597 = vrot.slane %v8595, 5
    %v8598 = vor.u32 %v8594, %v8597
    %v8599 = vrot.slane %v8598, 4
    %v8601 = vshll.u32 %v8570, 16
    %v8603 = vrot.slane %v8601, 5
    %v8604 = vsel %vm613, %v8599, %v8603
    %v8605 = vshrl.u32 %v8570, 16
    %v8607 = vrot.slane %v8605, 4
    %v8608 = vor.u32 %v8607, %v8603
    %v8609 = vrot.slane %v8608, 4
    %v8611 = vshll.u32 %v8589, 16
    %v8613 = vrot.slane %v8611, 5
    %v8614 = vsel %vm613, %v8609, %v8613
    %v8616 = vshrl.u32 %v8571, 16
    %v8618 = vrot.slane %v8616, 4
    %v8619 = vshll.u32 %v8571, 16
    %v8621 = vrot.slane %v8619, 5
    %v8622 = vor.u32 %v8618, %v8621
    %v8623 = vrot.slane %v8622, 4
    %v8625 = vshll.u32 %v8572, 16
    %v8627 = vrot.slane %v8625, 5
    %v8628 = vsel %vm613, %v8623, %v8627
    %v8629 = vshrl.u32 %v8572, 16
    %v8631 = vrot.slane %v8629, 4
    %v8632 = vor.u32 %v8631, %v8627
    %v8633 = vrot.slane %v8632, 4
    %v8635 = vshll.u32 %v8590, 16
    %v8637 = vrot.slane %v8635, 5
    %v8638 = vsel %vm613, %v8633, %v8637
    %s8639 = scalar_lea.vmem [#allocation39], 64
    %v8640 = vld [vmem:[%s8639] sm:$0xf]
    %v8641 = vld [vmem:[%s8639 + $0x4] sm:$0xf]
    %v8642 = vld [vmem:[%s8639 + $0x8] sm:$0xf]
    %v8643 = vld [vmem:[%s8639 + $0xc] sm:$0xf]
    %v8644 = vld [vmem:[%s8639 + $0x10] sm:$0xf]
    %v8645 = vld [vmem:[%s8639 + $0x14] sm:$0xf]
    %v8646 = vld [vmem:[%s8639 + $0x18] sm:$0xf]
    %v8647 = vld [vmem:[%s8639 + $0x1c] sm:$0xf]
    %v8648 = vld [vmem:[%s8639 + $0x20] sm:$0xf]
    %v8649 = vld [vmem:[%s8639 + $0x24] sm:$0xf]
    %v8650 = vld [vmem:[%s8639 + $0x28] sm:$0xf]
    %v8651 = vld [vmem:[%s8639 + $0x2c] sm:$0xf]
    %v8652 = vld [vmem:[%s8639 + $0x30] sm:$0xf]
    %v8653 = vld [vmem:[%s8639 + $0x34] sm:$0xf]
    %v8654 = vld [vmem:[%s8639 + $0x38] sm:$0xf]
    %v8655 = vld [vmem:[%s8639 + $0x3c] sm:$0xf]
    %v8656 = vunpack.c.l.b16 %v8604
    %v8657 = vunpack.c.l.b16 %v8614
    %v8658 = vunpack.c.l.b16 %v8628
    %v8659 = vunpack.c.l.b16 %v8638
    %v8660 = vpack.c.b16 %v8657, %v8656
    %v8661 = vpack.c.b16 %v8659, %v8658
    %v8680 = vunpack.c.l.b16 %v8640
    %v8681 = vunpack.c.l.b16 %v8641
    %v8682 = vunpack.c.l.b16 %v8642
    %v8683 = vunpack.c.l.b16 %v8643
    %v8684 = vunpack.c.l.b16 %v8644
    %v8685 = vunpack.c.l.b16 %v8645
    %v8686 = vunpack.c.l.b16 %v8646
    %v8687 = vunpack.c.l.b16 %v8647
    %v8688 = vunpack.c.l.b16 %v8648
    %v8689 = vunpack.c.l.b16 %v8649
    %v8690 = vunpack.c.l.b16 %v8650
    %v8691 = vunpack.c.l.b16 %v8651
    %v8692 = vunpack.c.l.b16 %v8652
    %v8693 = vunpack.c.l.b16 %v8653
    %v8694 = vunpack.c.l.b16 %v8654
    %v8695 = vunpack.c.l.b16 %v8655
    %v8696 = vpack.c.b16 %v8681, %v8680
    %v8697 = vpack.c.b16 %v8683, %v8682
    %v8698 = vpack.c.b16 %v8685, %v8684
    %v8699 = vpack.c.b16 %v8687, %v8686
    %v8700 = vpack.c.b16 %v8689, %v8688
    %v8701 = vpack.c.b16 %v8691, %v8690
    %v8702 = vpack.c.b16 %v8693, %v8692
    %v8703 = vpack.c.b16 %v8695, %v8694
    %8712 = vmatprep.subr.bf16.mxu0 0
    %8713 = vmatpush1.bf16.msra.mxu0 %v8696
    %8714 = vmatprep.subr.bf16.mxu0 0
    %8715 = vmatpush1.bf16.msra.mxu0 %v8697
    %8716 = vmatprep.subr.bf16.mxu0 0
    %8717 = vmatpush1.bf16.msra.mxu0 %v8698
    %8718 = vmatprep.subr.bf16.mxu0 0
    %8719 = vmatpush1.bf16.msra.mxu0 %v8699
    %8720 = vmatprep.subr.bf16.mxu0 0
    %8721 = vmatpush1.bf16.msra.mxu0 %v8700
    %8722 = vmatprep.subr.bf16.mxu0 0
    %8723 = vmatpush1.bf16.msra.mxu0 %v8701
    %8724 = vmatprep.subr.bf16.mxu0 0
    %8725 = vmatpush1.bf16.msra.mxu0 %v8702
    %8726 = vmatprep.subr.bf16.mxu0 0
    %8727 = vmatpush1.bf16.msra.mxu0 %v8703
    %8728 = vmatprep.subr.bf16.mxu0 0
    %8729 = vmatpush1.bf16.msra.mxu0 0
    %8730 = vmatprep.subr.bf16.mxu0 0
    %8731 = vmatpush1.bf16.msra.mxu0 0
    %8732 = vmatprep.subr.bf16.mxu0 0
    %8733 = vmatpush1.bf16.msra.mxu0 0
    %8734 = vmatprep.subr.bf16.mxu0 0
    %8735 = vmatpush1.bf16.msra.mxu0 0
    %8736 = vmatprep.subr.bf16.mxu0 0
    %8737 = vmatpush1.bf16.msra.mxu0 0
    %8738 = vmatprep.subr.bf16.mxu0 0
    %8739 = vmatpush1.bf16.msra.mxu0 0
    %8740 = vmatprep.subr.bf16.mxu0 0
    %8741 = vmatpush1.bf16.msra.mxu0 0
    %8742 = vmatprep.subr.bf16.mxu0 0
    %8743 = vmatpush1.bf16.msra.mxu0 0
    %8744 = vmatprep.mubr.bf16.mxu0 0
    %8745 = vmatmul.mubr.bf16.gmra.mrb[0].mxu0 %v8660
    %v8746 = vpop.f32.mrb[0].mxu0
    %v8747 = vadd.f32 0.0, %v8746
    %v8748 = vpop.f32.mrb[0].mxu0
    %v8749 = vpop.f32.mrb[0].mxu0
    %v8750 = vadd.f32 0.0, %v8749
    %v8751 = vpop.f32.mrb[0].mxu0
    %8752 = vmatprep.mubr.bf16.mxu0 0
    %8753 = vmatmul.mubr.bf16.gmra.mrb[0].mxu0 %v8661
    %v8754 = vpop.f32.mrb[0].mxu0
    %v8755 = vadd.f32 0.0, %v8754
    %v8756 = vpop.f32.mrb[0].mxu0
    %v8757 = vpop.f32.mrb[0].mxu0
    %v8758 = vadd.f32 0.0, %v8757
    %v8759 = vpop.f32.mrb[0].mxu0
    %8760 = vdwg.mxu0
    %v8765 = vunpack.c.l.b16 %v8569
    %v8766 = vunpack.c.l.b16 %v8570
    %v8767 = vunpack.c.l.b16 %v8571
    %v8768 = vunpack.c.l.b16 %v8572
    %v8769 = vpack.c.b16 %v8766, %v8765
    %v8770 = vpack.c.b16 %v8768, %v8767
    %v8789 = vunpack.c.l.b16 %v8573
    %v8790 = vunpack.c.l.b16 %v8574
    %v8791 = vunpack.c.l.b16 %v8575
    %v8792 = vunpack.c.l.b16 %v8576
    %v8793 = vunpack.c.l.b16 %v8577
    %v8794 = vunpack.c.l.b16 %v8578
    %v8795 = vunpack.c.l.b16 %v8579
    %v8796 = vunpack.c.l.b16 %v8580
    %v8797 = vunpack.c.l.b16 %v8581
    %v8798 = vunpack.c.l.b16 %v8582
    %v8799 = vunpack.c.l.b16 %v8583
    %v8800 = vunpack.c.l.b16 %v8584
    %v8801 = vunpack.c.l.b16 %v8585
    %v8802 = vunpack.c.l.b16 %v8586
    %v8803 = vunpack.c.l.b16 %v8587
    %v8804 = vunpack.c.l.b16 %v8588
    %v8805 = vpack.c.b16 %v8790, %v8789
    %v8806 = vpack.c.b16 %v8792, %v8791
    %v8807 = vpack.c.b16 %v8794, %v8793
    %v8808 = vpack.c.b16 %v8796, %v8795
    %v8809 = vpack.c.b16 %v8798, %v8797
    %v8810 = vpack.c.b16 %v8800, %v8799
    %v8811 = vpack.c.b16 %v8802, %v8801
    %v8812 = vpack.c.b16 %v8804, %v8803
    %8821 = vmatprep.subr.bf16.mxu0 0
    %8822 = vmatpush1.bf16.msra.mxu0 %v8805
    %8823 = vmatprep.subr.bf16.mxu0 0
    %8824 = vmatpush1.bf16.msra.mxu0 %v8806
    %8825 = vmatprep.subr.bf16.mxu0 0
    %8826 = vmatpush1.bf16.msra.mxu0 %v8807
    %8827 = vmatprep.subr.bf16.mxu0 0
    %8828 = vmatpush1.bf16.msra.mxu0 %v8808
    %8829 = vmatprep.subr.bf16.mxu0 0
    %8830 = vmatpush1.bf16.msra.mxu0 %v8809
    %8831 = vmatprep.subr.bf16.mxu0 0
    %8832 = vmatpush1.bf16.msra.mxu0 %v8810
    %8833 = vmatprep.subr.bf16.mxu0 0
    %8834 = vmatpush1.bf16.msra.mxu0 %v8811
    %8835 = vmatprep.subr.bf16.mxu0 0
    %8836 = vmatpush1.bf16.msra.mxu0 %v8812
    %8837 = vmatprep.subr.bf16.mxu0 0
    %8838 = vmatpush1.bf16.msra.mxu0 0
    %8839 = vmatprep.subr.bf16.mxu0 0
    %8840 = vmatpush1.bf16.msra.mxu0 0
    %8841 = vmatprep.subr.bf16.mxu0 0
    %8842 = vmatpush1.bf16.msra.mxu0 0
    %8843 = vmatprep.subr.bf16.mxu0 0
    %8844 = vmatpush1.bf16.msra.mxu0 0
    %8845 = vmatprep.subr.bf16.mxu0 0
    %8846 = vmatpush1.bf16.msra.mxu0 0
    %8847 = vmatprep.subr.bf16.mxu0 0
    %8848 = vmatpush1.bf16.msra.mxu0 0
    %8849 = vmatprep.subr.bf16.mxu0 0
    %8850 = vmatpush1.bf16.msra.mxu0 0
    %8851 = vmatprep.subr.bf16.mxu0 0
    %8852 = vmatpush1.bf16.msra.mxu0 0
    %8853 = vmatprep.mubr.bf16.mxu0 0
    %8854 = vmatmul.mubr.bf16.gmra.mrb[0].mxu0 %v8769
    %v8855 = vpop.f32.mrb[0].mxu0
    %v8856 = vadd.f32 %v8747, %v8855
    %v8857 = vpop.f32.mrb[0].mxu0
    %v8858 = vpop.f32.mrb[0].mxu0
    %v8859 = vadd.f32 %v8750, %v8858
    %v8860 = vpop.f32.mrb[0].mxu0
    %8861 = vmatprep.mubr.bf16.mxu0 0
    %8862 = vmatmul.mubr.bf16.gmra.mrb[0].mxu0 %v8770
    %v8863 = vpop.f32.mrb[0].mxu0
    %v8864 = vadd.f32 %v8755, %v8863
    %v8865 = vpop.f32.mrb[0].mxu0
    %v8866 = vpop.f32.mrb[0].mxu0
    %v8867 = vadd.f32 %v8758, %v8866
    %v8868 = vpop.f32.mrb[0].mxu0
    %8869 = vdwg.mxu0
    %v8870 = vld [vmem:[#allocation2] sm:$0xe]
    %v8871 = vld [vmem:[#allocation2 + $0xc] sm:$0xe]
    %v8876 = vrot.slane %v8870, 5
    %v8877 = vrot.slane %v8876, 4
    %v8878 = vrot.slane %v8570, 5
    %v8879 = vsel %vm901, %v8877, %v8878
    %v8880 = vrot.slane %v8878, 4
    %v8881 = vrot.slane %v8589, 5
    %v8882 = vsel %vm901, %v8880, %v8881
    %v8883 = vrot.slane %v8871, 5
    %v8884 = vrot.slane %v8883, 4
    %v8885 = vrot.slane %v8572, 5
    %v8886 = vsel %vm901, %v8884, %v8885
    %v8887 = vrot.slane %v8885, 4
    %v8888 = vrot.slane %v8590, 5
    %v8889 = vsel %vm901, %v8887, %v8888
    %s8890 = scalar_lea.vmem [#allocation39], 128
    %v8891 = vld [vmem:[%s8890] sm:$0xf]
    %v8892 = vld [vmem:[%s8890 + $0x4] sm:$0xf]
    %v8893 = vld [vmem:[%s8890 + $0x8] sm:$0xf]
    %v8894 = vld [vmem:[%s8890 + $0xc] sm:$0xf]
    %v8895 = vld [vmem:[%s8890 + $0x10] sm:$0xf]
    %v8896 = vld [vmem:[%s8890 + $0x14] sm:$0xf]
    %v8897 = vld [vmem:[%s8890 + $0x18] sm:$0xf]
    %v8898 = vld [vmem:[%s8890 + $0x1c] sm:$0xf]
    %v8899 = vld [vmem:[%s8890 + $0x20] sm:$0xf]
    %v8900 = vld [vmem:[%s8890 + $0x24] sm:$0xf]
    %v8901 = vld [vmem:[%s8890 + $0x28] sm:$0xf]
    %v8902 = vld [vmem:[%s8890 + $0x2c] sm:$0xf]
    %v8903 = vld [vmem:[%s8890 + $0x30] sm:$0xf]
    %v8904 = vld [vmem:[%s8890 + $0x34] sm:$0xf]
    %v8905 = vld [vmem:[%s8890 + $0x38] sm:$0xf]
    %v8906 = vld [vmem:[%s8890 + $0x3c] sm:$0xf]
    %v8907 = vunpack.c.l.b16 %v8879
    %v8908 = vunpack.c.l.b16 %v8882
    %v8909 = vunpack.c.l.b16 %v8886
    %v8910 = vunpack.c.l.b16 %v8889
    %v8911 = vpack.c.b16 %v8908, %v8907
    %v8912 = vpack.c.b16 %v8910, %v8909
    %v8931 = vunpack.c.l.b16 %v8891
    %v8932 = vunpack.c.l.b16 %v8892
    %v8933 = vunpack.c.l.b16 %v8893
    %v8934 = vunpack.c.l.b16 %v8894
    %v8935 = vunpack.c.l.b16 %v8895
    %v8936 = vunpack.c.l.b16 %v8896
    %v8937 = vunpack.c.l.b16 %v8897
    %v8938 = vunpack.c.l.b16 %v8898
    %v8939 = vunpack.c.l.b16 %v8899
    %v8940 = vunpack.c.l.b16 %v8900
    %v8941 = vunpack.c.l.b16 %v8901
    %v8942 = vunpack.c.l.b16 %v8902
    %v8943 = vunpack.c.l.b16 %v8903
    %v8944 = vunpack.c.l.b16 %v8904
    %v8945 = vunpack.c.l.b16 %v8905
    %v8946 = vunpack.c.l.b16 %v8906
    %v8947 = vpack.c.b16 %v8932, %v8931
    %v8948 = vpack.c.b16 %v8934, %v8933
    %v8949 = vpack.c.b16 %v8936, %v8935
    %v8950 = vpack.c.b16 %v8938, %v8937
    %v8951 = vpack.c.b16 %v8940, %v8939
    %v8952 = vpack.c.b16 %v8942, %v8941
    %v8953 = vpack.c.b16 %v8944, %v8943
    %v8954 = vpack.c.b16 %v8946, %v8945
    %8963 = vmatprep.subr.bf16.mxu0 0
    %8964 = vmatpush1.bf16.msra.mxu0 %v8947
    %8965 = vmatprep.subr.bf16.mxu0 0
    %8966 = vmatpush1.bf16.msra.mxu0 %v8948
    %8967 = vmatprep.subr.bf16.mxu0 0
    %8968 = vmatpush1.bf16.msra.mxu0 %v8949
    %8969 = vmatprep.subr.bf16.mxu0 0
    %8970 = vmatpush1.bf16.msra.mxu0 %v8950
    %8971 = vmatprep.subr.bf16.mxu0 0
    %8972 = vmatpush1.bf16.msra.mxu0 %v8951
    %8973 = vmatprep.subr.bf16.mxu0 0
    %8974 = vmatpush1.bf16.msra.mxu0 %v8952
    %8975 = vmatprep.subr.bf16.mxu0 0
    %8976 = vmatpush1.bf16.msra.mxu0 %v8953
    %8977 = vmatprep.subr.bf16.mxu0 0
    %8978 = vmatpush1.bf16.msra.mxu0 %v8954
    %8979 = vmatprep.subr.bf16.mxu0 0
    %8980 = vmatpush1.bf16.msra.mxu0 0
    %8981 = vmatprep.subr.bf16.mxu0 0
    %8982 = vmatpush1.bf16.msra.mxu0 0
    %8983 = vmatprep.subr.bf16.mxu0 0
    %8984 = vmatpush1.bf16.msra.mxu0 0
    %8985 = vmatprep.subr.bf16.mxu0 0
    %8986 = vmatpush1.bf16.msra.mxu0 0
    %8987 = vmatprep.subr.bf16.mxu0 0
    %8988 = vmatpush1.bf16.msra.mxu0 0
    %8989 = vmatprep.subr.bf16.mxu0 0
    %8990 = vmatpush1.bf16.msra.mxu0 0
    %8991 = vmatprep.subr.bf16.mxu0 0
    %8992 = vmatpush1.bf16.msra.mxu0 0
    %8993 = vmatprep.subr.bf16.mxu0 0
    %8994 = vmatpush1.bf16.msra.mxu0 0
    %8995 = vmatprep.mubr.bf16.mxu0 0
    %8996 = vmatmul.mubr.bf16.gmra.mrb[0].mxu0 %v8911
    %v8997 = vpop.f32.mrb[0].mxu0
    %v8998 = vadd.f32 0.0, %v8997
    %v8999 = vpop.f32.mrb[0].mxu0
    %v9000 = vpop.f32.mrb[0].mxu0
    %v9001 = vadd.f32 0.0, %v9000
    %v9002 = vpop.f32.mrb[0].mxu0
    %9003 = vmatprep.mubr.bf16.mxu0 0
    %9004 = vmatmul.mubr.bf16.gmra.mrb[0].mxu0 %v8912
    %v9005 = vpop.f32.mrb[0].mxu0
    %v9006 = vadd.f32 0.0, %v9005
    %v9007 = vpop.f32.mrb[0].mxu0
    %v9008 = vpop.f32.mrb[0].mxu0
    %v9009 = vadd.f32 0.0, %v9008
    %v9010 = vpop.f32.mrb[0].mxu0
    %9011 = vdwg.mxu0
    %v9012 = vadd.f32 %v8856, %v8998
    %v9013 = vadd.f32 %v8859, %v9001
    %v9014 = vadd.f32 %v8864, %v9006
    %v9015 = vadd.f32 %v8867, %v9009
    %v9016 = vld [vmem:[#allocation41] sm:$0x1]
    %v9018 = vlaneseq
    %v9019 = vshrl.u32 %v9018, 7
    %v9020 = vsub.s32 0, %v9019
    %v9021 = vrot.slane %v9016, %v9020
    %v9023 = vmul.f32 %v9012, %v9021
    %v9024 = vmul.f32 %v9013, %v9021
    %v9025 = vmul.f32 %v9014, %v9021
    %v9026 = vmul.f32 %v9015, %v9021
    %v9027 = vld [vmem:[#allocation42] sm:$0x1]
    %v9029 = vlaneseq
    %v9030 = vshrl.u32 %v9029, 7
    %v9031 = vsub.s32 0, %v9030
    %v9032 = vrot.slane %v9027, %v9031
    %v9034 = vadd.f32 %v9023, %v9032
    %v9035 = vadd.f32 %v9024, %v9032
    %v9036 = vadd.f32 %v9025, %v9032
    %v9037 = vadd.f32 %v9026, %v9032
    %v9038 = vld [vmem:[#allocation44] sm:$0x1]
    %v9040 = vlaneseq
    %v9041 = vshrl.u32 %v9040, 7
    %v9042 = vsub.s32 0, %v9041
    %v9043 = vrot.slane %v9038, %v9042
    %v9045 = vmul.f32 %v6297, %v9043
    %v9046 = vmul.f32 %v6298, %v9043
    %v9047 = vmul.f32 %v6299, %v9043
    %v9048 = vmul.f32 %v6300, %v9043
    %v9049 = vld [vmem:[#allocation45] sm:$0x1]
    %v9051 = vlaneseq
    %v9052 = vshrl.u32 %v9051, 7
    %v9053 = vsub.s32 0, %v9052
    %v9054 = vrot.slane %v9049, %v9053
    %v9056 = vadd.f32 %v9045, %v9054
    %v9057 = vadd.f32 %v9046, %v9054
    %v9058 = vadd.f32 %v9047, %v9054
    %v9059 = vadd.f32 %v9048, %v9054
    %v9060 = vadd.f32 %v9034, %v9056
    %v9061 = vadd.f32 %v9035, %v9057
    %v9062 = vadd.f32 %v9036, %v9058
    %v9063 = vadd.f32 %v9037, %v9059
    %v9064 = vmax.f32 %v9060, 0.0
    %v9065 = vmax.f32 %v9061, 0.0
    %v9066 = vmax.f32 %v9062, 0.0
    %v9067 = vmax.f32 %v9063, 0.0
    %v9068 = vadd.f32 %v9064, %v9065
    %v9069 = vrot.slane %v9068, 4
    %v9070 = vadd.f32 %v9068, %v9069
    %v9071 = vrot.slane %v9070, 2
    %v9072 = vadd.f32 %v9070, %v9071
    %v9073 = vrot.slane %v9072, 1
    %v9074 = vadd.f32 %v9072, %v9073
    %v9075 = vadd.f32 %v9066, %v9067
    %v9076 = vrot.slane %v9075, 4
    %v9077 = vadd.f32 %v9075, %v9076
    %v9078 = vrot.slane %v9077, 2
    %v9079 = vadd.f32 %v9077, %v9078
    %v9080 = vrot.slane %v9079, 1
    %v9081 = vadd.f32 %v9079, %v9080
    %v9082 = vrcp.pop 16.0
    %v9083 = vmul.f32 %v9074, %v9082
    %v9084 = vmul.f32 %v9081, %v9082
    %v9085 = vld [vmem:[%s73] sm:$0xff]
    %v9086 = vld [vmem:[%s73 + $0x8] sm:$0xff]
    %v9087 = vld [vmem:[%s73 + $0x10] sm:$0xff]
    %v9088 = vld [vmem:[%s73 + $0x18] sm:$0xff]
    %v9089 = vld [vmem:[%s73 + $0x20] sm:$0xff]
    %v9090 = vld [vmem:[%s73 + $0x28] sm:$0xff]
    %v9091 = vld [vmem:[%s73 + $0x30] sm:$0xff]
    %v9092 = vld [vmem:[%s73 + $0x38] sm:$0xff]
    %v9093 = vld [vmem:[%s73 + $0x40] sm:$0xff]
    %v9094 = vld [vmem:[%s73 + $0x48] sm:$0xff]
    %v9095 = vld [vmem:[%s73 + $0x50] sm:$0xff]
    %v9096 = vld [vmem:[%s73 + $0x58] sm:$0xff]
    %v9097 = vld [vmem:[%s73 + $0x60] sm:$0xff]
    %v9098 = vld [vmem:[%s73 + $0x68] sm:$0xff]
    %v9099 = vld [vmem:[%s73 + $0x70] sm:$0xff]
    %v9100 = vld [vmem:[%s73 + $0x78] sm:$0xff]
    %v9101 = vld [vmem:[%s75] sm:$0x1]
    %v9103 = vlaneseq
    %v9104 = vshrl.u32 %v9103, 7
    %v9105 = vsub.s32 0, %v9104
    %v9106 = vrot.slane %v9101, %v9105
    %vm9110 = vcmask 1041409
    %v9111 = vsel %vm9110, %v9084, %v9083
    %9113 = vmatprep.subr.mxu0 0.0
    %9114 = vmatpush1.msra.mxu0 %v9085
    %9115 = vmatprep.subr.mxu0 0.0
    %9116 = vmatpush1.msra.mxu0 %v9086
    %9117 = vmatprep.subr.mxu0 0.0
    %9118 = vmatpush1.msra.mxu0 %v9087
    %9119 = vmatprep.subr.mxu0 0.0
    %9120 = vmatpush1.msra.mxu0 %v9088
    %9121 = vmatprep.subr.mxu0 0.0
    %9122 = vmatpush1.msra.mxu0 %v9089
    %9123 = vmatprep.subr.mxu0 0.0
    %9124 = vmatpush1.msra.mxu0 %v9090
    %9125 = vmatprep.subr.mxu0 0.0
    %9126 = vmatpush1.msra.mxu0 %v9091
    %9127 = vmatprep.subr.mxu0 0.0
    %9128 = vmatpush1.msra.mxu0 %v9092
    %9129 = vmatprep.subr.mxu0 0.0
    %9130 = vmatpush1.msra.mxu0 %v9093
    %9131 = vmatprep.subr.mxu0 0.0
    %9132 = vmatpush1.msra.mxu0 %v9094
    %9133 = vmatprep.subr.mxu0 0.0
    %9134 = vmatpush1.msra.mxu0 %v9095
    %9135 = vmatprep.subr.mxu0 0.0
    %9136 = vmatpush1.msra.mxu0 %v9096
    %9137 = vmatprep.subr.mxu0 0.0
    %9138 = vmatpush1.msra.mxu0 %v9097
    %9139 = vmatprep.subr.mxu0 0.0
    %9140 = vmatpush1.msra.mxu0 %v9098
    %9141 = vmatprep.subr.mxu0 0.0
    %9142 = vmatpush1.msra.mxu0 %v9099
    %9143 = vmatprep.subr.mxu0 0.0
    %9144 = vmatpush1.msra.mxu0 %v9100
    %9145 = vmatprep.subr.mxu0 0.0
    %9146 = vmatpush1.msra.mxu0 0.0
    %9147 = vmatprep.subr.mxu0 0.0
    %9148 = vmatpush1.msra.mxu0 0.0
    %9149 = vmatprep.subr.mxu0 0.0
    %9150 = vmatpush1.msra.mxu0 0.0
    %9151 = vmatprep.subr.mxu0 0.0
    %9152 = vmatpush1.msra.mxu0 0.0
    %9153 = vmatprep.subr.mxu0 0.0
    %9154 = vmatpush1.msra.mxu0 0.0
    %9155 = vmatprep.subr.mxu0 0.0
    %9156 = vmatpush1.msra.mxu0 0.0
    %9157 = vmatprep.subr.mxu0 0.0
    %9158 = vmatpush1.msra.mxu0 0.0
    %9159 = vmatprep.subr.mxu0 0.0
    %9160 = vmatpush1.msra.mxu0 0.0
    %9161 = vmatprep.subr.mxu0 0.0
    %9162 = vmatpush1.msra.mxu0 0.0
    %9163 = vmatprep.subr.mxu0 0.0
    %9164 = vmatpush1.msra.mxu0 0.0
    %9165 = vmatprep.subr.mxu0 0.0
    %9166 = vmatpush1.msra.mxu0 0.0
    %9167 = vmatprep.subr.mxu0 0.0
    %9168 = vmatpush1.msra.mxu0 0.0
    %9169 = vmatprep.subr.mxu0 0.0
    %9170 = vmatpush1.msra.mxu0 0.0
    %9171 = vmatprep.subr.mxu0 0.0
    %9172 = vmatpush1.msra.mxu0 0.0
    %9173 = vmatprep.subr.mxu0 0.0
    %9174 = vmatpush1.msra.mxu0 0.0
    %9175 = vmatprep.subr.mxu0 0.0
    %9176 = vmatpush1.msra.mxu0 0.0
    %9177 = vmatprep.mubr.f32.mxu0 0.0
    %9178 = vmatmul.mubr.f32.gmra.mrb[0].mxu0 %v9111
    %v9179 = vpop.f32.mrb[0].mxu0
    %v9180 = vadd.f32 %v9106, %v9179
    %v9181 = vpop.f32.mrb[0].mxu0
    %9182 = vdwg.mxu0
    %vm9183 = vcmask 1041408
    %v9184 = vsel %vm9183, %v9180, -inf
    %9185 = vmax.xlane.f32.xlu0 %v9184
    %v9186 = vpop.xlane.xlu0 %9185
    %v9187 = vsub.f32 %v9180, %v9186
    %v9188 = vmul.f32 %v9187, 1.442695
    %v9189 = vpow.pop %v9188
    %v9190 = vsel %vm9183, %v9189, 0.0
    %9191 = vadd.xlane.f32.xlu0 %v9190
    %v9192 = vpop.xlane.xlu0 %9191
    %v9193 = vrcp.pop %v9192
    %v9194 = vmul.f32 %v9189, %v9193
    %vm9195 = vcmask 41984
    %9196 = vst.msk [vmem:[#allocation47] sm:$0x3] %vm9195, %v9194
    // Predicated region
    $region266: #{tpu_custom_call.1} parent=1 // pred_check
      _
    $region267: #{tpu_custom_call.1} parent=1 // pred_check_branch
      %9198 = sbr.rel (0) target = $region269
    $region268: #{tpu_custom_call.1} parent=1 // pred_region
      %s9200 = ssub.s32 32, 32
      %9201 = vsyncadd [#allocation5], %s9200
      %s9203 = sshll.u32 [#allocation47], 4
      %s9204 = int_to_ptr.vmem [resolvable:$true] %s9203
      %9206 = dma.vmem_to_hbm [thread:$0]  %s9204, 32, %s77, [#allocation5]
    $region269: #{tpu_custom_call.1} parent=1 // pred_fallthru
      _
    // Predicated region
    $region270: #{tpu_custom_call.1} parent=1 // pred_check
      _
    $region271: #{tpu_custom_call.1} parent=1 // pred_check_branch
      %9208 = sbr.rel (0) target = $region273
    $region272: #{tpu_custom_call.1} parent=1 // pred_region
      %9209 = dma.done [#allocation5], 32
    $region273: #{tpu_custom_call.1} parent=1 // pred_fallthru
      _
    %9210 = vsyncpa [#allocation4], 1
    %9211 = vsyncpa [#allocation7], 1
    %9212 = vsyncpa [#allocation10], 1
    %9213 = vsyncpa [#allocation13], 1
    %9214 = vsyncpa [#allocation16], 1
    %9215 = vsyncpa [#allocation19], 1
    %9216 = vsyncpa [#allocation22], 1
    %9217 = vsyncpa [#allocation25], 1
    %9218 = vsyncpa [#allocation28], 1
    %9219 = vsyncpa [#allocation31], 1
    %9220 = vsyncpa [#allocation34], 1
    %9221 = vsyncpa [#allocation37], 1
    %9222 = vsyncpa [#allocation40], 1
    %9223 = vsyncpa [#allocation43], 1
    %9224 = vsyncpa [#allocation46], 1
    %9225 = vsyncpa [#allocation5], 1

</llo_original>
